<compile_context>
chip_gen: v7x
topology: tpu7x:2x2x1
jax: 0.10.0
libtpu: 0.0.40
codegen_flags: <defaults>
</compile_context>

<pallas_src>
import functools

import numpy as np
import jax
import jax.numpy as jnp
from jax.experimental import pallas as pl
from jax.experimental.pallas import tpu as pltpu

# ----------------------------- static geometry -----------------------------
H_IMG = 48                        # input spatial size implied by fc1 = 16*9*9
HW = H_IMG * H_IMG                # 2304 flat spatial grid (shared by both convs)
ACC_W = HW + 128                  # 2432 conv-accumulator width (pool-shift headroom)
WIN = HW + 640                    # 2944 padded width for tap-shift headroom (in VMEM)
C_PAD = 8                         # input channels padded to one f32 sublane group
KK = 5                            # conv kernel size
KDIM = KK * KK * C_PAD            # 200
KDIM_P = KDIM + C_PAD             # 208, multiple of 16 -> whole bf16 sublane tiles
P2 = 9                            # pooled spatial size after conv2
K_SEL = 1664                      # 13*128 columns fed to the selection matmul
N_PAD = 128                       # lane-dense width for FC / feature blocks
VMEM_LIMIT = 32 * 1024 * 1024

# Tap shifts on the flat 48-wide grid: conv1 output pixel (h,w) lives at column
# 48h+w; conv2 operates on conv1's pooled pixels which live at columns 96a+2b.
TAPS1 = tuple(H_IMG * i + j for i in range(KK) for j in range(KK))
TAPS2 = tuple(2 * H_IMG * i + 2 * j for i in range(KK) for j in range(KK))

# Static invariants (tap headroom, pool headroom, garbage-column avoidance).
assert max(TAPS1) + ACC_W <= WIN and max(TAPS2) + ACC_W <= WIN
assert HW + H_IMG + 1 <= ACC_W and HW + 2 * H_IMG + 2 <= ACC_W
_LAST_SEL_COL = 4 * H_IMG * (P2 - 1) + 4 * (P2 - 1)           # 1568
assert _LAST_SEL_COL < K_SEL
assert _LAST_SEL_COL + 2 * H_IMG + 2 <= HW                    # conv2 pool reads stay valid


def _build_sel2():
    """(K_SEL, 128) 0/1 selection: conv2's pooled pixel (p,q) sits at flat column
    192p+4q; compact it to PyTorch flatten order 9p+q (lane-dense, zero-padded)."""
    sel = np.zeros((K_SEL, N_PAD), np.float32)
    for p in range(P2):
        for q in range(P2):
            sel[4 * H_IMG * p + 4 * q, P2 * p + q] = 1.0
    return sel


# ----------------------------- Pallas kernels ------------------------------
def _conv_relu_pool(x_ref, w_ref, b_ref, taps, pool_w, pool_h):
    """5x5 valid conv + bias + ReLU + fused 2x2/2 max-pool for one image.

    x_ref block: (1, 8, HW) f32.  w_ref: (co, KDIM_P) bf16.  b_ref: (co, 1) f32.
    Returns the pooled map (co, HW) f32 on the flat 48-wide grid.
    """
    x = x_ref[0]                                               # (8, 2304) f32
    # Re-create the 640-column tap headroom in VMEM (lane-aligned concat of zeros).
    x = jnp.concatenate([x, jnp.zeros((C_PAD, WIN - HW), x.dtype)], axis=1)
    # In-VMEM im2col: 25 statically shifted (8, 2432) views + one zero block to pad
    # K to 208, stacked on sublanes, then cast once to bf16 for the MXU.
    pieces = [x[:, s:s + ACC_W] for s in taps]
    pieces.append(jnp.zeros((C_PAD, ACC_W), x.dtype))
    patches = jnp.concatenate(pieces, axis=0).astype(jnp.bfloat16)   # (208, 2432)
    # One bf16 MXU matmul producing only the real output-channel rows, f32 accum.
    acc = jnp.dot(w_ref[...], patches, preferred_element_type=jnp.float32)
    y = jnp.maximum(acc + b_ref[...], 0.0)                     # bias + ReLU (co, 2432)
    # Fused 2x2/2 max-pool via shifted-slice maxima (pooled value lands at the
    # column of its top-left element; garbage columns are never read downstream).
    w_r1 = HW + pool_h
    r1 = jnp.maximum(y[:, :w_r1], y[:, pool_w:pool_w + w_r1])
    return jnp.maximum(r1[:, :HW], r1[:, pool_h:pool_h + HW])  # (co, HW)


def _conv1_kernel(x_ref, w_ref, b_ref, o_ref):
    r2 = _conv_relu_pool(x_ref, w_ref, b_ref, TAPS1, 1, H_IMG)       # (8, 2304) f32
    o_ref[0] = r2.astype(o_ref.dtype)                                # dense store


def _conv2_kernel(x_ref, w_ref, b_ref, s_ref, o_ref):
    r2 = _conv_relu_pool(x_ref, w_ref, b_ref, TAPS2, 2, 2 * H_IMG)   # (16, 2304) f32
    # Compact to PyTorch flatten order with a small bf16 selection matmul over only
    # the 1664 columns that can hold valid pooled pixels; output is lane-dense.
    feat = jnp.dot(r2[:, :K_SEL].astype(jnp.bfloat16), s_ref[...],
                   preferred_element_type=jnp.float32)               # (16, 128)
    o_ref[0] = feat.astype(o_ref.dtype)


def _mlp_kernel(x_ref, w1_ref, b1_ref, w2_ref, b2_ref, w3_ref, b3_ref, o_ref):
    """fc1 -> ReLU -> fc2 -> ReLU -> fc3 fused; bf16 MXU operands, f32 accum."""
    h = jnp.dot(x_ref[...], w1_ref[...], preferred_element_type=jnp.float32)
    h = jnp.maximum(h + b1_ref[...], 0.0)
    h = jnp.dot(h.astype(jnp.bfloat16), w2_ref[...],
                preferred_element_type=jnp.float32)
    h = jnp.maximum(h + b2_ref[...], 0.0)
    out = jnp.dot(h.astype(jnp.bfloat16), w3_ref[...],
                  preferred_element_type=jnp.float32) + b3_ref[...]
    o_ref[...] = out.astype(o_ref.dtype)


# ------------------------------ wrappers ------------------------------------
def _conv_stage(kernel, x, w, b, sel, out_tail, out_dtype):
    """Grid over batch; weights/bias/sel are resident full blocks."""
    B = x.shape[0]
    in_specs = [pl.BlockSpec((1,) + x.shape[1:], lambda i: (i, 0, 0)),
                pl.BlockSpec(w.shape, lambda i: (0, 0)),
                pl.BlockSpec(b.shape, lambda i: (0, 0))]
    args = [x, w, b]
    if sel is not None:
        in_specs.append(pl.BlockSpec(sel.shape, lambda i: (0, 0)))
        args.append(sel)
    return pl.pallas_call(
        kernel,
        grid=(B,),
        in_specs=in_specs,
        out_specs=pl.BlockSpec((1,) + out_tail, lambda i: (i, 0, 0)),
        out_shape=jax.ShapeDtypeStruct((B,) + out_tail, out_dtype),
        compiler_params=pltpu.CompilerParams(
            dimension_semantics=("parallel",),       # megacore over batch on v7x
            vmem_limit_bytes=VMEM_LIMIT),
    )(*args)


def _round_up(n, m):
    return (n + m - 1) // m * m


def mlp_fused(x, w1, b1, w2, b2, w3, b3):
    """x: (B, 2048) bf16 -> (B, 128) f32 padded logits, tiled over batch rows."""
    B, K = x.shape
    tm = min(128, _round_up(B, 8))
    bp = _round_up(B, tm)
    if bp != B:
        x = jnp.pad(x, ((0, bp - B), (0, 0)))
    full = lambda a: pl.BlockSpec(a.shape, lambda i: (0, 0))
    out = pl.pallas_call(
        _mlp_kernel,
        grid=(bp // tm,),
        in_specs=[pl.BlockSpec((tm, K), lambda i: (i, 0)),
                  full(w1), full(b1), full(w2), full(b2), full(w3), full(b3)],
        out_specs=pl.BlockSpec((tm, N_PAD), lambda i: (i, 0)),
        out_shape=jax.ShapeDtypeStruct((bp, N_PAD), jnp.float32),
        compiler_params=pltpu.CompilerParams(
            dimension_semantics=("parallel",),
            vmem_limit_bytes=VMEM_LIMIT),
    )(x, w1, b1, w2, b2, w3, b3)
    return out[:B]


# ------------------------------ parameters ----------------------------------
def init_params(key, class_number):
    """PyTorch-style uniform(-1/sqrt(fan_in), 1/sqrt(fan_in)) initialization."""
    ks = jax.random.split(key, 10)

    def u(k, shape, fan_in):
        bound = 1.0 / jnp.sqrt(jnp.float32(fan_in))
        return jax.random.uniform(k, shape, jnp.float32, -bound, bound)

    return {
        "conv1_w": u(ks[0], (6, 3, 5, 5), 3 * 25),
        "conv1_b": u(ks[1], (6,), 3 * 25),
        "conv2_w": u(ks[2], (16, 6, 5, 5), 6 * 25),
        "conv2_b": u(ks[3], (16,), 6 * 25),
        "fc1_w": u(ks[4], (120, 16 * P2 * P2), 16 * P2 * P2),
        "fc1_b": u(ks[5], (120,), 16 * P2 * P2),
        "fc2_w": u(ks[6], (84, 120), 120),
        "fc2_b": u(ks[7], (84,), 120),
        "fc3_w": u(ks[8], (class_number, 84), 84),
        "fc3_b": u(ks[9], (class_number,), 84),
    }


def _pack_conv_weight(w, co_rows):
    co, ci, kh, kw = w.shape
    w = jnp.transpose(w, (0, 2, 3, 1))                               # (co, kh, kw, ci)
    w = jnp.pad(w, ((0, co_rows - co), (0, 0), (0, 0), (0, C_PAD - ci)))
    w = w.reshape(co_rows, kh * kw * C_PAD)                          # (co_rows, 200)
    w = jnp.pad(w, ((0, 0), (0, KDIM_P - kh * kw * C_PAD)))          # (co_rows, 208)
    return w.astype(jnp.bfloat16)


def _pack_bias_col(b, rows):
    return jnp.pad(b, (0, rows - b.shape[0])).reshape(rows, 1).astype(jnp.float32)


def _pack_bias_row(b):
    return jnp.pad(b, (0, N_PAD - b.shape[0])).reshape(1, N_PAD).astype(jnp.float32)


def _pack_fc1(w):
    """(120, 1296) -> (16*128, 128): rows follow the lane-dense feature layout
    (channel c, padded column 9p+q), columns are the padded output units."""
    w = w.reshape(120, 16, P2 * P2)
    w = jnp.pad(w, ((0, N_PAD - 120), (0, 0), (0, N_PAD - P2 * P2)))  # (128,16,128)
    return w.transpose(1, 2, 0).reshape(16 * N_PAD, N_PAD).astype(jnp.bfloat16)


def _pack_fc(w):
    wt = w.T
    wt = jnp.pad(wt, ((0, N_PAD - wt.shape[0]), (0, N_PAD - wt.shape[1])))
    return wt.astype(jnp.bfloat16)


def prepare_params(p):
    """One-time packing: bf16 MXU operands, channel/feature dims padded (8/16, 128)."""
    return {
        "c1w": _pack_conv_weight(p["conv1_w"], 8),
        "c1b": _pack_bias_col(p["conv1_b"], 8),
        "c2w": _pack_conv_weight(p["conv2_w"], 16),
        "c2b": _pack_bias_col(p["conv2_b"], 16),
        "sel2": jnp.asarray(_build_sel2()).astype(jnp.bfloat16),
        "f1w": _pack_fc1(p["fc1_w"]), "f1b": _pack_bias_row(p["fc1_b"]),
        "f2w": _pack_fc(p["fc2_w"]), "f2b": _pack_bias_row(p["fc2_b"]),
        "f3w": _pack_fc(p["fc3_w"]), "f3b": _pack_bias_row(p["fc3_b"]),
    }


# ------------------------------ forward pass --------------------------------
def simple_convnet_forward(pp, x, class_number):
    B = x.shape[0]
    # Only the tiny channel pad (3 -> 8) remains outside the kernels; the 640-column
    # tap headroom and the inter-stage pad are re-created in VMEM inside each kernel.
    xf = jnp.pad(x.reshape(B, 3, HW), ((0, 0), (0, C_PAD - 3), (0, 0)))
    a1 = _conv_stage(_conv1_kernel, xf, pp["c1w"], pp["c1b"], None,
                     (C_PAD, HW), jnp.float32)                 # (B, 8, 2304)
    feat = _conv_stage(_conv2_kernel, a1, pp["c2w"], pp["c2b"], pp["sel2"],
                       (16, N_PAD), jnp.bfloat16)              # (B, 16, 128) lane-dense
    feat = feat.reshape(B, 16 * N_PAD)                         # padded flatten order
    logits = mlp_fused(feat, pp["f1w"], pp["f1b"], pp["f2w"], pp["f2b"],
                       pp["f3w"], pp["f3b"])
    return logits[:, :class_number]


def reference_forward(p, x):
    """Pure-JAX/XLA f32 reference of the PyTorch module (numerical self-check)."""
    dn = ("NCHW", "OIHW", "NCHW")
    prec = jax.lax.Precision.HIGHEST

    def conv(v, w, b):
        y = jax.lax.conv_general_dilated(v, w, (1, 1), "VALID",
                                         dimension_numbers=dn, precision=prec)
        return jax.nn.relu(y + b[None, :, None, None])

    def pool(v):
        return jax.lax.reduce_window(v, -jnp.inf, jax.lax.max,
                                     (1, 1, 2, 2), (1, 1, 2, 2), "VALID")

    h = pool(conv(x, p["conv1_w"], p["conv1_b"]))
    h = pool(conv(h, p["conv2_w"], p["conv2_b"]))
    h = h.reshape(x.shape[0], -1)
    h = jax.nn.relu(jnp.matmul(h, p["fc1_w"].T, precision=prec) + p["fc1_b"])
    h = jax.nn.relu(jnp.matmul(h, p["fc2_w"].T, precision=prec) + p["fc2_b"])
    return jnp.matmul(h, p["fc3_w"].T, precision=prec) + p["fc3_b"]


if __name__ == "__main__":
    class_number = 10
    key = jax.random.PRNGKey(0)
    kx, kp = jax.random.split(key)
    x = jax.random.normal(kx, (2, 3, H_IMG, H_IMG), jnp.float32)
    raw = init_params(kp, class_number)
    pp = prepare_params(raw)

    fwd = jax.jit(functools.partial(simple_convnet_forward, class_number=class_number))
    out = jax.block_until_ready(fwd(pp, x))
    assert out.shape == (2, class_number), out.shape

    ref = jax.block_until_ready(jax.jit(reference_forward)(raw, x))
    max_err = float(jnp.max(jnp.abs(out - ref)))
    assert max_err < 2e-2, max_err

    print("KERNEL_OK")
</pallas_src>

<mosaic_0001>
module attributes {stable_mosaic.version = 11 : i64} {
  func.func @_conv1_kernel(%arg0: i32, %arg1: memref<1x8x2304xf32, #tpu.memory_space<vmem>>, %arg2: memref<8x208xbf16, #tpu.memory_space<vmem>>, %arg3: memref<8x1xf32, #tpu.memory_space<vmem>>, %arg4: memref<1x8x2304xf32, #tpu.memory_space<vmem>>) attributes {dimension_semantics = [#tpu.dimension_semantics<parallel>], iteration_bounds = array<i64: 2>, scalar_prefetch = 0 : i64, scratch_operands = 0 : i64, tpu.core_type = #tpu.core_type<tc>, window_params = [{transform_indices = @transform_0, window_bounds = array<i64: 1, 8, 2304>}, {pipeline_mode = #tpu.pipeline_mode<synchronous>, transform_indices = @transform_1, window_bounds = array<i64: 8, 208>}, {pipeline_mode = #tpu.pipeline_mode<synchronous>, transform_indices = @transform_2, window_bounds = array<i64: 8, 1>}, {transform_indices = @transform_3, window_bounds = array<i64: 1, 8, 2304>}]} {
    %c0 = arith.constant 0 : index
    %c0_0 = arith.constant 0 : index
    %c0_1 = arith.constant 0 : index
    %0 = vector.load %arg1[%c0, %c0_0, %c0_1] : memref<1x8x2304xf32, #tpu.memory_space<vmem>>, vector<1x8x2304xf32>
    %1 = vector.shape_cast %0 : vector<1x8x2304xf32> to vector<8x2304xf32>
    %cst = arith.constant 0.000000e+00 : f32
    %2 = vector.broadcast %cst : f32 to vector<8x640xf32>
    %3 = tpu.concatenate %1, %2 in 1 : vector<8x2304xf32>, vector<8x640xf32> -> vector<8x2944xf32>
    %4 = vector.extract_strided_slice %3 {offsets = [0, 0], sizes = [8, 2432], strides = [1, 1]} : vector<8x2944xf32> to vector<8x2432xf32>
    %5 = vector.extract_strided_slice %3 {offsets = [0, 1], sizes = [8, 2432], strides = [1, 1]} : vector<8x2944xf32> to vector<8x2432xf32>
    %6 = vector.extract_strided_slice %3 {offsets = [0, 2], sizes = [8, 2432], strides = [1, 1]} : vector<8x2944xf32> to vector<8x2432xf32>
    %7 = vector.extract_strided_slice %3 {offsets = [0, 3], sizes = [8, 2432], strides = [1, 1]} : vector<8x2944xf32> to vector<8x2432xf32>
    %8 = vector.extract_strided_slice %3 {offsets = [0, 4], sizes = [8, 2432], strides = [1, 1]} : vector<8x2944xf32> to vector<8x2432xf32>
    %9 = vector.extract_strided_slice %3 {offsets = [0, 48], sizes = [8, 2432], strides = [1, 1]} : vector<8x2944xf32> to vector<8x2432xf32>
    %10 = vector.extract_strided_slice %3 {offsets = [0, 49], sizes = [8, 2432], strides = [1, 1]} : vector<8x2944xf32> to vector<8x2432xf32>
    %11 = vector.extract_strided_slice %3 {offsets = [0, 50], sizes = [8, 2432], strides = [1, 1]} : vector<8x2944xf32> to vector<8x2432xf32>
    %12 = vector.extract_strided_slice %3 {offsets = [0, 51], sizes = [8, 2432], strides = [1, 1]} : vector<8x2944xf32> to vector<8x2432xf32>
    %13 = vector.extract_strided_slice %3 {offsets = [0, 52], sizes = [8, 2432], strides = [1, 1]} : vector<8x2944xf32> to vector<8x2432xf32>
    %14 = vector.extract_strided_slice %3 {offsets = [0, 96], sizes = [8, 2432], strides = [1, 1]} : vector<8x2944xf32> to vector<8x2432xf32>
    %15 = vector.extract_strided_slice %3 {offsets = [0, 97], sizes = [8, 2432], strides = [1, 1]} : vector<8x2944xf32> to vector<8x2432xf32>
    %16 = vector.extract_strided_slice %3 {offsets = [0, 98], sizes = [8, 2432], strides = [1, 1]} : vector<8x2944xf32> to vector<8x2432xf32>
    %17 = vector.extract_strided_slice %3 {offsets = [0, 99], sizes = [8, 2432], strides = [1, 1]} : vector<8x2944xf32> to vector<8x2432xf32>
    %18 = vector.extract_strided_slice %3 {offsets = [0, 100], sizes = [8, 2432], strides = [1, 1]} : vector<8x2944xf32> to vector<8x2432xf32>
    %19 = vector.extract_strided_slice %3 {offsets = [0, 144], sizes = [8, 2432], strides = [1, 1]} : vector<8x2944xf32> to vector<8x2432xf32>
    %20 = vector.extract_strided_slice %3 {offsets = [0, 145], sizes = [8, 2432], strides = [1, 1]} : vector<8x2944xf32> to vector<8x2432xf32>
    %21 = vector.extract_strided_slice %3 {offsets = [0, 146], sizes = [8, 2432], strides = [1, 1]} : vector<8x2944xf32> to vector<8x2432xf32>
    %22 = vector.extract_strided_slice %3 {offsets = [0, 147], sizes = [8, 2432], strides = [1, 1]} : vector<8x2944xf32> to vector<8x2432xf32>
    %23 = vector.extract_strided_slice %3 {offsets = [0, 148], sizes = [8, 2432], strides = [1, 1]} : vector<8x2944xf32> to vector<8x2432xf32>
    %24 = vector.extract_strided_slice %3 {offsets = [0, 192], sizes = [8, 2432], strides = [1, 1]} : vector<8x2944xf32> to vector<8x2432xf32>
    %25 = vector.extract_strided_slice %3 {offsets = [0, 193], sizes = [8, 2432], strides = [1, 1]} : vector<8x2944xf32> to vector<8x2432xf32>
    %26 = vector.extract_strided_slice %3 {offsets = [0, 194], sizes = [8, 2432], strides = [1, 1]} : vector<8x2944xf32> to vector<8x2432xf32>
    %27 = vector.extract_strided_slice %3 {offsets = [0, 195], sizes = [8, 2432], strides = [1, 1]} : vector<8x2944xf32> to vector<8x2432xf32>
    %28 = vector.extract_strided_slice %3 {offsets = [0, 196], sizes = [8, 2432], strides = [1, 1]} : vector<8x2944xf32> to vector<8x2432xf32>
    %cst_2 = arith.constant 0.000000e+00 : f32
    %29 = vector.broadcast %cst_2 : f32 to vector<8x2432xf32>
    %30 = tpu.concatenate %4, %5, %6, %7, %8, %9, %10, %11, %12, %13, %14, %15, %16, %17, %18, %19 in 0 : vector<8x2432xf32>, vector<8x2432xf32>, vector<8x2432xf32>, vector<8x2432xf32>, vector<8x2432xf32>, vector<8x2432xf32>, vector<8x2432xf32>, vector<8x2432xf32>, vector<8x2432xf32>, vector<8x2432xf32>, vector<8x2432xf32>, vector<8x2432xf32>, vector<8x2432xf32>, vector<8x2432xf32>, vector<8x2432xf32>, vector<8x2432xf32> -> vector<128x2432xf32>
    %31 = tpu.concatenate %20, %21, %22, %23, %24, %25, %26, %27, %28, %29 in 0 : vector<8x2432xf32>, vector<8x2432xf32>, vector<8x2432xf32>, vector<8x2432xf32>, vector<8x2432xf32>, vector<8x2432xf32>, vector<8x2432xf32>, vector<8x2432xf32>, vector<8x2432xf32>, vector<8x2432xf32> -> vector<80x2432xf32>
    %32 = tpu.concatenate %30, %31 in 0 : vector<128x2432xf32>, vector<80x2432xf32> -> vector<208x2432xf32>
    %33 = arith.truncf %32 : vector<208x2432xf32> to vector<208x2432xbf16>
    %c0_3 = arith.constant 0 : index
    %c0_4 = arith.constant 0 : index
    %34 = vector.load %arg2[%c0_3, %c0_4] : memref<8x208xbf16, #tpu.memory_space<vmem>>, vector<8x208xbf16>
    %cst_5 = arith.constant dense<0.000000e+00> : vector<8x2432xf32>
    %35 = tpu.matmul %34, %33, %cst_5 {dimension_numbers = #tpu.dot_dimension_numbers<[1], [0], [0], [1], [0, 0, 1, 1], [], []>} : vector<8x208xbf16>, vector<208x2432xbf16>, vector<8x2432xf32> -> vector<8x2432xf32>
    %c0_6 = arith.constant 0 : index
    %c0_7 = arith.constant 0 : index
    %36 = vector.load %arg3[%c0_6, %c0_7] : memref<8x1xf32, #tpu.memory_space<vmem>>, vector<8x1xf32>
    %37 = vector.broadcast %36 : vector<8x1xf32> to vector<8x2432xf32>
    %38 = arith.addf %35, %37 : vector<8x2432xf32>
    %cst_8 = arith.constant 0.000000e+00 : f32
    %39 = vector.broadcast %cst_8 : f32 to vector<8x2432xf32>
    %40 = arith.maximumf %38, %39 : vector<8x2432xf32>
    %41 = vector.extract_strided_slice %40 {offsets = [0, 0], sizes = [8, 2352], strides = [1, 1]} : vector<8x2432xf32> to vector<8x2352xf32>
    %42 = vector.extract_strided_slice %40 {offsets = [0, 1], sizes = [8, 2352], strides = [1, 1]} : vector<8x2432xf32> to vector<8x2352xf32>
    %43 = arith.maximumf %41, %42 : vector<8x2352xf32>
    %44 = vector.extract_strided_slice %43 {offsets = [0, 0], sizes = [8, 2304], strides = [1, 1]} : vector<8x2352xf32> to vector<8x2304xf32>
    %45 = vector.extract_strided_slice %43 {offsets = [0, 48], sizes = [8, 2304], strides = [1, 1]} : vector<8x2352xf32> to vector<8x2304xf32>
    %46 = arith.maximumf %44, %45 : vector<8x2304xf32>
    %c0_9 = arith.constant 0 : index
    %c0_10 = arith.constant 0 : index
    %c0_11 = arith.constant 0 : index
    %47 = vector.load %arg4[%c0_9, %c0_10, %c0_11] : memref<1x8x2304xf32, #tpu.memory_space<vmem>>, vector<1x8x2304xf32>
    %48 = vector.shape_cast %47 : vector<1x8x2304xf32> to vector<8x2304xf32>
    %49 = vector.shape_cast %46 : vector<8x2304xf32> to vector<1x8x2304xf32>
    tpu.vector_store %arg4[%c0_9, %c0_10, %c0_11], %49 {strides = array<i32>} : memref<1x8x2304xf32, #tpu.memory_space<vmem>>, vector<1x8x2304xf32>,
    return
  }
  func.func @transform_0(%arg0: i32) -> (i32, i32, i32) {
    %c0_i32 = arith.constant 0 : i32
    %c0_i32_0 = arith.constant 0 : i32
    %c0_i32_1 = arith.constant 0 : i32
    return %arg0, %c0_i32, %c0_i32_0 : i32, i32, i32
  }
  func.func @transform_1(%arg0: i32) -> (i32, i32) {
    %c0_i32 = arith.constant 0 : i32
    %c0_i32_0 = arith.constant 0 : i32
    %c0_i32_1 = arith.constant 0 : i32
    return %c0_i32, %c0_i32_0 : i32, i32
  }
  func.func @transform_2(%arg0: i32) -> (i32, i32) {
    %c0_i32 = arith.constant 0 : i32
    %c0_i32_0 = arith.constant 0 : i32
    %c0_i32_1 = arith.constant 0 : i32
    return %c0_i32, %c0_i32_0 : i32, i32
  }
  func.func @transform_3(%arg0: i32) -> (i32, i32, i32) {
    %c0_i32 = arith.constant 0 : i32
    %c0_i32_0 = arith.constant 0 : i32
    %c0_i32_1 = arith.constant 0 : i32
    return %arg0, %c0_i32, %c0_i32_0 : i32, i32, i32
  }
}

module attributes {stable_mosaic.version = 11 : i64} {
  func.func @_conv2_kernel(%arg0: i32, %arg1: memref<1x8x2304xf32, #tpu.memory_space<vmem>>, %arg2: memref<16x208xbf16, #tpu.memory_space<vmem>>, %arg3: memref<16x1xf32, #tpu.memory_space<vmem>>, %arg4: memref<1664x128xbf16, #tpu.memory_space<vmem>>, %arg5: memref<1x16x128xbf16, #tpu.memory_space<vmem>>) attributes {dimension_semantics = [#tpu.dimension_semantics<parallel>], iteration_bounds = array<i64: 2>, scalar_prefetch = 0 : i64, scratch_operands = 0 : i64, tpu.core_type = #tpu.core_type<tc>, window_params = [{transform_indices = @transform_0, window_bounds = array<i64: 1, 8, 2304>}, {pipeline_mode = #tpu.pipeline_mode<synchronous>, transform_indices = @transform_1, window_bounds = array<i64: 16, 208>}, {pipeline_mode = #tpu.pipeline_mode<synchronous>, transform_indices = @transform_2, window_bounds = array<i64: 16, 1>}, {pipeline_mode = #tpu.pipeline_mode<synchronous>, transform_indices = @transform_3, window_bounds = array<i64: 1664, 128>}, {transform_indices = @transform_4, window_bounds = array<i64: 1, 16, 128>}]} {
    %c0 = arith.constant 0 : index
    %c0_0 = arith.constant 0 : index
    %c0_1 = arith.constant 0 : index
    %0 = vector.load %arg1[%c0, %c0_0, %c0_1] : memref<1x8x2304xf32, #tpu.memory_space<vmem>>, vector<1x8x2304xf32>
    %1 = vector.shape_cast %0 : vector<1x8x2304xf32> to vector<8x2304xf32>
    %cst = arith.constant 0.000000e+00 : f32
    %2 = vector.broadcast %cst : f32 to vector<8x640xf32>
    %3 = tpu.concatenate %1, %2 in 1 : vector<8x2304xf32>, vector<8x640xf32> -> vector<8x2944xf32>
    %4 = vector.extract_strided_slice %3 {offsets = [0, 0], sizes = [8, 2432], strides = [1, 1]} : vector<8x2944xf32> to vector<8x2432xf32>
    %5 = vector.extract_strided_slice %3 {offsets = [0, 2], sizes = [8, 2432], strides = [1, 1]} : vector<8x2944xf32> to vector<8x2432xf32>
    %6 = vector.extract_strided_slice %3 {offsets = [0, 4], sizes = [8, 2432], strides = [1, 1]} : vector<8x2944xf32> to vector<8x2432xf32>
    %7 = vector.extract_strided_slice %3 {offsets = [0, 6], sizes = [8, 2432], strides = [1, 1]} : vector<8x2944xf32> to vector<8x2432xf32>
    %8 = vector.extract_strided_slice %3 {offsets = [0, 8], sizes = [8, 2432], strides = [1, 1]} : vector<8x2944xf32> to vector<8x2432xf32>
    %9 = vector.extract_strided_slice %3 {offsets = [0, 96], sizes = [8, 2432], strides = [1, 1]} : vector<8x2944xf32> to vector<8x2432xf32>
    %10 = vector.extract_strided_slice %3 {offsets = [0, 98], sizes = [8, 2432], strides = [1, 1]} : vector<8x2944xf32> to vector<8x2432xf32>
    %11 = vector.extract_strided_slice %3 {offsets = [0, 100], sizes = [8, 2432], strides = [1, 1]} : vector<8x2944xf32> to vector<8x2432xf32>
    %12 = vector.extract_strided_slice %3 {offsets = [0, 102], sizes = [8, 2432], strides = [1, 1]} : vector<8x2944xf32> to vector<8x2432xf32>
    %13 = vector.extract_strided_slice %3 {offsets = [0, 104], sizes = [8, 2432], strides = [1, 1]} : vector<8x2944xf32> to vector<8x2432xf32>
    %14 = vector.extract_strided_slice %3 {offsets = [0, 192], sizes = [8, 2432], strides = [1, 1]} : vector<8x2944xf32> to vector<8x2432xf32>
    %15 = vector.extract_strided_slice %3 {offsets = [0, 194], sizes = [8, 2432], strides = [1, 1]} : vector<8x2944xf32> to vector<8x2432xf32>
    %16 = vector.extract_strided_slice %3 {offsets = [0, 196], sizes = [8, 2432], strides = [1, 1]} : vector<8x2944xf32> to vector<8x2432xf32>
    %17 = vector.extract_strided_slice %3 {offsets = [0, 198], sizes = [8, 2432], strides = [1, 1]} : vector<8x2944xf32> to vector<8x2432xf32>
    %18 = vector.extract_strided_slice %3 {offsets = [0, 200], sizes = [8, 2432], strides = [1, 1]} : vector<8x2944xf32> to vector<8x2432xf32>
    %19 = vector.extract_strided_slice %3 {offsets = [0, 288], sizes = [8, 2432], strides = [1, 1]} : vector<8x2944xf32> to vector<8x2432xf32>
    %20 = vector.extract_strided_slice %3 {offsets = [0, 290], sizes = [8, 2432], strides = [1, 1]} : vector<8x2944xf32> to vector<8x2432xf32>
    %21 = vector.extract_strided_slice %3 {offsets = [0, 292], sizes = [8, 2432], strides = [1, 1]} : vector<8x2944xf32> to vector<8x2432xf32>
    %22 = vector.extract_strided_slice %3 {offsets = [0, 294], sizes = [8, 2432], strides = [1, 1]} : vector<8x2944xf32> to vector<8x2432xf32>
    %23 = vector.extract_strided_slice %3 {offsets = [0, 296], sizes = [8, 2432], strides = [1, 1]} : vector<8x2944xf32> to vector<8x2432xf32>
    %24 = vector.extract_strided_slice %3 {offsets = [0, 384], sizes = [8, 2432], strides = [1, 1]} : vector<8x2944xf32> to vector<8x2432xf32>
    %25 = vector.extract_strided_slice %3 {offsets = [0, 386], sizes = [8, 2432], strides = [1, 1]} : vector<8x2944xf32> to vector<8x2432xf32>
    %26 = vector.extract_strided_slice %3 {offsets = [0, 388], sizes = [8, 2432], strides = [1, 1]} : vector<8x2944xf32> to vector<8x2432xf32>
    %27 = vector.extract_strided_slice %3 {offsets = [0, 390], sizes = [8, 2432], strides = [1, 1]} : vector<8x2944xf32> to vector<8x2432xf32>
    %28 = vector.extract_strided_slice %3 {offsets = [0, 392], sizes = [8, 2432], strides = [1, 1]} : vector<8x2944xf32> to vector<8x2432xf32>
    %cst_2 = arith.constant 0.000000e+00 : f32
    %29 = vector.broadcast %cst_2 : f32 to vector<8x2432xf32>
    %30 = tpu.concatenate %4, %5, %6, %7, %8, %9, %10, %11, %12, %13, %14, %15, %16, %17, %18, %19 in 0 : vector<8x2432xf32>, vector<8x2432xf32>, vector<8x2432xf32>, vector<8x2432xf32>, vector<8x2432xf32>, vector<8x2432xf32>, vector<8x2432xf32>, vector<8x2432xf32>, vector<8x2432xf32>, vector<8x2432xf32>, vector<8x2432xf32>, vector<8x2432xf32>, vector<8x2432xf32>, vector<8x2432xf32>, vector<8x2432xf32>, vector<8x2432xf32> -> vector<128x2432xf32>
    %31 = tpu.concatenate %20, %21, %22, %23, %24, %25, %26, %27, %28, %29 in 0 : vector<8x2432xf32>, vector<8x2432xf32>, vector<8x2432xf32>, vector<8x2432xf32>, vector<8x2432xf32>, vector<8x2432xf32>, vector<8x2432xf32>, vector<8x2432xf32>, vector<8x2432xf32>, vector<8x2432xf32> -> vector<80x2432xf32>
    %32 = tpu.concatenate %30, %31 in 0 : vector<128x2432xf32>, vector<80x2432xf32> -> vector<208x2432xf32>
    %33 = arith.truncf %32 : vector<208x2432xf32> to vector<208x2432xbf16>
    %c0_3 = arith.constant 0 : index
    %c0_4 = arith.constant 0 : index
    %34 = vector.load %arg2[%c0_3, %c0_4] : memref<16x208xbf16, #tpu.memory_space<vmem>>, vector<16x208xbf16>
    %cst_5 = arith.constant dense<0.000000e+00> : vector<16x2432xf32>
    %35 = tpu.matmul %34, %33, %cst_5 {dimension_numbers = #tpu.dot_dimension_numbers<[1], [0], [0], [1], [0, 0, 1, 1], [], []>} : vector<16x208xbf16>, vector<208x2432xbf16>, vector<16x2432xf32> -> vector<16x2432xf32>
    %c0_6 = arith.constant 0 : index
    %c0_7 = arith.constant 0 : index
    %36 = vector.load %arg3[%c0_6, %c0_7] : memref<16x1xf32, #tpu.memory_space<vmem>>, vector<16x1xf32>
    %37 = vector.broadcast %36 : vector<16x1xf32> to vector<16x2432xf32>
    %38 = arith.addf %35, %37 : vector<16x2432xf32>
    %cst_8 = arith.constant 0.000000e+00 : f32
    %39 = vector.broadcast %cst_8 : f32 to vector<16x2432xf32>
    %40 = arith.maximumf %38, %39 : vector<16x2432xf32>
    %41 = vector.extract_strided_slice %40 {offsets = [0, 0], sizes = [16, 2400], strides = [1, 1]} : vector<16x2432xf32> to vector<16x2400xf32>
    %42 = vector.extract_strided_slice %40 {offsets = [0, 2], sizes = [16, 2400], strides = [1, 1]} : vector<16x2432xf32> to vector<16x2400xf32>
    %43 = arith.maximumf %41, %42 : vector<16x2400xf32>
    %44 = vector.extract_strided_slice %43 {offsets = [0, 0], sizes = [16, 2304], strides = [1, 1]} : vector<16x2400xf32> to vector<16x2304xf32>
    %45 = vector.extract_strided_slice %43 {offsets = [0, 96], sizes = [16, 2304], strides = [1, 1]} : vector<16x2400xf32> to vector<16x2304xf32>
    %46 = arith.maximumf %44, %45 : vector<16x2304xf32>
    %47 = vector.extract_strided_slice %46 {offsets = [0, 0], sizes = [16, 1664], strides = [1, 1]} : vector<16x2304xf32> to vector<16x1664xf32>
    %48 = arith.truncf %47 : vector<16x1664xf32> to vector<16x1664xbf16>
    %c0_9 = arith.constant 0 : index
    %c0_10 = arith.constant 0 : index
    %49 = vector.load %arg4[%c0_9, %c0_10] : memref<1664x128xbf16, #tpu.memory_space<vmem>>, vector<1664x128xbf16>
    %cst_11 = arith.constant dense<0.000000e+00> : vector<16x128xf32>
    %50 = tpu.matmul %48, %49, %cst_11 {dimension_numbers = #tpu.dot_dimension_numbers<[1], [0], [0], [1], [0, 0, 1, 1], [], []>} : vector<16x1664xbf16>, vector<1664x128xbf16>, vector<16x128xf32> -> vector<16x128xf32>
    %51 = arith.truncf %50 : vector<16x128xf32> to vector<16x128xbf16>
    %c0_12 = arith.constant 0 : index
    %c0_13 = arith.constant 0 : index
    %c0_14 = arith.constant 0 : index
    %52 = vector.load %arg5[%c0_12, %c0_13, %c0_14] : memref<1x16x128xbf16, #tpu.memory_space<vmem>>, vector<1x16x128xbf16>
    %53 = vector.shape_cast %52 : vector<1x16x128xbf16> to vector<16x128xbf16>
    %54 = vector.shape_cast %51 : vector<16x128xbf16> to vector<1x16x128xbf16>
    tpu.vector_store %arg5[%c0_12, %c0_13, %c0_14], %54 {strides = array<i32>} : memref<1x16x128xbf16, #tpu.memory_space<vmem>>, vector<1x16x128xbf16>,
    return
  }
  func.func @transform_0(%arg0: i32) -> (i32, i32, i32) {
    %c0_i32 = arith.constant 0 : i32
    %c0_i32_0 = arith.constant 0 : i32
    %c0_i32_1 = arith.constant 0 : i32
    return %arg0, %c0_i32, %c0_i32_0 : i32, i32, i32
  }
  func.func @transform_1(%arg0: i32) -> (i32, i32) {
    %c0_i32 = arith.constant 0 : i32
    %c0_i32_0 = arith.constant 0 : i32
    %c0_i32_1 = arith.constant 0 : i32
    return %c0_i32, %c0_i32_0 : i32, i32
  }
  func.func @transform_2(%arg0: i32) -> (i32, i32) {
    %c0_i32 = arith.constant 0 : i32
    %c0_i32_0 = arith.constant 0 : i32
    %c0_i32_1 = arith.constant 0 : i32
    return %c0_i32, %c0_i32_0 : i32, i32
  }
  func.func @transform_3(%arg0: i32) -> (i32, i32) {
    %c0_i32 = arith.constant 0 : i32
    %c0_i32_0 = arith.constant 0 : i32
    %c0_i32_1 = arith.constant 0 : i32
    return %c0_i32, %c0_i32_0 : i32, i32
  }
  func.func @transform_4(%arg0: i32) -> (i32, i32, i32) {
    %c0_i32 = arith.constant 0 : i32
    %c0_i32_0 = arith.constant 0 : i32
    %c0_i32_1 = arith.constant 0 : i32
    return %arg0, %c0_i32, %c0_i32_0 : i32, i32, i32
  }
}

module attributes {stable_mosaic.version = 11 : i64} {
  func.func @_mlp_kernel(%arg0: i32, %arg1: memref<8x2048xbf16, #tpu.memory_space<vmem>>, %arg2: memref<2048x128xbf16, #tpu.memory_space<vmem>>, %arg3: memref<1x128xf32, #tpu.memory_space<vmem>>, %arg4: memref<128x128xbf16, #tpu.memory_space<vmem>>, %arg5: memref<1x128xf32, #tpu.memory_space<vmem>>, %arg6: memref<128x128xbf16, #tpu.memory_space<vmem>>, %arg7: memref<1x128xf32, #tpu.memory_space<vmem>>, %arg8: memref<8x128xf32, #tpu.memory_space<vmem>>) attributes {dimension_semantics = [#tpu.dimension_semantics<parallel>], iteration_bounds = array<i64: 1>, scalar_prefetch = 0 : i64, scratch_operands = 0 : i64, tpu.core_type = #tpu.core_type<tc>, window_params = [{transform_indices = @transform_0, window_bounds = array<i64: 8, 2048>}, {pipeline_mode = #tpu.pipeline_mode<synchronous>, transform_indices = @transform_1, window_bounds = array<i64: 2048, 128>}, {pipeline_mode = #tpu.pipeline_mode<synchronous>, transform_indices = @transform_2, window_bounds = array<i64: 1, 128>}, {pipeline_mode = #tpu.pipeline_mode<synchronous>, transform_indices = @transform_3, window_bounds = array<i64: 128, 128>}, {pipeline_mode = #tpu.pipeline_mode<synchronous>, transform_indices = @transform_4, window_bounds = array<i64: 1, 128>}, {pipeline_mode = #tpu.pipeline_mode<synchronous>, transform_indices = @transform_5, window_bounds = array<i64: 128, 128>}, {pipeline_mode = #tpu.pipeline_mode<synchronous>, transform_indices = @transform_6, window_bounds = array<i64: 1, 128>}, {transform_indices = @transform_7, window_bounds = array<i64: 8, 128>}]} {
    %c0 = arith.constant 0 : index
    %c0_0 = arith.constant 0 : index
    %0 = vector.load %arg1[%c0, %c0_0] : memref<8x2048xbf16, #tpu.memory_space<vmem>>, vector<8x2048xbf16>
    %c0_1 = arith.constant 0 : index
    %c0_2 = arith.constant 0 : index
    %1 = vector.load %arg2[%c0_1, %c0_2] : memref<2048x128xbf16, #tpu.memory_space<vmem>>, vector<2048x128xbf16>
    %cst = arith.constant dense<0.000000e+00> : vector<8x128xf32>
    %2 = tpu.matmul %0, %1, %cst {dimension_numbers = #tpu.dot_dimension_numbers<[1], [0], [0], [1], [0, 0, 1, 1], [], []>} : vector<8x2048xbf16>, vector<2048x128xbf16>, vector<8x128xf32> -> vector<8x128xf32>
    %c0_3 = arith.constant 0 : index
    %c0_4 = arith.constant 0 : index
    %3 = vector.load %arg3[%c0_3, %c0_4] : memref<1x128xf32, #tpu.memory_space<vmem>>, vector<1x128xf32>
    %4 = vector.broadcast %3 : vector<1x128xf32> to vector<8x128xf32>
    %5 = arith.addf %2, %4 : vector<8x128xf32>
    %cst_5 = arith.constant 0.000000e+00 : f32
    %6 = vector.broadcast %cst_5 : f32 to vector<8x128xf32>
    %7 = arith.maximumf %5, %6 : vector<8x128xf32>
    %8 = arith.truncf %7 : vector<8x128xf32> to vector<8x128xbf16>
    %c0_6 = arith.constant 0 : index
    %c0_7 = arith.constant 0 : index
    %9 = vector.load %arg4[%c0_6, %c0_7] : memref<128x128xbf16, #tpu.memory_space<vmem>>, vector<128x128xbf16>
    %cst_8 = arith.constant dense<0.000000e+00> : vector<8x128xf32>
    %10 = tpu.matmul %8, %9, %cst_8 {dimension_numbers = #tpu.dot_dimension_numbers<[1], [0], [0], [1], [0, 0, 1, 1], [], []>} : vector<8x128xbf16>, vector<128x128xbf16>, vector<8x128xf32> -> vector<8x128xf32>
    %c0_9 = arith.constant 0 : index
    %c0_10 = arith.constant 0 : index
    %11 = vector.load %arg5[%c0_9, %c0_10] : memref<1x128xf32, #tpu.memory_space<vmem>>, vector<1x128xf32>
    %12 = vector.broadcast %11 : vector<1x128xf32> to vector<8x128xf32>
    %13 = arith.addf %10, %12 : vector<8x128xf32>
    %cst_11 = arith.constant 0.000000e+00 : f32
    %14 = vector.broadcast %cst_11 : f32 to vector<8x128xf32>
    %15 = arith.maximumf %13, %14 : vector<8x128xf32>
    %16 = arith.truncf %15 : vector<8x128xf32> to vector<8x128xbf16>
    %c0_12 = arith.constant 0 : index
    %c0_13 = arith.constant 0 : index
    %17 = vector.load %arg6[%c0_12, %c0_13] : memref<128x128xbf16, #tpu.memory_space<vmem>>, vector<128x128xbf16>
    %cst_14 = arith.constant dense<0.000000e+00> : vector<8x128xf32>
    %18 = tpu.matmul %16, %17, %cst_14 {dimension_numbers = #tpu.dot_dimension_numbers<[1], [0], [0], [1], [0, 0, 1, 1], [], []>} : vector<8x128xbf16>, vector<128x128xbf16>, vector<8x128xf32> -> vector<8x128xf32>
    %c0_15 = arith.constant 0 : index
    %c0_16 = arith.constant 0 : index
    %19 = vector.load %arg7[%c0_15, %c0_16] : memref<1x128xf32, #tpu.memory_space<vmem>>, vector<1x128xf32>
    %20 = vector.broadcast %19 : vector<1x128xf32> to vector<8x128xf32>
    %21 = arith.addf %18, %20 : vector<8x128xf32>
    %c0_17 = arith.constant 0 : index
    %c0_18 = arith.constant 0 : index
    %22 = vector.load %arg8[%c0_17, %c0_18] : memref<8x128xf32, #tpu.memory_space<vmem>>, vector<8x128xf32>
    tpu.vector_store %arg8[%c0_17, %c0_18], %21 {strides = array<i32>} : memref<8x128xf32, #tpu.memory_space<vmem>>, vector<8x128xf32>,
    return
  }
  func.func @transform_0(%arg0: i32) -> (i32, i32) {
    %c0_i32 = arith.constant 0 : i32
    %c0_i32_0 = arith.constant 0 : i32
    return %arg0, %c0_i32 : i32, i32
  }
  func.func @transform_1(%arg0: i32) -> (i32, i32) {
    %c0_i32 = arith.constant 0 : i32
    %c0_i32_0 = arith.constant 0 : i32
    %c0_i32_1 = arith.constant 0 : i32
    return %c0_i32, %c0_i32_0 : i32, i32
  }
  func.func @transform_2(%arg0: i32) -> (i32, i32) {
    %c0_i32 = arith.constant 0 : i32
    %c0_i32_0 = arith.constant 0 : i32
    %c0_i32_1 = arith.constant 0 : i32
    return %c0_i32, %c0_i32_0 : i32, i32
  }
  func.func @transform_3(%arg0: i32) -> (i32, i32) {
    %c0_i32 = arith.constant 0 : i32
    %c0_i32_0 = arith.constant 0 : i32
    %c0_i32_1 = arith.constant 0 : i32
    return %c0_i32, %c0_i32_0 : i32, i32
  }
  func.func @transform_4(%arg0: i32) -> (i32, i32) {
    %c0_i32 = arith.constant 0 : i32
    %c0_i32_0 = arith.constant 0 : i32
    %c0_i32_1 = arith.constant 0 : i32
    return %c0_i32, %c0_i32_0 : i32, i32
  }
  func.func @transform_5(%arg0: i32) -> (i32, i32) {
    %c0_i32 = arith.constant 0 : i32
    %c0_i32_0 = arith.constant 0 : i32
    %c0_i32_1 = arith.constant 0 : i32
    return %c0_i32, %c0_i32_0 : i32, i32
  }
  func.func @transform_6(%arg0: i32) -> (i32, i32) {
    %c0_i32 = arith.constant 0 : i32
    %c0_i32_0 = arith.constant 0 : i32
    %c0_i32_1 = arith.constant 0 : i32
    return %c0_i32, %c0_i32_0 : i32, i32
  }
  func.func @transform_7(%arg0: i32) -> (i32, i32) {
    %c0_i32 = arith.constant 0 : i32
    %c0_i32_0 = arith.constant 0 : i32
    return %arg0, %c0_i32 : i32, i32
  }
}

</mosaic_0001>

<llo_original>
// kernel: simple_convnet_forward.3
$region0: #{simple_convnet_forward.3}
  #allocation0 [shape = 'u32[]', space=smem, size = 0x4, offset = 0x4, fixed_abs, tag = 'smem constant byte address 0x4 - core index']
  #allocation1 [shape = 'u32[144,128]{1,0:T(1,128)}', space=vmem, size = 0x12000, scoped, tag = 'internal scratch']
  %s0 = inlined_call_operand.vmem [shape: f32[2,8,2304], index: 0, kind: input, shape index: {}]
  %s1 = inlined_call_operand.vmem [shape: bf16[8,208], index: 1, kind: input, shape index: {}]
  %s2 = inlined_call_operand.vmem [shape: f32[8,1], index: 2, kind: input, shape index: {}]
  %s3 = inlined_call_operand.vmem [shape: f32[2,8,2304], index: 3, kind: output, shape index: {}]
  %s4 = sld [smem:[#allocation0]]
  $region45: #{simple_convnet_forward.3} parent=0
    _
  %s6 = ssub.s32 1, %s4
  %s7 = scalar_select 0, %s6, %s4
  loop: start=0, step=1, limit=4
  $region2: #{simple_convnet_forward.3} parent=0 // loop_pre_header
    _
  $region3: #{simple_convnet_forward.3} parent=0 // loop_header
    %s9 = sphi 0, %s13
    %p10 = scmp.ge.s32.totalorder %s9, 4
    %s19 = sphi 0, %s21
    %s22 = sphi 0, %s19
    %s23 = sphi 0, %s22
    %s39 = sphi 0, %s23
    %s43 = sphi 0, %s43
    %s45 = sphi 0, %s43
    %s46 = sphi 0, %s45
    %s60 = sphi 0, %s46
    %s64 = sphi 0, %s64
    %s66 = sphi 0, %s64
    %s67 = sphi 0, %s66
    %s81 = sphi 0, %s67
    %s87 = sphi 0, %s89
    %s90 = sphi 0, %s87
    %s91 = sphi 0, %s90
    %s107 = sphi 0, %s91
  $region4: #{simple_convnet_forward.3} parent=0 // loop_header_branch
    %12 = sbr.rel (%p10) target = $region8
  $region5: #{simple_convnet_forward.3} parent=0 // loop_body
    %s14 = ssub.s32 %s9, 1
    %s15 = ssub.s32 %s9, 2
    %s16 = sadd.s32 %s9, 1
    %s17 = ssub.s32 %s9, %s16
    %p18 = scmp.eq.s32.totalorder %s17, 0
    %s20 = sadd.s32 %s19, 1
    %s21 = scalar_select %p18, %s19, %s20
    %p24 = pneg %p18
    %p25 = scmp.eq.s32.totalorder %s9, 1
    %p26 = por %p24, %p25
    %p27 = scmp.ne.s32.totalorder %s19, %s22
    %p28 = scmp.eq.s32.totalorder %s9, 0
    %p29 = por %p27, %p28
    %p30 = scmp.ne.s32.totalorder %s19, %s22
    %p31 = scmp.eq.s32.totalorder %s14, 1
    %p32 = por %p30, %p31
    %p33 = scmp.ne.s32.totalorder %s22, %s23
    %p34 = scmp.eq.s32.totalorder %s14, 0
    %p35 = por %p33, %p34
    %p36 = scmp.ne.s32.totalorder %s22, %s23
    %p37 = scmp.eq.s32.totalorder %s15, 1
    %p38 = por %p36, %p37
    %p40 = scmp.ne.s32.totalorder %s23, %s39
    %p41 = scmp.eq.s32.totalorder %s15, 0
    %p42 = por %p40, %p41
    %s44 = sadd.s32 %s43, 1
    %p47 = scmp.eq.s32.totalorder %s9, 1
    %p48 = scmp.ne.s32.totalorder %s43, %s45
    %p49 = scmp.eq.s32.totalorder %s9, 0
    %p50 = por %p48, %p49
    %p51 = scmp.ne.s32.totalorder %s43, %s45
    %p52 = scmp.eq.s32.totalorder %s14, 1
    %p53 = por %p51, %p52
    %p54 = scmp.ne.s32.totalorder %s45, %s46
    %p55 = scmp.eq.s32.totalorder %s14, 0
    %p56 = por %p54, %p55
    %p57 = scmp.ne.s32.totalorder %s45, %s46
    %p58 = scmp.eq.s32.totalorder %s15, 1
    %p59 = por %p57, %p58
    %p61 = scmp.ne.s32.totalorder %s46, %s60
    %p62 = scmp.eq.s32.totalorder %s15, 0
    %p63 = por %p61, %p62
    %s65 = sadd.s32 %s64, 1
    %p68 = scmp.eq.s32.totalorder %s9, 1
    %p69 = scmp.ne.s32.totalorder %s64, %s66
    %p70 = scmp.eq.s32.totalorder %s9, 0
    %p71 = por %p69, %p70
    %p72 = scmp.ne.s32.totalorder %s64, %s66
    %p73 = scmp.eq.s32.totalorder %s14, 1
    %p74 = por %p72, %p73
    %p75 = scmp.ne.s32.totalorder %s66, %s67
    %p76 = scmp.eq.s32.totalorder %s14, 0
    %p77 = por %p75, %p76
    %p78 = scmp.ne.s32.totalorder %s66, %s67
    %p79 = scmp.eq.s32.totalorder %s15, 1
    %p80 = por %p78, %p79
    %p82 = scmp.ne.s32.totalorder %s67, %s81
    %p83 = scmp.eq.s32.totalorder %s15, 0
    %p84 = por %p82, %p83
    %s85 = ssub.s32 %s9, %s16
    %p86 = scmp.eq.s32.totalorder %s85, 0
    %s88 = sadd.s32 %s87, 1
    %s89 = scalar_select %p86, %s87, %s88
    %p92 = pneg %p86
    %p93 = scmp.eq.s32.totalorder %s9, 1
    %p94 = por %p92, %p93
    %p95 = scmp.ne.s32.totalorder %s87, %s90
    %p96 = scmp.eq.s32.totalorder %s9, 0
    %p97 = por %p95, %p96
    %p98 = scmp.ne.s32.totalorder %s87, %s90
    %p99 = scmp.eq.s32.totalorder %s14, 1
    %p100 = por %p98, %p99
    %p101 = scmp.ne.s32.totalorder %s90, %s91
    %p102 = scmp.eq.s32.totalorder %s14, 0
    %p103 = por %p101, %p102
    %p104 = scmp.ne.s32.totalorder %s90, %s91
    %p105 = scmp.eq.s32.totalorder %s15, 1
    %p106 = por %p104, %p105
    %p108 = scmp.ne.s32.totalorder %s91, %s107
    %p109 = scmp.eq.s32.totalorder %s15, 0
    %p110 = por %p108, %p109
    %p111 = scmp.le.s32.totalorder 1, %s9
    %p112 = scmp.lt.s32.totalorder %s9, 3
    %p113 = pnand %p111, %p112
    %p114 = pneg %p113
    // Predicated region
    $region9: #{simple_convnet_forward.3} parent=5 // pred_check
      _
    $region10: #{simple_convnet_forward.3} parent=5 // pred_check_branch
      %116 = sbr.rel (%p113) target = $region12
    $region11: #{simple_convnet_forward.3} parent=5 // pred_region
      %s117 = ssub.s32 %s9, 1
      // Predicated region
      $region13: #{simple_convnet_forward.3} parent=11 // pred_check
        %p118 = pneg %p56
      $region14: #{simple_convnet_forward.3} parent=11 // pred_check_branch
        %120 = sbr.rel (%p118) target = $region16
      $region15: #{simple_convnet_forward.3} parent=11 // pred_region
        _
      $region16: #{simple_convnet_forward.3} parent=11 // pred_fallthru
        _
      // Predicated region
      $region17: #{simple_convnet_forward.3} parent=11 // pred_check
        %p121 = pneg %p77
      $region18: #{simple_convnet_forward.3} parent=11 // pred_check_branch
        %123 = sbr.rel (%p121) target = $region20
      $region19: #{simple_convnet_forward.3} parent=11 // pred_region
        _
      $region20: #{simple_convnet_forward.3} parent=11 // pred_fallthru
        _
    $region12: #{simple_convnet_forward.3} parent=5 // pred_fallthru
      _
    %p124 = scmp.lt.s32.totalorder %s9, 2
    // Predicated region
    $region21: #{simple_convnet_forward.3} parent=5 // pred_check
      %p125 = pneg %p124
    $region22: #{simple_convnet_forward.3} parent=5 // pred_check_branch
      %127 = sbr.rel (%p125) target = $region24
    $region23: #{simple_convnet_forward.3} parent=5 // pred_region
      // Predicated region
      $region25: #{simple_convnet_forward.3} parent=23 // pred_check
        %p128 = pneg %p29
      $region26: #{simple_convnet_forward.3} parent=23 // pred_check_branch
        %130 = sbr.rel (%p128) target = $region28
      $region27: #{simple_convnet_forward.3} parent=23 // pred_region
        %p131 = scmp.lt.s32.totalorder %s9, 1
        %s132 = scalar_select %p131, %s9, 1
        %s133 = smul.addr %s132, 18
        %s134 = smul.addr %s133, 8
        %s135 = scalar_lea.vmem %s0, %s134
      $region28: #{simple_convnet_forward.3} parent=23 // pred_fallthru
        _
    $region24: #{simple_convnet_forward.3} parent=5 // pred_fallthru
      _
    %p136 = scmp.le.s32.totalorder 1, %s9
    %p137 = scmp.lt.s32.totalorder %s9, 3
    %p138 = pnand %p136, %p137
    %p139 = pneg %p138
    // Predicated region
    $region29: #{simple_convnet_forward.3} parent=5 // pred_check
      _
    $region30: #{simple_convnet_forward.3} parent=5 // pred_check_branch
      %141 = sbr.rel (%p138) target = $region32
    $region31: #{simple_convnet_forward.3} parent=5 // pred_region
      %s142 = ssub.s32 %s9, 1
      %p143 = scmp.lt.s32.totalorder %s14, 1
      %s144 = scalar_select %p143, %s14, 1
      %s145 = smul.addr %s144, 18
      %s146 = smul.addr %s145, 8
      %s147 = scalar_lea.vmem %s0, %s146
      %p148 = pneg %p35
      %p149 = pneg %p32
      %p150 = pneg %p56
      %p151 = pneg %p53
      %p152 = pneg %p77
      %p153 = pneg %p74
      %p154 = pneg %p103
      %p155 = pneg %p100
      %p156 = scmp.lt.s32.totalorder %s14, 1
      %s157 = scalar_select %p156, %s14, 1
      %s158 = smul.addr %s157, 18
      %s159 = smul.addr %s158, 8
      %s160 = scalar_lea.vmem %s3, %s159
      %p161 = scmp.lt.s32.totalorder %s14, 1
      %s162 = scalar_select %p161, %s14, 1
      %s163 = smul.addr %s162, 18
      %s164 = smul.addr %s163, 8
      %s165 = scalar_lea.vmem %s0, %s164
      %p166 = scmp.lt.s32.totalorder %s14, 1
      %s167 = scalar_select %p166, %s14, 1
      %s168 = smul.addr %s167, 18
      %s169 = smul.addr %s168, 8
      %s170 = scalar_lea.vmem %s3, %s169
      %v172 = vld [vmem:[%s165] sm:$0xff]
      %v173 = vld [vmem:[%s165 + $0x8] sm:$0xff]
      %v174 = vld [vmem:[%s165 + $0x10] sm:$0xff]
      %v175 = vld [vmem:[%s165 + $0x18] sm:$0xff]
      %v176 = vld [vmem:[%s165 + $0x20] sm:$0xff]
      %v177 = vld [vmem:[%s165 + $0x28] sm:$0xff]
      %v178 = vld [vmem:[%s165 + $0x30] sm:$0xff]
      %v179 = vld [vmem:[%s165 + $0x38] sm:$0xff]
      %v180 = vld [vmem:[%s165 + $0x40] sm:$0xff]
      %v181 = vld [vmem:[%s165 + $0x48] sm:$0xff]
      %v182 = vld [vmem:[%s165 + $0x50] sm:$0xff]
      %v183 = vld [vmem:[%s165 + $0x58] sm:$0xff]
      %v184 = vld [vmem:[%s165 + $0x60] sm:$0xff]
      %v185 = vld [vmem:[%s165 + $0x68] sm:$0xff]
      %v186 = vld [vmem:[%s165 + $0x70] sm:$0xff]
      %v187 = vld [vmem:[%s165 + $0x78] sm:$0xff]
      %v188 = vld [vmem:[%s165 + $0x80] sm:$0xff]
      %v189 = vld [vmem:[%s165 + $0x88] sm:$0xff]
      %209 = vrot.lane.b32.xlu0 %v172, 127
      %v210 = vpop.permute.xlu0 %209
      %211 = vrot.lane.b32.xlu0 %v173, 127
      %v212 = vpop.permute.xlu0 %211
      %213 = vrot.lane.b32.xlu0 %v174, 127
      %v214 = vpop.permute.xlu0 %213
      %215 = vrot.lane.b32.xlu0 %v175, 127
      %v216 = vpop.permute.xlu0 %215
      %217 = vrot.lane.b32.xlu0 %v176, 127
      %v218 = vpop.permute.xlu0 %217
      %219 = vrot.lane.b32.xlu0 %v177, 127
      %v220 = vpop.permute.xlu0 %219
      %221 = vrot.lane.b32.xlu0 %v178, 127
      %v222 = vpop.permute.xlu0 %221
      %223 = vrot.lane.b32.xlu0 %v179, 127
      %v224 = vpop.permute.xlu0 %223
      %225 = vrot.lane.b32.xlu0 %v180, 127
      %v226 = vpop.permute.xlu0 %225
      %227 = vrot.lane.b32.xlu0 %v181, 127
      %v228 = vpop.permute.xlu0 %227
      %229 = vrot.lane.b32.xlu0 %v182, 127
      %v230 = vpop.permute.xlu0 %229
      %231 = vrot.lane.b32.xlu0 %v183, 127
      %v232 = vpop.permute.xlu0 %231
      %233 = vrot.lane.b32.xlu0 %v184, 127
      %v234 = vpop.permute.xlu0 %233
      %235 = vrot.lane.b32.xlu0 %v185, 127
      %v236 = vpop.permute.xlu0 %235
      %237 = vrot.lane.b32.xlu0 %v186, 127
      %v238 = vpop.permute.xlu0 %237
      %239 = vrot.lane.b32.xlu0 %v187, 127
      %v240 = vpop.permute.xlu0 %239
      %241 = vrot.lane.b32.xlu0 %v188, 127
      %v242 = vpop.permute.xlu0 %241
      %243 = vrot.lane.b32.xlu0 %v189, 127
      %v244 = vpop.permute.xlu0 %243
      %245 = vrot.lane.b32.xlu0 0.0, 127
      %v246 = vpop.permute.xlu0 %245
      %vm247 = vcmask 1039360
      %v248 = vsel %vm247, %v210, %v212
      %v249 = vsel %vm247, %v212, %v214
      %v250 = vsel %vm247, %v214, %v216
      %v251 = vsel %vm247, %v216, %v218
      %v252 = vsel %vm247, %v218, %v220
      %v253 = vsel %vm247, %v220, %v222
      %v254 = vsel %vm247, %v222, %v224
      %v255 = vsel %vm247, %v224, %v226
      %v256 = vsel %vm247, %v226, %v228
      %v257 = vsel %vm247, %v228, %v230
      %v258 = vsel %vm247, %v230, %v232
      %v259 = vsel %vm247, %v232, %v234
      %v260 = vsel %vm247, %v234, %v236
      %v261 = vsel %vm247, %v236, %v238
      %v262 = vsel %vm247, %v238, %v240
      %v263 = vsel %vm247, %v240, %v242
      %v264 = vsel %vm247, %v242, %v244
      %v265 = vsel %vm247, %v244, %v246
      %285 = vrot.lane.b32.xlu0 %v172, 126
      %v286 = vpop.permute.xlu0 %285
      %287 = vrot.lane.b32.xlu0 %v173, 126
      %v288 = vpop.permute.xlu0 %287
      %289 = vrot.lane.b32.xlu0 %v174, 126
      %v290 = vpop.permute.xlu0 %289
      %291 = vrot.lane.b32.xlu0 %v175, 126
      %v292 = vpop.permute.xlu0 %291
      %293 = vrot.lane.b32.xlu0 %v176, 126
      %v294 = vpop.permute.xlu0 %293
      %295 = vrot.lane.b32.xlu0 %v177, 126
      %v296 = vpop.permute.xlu0 %295
      %297 = vrot.lane.b32.xlu0 %v178, 126
      %v298 = vpop.permute.xlu0 %297
      %299 = vrot.lane.b32.xlu0 %v179, 126
      %v300 = vpop.permute.xlu0 %299
      %301 = vrot.lane.b32.xlu0 %v180, 126
      %v302 = vpop.permute.xlu0 %301
      %303 = vrot.lane.b32.xlu0 %v181, 126
      %v304 = vpop.permute.xlu0 %303
      %305 = vrot.lane.b32.xlu0 %v182, 126
      %v306 = vpop.permute.xlu0 %305
      %307 = vrot.lane.b32.xlu0 %v183, 126
      %v308 = vpop.permute.xlu0 %307
      %309 = vrot.lane.b32.xlu0 %v184, 126
      %v310 = vpop.permute.xlu0 %309
      %311 = vrot.lane.b32.xlu0 %v185, 126
      %v312 = vpop.permute.xlu0 %311
      %313 = vrot.lane.b32.xlu0 %v186, 126
      %v314 = vpop.permute.xlu0 %313
      %315 = vrot.lane.b32.xlu0 %v187, 126
      %v316 = vpop.permute.xlu0 %315
      %317 = vrot.lane.b32.xlu0 %v188, 126
      %v318 = vpop.permute.xlu0 %317
      %319 = vrot.lane.b32.xlu0 %v189, 126
      %v320 = vpop.permute.xlu0 %319
      %321 = vrot.lane.b32.xlu0 0.0, 126
      %v322 = vpop.permute.xlu0 %321
      %vm323 = vcmask 1031168
      %v324 = vsel %vm323, %v286, %v288
      %v325 = vsel %vm323, %v288, %v290
      %v326 = vsel %vm323, %v290, %v292
      %v327 = vsel %vm323, %v292, %v294
      %v328 = vsel %vm323, %v294, %v296
      %v329 = vsel %vm323, %v296, %v298
      %v330 = vsel %vm323, %v298, %v300
      %v331 = vsel %vm323, %v300, %v302
      %v332 = vsel %vm323, %v302, %v304
      %v333 = vsel %vm323, %v304, %v306
      %v334 = vsel %vm323, %v306, %v308
      %v335 = vsel %vm323, %v308, %v310
      %v336 = vsel %vm323, %v310, %v312
      %v337 = vsel %vm323, %v312, %v314
      %v338 = vsel %vm323, %v314, %v316
      %v339 = vsel %vm323, %v316, %v318
      %v340 = vsel %vm323, %v318, %v320
      %v341 = vsel %vm323, %v320, %v322
      %361 = vrot.lane.b32.xlu0 %v172, 125
      %v362 = vpop.permute.xlu0 %361
      %363 = vrot.lane.b32.xlu0 %v173, 125
      %v364 = vpop.permute.xlu0 %363
      %365 = vrot.lane.b32.xlu0 %v174, 125
      %v366 = vpop.permute.xlu0 %365
      %367 = vrot.lane.b32.xlu0 %v175, 125
      %v368 = vpop.permute.xlu0 %367
      %369 = vrot.lane.b32.xlu0 %v176, 125
      %v370 = vpop.permute.xlu0 %369
      %371 = vrot.lane.b32.xlu0 %v177, 125
      %v372 = vpop.permute.xlu0 %371
      %373 = vrot.lane.b32.xlu0 %v178, 125
      %v374 = vpop.permute.xlu0 %373
      %375 = vrot.lane.b32.xlu0 %v179, 125
      %v376 = vpop.permute.xlu0 %375
      %377 = vrot.lane.b32.xlu0 %v180, 125
      %v378 = vpop.permute.xlu0 %377
      %379 = vrot.lane.b32.xlu0 %v181, 125
      %v380 = vpop.permute.xlu0 %379
      %381 = vrot.lane.b32.xlu0 %v182, 125
      %v382 = vpop.permute.xlu0 %381
      %383 = vrot.lane.b32.xlu0 %v183, 125
      %v384 = vpop.permute.xlu0 %383
      %385 = vrot.lane.b32.xlu0 %v184, 125
      %v386 = vpop.permute.xlu0 %385
      %387 = vrot.lane.b32.xlu0 %v185, 125
      %v388 = vpop.permute.xlu0 %387
      %389 = vrot.lane.b32.xlu0 %v186, 125
      %v390 = vpop.permute.xlu0 %389
      %391 = vrot.lane.b32.xlu0 %v187, 125
      %v392 = vpop.permute.xlu0 %391
      %393 = vrot.lane.b32.xlu0 %v188, 125
      %v394 = vpop.permute.xlu0 %393
      %395 = vrot.lane.b32.xlu0 %v189, 125
      %v396 = vpop.permute.xlu0 %395
      %397 = vrot.lane.b32.xlu0 0.0, 125
      %v398 = vpop.permute.xlu0 %397
      %vm399 = vcmask 1022976
      %v400 = vsel %vm399, %v362, %v364
      %v401 = vsel %vm399, %v364, %v366
      %v402 = vsel %vm399, %v366, %v368
      %v403 = vsel %vm399, %v368, %v370
      %v404 = vsel %vm399, %v370, %v372
      %v405 = vsel %vm399, %v372, %v374
      %v406 = vsel %vm399, %v374, %v376
      %v407 = vsel %vm399, %v376, %v378
      %v408 = vsel %vm399, %v378, %v380
      %v409 = vsel %vm399, %v380, %v382
      %v410 = vsel %vm399, %v382, %v384
      %v411 = vsel %vm399, %v384, %v386
      %v412 = vsel %vm399, %v386, %v388
      %v413 = vsel %vm399, %v388, %v390
      %v414 = vsel %vm399, %v390, %v392
      %v415 = vsel %vm399, %v392, %v394
      %v416 = vsel %vm399, %v394, %v396
      %v417 = vsel %vm399, %v396, %v398
      %437 = vrot.lane.b32.xlu0 %v172, 124
      %v438 = vpop.permute.xlu0 %437
      %439 = vrot.lane.b32.xlu0 %v173, 124
      %v440 = vpop.permute.xlu0 %439
      %441 = vrot.lane.b32.xlu0 %v174, 124
      %v442 = vpop.permute.xlu0 %441
      %443 = vrot.lane.b32.xlu0 %v175, 124
      %v444 = vpop.permute.xlu0 %443
      %445 = vrot.lane.b32.xlu0 %v176, 124
      %v446 = vpop.permute.xlu0 %445
      %447 = vrot.lane.b32.xlu0 %v177, 124
      %v448 = vpop.permute.xlu0 %447
      %449 = vrot.lane.b32.xlu0 %v178, 124
      %v450 = vpop.permute.xlu0 %449
      %451 = vrot.lane.b32.xlu0 %v179, 124
      %v452 = vpop.permute.xlu0 %451
      %453 = vrot.lane.b32.xlu0 %v180, 124
      %v454 = vpop.permute.xlu0 %453
      %455 = vrot.lane.b32.xlu0 %v181, 124
      %v456 = vpop.permute.xlu0 %455
      %457 = vrot.lane.b32.xlu0 %v182, 124
      %v458 = vpop.permute.xlu0 %457
      %459 = vrot.lane.b32.xlu0 %v183, 124
      %v460 = vpop.permute.xlu0 %459
      %461 = vrot.lane.b32.xlu0 %v184, 124
      %v462 = vpop.permute.xlu0 %461
      %463 = vrot.lane.b32.xlu0 %v185, 124
      %v464 = vpop.permute.xlu0 %463
      %465 = vrot.lane.b32.xlu0 %v186, 124
      %v466 = vpop.permute.xlu0 %465
      %467 = vrot.lane.b32.xlu0 %v187, 124
      %v468 = vpop.permute.xlu0 %467
      %469 = vrot.lane.b32.xlu0 %v188, 124
      %v470 = vpop.permute.xlu0 %469
      %471 = vrot.lane.b32.xlu0 %v189, 124
      %v472 = vpop.permute.xlu0 %471
      %473 = vrot.lane.b32.xlu0 0.0, 124
      %v474 = vpop.permute.xlu0 %473
      %vm475 = vcmask 1014784
      %v476 = vsel %vm475, %v438, %v440
      %v477 = vsel %vm475, %v440, %v442
      %v478 = vsel %vm475, %v442, %v444
      %v479 = vsel %vm475, %v444, %v446
      %v480 = vsel %vm475, %v446, %v448
      %v481 = vsel %vm475, %v448, %v450
      %v482 = vsel %vm475, %v450, %v452
      %v483 = vsel %vm475, %v452, %v454
      %v484 = vsel %vm475, %v454, %v456
      %v485 = vsel %vm475, %v456, %v458
      %v486 = vsel %vm475, %v458, %v460
      %v487 = vsel %vm475, %v460, %v462
      %v488 = vsel %vm475, %v462, %v464
      %v489 = vsel %vm475, %v464, %v466
      %v490 = vsel %vm475, %v466, %v468
      %v491 = vsel %vm475, %v468, %v470
      %v492 = vsel %vm475, %v470, %v472
      %v493 = vsel %vm475, %v472, %v474
      %513 = vrot.lane.b32.xlu0 %v172, 80
      %v514 = vpop.permute.xlu0 %513
      %515 = vrot.lane.b32.xlu0 %v173, 80
      %v516 = vpop.permute.xlu0 %515
      %517 = vrot.lane.b32.xlu0 %v174, 80
      %v518 = vpop.permute.xlu0 %517
      %519 = vrot.lane.b32.xlu0 %v175, 80
      %v520 = vpop.permute.xlu0 %519
      %521 = vrot.lane.b32.xlu0 %v176, 80
      %v522 = vpop.permute.xlu0 %521
      %523 = vrot.lane.b32.xlu0 %v177, 80
      %v524 = vpop.permute.xlu0 %523
      %525 = vrot.lane.b32.xlu0 %v178, 80
      %v526 = vpop.permute.xlu0 %525
      %527 = vrot.lane.b32.xlu0 %v179, 80
      %v528 = vpop.permute.xlu0 %527
      %529 = vrot.lane.b32.xlu0 %v180, 80
      %v530 = vpop.permute.xlu0 %529
      %531 = vrot.lane.b32.xlu0 %v181, 80
      %v532 = vpop.permute.xlu0 %531
      %533 = vrot.lane.b32.xlu0 %v182, 80
      %v534 = vpop.permute.xlu0 %533
      %535 = vrot.lane.b32.xlu0 %v183, 80
      %v536 = vpop.permute.xlu0 %535
      %537 = vrot.lane.b32.xlu0 %v184, 80
      %v538 = vpop.permute.xlu0 %537
      %539 = vrot.lane.b32.xlu0 %v185, 80
      %v540 = vpop.permute.xlu0 %539
      %541 = vrot.lane.b32.xlu0 %v186, 80
      %v542 = vpop.permute.xlu0 %541
      %543 = vrot.lane.b32.xlu0 %v187, 80
      %v544 = vpop.permute.xlu0 %543
      %545 = vrot.lane.b32.xlu0 %v188, 80
      %v546 = vpop.permute.xlu0 %545
      %547 = vrot.lane.b32.xlu0 %v189, 80
      %v548 = vpop.permute.xlu0 %547
      %549 = vrot.lane.b32.xlu0 0.0, 80
      %v550 = vpop.permute.xlu0 %549
      %vm551 = vcmask 654336
      %v552 = vsel %vm551, %v514, %v516
      %v553 = vsel %vm551, %v516, %v518
      %v554 = vsel %vm551, %v518, %v520
      %v555 = vsel %vm551, %v520, %v522
      %v556 = vsel %vm551, %v522, %v524
      %v557 = vsel %vm551, %v524, %v526
      %v558 = vsel %vm551, %v526, %v528
      %v559 = vsel %vm551, %v528, %v530
      %v560 = vsel %vm551, %v530, %v532
      %v561 = vsel %vm551, %v532, %v534
      %v562 = vsel %vm551, %v534, %v536
      %v563 = vsel %vm551, %v536, %v538
      %v564 = vsel %vm551, %v538, %v540
      %v565 = vsel %vm551, %v540, %v542
      %v566 = vsel %vm551, %v542, %v544
      %v567 = vsel %vm551, %v544, %v546
      %v568 = vsel %vm551, %v546, %v548
      %v569 = vsel %vm551, %v548, %v550
      %589 = vrot.lane.b32.xlu0 %v172, 79
      %v590 = vpop.permute.xlu0 %589
      %591 = vrot.lane.b32.xlu0 %v173, 79
      %v592 = vpop.permute.xlu0 %591
      %593 = vrot.lane.b32.xlu0 %v174, 79
      %v594 = vpop.permute.xlu0 %593
      %595 = vrot.lane.b32.xlu0 %v175, 79
      %v596 = vpop.permute.xlu0 %595
      %597 = vrot.lane.b32.xlu0 %v176, 79
      %v598 = vpop.permute.xlu0 %597
      %599 = vrot.lane.b32.xlu0 %v177, 79
      %v600 = vpop.permute.xlu0 %599
      %601 = vrot.lane.b32.xlu0 %v178, 79
      %v602 = vpop.permute.xlu0 %601
      %603 = vrot.lane.b32.xlu0 %v179, 79
      %v604 = vpop.permute.xlu0 %603
      %605 = vrot.lane.b32.xlu0 %v180, 79
      %v606 = vpop.permute.xlu0 %605
      %607 = vrot.lane.b32.xlu0 %v181, 79
      %v608 = vpop.permute.xlu0 %607
      %609 = vrot.lane.b32.xlu0 %v182, 79
      %v610 = vpop.permute.xlu0 %609
      %611 = vrot.lane.b32.xlu0 %v183, 79
      %v612 = vpop.permute.xlu0 %611
      %613 = vrot.lane.b32.xlu0 %v184, 79
      %v614 = vpop.permute.xlu0 %613
      %615 = vrot.lane.b32.xlu0 %v185, 79
      %v616 = vpop.permute.xlu0 %615
      %617 = vrot.lane.b32.xlu0 %v186, 79
      %v618 = vpop.permute.xlu0 %617
      %619 = vrot.lane.b32.xlu0 %v187, 79
      %v620 = vpop.permute.xlu0 %619
      %621 = vrot.lane.b32.xlu0 %v188, 79
      %v622 = vpop.permute.xlu0 %621
      %623 = vrot.lane.b32.xlu0 %v189, 79
      %v624 = vpop.permute.xlu0 %623
      %625 = vrot.lane.b32.xlu0 0.0, 79
      %v626 = vpop.permute.xlu0 %625
      %vm627 = vcmask 646144
      %v628 = vsel %vm627, %v590, %v592
      %v629 = vsel %vm627, %v592, %v594
      %v630 = vsel %vm627, %v594, %v596
      %v631 = vsel %vm627, %v596, %v598
      %v632 = vsel %vm627, %v598, %v600
      %v633 = vsel %vm627, %v600, %v602
      %v634 = vsel %vm627, %v602, %v604
      %v635 = vsel %vm627, %v604, %v606
      %v636 = vsel %vm627, %v606, %v608
      %v637 = vsel %vm627, %v608, %v610
      %v638 = vsel %vm627, %v610, %v612
      %v639 = vsel %vm627, %v612, %v614
      %v640 = vsel %vm627, %v614, %v616
      %v641 = vsel %vm627, %v616, %v618
      %v642 = vsel %vm627, %v618, %v620
      %v643 = vsel %vm627, %v620, %v622
      %v644 = vsel %vm627, %v622, %v624
      %v645 = vsel %vm627, %v624, %v626
      %665 = vrot.lane.b32.xlu0 %v172, 78
      %v666 = vpop.permute.xlu0 %665
      %667 = vrot.lane.b32.xlu0 %v173, 78
      %v668 = vpop.permute.xlu0 %667
      %669 = vrot.lane.b32.xlu0 %v174, 78
      %v670 = vpop.permute.xlu0 %669
      %671 = vrot.lane.b32.xlu0 %v175, 78
      %v672 = vpop.permute.xlu0 %671
      %673 = vrot.lane.b32.xlu0 %v176, 78
      %v674 = vpop.permute.xlu0 %673
      %675 = vrot.lane.b32.xlu0 %v177, 78
      %v676 = vpop.permute.xlu0 %675
      %677 = vrot.lane.b32.xlu0 %v178, 78
      %v678 = vpop.permute.xlu0 %677
      %679 = vrot.lane.b32.xlu0 %v179, 78
      %v680 = vpop.permute.xlu0 %679
      %681 = vrot.lane.b32.xlu0 %v180, 78
      %v682 = vpop.permute.xlu0 %681
      %683 = vrot.lane.b32.xlu0 %v181, 78
      %v684 = vpop.permute.xlu0 %683
      %685 = vrot.lane.b32.xlu0 %v182, 78
      %v686 = vpop.permute.xlu0 %685
      %687 = vrot.lane.b32.xlu0 %v183, 78
      %v688 = vpop.permute.xlu0 %687
      %689 = vrot.lane.b32.xlu0 %v184, 78
      %v690 = vpop.permute.xlu0 %689
      %691 = vrot.lane.b32.xlu0 %v185, 78
      %v692 = vpop.permute.xlu0 %691
      %693 = vrot.lane.b32.xlu0 %v186, 78
      %v694 = vpop.permute.xlu0 %693
      %695 = vrot.lane.b32.xlu0 %v187, 78
      %v696 = vpop.permute.xlu0 %695
      %697 = vrot.lane.b32.xlu0 %v188, 78
      %v698 = vpop.permute.xlu0 %697
      %699 = vrot.lane.b32.xlu0 %v189, 78
      %v700 = vpop.permute.xlu0 %699
      %701 = vrot.lane.b32.xlu0 0.0, 78
      %v702 = vpop.permute.xlu0 %701
      %vm703 = vcmask 637952
      %v704 = vsel %vm703, %v666, %v668
      %v705 = vsel %vm703, %v668, %v670
      %v706 = vsel %vm703, %v670, %v672
      %v707 = vsel %vm703, %v672, %v674
      %v708 = vsel %vm703, %v674, %v676
      %v709 = vsel %vm703, %v676, %v678
      %v710 = vsel %vm703, %v678, %v680
      %v711 = vsel %vm703, %v680, %v682
      %v712 = vsel %vm703, %v682, %v684
      %v713 = vsel %vm703, %v684, %v686
      %v714 = vsel %vm703, %v686, %v688
      %v715 = vsel %vm703, %v688, %v690
      %v716 = vsel %vm703, %v690, %v692
      %v717 = vsel %vm703, %v692, %v694
      %v718 = vsel %vm703, %v694, %v696
      %v719 = vsel %vm703, %v696, %v698
      %v720 = vsel %vm703, %v698, %v700
      %v721 = vsel %vm703, %v700, %v702
      %741 = vrot.lane.b32.xlu0 %v172, 77
      %v742 = vpop.permute.xlu0 %741
      %743 = vrot.lane.b32.xlu0 %v173, 77
      %v744 = vpop.permute.xlu0 %743
      %745 = vrot.lane.b32.xlu0 %v174, 77
      %v746 = vpop.permute.xlu0 %745
      %747 = vrot.lane.b32.xlu0 %v175, 77
      %v748 = vpop.permute.xlu0 %747
      %749 = vrot.lane.b32.xlu0 %v176, 77
      %v750 = vpop.permute.xlu0 %749
      %751 = vrot.lane.b32.xlu0 %v177, 77
      %v752 = vpop.permute.xlu0 %751
      %753 = vrot.lane.b32.xlu0 %v178, 77
      %v754 = vpop.permute.xlu0 %753
      %755 = vrot.lane.b32.xlu0 %v179, 77
      %v756 = vpop.permute.xlu0 %755
      %757 = vrot.lane.b32.xlu0 %v180, 77
      %v758 = vpop.permute.xlu0 %757
      %759 = vrot.lane.b32.xlu0 %v181, 77
      %v760 = vpop.permute.xlu0 %759
      %761 = vrot.lane.b32.xlu0 %v182, 77
      %v762 = vpop.permute.xlu0 %761
      %763 = vrot.lane.b32.xlu0 %v183, 77
      %v764 = vpop.permute.xlu0 %763
      %765 = vrot.lane.b32.xlu0 %v184, 77
      %v766 = vpop.permute.xlu0 %765
      %767 = vrot.lane.b32.xlu0 %v185, 77
      %v768 = vpop.permute.xlu0 %767
      %769 = vrot.lane.b32.xlu0 %v186, 77
      %v770 = vpop.permute.xlu0 %769
      %771 = vrot.lane.b32.xlu0 %v187, 77
      %v772 = vpop.permute.xlu0 %771
      %773 = vrot.lane.b32.xlu0 %v188, 77
      %v774 = vpop.permute.xlu0 %773
      %775 = vrot.lane.b32.xlu0 %v189, 77
      %v776 = vpop.permute.xlu0 %775
      %777 = vrot.lane.b32.xlu0 0.0, 77
      %v778 = vpop.permute.xlu0 %777
      %vm779 = vcmask 629760
      %v780 = vsel %vm779, %v742, %v744
      %v781 = vsel %vm779, %v744, %v746
      %v782 = vsel %vm779, %v746, %v748
      %v783 = vsel %vm779, %v748, %v750
      %v784 = vsel %vm779, %v750, %v752
      %v785 = vsel %vm779, %v752, %v754
      %v786 = vsel %vm779, %v754, %v756
      %v787 = vsel %vm779, %v756, %v758
      %v788 = vsel %vm779, %v758, %v760
      %v789 = vsel %vm779, %v760, %v762
      %v790 = vsel %vm779, %v762, %v764
      %v791 = vsel %vm779, %v764, %v766
      %v792 = vsel %vm779, %v766, %v768
      %v793 = vsel %vm779, %v768, %v770
      %v794 = vsel %vm779, %v770, %v772
      %v795 = vsel %vm779, %v772, %v774
      %v796 = vsel %vm779, %v774, %v776
      %v797 = vsel %vm779, %v776, %v778
      %817 = vrot.lane.b32.xlu0 %v172, 76
      %v818 = vpop.permute.xlu0 %817
      %819 = vrot.lane.b32.xlu0 %v173, 76
      %v820 = vpop.permute.xlu0 %819
      %821 = vrot.lane.b32.xlu0 %v174, 76
      %v822 = vpop.permute.xlu0 %821
      %823 = vrot.lane.b32.xlu0 %v175, 76
      %v824 = vpop.permute.xlu0 %823
      %825 = vrot.lane.b32.xlu0 %v176, 76
      %v826 = vpop.permute.xlu0 %825
      %827 = vrot.lane.b32.xlu0 %v177, 76
      %v828 = vpop.permute.xlu0 %827
      %829 = vrot.lane.b32.xlu0 %v178, 76
      %v830 = vpop.permute.xlu0 %829
      %831 = vrot.lane.b32.xlu0 %v179, 76
      %v832 = vpop.permute.xlu0 %831
      %833 = vrot.lane.b32.xlu0 %v180, 76
      %v834 = vpop.permute.xlu0 %833
      %835 = vrot.lane.b32.xlu0 %v181, 76
      %v836 = vpop.permute.xlu0 %835
      %837 = vrot.lane.b32.xlu0 %v182, 76
      %v838 = vpop.permute.xlu0 %837
      %839 = vrot.lane.b32.xlu0 %v183, 76
      %v840 = vpop.permute.xlu0 %839
      %841 = vrot.lane.b32.xlu0 %v184, 76
      %v842 = vpop.permute.xlu0 %841
      %843 = vrot.lane.b32.xlu0 %v185, 76
      %v844 = vpop.permute.xlu0 %843
      %845 = vrot.lane.b32.xlu0 %v186, 76
      %v846 = vpop.permute.xlu0 %845
      %847 = vrot.lane.b32.xlu0 %v187, 76
      %v848 = vpop.permute.xlu0 %847
      %849 = vrot.lane.b32.xlu0 %v188, 76
      %v850 = vpop.permute.xlu0 %849
      %851 = vrot.lane.b32.xlu0 %v189, 76
      %v852 = vpop.permute.xlu0 %851
      %853 = vrot.lane.b32.xlu0 0.0, 76
      %v854 = vpop.permute.xlu0 %853
      %vm855 = vcmask 621568
      %v856 = vsel %vm855, %v818, %v820
      %v857 = vsel %vm855, %v820, %v822
      %v858 = vsel %vm855, %v822, %v824
      %v859 = vsel %vm855, %v824, %v826
      %v860 = vsel %vm855, %v826, %v828
      %v861 = vsel %vm855, %v828, %v830
      %v862 = vsel %vm855, %v830, %v832
      %v863 = vsel %vm855, %v832, %v834
      %v864 = vsel %vm855, %v834, %v836
      %v865 = vsel %vm855, %v836, %v838
      %v866 = vsel %vm855, %v838, %v840
      %v867 = vsel %vm855, %v840, %v842
      %v868 = vsel %vm855, %v842, %v844
      %v869 = vsel %vm855, %v844, %v846
      %v870 = vsel %vm855, %v846, %v848
      %v871 = vsel %vm855, %v848, %v850
      %v872 = vsel %vm855, %v850, %v852
      %v873 = vsel %vm855, %v852, %v854
      %893 = vrot.lane.b32.xlu0 %v172, 32
      %v894 = vpop.permute.xlu0 %893
      %895 = vrot.lane.b32.xlu0 %v173, 32
      %v896 = vpop.permute.xlu0 %895
      %897 = vrot.lane.b32.xlu0 %v174, 32
      %v898 = vpop.permute.xlu0 %897
      %899 = vrot.lane.b32.xlu0 %v175, 32
      %v900 = vpop.permute.xlu0 %899
      %901 = vrot.lane.b32.xlu0 %v176, 32
      %v902 = vpop.permute.xlu0 %901
      %903 = vrot.lane.b32.xlu0 %v177, 32
      %v904 = vpop.permute.xlu0 %903
      %905 = vrot.lane.b32.xlu0 %v178, 32
      %v906 = vpop.permute.xlu0 %905
      %907 = vrot.lane.b32.xlu0 %v179, 32
      %v908 = vpop.permute.xlu0 %907
      %909 = vrot.lane.b32.xlu0 %v180, 32
      %v910 = vpop.permute.xlu0 %909
      %911 = vrot.lane.b32.xlu0 %v181, 32
      %v912 = vpop.permute.xlu0 %911
      %913 = vrot.lane.b32.xlu0 %v182, 32
      %v914 = vpop.permute.xlu0 %913
      %915 = vrot.lane.b32.xlu0 %v183, 32
      %v916 = vpop.permute.xlu0 %915
      %917 = vrot.lane.b32.xlu0 %v184, 32
      %v918 = vpop.permute.xlu0 %917
      %919 = vrot.lane.b32.xlu0 %v185, 32
      %v920 = vpop.permute.xlu0 %919
      %921 = vrot.lane.b32.xlu0 %v186, 32
      %v922 = vpop.permute.xlu0 %921
      %923 = vrot.lane.b32.xlu0 %v187, 32
      %v924 = vpop.permute.xlu0 %923
      %925 = vrot.lane.b32.xlu0 %v188, 32
      %v926 = vpop.permute.xlu0 %925
      %927 = vrot.lane.b32.xlu0 %v189, 32
      %v928 = vpop.permute.xlu0 %927
      %929 = vrot.lane.b32.xlu0 0.0, 32
      %v930 = vpop.permute.xlu0 %929
      %vm931 = vcmask 261120
      %v932 = vsel %vm931, %v894, %v896
      %v933 = vsel %vm931, %v896, %v898
      %v934 = vsel %vm931, %v898, %v900
      %v935 = vsel %vm931, %v900, %v902
      %v936 = vsel %vm931, %v902, %v904
      %v937 = vsel %vm931, %v904, %v906
      %v938 = vsel %vm931, %v906, %v908
      %v939 = vsel %vm931, %v908, %v910
      %v940 = vsel %vm931, %v910, %v912
      %v941 = vsel %vm931, %v912, %v914
      %v942 = vsel %vm931, %v914, %v916
      %v943 = vsel %vm931, %v916, %v918
      %v944 = vsel %vm931, %v918, %v920
      %v945 = vsel %vm931, %v920, %v922
      %v946 = vsel %vm931, %v922, %v924
      %v947 = vsel %vm931, %v924, %v926
      %v948 = vsel %vm931, %v926, %v928
      %v949 = vsel %vm931, %v928, %v930
      %969 = vrot.lane.b32.xlu0 %v172, 31
      %v970 = vpop.permute.xlu0 %969
      %971 = vrot.lane.b32.xlu0 %v173, 31
      %v972 = vpop.permute.xlu0 %971
      %973 = vrot.lane.b32.xlu0 %v174, 31
      %v974 = vpop.permute.xlu0 %973
      %975 = vrot.lane.b32.xlu0 %v175, 31
      %v976 = vpop.permute.xlu0 %975
      %977 = vrot.lane.b32.xlu0 %v176, 31
      %v978 = vpop.permute.xlu0 %977
      %979 = vrot.lane.b32.xlu0 %v177, 31
      %v980 = vpop.permute.xlu0 %979
      %981 = vrot.lane.b32.xlu0 %v178, 31
      %v982 = vpop.permute.xlu0 %981
      %983 = vrot.lane.b32.xlu0 %v179, 31
      %v984 = vpop.permute.xlu0 %983
      %985 = vrot.lane.b32.xlu0 %v180, 31
      %v986 = vpop.permute.xlu0 %985
      %987 = vrot.lane.b32.xlu0 %v181, 31
      %v988 = vpop.permute.xlu0 %987
      %989 = vrot.lane.b32.xlu0 %v182, 31
      %v990 = vpop.permute.xlu0 %989
      %991 = vrot.lane.b32.xlu0 %v183, 31
      %v992 = vpop.permute.xlu0 %991
      %993 = vrot.lane.b32.xlu0 %v184, 31
      %v994 = vpop.permute.xlu0 %993
      %995 = vrot.lane.b32.xlu0 %v185, 31
      %v996 = vpop.permute.xlu0 %995
      %997 = vrot.lane.b32.xlu0 %v186, 31
      %v998 = vpop.permute.xlu0 %997
      %999 = vrot.lane.b32.xlu0 %v187, 31
      %v1000 = vpop.permute.xlu0 %999
      %1001 = vrot.lane.b32.xlu0 %v188, 31
      %v1002 = vpop.permute.xlu0 %1001
      %1003 = vrot.lane.b32.xlu0 %v189, 31
      %v1004 = vpop.permute.xlu0 %1003
      %1005 = vrot.lane.b32.xlu0 0.0, 31
      %v1006 = vpop.permute.xlu0 %1005
      %vm1007 = vcmask 252928
      %v1008 = vsel %vm1007, %v970, %v972
      %v1009 = vsel %vm1007, %v972, %v974
      %v1010 = vsel %vm1007, %v974, %v976
      %v1011 = vsel %vm1007, %v976, %v978
      %v1012 = vsel %vm1007, %v978, %v980
      %v1013 = vsel %vm1007, %v980, %v982
      %v1014 = vsel %vm1007, %v982, %v984
      %v1015 = vsel %vm1007, %v984, %v986
      %v1016 = vsel %vm1007, %v986, %v988
      %v1017 = vsel %vm1007, %v988, %v990
      %v1018 = vsel %vm1007, %v990, %v992
      %v1019 = vsel %vm1007, %v992, %v994
      %v1020 = vsel %vm1007, %v994, %v996
      %v1021 = vsel %vm1007, %v996, %v998
      %v1022 = vsel %vm1007, %v998, %v1000
      %v1023 = vsel %vm1007, %v1000, %v1002
      %v1024 = vsel %vm1007, %v1002, %v1004
      %v1025 = vsel %vm1007, %v1004, %v1006
      %1045 = vrot.lane.b32.xlu0 %v172, 30
      %v1046 = vpop.permute.xlu0 %1045
      %1047 = vrot.lane.b32.xlu0 %v173, 30
      %v1048 = vpop.permute.xlu0 %1047
      %1049 = vrot.lane.b32.xlu0 %v174, 30
      %v1050 = vpop.permute.xlu0 %1049
      %1051 = vrot.lane.b32.xlu0 %v175, 30
      %v1052 = vpop.permute.xlu0 %1051
      %1053 = vrot.lane.b32.xlu0 %v176, 30
      %v1054 = vpop.permute.xlu0 %1053
      %1055 = vrot.lane.b32.xlu0 %v177, 30
      %v1056 = vpop.permute.xlu0 %1055
      %1057 = vrot.lane.b32.xlu0 %v178, 30
      %v1058 = vpop.permute.xlu0 %1057
      %1059 = vrot.lane.b32.xlu0 %v179, 30
      %v1060 = vpop.permute.xlu0 %1059
      %1061 = vrot.lane.b32.xlu0 %v180, 30
      %v1062 = vpop.permute.xlu0 %1061
      %1063 = vrot.lane.b32.xlu0 %v181, 30
      %v1064 = vpop.permute.xlu0 %1063
      %1065 = vrot.lane.b32.xlu0 %v182, 30
      %v1066 = vpop.permute.xlu0 %1065
      %1067 = vrot.lane.b32.xlu0 %v183, 30
      %v1068 = vpop.permute.xlu0 %1067
      %1069 = vrot.lane.b32.xlu0 %v184, 30
      %v1070 = vpop.permute.xlu0 %1069
      %1071 = vrot.lane.b32.xlu0 %v185, 30
      %v1072 = vpop.permute.xlu0 %1071
      %1073 = vrot.lane.b32.xlu0 %v186, 30
      %v1074 = vpop.permute.xlu0 %1073
      %1075 = vrot.lane.b32.xlu0 %v187, 30
      %v1076 = vpop.permute.xlu0 %1075
      %1077 = vrot.lane.b32.xlu0 %v188, 30
      %v1078 = vpop.permute.xlu0 %1077
      %1079 = vrot.lane.b32.xlu0 %v189, 30
      %v1080 = vpop.permute.xlu0 %1079
      %1081 = vrot.lane.b32.xlu0 0.0, 30
      %v1082 = vpop.permute.xlu0 %1081
      %vm1083 = vcmask 244736
      %v1084 = vsel %vm1083, %v1046, %v1048
      %v1085 = vsel %vm1083, %v1048, %v1050
      %v1086 = vsel %vm1083, %v1050, %v1052
      %v1087 = vsel %vm1083, %v1052, %v1054
      %v1088 = vsel %vm1083, %v1054, %v1056
      %v1089 = vsel %vm1083, %v1056, %v1058
      %v1090 = vsel %vm1083, %v1058, %v1060
      %v1091 = vsel %vm1083, %v1060, %v1062
      %v1092 = vsel %vm1083, %v1062, %v1064
      %v1093 = vsel %vm1083, %v1064, %v1066
      %v1094 = vsel %vm1083, %v1066, %v1068
      %v1095 = vsel %vm1083, %v1068, %v1070
      %v1096 = vsel %vm1083, %v1070, %v1072
      %v1097 = vsel %vm1083, %v1072, %v1074
      %v1098 = vsel %vm1083, %v1074, %v1076
      %v1099 = vsel %vm1083, %v1076, %v1078
      %v1100 = vsel %vm1083, %v1078, %v1080
      %v1101 = vsel %vm1083, %v1080, %v1082
      %1121 = vrot.lane.b32.xlu0 %v172, 29
      %v1122 = vpop.permute.xlu0 %1121
      %1123 = vrot.lane.b32.xlu0 %v173, 29
      %v1124 = vpop.permute.xlu0 %1123
      %1125 = vrot.lane.b32.xlu0 %v174, 29
      %v1126 = vpop.permute.xlu0 %1125
      %1127 = vrot.lane.b32.xlu0 %v175, 29
      %v1128 = vpop.permute.xlu0 %1127
      %1129 = vrot.lane.b32.xlu0 %v176, 29
      %v1130 = vpop.permute.xlu0 %1129
      %1131 = vrot.lane.b32.xlu0 %v177, 29
      %v1132 = vpop.permute.xlu0 %1131
      %1133 = vrot.lane.b32.xlu0 %v178, 29
      %v1134 = vpop.permute.xlu0 %1133
      %1135 = vrot.lane.b32.xlu0 %v179, 29
      %v1136 = vpop.permute.xlu0 %1135
      %1137 = vrot.lane.b32.xlu0 %v180, 29
      %v1138 = vpop.permute.xlu0 %1137
      %1139 = vrot.lane.b32.xlu0 %v181, 29
      %v1140 = vpop.permute.xlu0 %1139
      %1141 = vrot.lane.b32.xlu0 %v182, 29
      %v1142 = vpop.permute.xlu0 %1141
      %1143 = vrot.lane.b32.xlu0 %v183, 29
      %v1144 = vpop.permute.xlu0 %1143
      %1145 = vrot.lane.b32.xlu0 %v184, 29
      %v1146 = vpop.permute.xlu0 %1145
      %1147 = vrot.lane.b32.xlu0 %v185, 29
      %v1148 = vpop.permute.xlu0 %1147
      %1149 = vrot.lane.b32.xlu0 %v186, 29
      %v1150 = vpop.permute.xlu0 %1149
      %1151 = vrot.lane.b32.xlu0 %v187, 29
      %v1152 = vpop.permute.xlu0 %1151
      %1153 = vrot.lane.b32.xlu0 %v188, 29
      %v1154 = vpop.permute.xlu0 %1153
      %1155 = vrot.lane.b32.xlu0 %v189, 29
      %v1156 = vpop.permute.xlu0 %1155
      %1157 = vrot.lane.b32.xlu0 0.0, 29
      %v1158 = vpop.permute.xlu0 %1157
      %vm1159 = vcmask 236544
      %v1160 = vsel %vm1159, %v1122, %v1124
      %v1161 = vsel %vm1159, %v1124, %v1126
      %v1162 = vsel %vm1159, %v1126, %v1128
      %v1163 = vsel %vm1159, %v1128, %v1130
      %v1164 = vsel %vm1159, %v1130, %v1132
      %v1165 = vsel %vm1159, %v1132, %v1134
      %v1166 = vsel %vm1159, %v1134, %v1136
      %v1167 = vsel %vm1159, %v1136, %v1138
      %v1168 = vsel %vm1159, %v1138, %v1140
      %v1169 = vsel %vm1159, %v1140, %v1142
      %v1170 = vsel %vm1159, %v1142, %v1144
      %v1171 = vsel %vm1159, %v1144, %v1146
      %v1172 = vsel %vm1159, %v1146, %v1148
      %v1173 = vsel %vm1159, %v1148, %v1150
      %v1174 = vsel %vm1159, %v1150, %v1152
      %v1175 = vsel %vm1159, %v1152, %v1154
      %v1176 = vsel %vm1159, %v1154, %v1156
      %v1177 = vsel %vm1159, %v1156, %v1158
      %1197 = vrot.lane.b32.xlu0 %v172, 28
      %v1198 = vpop.permute.xlu0 %1197
      %1199 = vrot.lane.b32.xlu0 %v173, 28
      %v1200 = vpop.permute.xlu0 %1199
      %1201 = vrot.lane.b32.xlu0 %v174, 28
      %v1202 = vpop.permute.xlu0 %1201
      %1203 = vrot.lane.b32.xlu0 %v175, 28
      %v1204 = vpop.permute.xlu0 %1203
      %1205 = vrot.lane.b32.xlu0 %v176, 28
      %v1206 = vpop.permute.xlu0 %1205
      %1207 = vrot.lane.b32.xlu0 %v177, 28
      %v1208 = vpop.permute.xlu0 %1207
      %1209 = vrot.lane.b32.xlu0 %v178, 28
      %v1210 = vpop.permute.xlu0 %1209
      %1211 = vrot.lane.b32.xlu0 %v179, 28
      %v1212 = vpop.permute.xlu0 %1211
      %1213 = vrot.lane.b32.xlu0 %v180, 28
      %v1214 = vpop.permute.xlu0 %1213
      %1215 = vrot.lane.b32.xlu0 %v181, 28
      %v1216 = vpop.permute.xlu0 %1215
      %1217 = vrot.lane.b32.xlu0 %v182, 28
      %v1218 = vpop.permute.xlu0 %1217
      %1219 = vrot.lane.b32.xlu0 %v183, 28
      %v1220 = vpop.permute.xlu0 %1219
      %1221 = vrot.lane.b32.xlu0 %v184, 28
      %v1222 = vpop.permute.xlu0 %1221
      %1223 = vrot.lane.b32.xlu0 %v185, 28
      %v1224 = vpop.permute.xlu0 %1223
      %1225 = vrot.lane.b32.xlu0 %v186, 28
      %v1226 = vpop.permute.xlu0 %1225
      %1227 = vrot.lane.b32.xlu0 %v187, 28
      %v1228 = vpop.permute.xlu0 %1227
      %1229 = vrot.lane.b32.xlu0 %v188, 28
      %v1230 = vpop.permute.xlu0 %1229
      %1231 = vrot.lane.b32.xlu0 %v189, 28
      %v1232 = vpop.permute.xlu0 %1231
      %1233 = vrot.lane.b32.xlu0 0.0, 28
      %v1234 = vpop.permute.xlu0 %1233
      %vm1235 = vcmask 228352
      %v1236 = vsel %vm1235, %v1198, %v1200
      %v1237 = vsel %vm1235, %v1200, %v1202
      %v1238 = vsel %vm1235, %v1202, %v1204
      %v1239 = vsel %vm1235, %v1204, %v1206
      %v1240 = vsel %vm1235, %v1206, %v1208
      %v1241 = vsel %vm1235, %v1208, %v1210
      %v1242 = vsel %vm1235, %v1210, %v1212
      %v1243 = vsel %vm1235, %v1212, %v1214
      %v1244 = vsel %vm1235, %v1214, %v1216
      %v1245 = vsel %vm1235, %v1216, %v1218
      %v1246 = vsel %vm1235, %v1218, %v1220
      %v1247 = vsel %vm1235, %v1220, %v1222
      %v1248 = vsel %vm1235, %v1222, %v1224
      %v1249 = vsel %vm1235, %v1224, %v1226
      %v1250 = vsel %vm1235, %v1226, %v1228
      %v1251 = vsel %vm1235, %v1228, %v1230
      %v1252 = vsel %vm1235, %v1230, %v1232
      %v1253 = vsel %vm1235, %v1232, %v1234
      %1273 = vrot.lane.b32.xlu0 %v173, 112
      %v1274 = vpop.permute.xlu0 %1273
      %1275 = vrot.lane.b32.xlu0 %v174, 112
      %v1276 = vpop.permute.xlu0 %1275
      %1277 = vrot.lane.b32.xlu0 %v175, 112
      %v1278 = vpop.permute.xlu0 %1277
      %1279 = vrot.lane.b32.xlu0 %v176, 112
      %v1280 = vpop.permute.xlu0 %1279
      %1281 = vrot.lane.b32.xlu0 %v177, 112
      %v1282 = vpop.permute.xlu0 %1281
      %1283 = vrot.lane.b32.xlu0 %v178, 112
      %v1284 = vpop.permute.xlu0 %1283
      %1285 = vrot.lane.b32.xlu0 %v179, 112
      %v1286 = vpop.permute.xlu0 %1285
      %1287 = vrot.lane.b32.xlu0 %v180, 112
      %v1288 = vpop.permute.xlu0 %1287
      %1289 = vrot.lane.b32.xlu0 %v181, 112
      %v1290 = vpop.permute.xlu0 %1289
      %1291 = vrot.lane.b32.xlu0 %v182, 112
      %v1292 = vpop.permute.xlu0 %1291
      %1293 = vrot.lane.b32.xlu0 %v183, 112
      %v1294 = vpop.permute.xlu0 %1293
      %1295 = vrot.lane.b32.xlu0 %v184, 112
      %v1296 = vpop.permute.xlu0 %1295
      %1297 = vrot.lane.b32.xlu0 %v185, 112
      %v1298 = vpop.permute.xlu0 %1297
      %1299 = vrot.lane.b32.xlu0 %v186, 112
      %v1300 = vpop.permute.xlu0 %1299
      %1301 = vrot.lane.b32.xlu0 %v187, 112
      %v1302 = vpop.permute.xlu0 %1301
      %1303 = vrot.lane.b32.xlu0 %v188, 112
      %v1304 = vpop.permute.xlu0 %1303
      %1305 = vrot.lane.b32.xlu0 %v189, 112
      %v1306 = vpop.permute.xlu0 %1305
      %1307 = vrot.lane.b32.xlu0 0.0, 112
      %v1308 = vpop.permute.xlu0 %1307
      %vm1309 = vcmask 916480
      %v1310 = vsel %vm1309, %v1274, %v1276
      %v1311 = vsel %vm1309, %v1276, %v1278
      %v1312 = vsel %vm1309, %v1278, %v1280
      %v1313 = vsel %vm1309, %v1280, %v1282
      %v1314 = vsel %vm1309, %v1282, %v1284
      %v1315 = vsel %vm1309, %v1284, %v1286
      %v1316 = vsel %vm1309, %v1286, %v1288
      %v1317 = vsel %vm1309, %v1288, %v1290
      %v1318 = vsel %vm1309, %v1290, %v1292
      %v1319 = vsel %vm1309, %v1292, %v1294
      %v1320 = vsel %vm1309, %v1294, %v1296
      %v1321 = vsel %vm1309, %v1296, %v1298
      %v1322 = vsel %vm1309, %v1298, %v1300
      %v1323 = vsel %vm1309, %v1300, %v1302
      %v1324 = vsel %vm1309, %v1302, %v1304
      %v1325 = vsel %vm1309, %v1304, %v1306
      %v1326 = vsel %vm1309, %v1306, %v1308
      %1345 = vrot.lane.b32.xlu0 %v173, 81
      %v1346 = vpop.permute.xlu0 %1345
      %1347 = vrot.lane.b32.xlu0 %v174, 81
      %v1348 = vpop.permute.xlu0 %1347
      %1349 = vrot.lane.b32.xlu0 %v175, 81
      %v1350 = vpop.permute.xlu0 %1349
      %1351 = vrot.lane.b32.xlu0 %v176, 81
      %v1352 = vpop.permute.xlu0 %1351
      %1353 = vrot.lane.b32.xlu0 %v177, 81
      %v1354 = vpop.permute.xlu0 %1353
      %1355 = vrot.lane.b32.xlu0 %v178, 81
      %v1356 = vpop.permute.xlu0 %1355
      %1357 = vrot.lane.b32.xlu0 %v179, 81
      %v1358 = vpop.permute.xlu0 %1357
      %1359 = vrot.lane.b32.xlu0 %v180, 81
      %v1360 = vpop.permute.xlu0 %1359
      %1361 = vrot.lane.b32.xlu0 %v181, 81
      %v1362 = vpop.permute.xlu0 %1361
      %1363 = vrot.lane.b32.xlu0 %v182, 81
      %v1364 = vpop.permute.xlu0 %1363
      %1365 = vrot.lane.b32.xlu0 %v183, 81
      %v1366 = vpop.permute.xlu0 %1365
      %1367 = vrot.lane.b32.xlu0 %v184, 81
      %v1368 = vpop.permute.xlu0 %1367
      %1369 = vrot.lane.b32.xlu0 %v185, 81
      %v1370 = vpop.permute.xlu0 %1369
      %1371 = vrot.lane.b32.xlu0 %v186, 81
      %v1372 = vpop.permute.xlu0 %1371
      %1373 = vrot.lane.b32.xlu0 %v187, 81
      %v1374 = vpop.permute.xlu0 %1373
      %1375 = vrot.lane.b32.xlu0 %v188, 81
      %v1376 = vpop.permute.xlu0 %1375
      %1377 = vrot.lane.b32.xlu0 %v189, 81
      %v1378 = vpop.permute.xlu0 %1377
      %1379 = vrot.lane.b32.xlu0 0.0, 81
      %v1380 = vpop.permute.xlu0 %1379
      %vm1381 = vcmask 662528
      %v1382 = vsel %vm1381, %v1346, %v1348
      %v1383 = vsel %vm1381, %v1348, %v1350
      %v1384 = vsel %vm1381, %v1350, %v1352
      %v1385 = vsel %vm1381, %v1352, %v1354
      %v1386 = vsel %vm1381, %v1354, %v1356
      %v1387 = vsel %vm1381, %v1356, %v1358
      %v1388 = vsel %vm1381, %v1358, %v1360
      %v1389 = vsel %vm1381, %v1360, %v1362
      %v1390 = vsel %vm1381, %v1362, %v1364
      %v1391 = vsel %vm1381, %v1364, %v1366
      %v1392 = vsel %vm1381, %v1366, %v1368
      %v1393 = vsel %vm1381, %v1368, %v1370
      %v1394 = vsel %vm1381, %v1370, %v1372
      %v1395 = vsel %vm1381, %v1372, %v1374
      %v1396 = vsel %vm1381, %v1374, %v1376
      %v1397 = vsel %vm1381, %v1376, %v1378
      %v1398 = vsel %vm1381, %v1378, %v1380
      %1399 = vrot.lane.b32.xlu0 %v173, 111
      %v1400 = vpop.permute.xlu0 %1399
      %1401 = vrot.lane.b32.xlu0 %v174, 111
      %v1402 = vpop.permute.xlu0 %1401
      %1403 = vrot.lane.b32.xlu0 %v175, 111
      %v1404 = vpop.permute.xlu0 %1403
      %1405 = vrot.lane.b32.xlu0 %v176, 111
      %v1406 = vpop.permute.xlu0 %1405
      %1407 = vrot.lane.b32.xlu0 %v177, 111
      %v1408 = vpop.permute.xlu0 %1407
      %1409 = vrot.lane.b32.xlu0 %v178, 111
      %v1410 = vpop.permute.xlu0 %1409
      %1411 = vrot.lane.b32.xlu0 %v179, 111
      %v1412 = vpop.permute.xlu0 %1411
      %1413 = vrot.lane.b32.xlu0 %v180, 111
      %v1414 = vpop.permute.xlu0 %1413
      %1415 = vrot.lane.b32.xlu0 %v181, 111
      %v1416 = vpop.permute.xlu0 %1415
      %1417 = vrot.lane.b32.xlu0 %v182, 111
      %v1418 = vpop.permute.xlu0 %1417
      %1419 = vrot.lane.b32.xlu0 %v183, 111
      %v1420 = vpop.permute.xlu0 %1419
      %1421 = vrot.lane.b32.xlu0 %v184, 111
      %v1422 = vpop.permute.xlu0 %1421
      %1423 = vrot.lane.b32.xlu0 %v185, 111
      %v1424 = vpop.permute.xlu0 %1423
      %1425 = vrot.lane.b32.xlu0 %v186, 111
      %v1426 = vpop.permute.xlu0 %1425
      %1427 = vrot.lane.b32.xlu0 %v187, 111
      %v1428 = vpop.permute.xlu0 %1427
      %1429 = vrot.lane.b32.xlu0 %v188, 111
      %v1430 = vpop.permute.xlu0 %1429
      %1431 = vrot.lane.b32.xlu0 %v189, 111
      %v1432 = vpop.permute.xlu0 %1431
      %1433 = vrot.lane.b32.xlu0 0.0, 111
      %v1434 = vpop.permute.xlu0 %1433
      %1435 = vrot.lane.b32.xlu0 %v249, 111
      %v1436 = vpop.permute.xlu0 %1435
      %1437 = vrot.lane.b32.xlu0 %v250, 111
      %v1438 = vpop.permute.xlu0 %1437
      %1439 = vrot.lane.b32.xlu0 %v251, 111
      %v1440 = vpop.permute.xlu0 %1439
      %1441 = vrot.lane.b32.xlu0 %v252, 111
      %v1442 = vpop.permute.xlu0 %1441
      %1443 = vrot.lane.b32.xlu0 %v253, 111
      %v1444 = vpop.permute.xlu0 %1443
      %1445 = vrot.lane.b32.xlu0 %v254, 111
      %v1446 = vpop.permute.xlu0 %1445
      %1447 = vrot.lane.b32.xlu0 %v255, 111
      %v1448 = vpop.permute.xlu0 %1447
      %1449 = vrot.lane.b32.xlu0 %v256, 111
      %v1450 = vpop.permute.xlu0 %1449
      %1451 = vrot.lane.b32.xlu0 %v257, 111
      %v1452 = vpop.permute.xlu0 %1451
      %1453 = vrot.lane.b32.xlu0 %v258, 111
      %v1454 = vpop.permute.xlu0 %1453
      %1455 = vrot.lane.b32.xlu0 %v259, 111
      %v1456 = vpop.permute.xlu0 %1455
      %1457 = vrot.lane.b32.xlu0 %v260, 111
      %v1458 = vpop.permute.xlu0 %1457
      %1459 = vrot.lane.b32.xlu0 %v261, 111
      %v1460 = vpop.permute.xlu0 %1459
      %1461 = vrot.lane.b32.xlu0 %v262, 111
      %v1462 = vpop.permute.xlu0 %1461
      %1463 = vrot.lane.b32.xlu0 %v263, 111
      %v1464 = vpop.permute.xlu0 %1463
      %1465 = vrot.lane.b32.xlu0 %v264, 111
      %v1466 = vpop.permute.xlu0 %1465
      %1467 = vrot.lane.b32.xlu0 %v265, 111
      %v1468 = vpop.permute.xlu0 %1467
      %1469 = vrot.lane.b32.xlu0 %v246, 111
      %v1470 = vpop.permute.xlu0 %1469
      %1471 = vrot.lane.b32.xlu0 %v325, 111
      %v1472 = vpop.permute.xlu0 %1471
      %1473 = vrot.lane.b32.xlu0 %v326, 111
      %v1474 = vpop.permute.xlu0 %1473
      %1475 = vrot.lane.b32.xlu0 %v327, 111
      %v1476 = vpop.permute.xlu0 %1475
      %1477 = vrot.lane.b32.xlu0 %v328, 111
      %v1478 = vpop.permute.xlu0 %1477
      %1479 = vrot.lane.b32.xlu0 %v329, 111
      %v1480 = vpop.permute.xlu0 %1479
      %1481 = vrot.lane.b32.xlu0 %v330, 111
      %v1482 = vpop.permute.xlu0 %1481
      %1483 = vrot.lane.b32.xlu0 %v331, 111
      %v1484 = vpop.permute.xlu0 %1483
      %1485 = vrot.lane.b32.xlu0 %v332, 111
      %v1486 = vpop.permute.xlu0 %1485
      %1487 = vrot.lane.b32.xlu0 %v333, 111
      %v1488 = vpop.permute.xlu0 %1487
      %1489 = vrot.lane.b32.xlu0 %v334, 111
      %v1490 = vpop.permute.xlu0 %1489
      %1491 = vrot.lane.b32.xlu0 %v335, 111
      %v1492 = vpop.permute.xlu0 %1491
      %1493 = vrot.lane.b32.xlu0 %v336, 111
      %v1494 = vpop.permute.xlu0 %1493
      %1495 = vrot.lane.b32.xlu0 %v337, 111
      %v1496 = vpop.permute.xlu0 %1495
      %1497 = vrot.lane.b32.xlu0 %v338, 111
      %v1498 = vpop.permute.xlu0 %1497
      %1499 = vrot.lane.b32.xlu0 %v339, 111
      %v1500 = vpop.permute.xlu0 %1499
      %1501 = vrot.lane.b32.xlu0 %v340, 111
      %v1502 = vpop.permute.xlu0 %1501
      %1503 = vrot.lane.b32.xlu0 %v341, 111
      %v1504 = vpop.permute.xlu0 %1503
      %1505 = vrot.lane.b32.xlu0 %v322, 111
      %v1506 = vpop.permute.xlu0 %1505
      %1507 = vrot.lane.b32.xlu0 %v401, 111
      %v1508 = vpop.permute.xlu0 %1507
      %1509 = vrot.lane.b32.xlu0 %v402, 111
      %v1510 = vpop.permute.xlu0 %1509
      %1511 = vrot.lane.b32.xlu0 %v403, 111
      %v1512 = vpop.permute.xlu0 %1511
      %1513 = vrot.lane.b32.xlu0 %v404, 111
      %v1514 = vpop.permute.xlu0 %1513
      %1515 = vrot.lane.b32.xlu0 %v405, 111
      %v1516 = vpop.permute.xlu0 %1515
      %1517 = vrot.lane.b32.xlu0 %v406, 111
      %v1518 = vpop.permute.xlu0 %1517
      %1519 = vrot.lane.b32.xlu0 %v407, 111
      %v1520 = vpop.permute.xlu0 %1519
      %1521 = vrot.lane.b32.xlu0 %v408, 111
      %v1522 = vpop.permute.xlu0 %1521
      %1523 = vrot.lane.b32.xlu0 %v409, 111
      %v1524 = vpop.permute.xlu0 %1523
      %1525 = vrot.lane.b32.xlu0 %v410, 111
      %v1526 = vpop.permute.xlu0 %1525
      %1527 = vrot.lane.b32.xlu0 %v411, 111
      %v1528 = vpop.permute.xlu0 %1527
      %1529 = vrot.lane.b32.xlu0 %v412, 111
      %v1530 = vpop.permute.xlu0 %1529
      %1531 = vrot.lane.b32.xlu0 %v413, 111
      %v1532 = vpop.permute.xlu0 %1531
      %1533 = vrot.lane.b32.xlu0 %v414, 111
      %v1534 = vpop.permute.xlu0 %1533
      %1535 = vrot.lane.b32.xlu0 %v415, 111
      %v1536 = vpop.permute.xlu0 %1535
      %1537 = vrot.lane.b32.xlu0 %v416, 111
      %v1538 = vpop.permute.xlu0 %1537
      %1539 = vrot.lane.b32.xlu0 %v417, 111
      %v1540 = vpop.permute.xlu0 %1539
      %1541 = vrot.lane.b32.xlu0 %v398, 111
      %v1542 = vpop.permute.xlu0 %1541
      %1543 = vrot.lane.b32.xlu0 %v1382, 111
      %v1544 = vpop.permute.xlu0 %1543
      %1545 = vrot.lane.b32.xlu0 %v1383, 111
      %v1546 = vpop.permute.xlu0 %1545
      %1547 = vrot.lane.b32.xlu0 %v1384, 111
      %v1548 = vpop.permute.xlu0 %1547
      %1549 = vrot.lane.b32.xlu0 %v1385, 111
      %v1550 = vpop.permute.xlu0 %1549
      %1551 = vrot.lane.b32.xlu0 %v1386, 111
      %v1552 = vpop.permute.xlu0 %1551
      %1553 = vrot.lane.b32.xlu0 %v1387, 111
      %v1554 = vpop.permute.xlu0 %1553
      %1555 = vrot.lane.b32.xlu0 %v1388, 111
      %v1556 = vpop.permute.xlu0 %1555
      %1557 = vrot.lane.b32.xlu0 %v1389, 111
      %v1558 = vpop.permute.xlu0 %1557
      %1559 = vrot.lane.b32.xlu0 %v1390, 111
      %v1560 = vpop.permute.xlu0 %1559
      %1561 = vrot.lane.b32.xlu0 %v1391, 111
      %v1562 = vpop.permute.xlu0 %1561
      %1563 = vrot.lane.b32.xlu0 %v1392, 111
      %v1564 = vpop.permute.xlu0 %1563
      %1565 = vrot.lane.b32.xlu0 %v1393, 111
      %v1566 = vpop.permute.xlu0 %1565
      %1567 = vrot.lane.b32.xlu0 %v1394, 111
      %v1568 = vpop.permute.xlu0 %1567
      %1569 = vrot.lane.b32.xlu0 %v1395, 111
      %v1570 = vpop.permute.xlu0 %1569
      %1571 = vrot.lane.b32.xlu0 %v1396, 111
      %v1572 = vpop.permute.xlu0 %1571
      %1573 = vrot.lane.b32.xlu0 %v1397, 111
      %v1574 = vpop.permute.xlu0 %1573
      %1575 = vrot.lane.b32.xlu0 %v1398, 111
      %v1576 = vpop.permute.xlu0 %1575
      %1577 = vrot.lane.b32.xlu0 %v1380, 111
      %v1578 = vpop.permute.xlu0 %1577
      %1579 = vrot.lane.b32.xlu0 %v553, 111
      %v1580 = vpop.permute.xlu0 %1579
      %1581 = vrot.lane.b32.xlu0 %v554, 111
      %v1582 = vpop.permute.xlu0 %1581
      %1583 = vrot.lane.b32.xlu0 %v555, 111
      %v1584 = vpop.permute.xlu0 %1583
      %1585 = vrot.lane.b32.xlu0 %v556, 111
      %v1586 = vpop.permute.xlu0 %1585
      %1587 = vrot.lane.b32.xlu0 %v557, 111
      %v1588 = vpop.permute.xlu0 %1587
      %1589 = vrot.lane.b32.xlu0 %v558, 111
      %v1590 = vpop.permute.xlu0 %1589
      %1591 = vrot.lane.b32.xlu0 %v559, 111
      %v1592 = vpop.permute.xlu0 %1591
      %1593 = vrot.lane.b32.xlu0 %v560, 111
      %v1594 = vpop.permute.xlu0 %1593
      %1595 = vrot.lane.b32.xlu0 %v561, 111
      %v1596 = vpop.permute.xlu0 %1595
      %1597 = vrot.lane.b32.xlu0 %v562, 111
      %v1598 = vpop.permute.xlu0 %1597
      %1599 = vrot.lane.b32.xlu0 %v563, 111
      %v1600 = vpop.permute.xlu0 %1599
      %1601 = vrot.lane.b32.xlu0 %v564, 111
      %v1602 = vpop.permute.xlu0 %1601
      %1603 = vrot.lane.b32.xlu0 %v565, 111
      %v1604 = vpop.permute.xlu0 %1603
      %1605 = vrot.lane.b32.xlu0 %v566, 111
      %v1606 = vpop.permute.xlu0 %1605
      %1607 = vrot.lane.b32.xlu0 %v567, 111
      %v1608 = vpop.permute.xlu0 %1607
      %1609 = vrot.lane.b32.xlu0 %v568, 111
      %v1610 = vpop.permute.xlu0 %1609
      %1611 = vrot.lane.b32.xlu0 %v569, 111
      %v1612 = vpop.permute.xlu0 %1611
      %1613 = vrot.lane.b32.xlu0 %v550, 111
      %v1614 = vpop.permute.xlu0 %1613
      %1615 = vrot.lane.b32.xlu0 %v629, 111
      %v1616 = vpop.permute.xlu0 %1615
      %1617 = vrot.lane.b32.xlu0 %v630, 111
      %v1618 = vpop.permute.xlu0 %1617
      %1619 = vrot.lane.b32.xlu0 %v631, 111
      %v1620 = vpop.permute.xlu0 %1619
      %1621 = vrot.lane.b32.xlu0 %v632, 111
      %v1622 = vpop.permute.xlu0 %1621
      %1623 = vrot.lane.b32.xlu0 %v633, 111
      %v1624 = vpop.permute.xlu0 %1623
      %1625 = vrot.lane.b32.xlu0 %v634, 111
      %v1626 = vpop.permute.xlu0 %1625
      %1627 = vrot.lane.b32.xlu0 %v635, 111
      %v1628 = vpop.permute.xlu0 %1627
      %1629 = vrot.lane.b32.xlu0 %v636, 111
      %v1630 = vpop.permute.xlu0 %1629
      %1631 = vrot.lane.b32.xlu0 %v637, 111
      %v1632 = vpop.permute.xlu0 %1631
      %1633 = vrot.lane.b32.xlu0 %v638, 111
      %v1634 = vpop.permute.xlu0 %1633
      %1635 = vrot.lane.b32.xlu0 %v639, 111
      %v1636 = vpop.permute.xlu0 %1635
      %1637 = vrot.lane.b32.xlu0 %v640, 111
      %v1638 = vpop.permute.xlu0 %1637
      %1639 = vrot.lane.b32.xlu0 %v641, 111
      %v1640 = vpop.permute.xlu0 %1639
      %1641 = vrot.lane.b32.xlu0 %v642, 111
      %v1642 = vpop.permute.xlu0 %1641
      %1643 = vrot.lane.b32.xlu0 %v643, 111
      %v1644 = vpop.permute.xlu0 %1643
      %1645 = vrot.lane.b32.xlu0 %v644, 111
      %v1646 = vpop.permute.xlu0 %1645
      %1647 = vrot.lane.b32.xlu0 %v645, 111
      %v1648 = vpop.permute.xlu0 %1647
      %1649 = vrot.lane.b32.xlu0 %v626, 111
      %v1650 = vpop.permute.xlu0 %1649
      %1651 = vrot.lane.b32.xlu0 %v705, 111
      %v1652 = vpop.permute.xlu0 %1651
      %1653 = vrot.lane.b32.xlu0 %v706, 111
      %v1654 = vpop.permute.xlu0 %1653
      %1655 = vrot.lane.b32.xlu0 %v707, 111
      %v1656 = vpop.permute.xlu0 %1655
      %1657 = vrot.lane.b32.xlu0 %v708, 111
      %v1658 = vpop.permute.xlu0 %1657
      %1659 = vrot.lane.b32.xlu0 %v709, 111
      %v1660 = vpop.permute.xlu0 %1659
      %1661 = vrot.lane.b32.xlu0 %v710, 111
      %v1662 = vpop.permute.xlu0 %1661
      %1663 = vrot.lane.b32.xlu0 %v711, 111
      %v1664 = vpop.permute.xlu0 %1663
      %1665 = vrot.lane.b32.xlu0 %v712, 111
      %v1666 = vpop.permute.xlu0 %1665
      %1667 = vrot.lane.b32.xlu0 %v713, 111
      %v1668 = vpop.permute.xlu0 %1667
      %1669 = vrot.lane.b32.xlu0 %v714, 111
      %v1670 = vpop.permute.xlu0 %1669
      %1671 = vrot.lane.b32.xlu0 %v715, 111
      %v1672 = vpop.permute.xlu0 %1671
      %1673 = vrot.lane.b32.xlu0 %v716, 111
      %v1674 = vpop.permute.xlu0 %1673
      %1675 = vrot.lane.b32.xlu0 %v717, 111
      %v1676 = vpop.permute.xlu0 %1675
      %1677 = vrot.lane.b32.xlu0 %v718, 111
      %v1678 = vpop.permute.xlu0 %1677
      %1679 = vrot.lane.b32.xlu0 %v719, 111
      %v1680 = vpop.permute.xlu0 %1679
      %1681 = vrot.lane.b32.xlu0 %v720, 111
      %v1682 = vpop.permute.xlu0 %1681
      %1683 = vrot.lane.b32.xlu0 %v721, 111
      %v1684 = vpop.permute.xlu0 %1683
      %1685 = vrot.lane.b32.xlu0 %v702, 111
      %v1686 = vpop.permute.xlu0 %1685
      %1687 = vrot.lane.b32.xlu0 %v781, 111
      %v1688 = vpop.permute.xlu0 %1687
      %1689 = vrot.lane.b32.xlu0 %v782, 111
      %v1690 = vpop.permute.xlu0 %1689
      %1691 = vrot.lane.b32.xlu0 %v783, 111
      %v1692 = vpop.permute.xlu0 %1691
      %1693 = vrot.lane.b32.xlu0 %v784, 111
      %v1694 = vpop.permute.xlu0 %1693
      %1695 = vrot.lane.b32.xlu0 %v785, 111
      %v1696 = vpop.permute.xlu0 %1695
      %1697 = vrot.lane.b32.xlu0 %v786, 111
      %v1698 = vpop.permute.xlu0 %1697
      %1699 = vrot.lane.b32.xlu0 %v787, 111
      %v1700 = vpop.permute.xlu0 %1699
      %1701 = vrot.lane.b32.xlu0 %v788, 111
      %v1702 = vpop.permute.xlu0 %1701
      %1703 = vrot.lane.b32.xlu0 %v789, 111
      %v1704 = vpop.permute.xlu0 %1703
      %1705 = vrot.lane.b32.xlu0 %v790, 111
      %v1706 = vpop.permute.xlu0 %1705
      %1707 = vrot.lane.b32.xlu0 %v791, 111
      %v1708 = vpop.permute.xlu0 %1707
      %1709 = vrot.lane.b32.xlu0 %v792, 111
      %v1710 = vpop.permute.xlu0 %1709
      %1711 = vrot.lane.b32.xlu0 %v793, 111
      %v1712 = vpop.permute.xlu0 %1711
      %1713 = vrot.lane.b32.xlu0 %v794, 111
      %v1714 = vpop.permute.xlu0 %1713
      %1715 = vrot.lane.b32.xlu0 %v795, 111
      %v1716 = vpop.permute.xlu0 %1715
      %1717 = vrot.lane.b32.xlu0 %v796, 111
      %v1718 = vpop.permute.xlu0 %1717
      %1719 = vrot.lane.b32.xlu0 %v797, 111
      %v1720 = vpop.permute.xlu0 %1719
      %1721 = vrot.lane.b32.xlu0 %v778, 111
      %v1722 = vpop.permute.xlu0 %1721
      %vm1723 = vcmask 908288
      %v1724 = vsel %vm1723, %v1400, %v1402
      %v1725 = vsel %vm1723, %v1402, %v1404
      %v1726 = vsel %vm1723, %v1404, %v1406
      %v1727 = vsel %vm1723, %v1406, %v1408
      %v1728 = vsel %vm1723, %v1408, %v1410
      %v1729 = vsel %vm1723, %v1410, %v1412
      %v1730 = vsel %vm1723, %v1412, %v1414
      %v1731 = vsel %vm1723, %v1414, %v1416
      %v1732 = vsel %vm1723, %v1416, %v1418
      %v1733 = vsel %vm1723, %v1418, %v1420
      %v1734 = vsel %vm1723, %v1420, %v1422
      %v1735 = vsel %vm1723, %v1422, %v1424
      %v1736 = vsel %vm1723, %v1424, %v1426
      %v1737 = vsel %vm1723, %v1426, %v1428
      %v1738 = vsel %vm1723, %v1428, %v1430
      %v1739 = vsel %vm1723, %v1430, %v1432
      %v1740 = vsel %vm1723, %v1432, %v1434
      %v1741 = vsel %vm1723, %v1436, %v1438
      %v1742 = vsel %vm1723, %v1438, %v1440
      %v1743 = vsel %vm1723, %v1440, %v1442
      %v1744 = vsel %vm1723, %v1442, %v1444
      %v1745 = vsel %vm1723, %v1444, %v1446
      %v1746 = vsel %vm1723, %v1446, %v1448
      %v1747 = vsel %vm1723, %v1448, %v1450
      %v1748 = vsel %vm1723, %v1450, %v1452
      %v1749 = vsel %vm1723, %v1452, %v1454
      %v1750 = vsel %vm1723, %v1454, %v1456
      %v1751 = vsel %vm1723, %v1456, %v1458
      %v1752 = vsel %vm1723, %v1458, %v1460
      %v1753 = vsel %vm1723, %v1460, %v1462
      %v1754 = vsel %vm1723, %v1462, %v1464
      %v1755 = vsel %vm1723, %v1464, %v1466
      %v1756 = vsel %vm1723, %v1466, %v1468
      %v1757 = vsel %vm1723, %v1468, %v1470
      %v1758 = vsel %vm1723, %v1470, %v1470
      %v1759 = vsel %vm1723, %v1472, %v1474
      %v1760 = vsel %vm1723, %v1474, %v1476
      %v1761 = vsel %vm1723, %v1476, %v1478
      %v1762 = vsel %vm1723, %v1478, %v1480
      %v1763 = vsel %vm1723, %v1480, %v1482
      %v1764 = vsel %vm1723, %v1482, %v1484
      %v1765 = vsel %vm1723, %v1484, %v1486
      %v1766 = vsel %vm1723, %v1486, %v1488
      %v1767 = vsel %vm1723, %v1488, %v1490
      %v1768 = vsel %vm1723, %v1490, %v1492
      %v1769 = vsel %vm1723, %v1492, %v1494
      %v1770 = vsel %vm1723, %v1494, %v1496
      %v1771 = vsel %vm1723, %v1496, %v1498
      %v1772 = vsel %vm1723, %v1498, %v1500
      %v1773 = vsel %vm1723, %v1500, %v1502
      %v1774 = vsel %vm1723, %v1502, %v1504
      %v1775 = vsel %vm1723, %v1504, %v1506
      %v1776 = vsel %vm1723, %v1506, %v1506
      %v1777 = vsel %vm1723, %v1508, %v1510
      %v1778 = vsel %vm1723, %v1510, %v1512
      %v1779 = vsel %vm1723, %v1512, %v1514
      %v1780 = vsel %vm1723, %v1514, %v1516
      %v1781 = vsel %vm1723, %v1516, %v1518
      %v1782 = vsel %vm1723, %v1518, %v1520
      %v1783 = vsel %vm1723, %v1520, %v1522
      %v1784 = vsel %vm1723, %v1522, %v1524
      %v1785 = vsel %vm1723, %v1524, %v1526
      %v1786 = vsel %vm1723, %v1526, %v1528
      %v1787 = vsel %vm1723, %v1528, %v1530
      %v1788 = vsel %vm1723, %v1530, %v1532
      %v1789 = vsel %vm1723, %v1532, %v1534
      %v1790 = vsel %vm1723, %v1534, %v1536
      %v1791 = vsel %vm1723, %v1536, %v1538
      %v1792 = vsel %vm1723, %v1538, %v1540
      %v1793 = vsel %vm1723, %v1540, %v1542
      %v1794 = vsel %vm1723, %v1542, %v1542
      %v1795 = vsel %vm1723, %v1544, %v1546
      %v1796 = vsel %vm1723, %v1546, %v1548
      %v1797 = vsel %vm1723, %v1548, %v1550
      %v1798 = vsel %vm1723, %v1550, %v1552
      %v1799 = vsel %vm1723, %v1552, %v1554
      %v1800 = vsel %vm1723, %v1554, %v1556
      %v1801 = vsel %vm1723, %v1556, %v1558
      %v1802 = vsel %vm1723, %v1558, %v1560
      %v1803 = vsel %vm1723, %v1560, %v1562
      %v1804 = vsel %vm1723, %v1562, %v1564
      %v1805 = vsel %vm1723, %v1564, %v1566
      %v1806 = vsel %vm1723, %v1566, %v1568
      %v1807 = vsel %vm1723, %v1568, %v1570
      %v1808 = vsel %vm1723, %v1570, %v1572
      %v1809 = vsel %vm1723, %v1572, %v1574
      %v1810 = vsel %vm1723, %v1574, %v1576
      %v1811 = vsel %vm1723, %v1576, %v1578
      %v1812 = vsel %vm1723, %v1578, %v1578
      %v1813 = vsel %vm1723, %v1580, %v1582
      %v1814 = vsel %vm1723, %v1582, %v1584
      %v1815 = vsel %vm1723, %v1584, %v1586
      %v1816 = vsel %vm1723, %v1586, %v1588
      %v1817 = vsel %vm1723, %v1588, %v1590
      %v1818 = vsel %vm1723, %v1590, %v1592
      %v1819 = vsel %vm1723, %v1592, %v1594
      %v1820 = vsel %vm1723, %v1594, %v1596
      %v1821 = vsel %vm1723, %v1596, %v1598
      %v1822 = vsel %vm1723, %v1598, %v1600
      %v1823 = vsel %vm1723, %v1600, %v1602
      %v1824 = vsel %vm1723, %v1602, %v1604
      %v1825 = vsel %vm1723, %v1604, %v1606
      %v1826 = vsel %vm1723, %v1606, %v1608
      %v1827 = vsel %vm1723, %v1608, %v1610
      %v1828 = vsel %vm1723, %v1610, %v1612
      %v1829 = vsel %vm1723, %v1612, %v1614
      %v1830 = vsel %vm1723, %v1614, %v1614
      %v1831 = vsel %vm1723, %v1616, %v1618
      %v1832 = vsel %vm1723, %v1618, %v1620
      %v1833 = vsel %vm1723, %v1620, %v1622
      %v1834 = vsel %vm1723, %v1622, %v1624
      %v1835 = vsel %vm1723, %v1624, %v1626
      %v1836 = vsel %vm1723, %v1626, %v1628
      %v1837 = vsel %vm1723, %v1628, %v1630
      %v1838 = vsel %vm1723, %v1630, %v1632
      %v1839 = vsel %vm1723, %v1632, %v1634
      %v1840 = vsel %vm1723, %v1634, %v1636
      %v1841 = vsel %vm1723, %v1636, %v1638
      %v1842 = vsel %vm1723, %v1638, %v1640
      %v1843 = vsel %vm1723, %v1640, %v1642
      %v1844 = vsel %vm1723, %v1642, %v1644
      %v1845 = vsel %vm1723, %v1644, %v1646
      %v1846 = vsel %vm1723, %v1646, %v1648
      %v1847 = vsel %vm1723, %v1648, %v1650
      %v1848 = vsel %vm1723, %v1650, %v1650
      %v1849 = vsel %vm1723, %v1652, %v1654
      %v1850 = vsel %vm1723, %v1654, %v1656
      %v1851 = vsel %vm1723, %v1656, %v1658
      %v1852 = vsel %vm1723, %v1658, %v1660
      %v1853 = vsel %vm1723, %v1660, %v1662
      %v1854 = vsel %vm1723, %v1662, %v1664
      %v1855 = vsel %vm1723, %v1664, %v1666
      %v1856 = vsel %vm1723, %v1666, %v1668
      %v1857 = vsel %vm1723, %v1668, %v1670
      %v1858 = vsel %vm1723, %v1670, %v1672
      %v1859 = vsel %vm1723, %v1672, %v1674
      %v1860 = vsel %vm1723, %v1674, %v1676
      %v1861 = vsel %vm1723, %v1676, %v1678
      %v1862 = vsel %vm1723, %v1678, %v1680
      %v1863 = vsel %vm1723, %v1680, %v1682
      %v1864 = vsel %vm1723, %v1682, %v1684
      %v1865 = vsel %vm1723, %v1684, %v1686
      %v1866 = vsel %vm1723, %v1686, %v1686
      %v1867 = vsel %vm1723, %v1688, %v1690
      %v1868 = vsel %vm1723, %v1690, %v1692
      %v1869 = vsel %vm1723, %v1692, %v1694
      %v1870 = vsel %vm1723, %v1694, %v1696
      %v1871 = vsel %vm1723, %v1696, %v1698
      %v1872 = vsel %vm1723, %v1698, %v1700
      %v1873 = vsel %vm1723, %v1700, %v1702
      %v1874 = vsel %vm1723, %v1702, %v1704
      %v1875 = vsel %vm1723, %v1704, %v1706
      %v1876 = vsel %vm1723, %v1706, %v1708
      %v1877 = vsel %vm1723, %v1708, %v1710
      %v1878 = vsel %vm1723, %v1710, %v1712
      %v1879 = vsel %vm1723, %v1712, %v1714
      %v1880 = vsel %vm1723, %v1714, %v1716
      %v1881 = vsel %vm1723, %v1716, %v1718
      %v1882 = vsel %vm1723, %v1718, %v1720
      %v1883 = vsel %vm1723, %v1720, %v1722
      %v1884 = vsel %vm1723, %v1722, %v1722
      %v2055 = vpack.c.bf16 %v248, %v172
      %v2056 = vpack.c.bf16 %v249, %v173
      %v2057 = vpack.c.bf16 %v250, %v174
      %v2058 = vpack.c.bf16 %v251, %v175
      %v2059 = vpack.c.bf16 %v252, %v176
      %v2060 = vpack.c.bf16 %v253, %v177
      %v2061 = vpack.c.bf16 %v254, %v178
      %v2062 = vpack.c.bf16 %v255, %v179
      %v2063 = vpack.c.bf16 %v256, %v180
      %v2064 = vpack.c.bf16 %v257, %v181
      %v2065 = vpack.c.bf16 %v258, %v182
      %v2066 = vpack.c.bf16 %v259, %v183
      %v2067 = vpack.c.bf16 %v260, %v184
      %v2068 = vpack.c.bf16 %v261, %v185
      %v2069 = vpack.c.bf16 %v262, %v186
      %v2070 = vpack.c.bf16 %v263, %v187
      %v2071 = vpack.c.bf16 %v264, %v188
      %v2072 = vpack.c.bf16 %v265, %v189
      %v2073 = vpack.c.bf16 %v246, 0.0
      %v2074 = vpack.c.bf16 %v400, %v324
      %v2075 = vpack.c.bf16 %v401, %v325
      %v2076 = vpack.c.bf16 %v402, %v326
      %v2077 = vpack.c.bf16 %v403, %v327
      %v2078 = vpack.c.bf16 %v404, %v328
      %v2079 = vpack.c.bf16 %v405, %v329
      %v2080 = vpack.c.bf16 %v406, %v330
      %v2081 = vpack.c.bf16 %v407, %v331
      %v2082 = vpack.c.bf16 %v408, %v332
      %v2083 = vpack.c.bf16 %v409, %v333
      %v2084 = vpack.c.bf16 %v410, %v334
      %v2085 = vpack.c.bf16 %v411, %v335
      %v2086 = vpack.c.bf16 %v412, %v336
      %v2087 = vpack.c.bf16 %v413, %v337
      %v2088 = vpack.c.bf16 %v414, %v338
      %v2089 = vpack.c.bf16 %v415, %v339
      %v2090 = vpack.c.bf16 %v416, %v340
      %v2091 = vpack.c.bf16 %v417, %v341
      %v2092 = vpack.c.bf16 %v398, %v322
      %v2093 = vpack.c.bf16 %v552, %v476
      %v2094 = vpack.c.bf16 %v553, %v477
      %v2095 = vpack.c.bf16 %v554, %v478
      %v2096 = vpack.c.bf16 %v555, %v479
      %v2097 = vpack.c.bf16 %v556, %v480
      %v2098 = vpack.c.bf16 %v557, %v481
      %v2099 = vpack.c.bf16 %v558, %v482
      %v2100 = vpack.c.bf16 %v559, %v483
      %v2101 = vpack.c.bf16 %v560, %v484
      %v2102 = vpack.c.bf16 %v561, %v485
      %v2103 = vpack.c.bf16 %v562, %v486
      %v2104 = vpack.c.bf16 %v563, %v487
      %v2105 = vpack.c.bf16 %v564, %v488
      %v2106 = vpack.c.bf16 %v565, %v489
      %v2107 = vpack.c.bf16 %v566, %v490
      %v2108 = vpack.c.bf16 %v567, %v491
      %v2109 = vpack.c.bf16 %v568, %v492
      %v2110 = vpack.c.bf16 %v569, %v493
      %v2111 = vpack.c.bf16 %v550, %v474
      %v2112 = vpack.c.bf16 %v704, %v628
      %v2113 = vpack.c.bf16 %v705, %v629
      %v2114 = vpack.c.bf16 %v706, %v630
      %v2115 = vpack.c.bf16 %v707, %v631
      %v2116 = vpack.c.bf16 %v708, %v632
      %v2117 = vpack.c.bf16 %v709, %v633
      %v2118 = vpack.c.bf16 %v710, %v634
      %v2119 = vpack.c.bf16 %v711, %v635
      %v2120 = vpack.c.bf16 %v712, %v636
      %v2121 = vpack.c.bf16 %v713, %v637
      %v2122 = vpack.c.bf16 %v714, %v638
      %v2123 = vpack.c.bf16 %v715, %v639
      %v2124 = vpack.c.bf16 %v716, %v640
      %v2125 = vpack.c.bf16 %v717, %v641
      %v2126 = vpack.c.bf16 %v718, %v642
      %v2127 = vpack.c.bf16 %v719, %v643
      %v2128 = vpack.c.bf16 %v720, %v644
      %v2129 = vpack.c.bf16 %v721, %v645
      %v2130 = vpack.c.bf16 %v702, %v626
      %v2131 = vpack.c.bf16 %v856, %v780
      %v2132 = vpack.c.bf16 %v857, %v781
      %v2133 = vpack.c.bf16 %v858, %v782
      %v2134 = vpack.c.bf16 %v859, %v783
      %v2135 = vpack.c.bf16 %v860, %v784
      %v2136 = vpack.c.bf16 %v861, %v785
      %v2137 = vpack.c.bf16 %v862, %v786
      %v2138 = vpack.c.bf16 %v863, %v787
      %v2139 = vpack.c.bf16 %v864, %v788
      %v2140 = vpack.c.bf16 %v865, %v789
      %v2141 = vpack.c.bf16 %v866, %v790
      %v2142 = vpack.c.bf16 %v867, %v791
      %v2143 = vpack.c.bf16 %v868, %v792
      %v2144 = vpack.c.bf16 %v869, %v793
      %v2145 = vpack.c.bf16 %v870, %v794
      %v2146 = vpack.c.bf16 %v871, %v795
      %v2147 = vpack.c.bf16 %v872, %v796
      %v2148 = vpack.c.bf16 %v873, %v797
      %v2149 = vpack.c.bf16 %v854, %v778
      %v2150 = vpack.c.bf16 %v1008, %v932
      %v2151 = vpack.c.bf16 %v1009, %v933
      %v2152 = vpack.c.bf16 %v1010, %v934
      %v2153 = vpack.c.bf16 %v1011, %v935
      %v2154 = vpack.c.bf16 %v1012, %v936
      %v2155 = vpack.c.bf16 %v1013, %v937
      %v2156 = vpack.c.bf16 %v1014, %v938
      %v2157 = vpack.c.bf16 %v1015, %v939
      %v2158 = vpack.c.bf16 %v1016, %v940
      %v2159 = vpack.c.bf16 %v1017, %v941
      %v2160 = vpack.c.bf16 %v1018, %v942
      %v2161 = vpack.c.bf16 %v1019, %v943
      %v2162 = vpack.c.bf16 %v1020, %v944
      %v2163 = vpack.c.bf16 %v1021, %v945
      %v2164 = vpack.c.bf16 %v1022, %v946
      %v2165 = vpack.c.bf16 %v1023, %v947
      %v2166 = vpack.c.bf16 %v1024, %v948
      %v2167 = vpack.c.bf16 %v1025, %v949
      %v2168 = vpack.c.bf16 %v1006, %v930
      %v2169 = vpack.c.bf16 %v1160, %v1084
      %v2170 = vpack.c.bf16 %v1161, %v1085
      %v2171 = vpack.c.bf16 %v1162, %v1086
      %v2172 = vpack.c.bf16 %v1163, %v1087
      %v2173 = vpack.c.bf16 %v1164, %v1088
      %v2174 = vpack.c.bf16 %v1165, %v1089
      %v2175 = vpack.c.bf16 %v1166, %v1090
      %v2176 = vpack.c.bf16 %v1167, %v1091
      %v2177 = vpack.c.bf16 %v1168, %v1092
      %v2178 = vpack.c.bf16 %v1169, %v1093
      %v2179 = vpack.c.bf16 %v1170, %v1094
      %v2180 = vpack.c.bf16 %v1171, %v1095
      %v2181 = vpack.c.bf16 %v1172, %v1096
      %v2182 = vpack.c.bf16 %v1173, %v1097
      %v2183 = vpack.c.bf16 %v1174, %v1098
      %v2184 = vpack.c.bf16 %v1175, %v1099
      %v2185 = vpack.c.bf16 %v1176, %v1100
      %v2186 = vpack.c.bf16 %v1177, %v1101
      %v2187 = vpack.c.bf16 %v1158, %v1082
      %v2188 = vpack.c.bf16 %v1310, %v1236
      %v2189 = vpack.c.bf16 %v1311, %v1237
      %v2190 = vpack.c.bf16 %v1312, %v1238
      %v2191 = vpack.c.bf16 %v1313, %v1239
      %v2192 = vpack.c.bf16 %v1314, %v1240
      %v2193 = vpack.c.bf16 %v1315, %v1241
      %v2194 = vpack.c.bf16 %v1316, %v1242
      %v2195 = vpack.c.bf16 %v1317, %v1243
      %v2196 = vpack.c.bf16 %v1318, %v1244
      %v2197 = vpack.c.bf16 %v1319, %v1245
      %v2198 = vpack.c.bf16 %v1320, %v1246
      %v2199 = vpack.c.bf16 %v1321, %v1247
      %v2200 = vpack.c.bf16 %v1322, %v1248
      %v2201 = vpack.c.bf16 %v1323, %v1249
      %v2202 = vpack.c.bf16 %v1324, %v1250
      %v2203 = vpack.c.bf16 %v1325, %v1251
      %v2204 = vpack.c.bf16 %v1326, %v1252
      %v2205 = vpack.c.bf16 %v1308, %v1253
      %v2206 = vpack.c.bf16 %v1308, %v1234
      %v2207 = vpack.c.bf16 %v1741, %v1724
      %v2208 = vpack.c.bf16 %v1742, %v1725
      %v2209 = vpack.c.bf16 %v1743, %v1726
      %v2210 = vpack.c.bf16 %v1744, %v1727
      %v2211 = vpack.c.bf16 %v1745, %v1728
      %v2212 = vpack.c.bf16 %v1746, %v1729
      %v2213 = vpack.c.bf16 %v1747, %v1730
      %v2214 = vpack.c.bf16 %v1748, %v1731
      %v2215 = vpack.c.bf16 %v1749, %v1732
      %v2216 = vpack.c.bf16 %v1750, %v1733
      %v2217 = vpack.c.bf16 %v1751, %v1734
      %v2218 = vpack.c.bf16 %v1752, %v1735
      %v2219 = vpack.c.bf16 %v1753, %v1736
      %v2220 = vpack.c.bf16 %v1754, %v1737
      %v2221 = vpack.c.bf16 %v1755, %v1738
      %v2222 = vpack.c.bf16 %v1756, %v1739
      %v2223 = vpack.c.bf16 %v1757, %v1740
      %v2224 = vpack.c.bf16 %v1470, %v1434
      %v2225 = vpack.c.bf16 %v1758, %v1434
      %v2226 = vpack.c.bf16 %v1777, %v1759
      %v2227 = vpack.c.bf16 %v1778, %v1760
      %v2228 = vpack.c.bf16 %v1779, %v1761
      %v2229 = vpack.c.bf16 %v1780, %v1762
      %v2230 = vpack.c.bf16 %v1781, %v1763
      %v2231 = vpack.c.bf16 %v1782, %v1764
      %v2232 = vpack.c.bf16 %v1783, %v1765
      %v2233 = vpack.c.bf16 %v1784, %v1766
      %v2234 = vpack.c.bf16 %v1785, %v1767
      %v2235 = vpack.c.bf16 %v1786, %v1768
      %v2236 = vpack.c.bf16 %v1787, %v1769
      %v2237 = vpack.c.bf16 %v1788, %v1770
      %v2238 = vpack.c.bf16 %v1789, %v1771
      %v2239 = vpack.c.bf16 %v1790, %v1772
      %v2240 = vpack.c.bf16 %v1791, %v1773
      %v2241 = vpack.c.bf16 %v1792, %v1774
      %v2242 = vpack.c.bf16 %v1793, %v1775
      %v2243 = vpack.c.bf16 %v1542, %v1506
      %v2244 = vpack.c.bf16 %v1794, %v1776
      %v2245 = vpack.c.bf16 %v1813, %v1795
      %v2246 = vpack.c.bf16 %v1814, %v1796
      %v2247 = vpack.c.bf16 %v1815, %v1797
      %v2248 = vpack.c.bf16 %v1816, %v1798
      %v2249 = vpack.c.bf16 %v1817, %v1799
      %v2250 = vpack.c.bf16 %v1818, %v1800
      %v2251 = vpack.c.bf16 %v1819, %v1801
      %v2252 = vpack.c.bf16 %v1820, %v1802
      %v2253 = vpack.c.bf16 %v1821, %v1803
      %v2254 = vpack.c.bf16 %v1822, %v1804
      %v2255 = vpack.c.bf16 %v1823, %v1805
      %v2256 = vpack.c.bf16 %v1824, %v1806
      %v2257 = vpack.c.bf16 %v1825, %v1807
      %v2258 = vpack.c.bf16 %v1826, %v1808
      %v2259 = vpack.c.bf16 %v1827, %v1809
      %v2260 = vpack.c.bf16 %v1828, %v1810
      %v2261 = vpack.c.bf16 %v1829, %v1811
      %v2262 = vpack.c.bf16 %v1614, %v1578
      %v2263 = vpack.c.bf16 %v1830, %v1812
      %v2264 = vpack.c.bf16 %v1849, %v1831
      %v2265 = vpack.c.bf16 %v1850, %v1832
      %v2266 = vpack.c.bf16 %v1851, %v1833
      %v2267 = vpack.c.bf16 %v1852, %v1834
      %v2268 = vpack.c.bf16 %v1853, %v1835
      %v2269 = vpack.c.bf16 %v1854, %v1836
      %v2270 = vpack.c.bf16 %v1855, %v1837
      %v2271 = vpack.c.bf16 %v1856, %v1838
      %v2272 = vpack.c.bf16 %v1857, %v1839
      %v2273 = vpack.c.bf16 %v1858, %v1840
      %v2274 = vpack.c.bf16 %v1859, %v1841
      %v2275 = vpack.c.bf16 %v1860, %v1842
      %v2276 = vpack.c.bf16 %v1861, %v1843
      %v2277 = vpack.c.bf16 %v1862, %v1844
      %v2278 = vpack.c.bf16 %v1863, %v1845
      %v2279 = vpack.c.bf16 %v1864, %v1846
      %v2280 = vpack.c.bf16 %v1865, %v1847
      %v2281 = vpack.c.bf16 %v1686, %v1650
      %v2282 = vpack.c.bf16 %v1866, %v1848
      %v2283 = vpack.c.bf16 %v1434, %v1867
      %v2284 = vpack.c.bf16 %v1434, %v1868
      %v2285 = vpack.c.bf16 %v1434, %v1869
      %v2286 = vpack.c.bf16 %v1434, %v1870
      %v2287 = vpack.c.bf16 %v1434, %v1871
      %v2288 = vpack.c.bf16 %v1434, %v1872
      %v2289 = vpack.c.bf16 %v1434, %v1873
      %v2290 = vpack.c.bf16 %v1434, %v1874
      %v2291 = vpack.c.bf16 %v1434, %v1875
      %v2292 = vpack.c.bf16 %v1434, %v1876
      %v2293 = vpack.c.bf16 %v1434, %v1877
      %v2294 = vpack.c.bf16 %v1434, %v1878
      %v2295 = vpack.c.bf16 %v1434, %v1879
      %v2296 = vpack.c.bf16 %v1434, %v1880
      %v2297 = vpack.c.bf16 %v1434, %v1881
      %v2298 = vpack.c.bf16 %v1434, %v1882
      %v2299 = vpack.c.bf16 %v1434, %v1883
      %v2300 = vpack.c.bf16 %v1434, %v1722
      %v2301 = vpack.c.bf16 %v1434, %v1884
      %v2302 = vld [vmem:[%s1] sm:$0xff]
      %v2303 = vld [vmem:[%s2] sm:$0xff]
      %2305 = vset.pattern.permute.xlu0 0
      %2306 = vperm.xlu0 %2305, %v2303
      %v2307 = vpop.permute.xlu0 %2306
      %v2310 = vunpack.c.l.b16 %v2302
      %v2311 = vunpack.c.h.b16 %v2302
      %v2312 = vpack.c.b16 %v2310, %v2310
      %v2313 = vpack.c.b16 %v2311, %v2311
      %v2316 = vsel %vm551, %v2313, 0
      %2318 = vmatprep.subr.bf16.mxu0 %v2056
      %2319 = vmatpush1.bf16.msra.mxu0 %v2055
      %2320 = vmatprep.subr.bf16.mxu0 %v2075
      %2321 = vmatpush1.bf16.msra.mxu0 %v2074
      %2322 = vmatprep.subr.bf16.mxu0 %v2094
      %2323 = vmatpush1.bf16.msra.mxu0 %v2093
      %2324 = vmatprep.subr.bf16.mxu0 %v2113
      %2325 = vmatpush1.bf16.msra.mxu0 %v2112
      %2326 = vmatprep.subr.bf16.mxu0 %v2132
      %2327 = vmatpush1.bf16.msra.mxu0 %v2131
      %2328 = vmatprep.subr.bf16.mxu0 %v2151
      %2329 = vmatpush1.bf16.msra.mxu0 %v2150
      %2330 = vmatprep.subr.bf16.mxu0 %v2170
      %2331 = vmatpush1.bf16.msra.mxu0 %v2169
      %2332 = vmatprep.subr.bf16.mxu0 %v2189
      %2333 = vmatpush1.bf16.msra.mxu0 %v2188
      %2334 = vmatprep.subr.bf16.mxu0 %v2208
      %2335 = vmatpush1.bf16.msra.mxu0 %v2207
      %2336 = vmatprep.subr.bf16.mxu0 %v2227
      %2337 = vmatpush1.bf16.msra.mxu0 %v2226
      %2338 = vmatprep.subr.bf16.mxu0 %v2246
      %2339 = vmatpush1.bf16.msra.mxu0 %v2245
      %2340 = vmatprep.subr.bf16.mxu0 %v2265
      %2341 = vmatpush1.bf16.msra.mxu0 %v2264
      %2342 = vmatprep.subr.bf16.mxu0 %v2284
      %2343 = vmatpush1.bf16.msra.mxu0 %v2283
      %2344 = vmatprep.subr.bf16.mxu0 0
      %2345 = vmatpush1.bf16.msra.mxu0 0
      %2346 = vmatprep.subr.bf16.mxu0 0
      %2347 = vmatpush1.bf16.msra.mxu0 0
      %2348 = vmatprep.subr.bf16.mxu0 0
      %2349 = vmatpush1.bf16.msra.mxu0 0
      %2350 = vmatprep.mubr.bf16.mxu0 %v2316
      %2351 = vmatmul.mubr.bf16.gmra.mrb[0].mxu0 %v2312
      %v2352 = vpop.f32.mrb[0].mxu0
      %v2353 = vadd.f32 %v2307, %v2352
      %v2354 = vpop.f32.mrb[0].mxu0
      %v2355 = vadd.f32 %v2307, %v2354
      %v2356 = vpop.f32.mrb[0].mxu0
      %v2357 = vpop.f32.mrb[0].mxu0
      %2358 = vdwg.mxu0
      %2359 = vmatprep.subr.bf16.mxu0 %v2058
      %2360 = vmatpush1.bf16.msra.mxu0 %v2057
      %2361 = vmatprep.subr.bf16.mxu0 %v2077
      %2362 = vmatpush1.bf16.msra.mxu0 %v2076
      %2363 = vmatprep.subr.bf16.mxu0 %v2096
      %2364 = vmatpush1.bf16.msra.mxu0 %v2095
      %2365 = vmatprep.subr.bf16.mxu0 %v2115
      %2366 = vmatpush1.bf16.msra.mxu0 %v2114
      %2367 = vmatprep.subr.bf16.mxu0 %v2134
      %2368 = vmatpush1.bf16.msra.mxu0 %v2133
      %2369 = vmatprep.subr.bf16.mxu0 %v2153
      %2370 = vmatpush1.bf16.msra.mxu0 %v2152
      %2371 = vmatprep.subr.bf16.mxu0 %v2172
      %2372 = vmatpush1.bf16.msra.mxu0 %v2171
      %2373 = vmatprep.subr.bf16.mxu0 %v2191
      %2374 = vmatpush1.bf16.msra.mxu0 %v2190
      %2375 = vmatprep.subr.bf16.mxu0 %v2210
      %2376 = vmatpush1.bf16.msra.mxu0 %v2209
      %2377 = vmatprep.subr.bf16.mxu0 %v2229
      %2378 = vmatpush1.bf16.msra.mxu0 %v2228
      %2379 = vmatprep.subr.bf16.mxu0 %v2248
      %2380 = vmatpush1.bf16.msra.mxu0 %v2247
      %2381 = vmatprep.subr.bf16.mxu0 %v2267
      %2382 = vmatpush1.bf16.msra.mxu0 %v2266
      %2383 = vmatprep.subr.bf16.mxu0 %v2286
      %2384 = vmatpush1.bf16.msra.mxu0 %v2285
      %2385 = vmatprep.subr.bf16.mxu0 0
      %2386 = vmatpush1.bf16.msra.mxu0 0
      %2387 = vmatprep.subr.bf16.mxu0 0
      %2388 = vmatpush1.bf16.msra.mxu0 0
      %2389 = vmatprep.subr.bf16.mxu0 0
      %2390 = vmatpush1.bf16.msra.mxu0 0
      %2391 = vmatprep.mubr.bf16.mxu0 %v2316
      %2392 = vmatmul.mubr.bf16.gmra.mrb[0].mxu0 %v2312
      %v2393 = vpop.f32.mrb[0].mxu0
      %v2394 = vadd.f32 %v2307, %v2393
      %v2395 = vpop.f32.mrb[0].mxu0
      %v2396 = vadd.f32 %v2307, %v2395
      %v2397 = vpop.f32.mrb[0].mxu0
      %v2398 = vpop.f32.mrb[0].mxu0
      %2399 = vdwg.mxu0
      %2400 = vmatprep.subr.bf16.mxu0 %v2060
      %2401 = vmatpush1.bf16.msra.mxu0 %v2059
      %2402 = vmatprep.subr.bf16.mxu0 %v2079
      %2403 = vmatpush1.bf16.msra.mxu0 %v2078
      %2404 = vmatprep.subr.bf16.mxu0 %v2098
      %2405 = vmatpush1.bf16.msra.mxu0 %v2097
      %2406 = vmatprep.subr.bf16.mxu0 %v2117
      %2407 = vmatpush1.bf16.msra.mxu0 %v2116
      %2408 = vmatprep.subr.bf16.mxu0 %v2136
      %2409 = vmatpush1.bf16.msra.mxu0 %v2135
      %2410 = vmatprep.subr.bf16.mxu0 %v2155
      %2411 = vmatpush1.bf16.msra.mxu0 %v2154
      %2412 = vmatprep.subr.bf16.mxu0 %v2174
      %2413 = vmatpush1.bf16.msra.mxu0 %v2173
      %2414 = vmatprep.subr.bf16.mxu0 %v2193
      %2415 = vmatpush1.bf16.msra.mxu0 %v2192
      %2416 = vmatprep.subr.bf16.mxu0 %v2212
      %2417 = vmatpush1.bf16.msra.mxu0 %v2211
      %2418 = vmatprep.subr.bf16.mxu0 %v2231
      %2419 = vmatpush1.bf16.msra.mxu0 %v2230
      %2420 = vmatprep.subr.bf16.mxu0 %v2250
      %2421 = vmatpush1.bf16.msra.mxu0 %v2249
      %2422 = vmatprep.subr.bf16.mxu0 %v2269
      %2423 = vmatpush1.bf16.msra.mxu0 %v2268
      %2424 = vmatprep.subr.bf16.mxu0 %v2288
      %2425 = vmatpush1.bf16.msra.mxu0 %v2287
      %2426 = vmatprep.subr.bf16.mxu0 0
      %2427 = vmatpush1.bf16.msra.mxu0 0
      %2428 = vmatprep.subr.bf16.mxu0 0
      %2429 = vmatpush1.bf16.msra.mxu0 0
      %2430 = vmatprep.subr.bf16.mxu0 0
      %2431 = vmatpush1.bf16.msra.mxu0 0
      %2432 = vmatprep.mubr.bf16.mxu0 %v2316
      %2433 = vmatmul.mubr.bf16.gmra.mrb[0].mxu0 %v2312
      %v2434 = vpop.f32.mrb[0].mxu0
      %v2435 = vadd.f32 %v2307, %v2434
      %v2436 = vpop.f32.mrb[0].mxu0
      %v2437 = vadd.f32 %v2307, %v2436
      %v2438 = vpop.f32.mrb[0].mxu0
      %v2439 = vpop.f32.mrb[0].mxu0
      %2440 = vdwg.mxu0
      %2441 = vmatprep.subr.bf16.mxu0 %v2062
      %2442 = vmatpush1.bf16.msra.mxu0 %v2061
      %2443 = vmatprep.subr.bf16.mxu0 %v2081
      %2444 = vmatpush1.bf16.msra.mxu0 %v2080
      %2445 = vmatprep.subr.bf16.mxu0 %v2100
      %2446 = vmatpush1.bf16.msra.mxu0 %v2099
      %2447 = vmatprep.subr.bf16.mxu0 %v2119
      %2448 = vmatpush1.bf16.msra.mxu0 %v2118
      %2449 = vmatprep.subr.bf16.mxu0 %v2138
      %2450 = vmatpush1.bf16.msra.mxu0 %v2137
      %2451 = vmatprep.subr.bf16.mxu0 %v2157
      %2452 = vmatpush1.bf16.msra.mxu0 %v2156
      %2453 = vmatprep.subr.bf16.mxu0 %v2176
      %2454 = vmatpush1.bf16.msra.mxu0 %v2175
      %2455 = vmatprep.subr.bf16.mxu0 %v2195
      %2456 = vmatpush1.bf16.msra.mxu0 %v2194
      %2457 = vmatprep.subr.bf16.mxu0 %v2214
      %2458 = vmatpush1.bf16.msra.mxu0 %v2213
      %2459 = vmatprep.subr.bf16.mxu0 %v2233
      %2460 = vmatpush1.bf16.msra.mxu0 %v2232
      %2461 = vmatprep.subr.bf16.mxu0 %v2252
      %2462 = vmatpush1.bf16.msra.mxu0 %v2251
      %2463 = vmatprep.subr.bf16.mxu0 %v2271
      %2464 = vmatpush1.bf16.msra.mxu0 %v2270
      %2465 = vmatprep.subr.bf16.mxu0 %v2290
      %2466 = vmatpush1.bf16.msra.mxu0 %v2289
      %2467 = vmatprep.subr.bf16.mxu0 0
      %2468 = vmatpush1.bf16.msra.mxu0 0
      %2469 = vmatprep.subr.bf16.mxu0 0
      %2470 = vmatpush1.bf16.msra.mxu0 0
      %2471 = vmatprep.subr.bf16.mxu0 0
      %2472 = vmatpush1.bf16.msra.mxu0 0
      %2473 = vmatprep.mubr.bf16.mxu0 %v2316
      %2474 = vmatmul.mubr.bf16.gmra.mrb[0].mxu0 %v2312
      %v2475 = vpop.f32.mrb[0].mxu0
      %v2476 = vadd.f32 %v2307, %v2475
      %v2477 = vpop.f32.mrb[0].mxu0
      %v2478 = vadd.f32 %v2307, %v2477
      %v2479 = vpop.f32.mrb[0].mxu0
      %v2480 = vpop.f32.mrb[0].mxu0
      %2481 = vdwg.mxu0
      %2482 = vmatprep.subr.bf16.mxu0 %v2064
      %2483 = vmatpush1.bf16.msra.mxu0 %v2063
      %2484 = vmatprep.subr.bf16.mxu0 %v2083
      %2485 = vmatpush1.bf16.msra.mxu0 %v2082
      %2486 = vmatprep.subr.bf16.mxu0 %v2102
      %2487 = vmatpush1.bf16.msra.mxu0 %v2101
      %2488 = vmatprep.subr.bf16.mxu0 %v2121
      %2489 = vmatpush1.bf16.msra.mxu0 %v2120
      %2490 = vmatprep.subr.bf16.mxu0 %v2140
      %2491 = vmatpush1.bf16.msra.mxu0 %v2139
      %2492 = vmatprep.subr.bf16.mxu0 %v2159
      %2493 = vmatpush1.bf16.msra.mxu0 %v2158
      %2494 = vmatprep.subr.bf16.mxu0 %v2178
      %2495 = vmatpush1.bf16.msra.mxu0 %v2177
      %2496 = vmatprep.subr.bf16.mxu0 %v2197
      %2497 = vmatpush1.bf16.msra.mxu0 %v2196
      %2498 = vmatprep.subr.bf16.mxu0 %v2216
      %2499 = vmatpush1.bf16.msra.mxu0 %v2215
      %2500 = vmatprep.subr.bf16.mxu0 %v2235
      %2501 = vmatpush1.bf16.msra.mxu0 %v2234
      %2502 = vmatprep.subr.bf16.mxu0 %v2254
      %2503 = vmatpush1.bf16.msra.mxu0 %v2253
      %2504 = vmatprep.subr.bf16.mxu0 %v2273
      %2505 = vmatpush1.bf16.msra.mxu0 %v2272
      %2506 = vmatprep.subr.bf16.mxu0 %v2292
      %2507 = vmatpush1.bf16.msra.mxu0 %v2291
      %2508 = vmatprep.subr.bf16.mxu0 0
      %2509 = vmatpush1.bf16.msra.mxu0 0
      %2510 = vmatprep.subr.bf16.mxu0 0
      %2511 = vmatpush1.bf16.msra.mxu0 0
      %2512 = vmatprep.subr.bf16.mxu0 0
      %2513 = vmatpush1.bf16.msra.mxu0 0
      %2514 = vmatprep.mubr.bf16.mxu0 %v2316
      %2515 = vmatmul.mubr.bf16.gmra.mrb[0].mxu0 %v2312
      %v2516 = vpop.f32.mrb[0].mxu0
      %v2517 = vadd.f32 %v2307, %v2516
      %v2518 = vpop.f32.mrb[0].mxu0
      %v2519 = vadd.f32 %v2307, %v2518
      %v2520 = vpop.f32.mrb[0].mxu0
      %v2521 = vpop.f32.mrb[0].mxu0
      %2522 = vdwg.mxu0
      %2523 = vmatprep.subr.bf16.mxu0 %v2066
      %2524 = vmatpush1.bf16.msra.mxu0 %v2065
      %2525 = vmatprep.subr.bf16.mxu0 %v2085
      %2526 = vmatpush1.bf16.msra.mxu0 %v2084
      %2527 = vmatprep.subr.bf16.mxu0 %v2104
      %2528 = vmatpush1.bf16.msra.mxu0 %v2103
      %2529 = vmatprep.subr.bf16.mxu0 %v2123
      %2530 = vmatpush1.bf16.msra.mxu0 %v2122
      %2531 = vmatprep.subr.bf16.mxu0 %v2142
      %2532 = vmatpush1.bf16.msra.mxu0 %v2141
      %2533 = vmatprep.subr.bf16.mxu0 %v2161
      %2534 = vmatpush1.bf16.msra.mxu0 %v2160
      %2535 = vmatprep.subr.bf16.mxu0 %v2180
      %2536 = vmatpush1.bf16.msra.mxu0 %v2179
      %2537 = vmatprep.subr.bf16.mxu0 %v2199
      %2538 = vmatpush1.bf16.msra.mxu0 %v2198
      %2539 = vmatprep.subr.bf16.mxu0 %v2218
      %2540 = vmatpush1.bf16.msra.mxu0 %v2217
      %2541 = vmatprep.subr.bf16.mxu0 %v2237
      %2542 = vmatpush1.bf16.msra.mxu0 %v2236
      %2543 = vmatprep.subr.bf16.mxu0 %v2256
      %2544 = vmatpush1.bf16.msra.mxu0 %v2255
      %2545 = vmatprep.subr.bf16.mxu0 %v2275
      %2546 = vmatpush1.bf16.msra.mxu0 %v2274
      %2547 = vmatprep.subr.bf16.mxu0 %v2294
      %2548 = vmatpush1.bf16.msra.mxu0 %v2293
      %2549 = vmatprep.subr.bf16.mxu0 0
      %2550 = vmatpush1.bf16.msra.mxu0 0
      %2551 = vmatprep.subr.bf16.mxu0 0
      %2552 = vmatpush1.bf16.msra.mxu0 0
      %2553 = vmatprep.subr.bf16.mxu0 0
      %2554 = vmatpush1.bf16.msra.mxu0 0
      %2555 = vmatprep.mubr.bf16.mxu0 %v2316
      %2556 = vmatmul.mubr.bf16.gmra.mrb[0].mxu0 %v2312
      %v2557 = vpop.f32.mrb[0].mxu0
      %v2558 = vadd.f32 %v2307, %v2557
      %v2559 = vpop.f32.mrb[0].mxu0
      %v2560 = vadd.f32 %v2307, %v2559
      %v2561 = vpop.f32.mrb[0].mxu0
      %v2562 = vpop.f32.mrb[0].mxu0
      %2563 = vdwg.mxu0
      %2564 = vmatprep.subr.bf16.mxu0 %v2068
      %2565 = vmatpush1.bf16.msra.mxu0 %v2067
      %2566 = vmatprep.subr.bf16.mxu0 %v2087
      %2567 = vmatpush1.bf16.msra.mxu0 %v2086
      %2568 = vmatprep.subr.bf16.mxu0 %v2106
      %2569 = vmatpush1.bf16.msra.mxu0 %v2105
      %2570 = vmatprep.subr.bf16.mxu0 %v2125
      %2571 = vmatpush1.bf16.msra.mxu0 %v2124
      %2572 = vmatprep.subr.bf16.mxu0 %v2144
      %2573 = vmatpush1.bf16.msra.mxu0 %v2143
      %2574 = vmatprep.subr.bf16.mxu0 %v2163
      %2575 = vmatpush1.bf16.msra.mxu0 %v2162
      %2576 = vmatprep.subr.bf16.mxu0 %v2182
      %2577 = vmatpush1.bf16.msra.mxu0 %v2181
      %2578 = vmatprep.subr.bf16.mxu0 %v2201
      %2579 = vmatpush1.bf16.msra.mxu0 %v2200
      %2580 = vmatprep.subr.bf16.mxu0 %v2220
      %2581 = vmatpush1.bf16.msra.mxu0 %v2219
      %2582 = vmatprep.subr.bf16.mxu0 %v2239
      %2583 = vmatpush1.bf16.msra.mxu0 %v2238
      %2584 = vmatprep.subr.bf16.mxu0 %v2258
      %2585 = vmatpush1.bf16.msra.mxu0 %v2257
      %2586 = vmatprep.subr.bf16.mxu0 %v2277
      %2587 = vmatpush1.bf16.msra.mxu0 %v2276
      %2588 = vmatprep.subr.bf16.mxu0 %v2296
      %2589 = vmatpush1.bf16.msra.mxu0 %v2295
      %2590 = vmatprep.subr.bf16.mxu0 0
      %2591 = vmatpush1.bf16.msra.mxu0 0
      %2592 = vmatprep.subr.bf16.mxu0 0
      %2593 = vmatpush1.bf16.msra.mxu0 0
      %2594 = vmatprep.subr.bf16.mxu0 0
      %2595 = vmatpush1.bf16.msra.mxu0 0
      %2596 = vmatprep.mubr.bf16.mxu0 %v2316
      %2597 = vmatmul.mubr.bf16.gmra.mrb[0].mxu0 %v2312
      %v2598 = vpop.f32.mrb[0].mxu0
      %v2599 = vadd.f32 %v2307, %v2598
      %v2600 = vpop.f32.mrb[0].mxu0
      %v2601 = vadd.f32 %v2307, %v2600
      %v2602 = vpop.f32.mrb[0].mxu0
      %v2603 = vpop.f32.mrb[0].mxu0
      %2604 = vdwg.mxu0
      %2605 = vmatprep.subr.bf16.mxu0 %v2070
      %2606 = vmatpush1.bf16.msra.mxu0 %v2069
      %2607 = vmatprep.subr.bf16.mxu0 %v2089
      %2608 = vmatpush1.bf16.msra.mxu0 %v2088
      %2609 = vmatprep.subr.bf16.mxu0 %v2108
      %2610 = vmatpush1.bf16.msra.mxu0 %v2107
      %2611 = vmatprep.subr.bf16.mxu0 %v2127
      %2612 = vmatpush1.bf16.msra.mxu0 %v2126
      %2613 = vmatprep.subr.bf16.mxu0 %v2146
      %2614 = vmatpush1.bf16.msra.mxu0 %v2145
      %2615 = vmatprep.subr.bf16.mxu0 %v2165
      %2616 = vmatpush1.bf16.msra.mxu0 %v2164
      %2617 = vmatprep.subr.bf16.mxu0 %v2184
      %2618 = vmatpush1.bf16.msra.mxu0 %v2183
      %2619 = vmatprep.subr.bf16.mxu0 %v2203
      %2620 = vmatpush1.bf16.msra.mxu0 %v2202
      %2621 = vmatprep.subr.bf16.mxu0 %v2222
      %2622 = vmatpush1.bf16.msra.mxu0 %v2221
      %2623 = vmatprep.subr.bf16.mxu0 %v2241
      %2624 = vmatpush1.bf16.msra.mxu0 %v2240
      %2625 = vmatprep.subr.bf16.mxu0 %v2260
      %2626 = vmatpush1.bf16.msra.mxu0 %v2259
      %2627 = vmatprep.subr.bf16.mxu0 %v2279
      %2628 = vmatpush1.bf16.msra.mxu0 %v2278
      %2629 = vmatprep.subr.bf16.mxu0 %v2298
      %2630 = vmatpush1.bf16.msra.mxu0 %v2297
      %2631 = vmatprep.subr.bf16.mxu0 0
      %2632 = vmatpush1.bf16.msra.mxu0 0
      %2633 = vmatprep.subr.bf16.mxu0 0
      %2634 = vmatpush1.bf16.msra.mxu0 0
      %2635 = vmatprep.subr.bf16.mxu0 0
      %2636 = vmatpush1.bf16.msra.mxu0 0
      %2637 = vmatprep.mubr.bf16.mxu0 %v2316
      %2638 = vmatmul.mubr.bf16.gmra.mrb[0].mxu0 %v2312
      %v2639 = vpop.f32.mrb[0].mxu0
      %v2640 = vadd.f32 %v2307, %v2639
      %v2641 = vpop.f32.mrb[0].mxu0
      %v2642 = vadd.f32 %v2307, %v2641
      %v2643 = vpop.f32.mrb[0].mxu0
      %v2644 = vpop.f32.mrb[0].mxu0
      %2645 = vdwg.mxu0
      %2646 = vmatprep.subr.bf16.mxu0 %v2072
      %2647 = vmatpush1.bf16.msra.mxu0 %v2071
      %2648 = vmatprep.subr.bf16.mxu0 %v2091
      %2649 = vmatpush1.bf16.msra.mxu0 %v2090
      %2650 = vmatprep.subr.bf16.mxu0 %v2110
      %2651 = vmatpush1.bf16.msra.mxu0 %v2109
      %2652 = vmatprep.subr.bf16.mxu0 %v2129
      %2653 = vmatpush1.bf16.msra.mxu0 %v2128
      %2654 = vmatprep.subr.bf16.mxu0 %v2148
      %2655 = vmatpush1.bf16.msra.mxu0 %v2147
      %2656 = vmatprep.subr.bf16.mxu0 %v2167
      %2657 = vmatpush1.bf16.msra.mxu0 %v2166
      %2658 = vmatprep.subr.bf16.mxu0 %v2186
      %2659 = vmatpush1.bf16.msra.mxu0 %v2185
      %2660 = vmatprep.subr.bf16.mxu0 %v2205
      %2661 = vmatpush1.bf16.msra.mxu0 %v2204
      %2662 = vmatprep.subr.bf16.mxu0 %v2224
      %2663 = vmatpush1.bf16.msra.mxu0 %v2223
      %2664 = vmatprep.subr.bf16.mxu0 %v2243
      %2665 = vmatpush1.bf16.msra.mxu0 %v2242
      %2666 = vmatprep.subr.bf16.mxu0 %v2262
      %2667 = vmatpush1.bf16.msra.mxu0 %v2261
      %2668 = vmatprep.subr.bf16.mxu0 %v2281
      %2669 = vmatpush1.bf16.msra.mxu0 %v2280
      %2670 = vmatprep.subr.bf16.mxu0 %v2300
      %2671 = vmatpush1.bf16.msra.mxu0 %v2299
      %2672 = vmatprep.subr.bf16.mxu0 0
      %2673 = vmatpush1.bf16.msra.mxu0 0
      %2674 = vmatprep.subr.bf16.mxu0 0
      %2675 = vmatpush1.bf16.msra.mxu0 0
      %2676 = vmatprep.subr.bf16.mxu0 0
      %2677 = vmatpush1.bf16.msra.mxu0 0
      %2678 = vmatprep.mubr.bf16.mxu0 %v2316
      %2679 = vmatmul.mubr.bf16.gmra.mrb[0].mxu0 %v2312
      %v2680 = vpop.f32.mrb[0].mxu0
      %v2681 = vadd.f32 %v2307, %v2680
      %v2682 = vpop.f32.mrb[0].mxu0
      %v2683 = vadd.f32 %v2307, %v2682
      %v2684 = vpop.f32.mrb[0].mxu0
      %v2685 = vpop.f32.mrb[0].mxu0
      %2686 = vdwg.mxu0
      %2687 = vmatprep.subr.bf16.mxu0 0
      %2688 = vmatpush1.bf16.msra.mxu0 %v2073
      %2689 = vmatprep.subr.bf16.mxu0 0
      %2690 = vmatpush1.bf16.msra.mxu0 %v2092
      %2691 = vmatprep.subr.bf16.mxu0 0
      %2692 = vmatpush1.bf16.msra.mxu0 %v2111
      %2693 = vmatprep.subr.bf16.mxu0 0
      %2694 = vmatpush1.bf16.msra.mxu0 %v2130
      %2695 = vmatprep.subr.bf16.mxu0 0
      %2696 = vmatpush1.bf16.msra.mxu0 %v2149
      %2697 = vmatprep.subr.bf16.mxu0 0
      %2698 = vmatpush1.bf16.msra.mxu0 %v2168
      %2699 = vmatprep.subr.bf16.mxu0 0
      %2700 = vmatpush1.bf16.msra.mxu0 %v2187
      %2701 = vmatprep.subr.bf16.mxu0 0
      %2702 = vmatpush1.bf16.msra.mxu0 %v2206
      %2703 = vmatprep.subr.bf16.mxu0 0
      %2704 = vmatpush1.bf16.msra.mxu0 %v2225
      %2705 = vmatprep.subr.bf16.mxu0 0
      %2706 = vmatpush1.bf16.msra.mxu0 %v2244
      %2707 = vmatprep.subr.bf16.mxu0 0
      %2708 = vmatpush1.bf16.msra.mxu0 %v2263
      %2709 = vmatprep.subr.bf16.mxu0 0
      %2710 = vmatpush1.bf16.msra.mxu0 %v2282
      %2711 = vmatprep.subr.bf16.mxu0 0
      %2712 = vmatpush1.bf16.msra.mxu0 %v2301
      %2713 = vmatprep.subr.bf16.mxu0 0
      %2714 = vmatpush1.bf16.msra.mxu0 0
      %2715 = vmatprep.subr.bf16.mxu0 0
      %2716 = vmatpush1.bf16.msra.mxu0 0
      %2717 = vmatprep.subr.bf16.mxu0 0
      %2718 = vmatpush1.bf16.msra.mxu0 0
      %2719 = vmatprep.mubr.bf16.mxu0 %v2316
      %2720 = vmatmul.mubr.bf16.gmra.mrb[0].mxu0 %v2312
      %v2721 = vpop.f32.mrb[0].mxu0
      %v2722 = vadd.f32 %v2307, %v2721
      %v2723 = vpop.f32.mrb[0].mxu0
      %v2724 = vpop.f32.mrb[0].mxu0
      %v2725 = vpop.f32.mrb[0].mxu0
      %2726 = vdwg.mxu0
      %v2727 = vmax.f32 %v2353, 0.0
      %v2728 = vmax.f32 %v2355, 0.0
      %v2729 = vmax.f32 %v2394, 0.0
      %v2730 = vmax.f32 %v2396, 0.0
      %v2731 = vmax.f32 %v2435, 0.0
      %v2732 = vmax.f32 %v2437, 0.0
      %v2733 = vmax.f32 %v2476, 0.0
      %v2734 = vmax.f32 %v2478, 0.0
      %v2735 = vmax.f32 %v2517, 0.0
      %v2736 = vmax.f32 %v2519, 0.0
      %v2737 = vmax.f32 %v2558, 0.0
      %v2738 = vmax.f32 %v2560, 0.0
      %v2739 = vmax.f32 %v2599, 0.0
      %v2740 = vmax.f32 %v2601, 0.0
      %v2741 = vmax.f32 %v2640, 0.0
      %v2742 = vmax.f32 %v2642, 0.0
      %v2743 = vmax.f32 %v2681, 0.0
      %v2744 = vmax.f32 %v2683, 0.0
      %v2745 = vmax.f32 %v2722, 0.0
      %2765 = vrot.lane.b32.xlu0 %v2727, 127
      %v2766 = vpop.permute.xlu0 %2765
      %2767 = vrot.lane.b32.xlu0 %v2728, 127
      %v2768 = vpop.permute.xlu0 %2767
      %2769 = vrot.lane.b32.xlu0 %v2729, 127
      %v2770 = vpop.permute.xlu0 %2769
      %2771 = vrot.lane.b32.xlu0 %v2730, 127
      %v2772 = vpop.permute.xlu0 %2771
      %2773 = vrot.lane.b32.xlu0 %v2731, 127
      %v2774 = vpop.permute.xlu0 %2773
      %2775 = vrot.lane.b32.xlu0 %v2732, 127
      %v2776 = vpop.permute.xlu0 %2775
      %2777 = vrot.lane.b32.xlu0 %v2733, 127
      %v2778 = vpop.permute.xlu0 %2777
      %2779 = vrot.lane.b32.xlu0 %v2734, 127
      %v2780 = vpop.permute.xlu0 %2779
      %2781 = vrot.lane.b32.xlu0 %v2735, 127
      %v2782 = vpop.permute.xlu0 %2781
      %2783 = vrot.lane.b32.xlu0 %v2736, 127
      %v2784 = vpop.permute.xlu0 %2783
      %2785 = vrot.lane.b32.xlu0 %v2737, 127
      %v2786 = vpop.permute.xlu0 %2785
      %2787 = vrot.lane.b32.xlu0 %v2738, 127
      %v2788 = vpop.permute.xlu0 %2787
      %2789 = vrot.lane.b32.xlu0 %v2739, 127
      %v2790 = vpop.permute.xlu0 %2789
      %2791 = vrot.lane.b32.xlu0 %v2740, 127
      %v2792 = vpop.permute.xlu0 %2791
      %2793 = vrot.lane.b32.xlu0 %v2741, 127
      %v2794 = vpop.permute.xlu0 %2793
      %2795 = vrot.lane.b32.xlu0 %v2742, 127
      %v2796 = vpop.permute.xlu0 %2795
      %2797 = vrot.lane.b32.xlu0 %v2743, 127
      %v2798 = vpop.permute.xlu0 %2797
      %2799 = vrot.lane.b32.xlu0 %v2744, 127
      %v2800 = vpop.permute.xlu0 %2799
      %2801 = vrot.lane.b32.xlu0 %v2745, 127
      %v2802 = vpop.permute.xlu0 %2801
      %v2803 = vsel %vm247, %v2766, %v2768
      %v2804 = vsel %vm247, %v2768, %v2770
      %v2805 = vsel %vm247, %v2770, %v2772
      %v2806 = vsel %vm247, %v2772, %v2774
      %v2807 = vsel %vm247, %v2774, %v2776
      %v2808 = vsel %vm247, %v2776, %v2778
      %v2809 = vsel %vm247, %v2778, %v2780
      %v2810 = vsel %vm247, %v2780, %v2782
      %v2811 = vsel %vm247, %v2782, %v2784
      %v2812 = vsel %vm247, %v2784, %v2786
      %v2813 = vsel %vm247, %v2786, %v2788
      %v2814 = vsel %vm247, %v2788, %v2790
      %v2815 = vsel %vm247, %v2790, %v2792
      %v2816 = vsel %vm247, %v2792, %v2794
      %v2817 = vsel %vm247, %v2794, %v2796
      %v2818 = vsel %vm247, %v2796, %v2798
      %v2819 = vsel %vm247, %v2798, %v2800
      %v2820 = vsel %vm247, %v2800, %v2802
      %v2840 = vmax.f32 %v2727, %v2803
      %v2841 = vmax.f32 %v2728, %v2804
      %v2842 = vmax.f32 %v2729, %v2805
      %v2843 = vmax.f32 %v2730, %v2806
      %v2844 = vmax.f32 %v2731, %v2807
      %v2845 = vmax.f32 %v2732, %v2808
      %v2846 = vmax.f32 %v2733, %v2809
      %v2847 = vmax.f32 %v2734, %v2810
      %v2848 = vmax.f32 %v2735, %v2811
      %v2849 = vmax.f32 %v2736, %v2812
      %v2850 = vmax.f32 %v2737, %v2813
      %v2851 = vmax.f32 %v2738, %v2814
      %v2852 = vmax.f32 %v2739, %v2815
      %v2853 = vmax.f32 %v2740, %v2816
      %v2854 = vmax.f32 %v2741, %v2817
      %v2855 = vmax.f32 %v2742, %v2818
      %v2856 = vmax.f32 %v2743, %v2819
      %v2857 = vmax.f32 %v2744, %v2820
      %v2858 = vmax.f32 %v2745, %v2802
      %2878 = vrot.lane.b32.xlu0 %v2840, 80
      %v2879 = vpop.permute.xlu0 %2878
      %2880 = vrot.lane.b32.xlu0 %v2841, 80
      %v2881 = vpop.permute.xlu0 %2880
      %2882 = vrot.lane.b32.xlu0 %v2842, 80
      %v2883 = vpop.permute.xlu0 %2882
      %2884 = vrot.lane.b32.xlu0 %v2843, 80
      %v2885 = vpop.permute.xlu0 %2884
      %2886 = vrot.lane.b32.xlu0 %v2844, 80
      %v2887 = vpop.permute.xlu0 %2886
      %2888 = vrot.lane.b32.xlu0 %v2845, 80
      %v2889 = vpop.permute.xlu0 %2888
      %2890 = vrot.lane.b32.xlu0 %v2846, 80
      %v2891 = vpop.permute.xlu0 %2890
      %2892 = vrot.lane.b32.xlu0 %v2847, 80
      %v2893 = vpop.permute.xlu0 %2892
      %2894 = vrot.lane.b32.xlu0 %v2848, 80
      %v2895 = vpop.permute.xlu0 %2894
      %2896 = vrot.lane.b32.xlu0 %v2849, 80
      %v2897 = vpop.permute.xlu0 %2896
      %2898 = vrot.lane.b32.xlu0 %v2850, 80
      %v2899 = vpop.permute.xlu0 %2898
      %2900 = vrot.lane.b32.xlu0 %v2851, 80
      %v2901 = vpop.permute.xlu0 %2900
      %2902 = vrot.lane.b32.xlu0 %v2852, 80
      %v2903 = vpop.permute.xlu0 %2902
      %2904 = vrot.lane.b32.xlu0 %v2853, 80
      %v2905 = vpop.permute.xlu0 %2904
      %2906 = vrot.lane.b32.xlu0 %v2854, 80
      %v2907 = vpop.permute.xlu0 %2906
      %2908 = vrot.lane.b32.xlu0 %v2855, 80
      %v2909 = vpop.permute.xlu0 %2908
      %2910 = vrot.lane.b32.xlu0 %v2856, 80
      %v2911 = vpop.permute.xlu0 %2910
      %2912 = vrot.lane.b32.xlu0 %v2857, 80
      %v2913 = vpop.permute.xlu0 %2912
      %2914 = vrot.lane.b32.xlu0 %v2858, 80
      %v2915 = vpop.permute.xlu0 %2914
      %v2916 = vsel %vm551, %v2879, %v2881
      %v2917 = vsel %vm551, %v2881, %v2883
      %v2918 = vsel %vm551, %v2883, %v2885
      %v2919 = vsel %vm551, %v2885, %v2887
      %v2920 = vsel %vm551, %v2887, %v2889
      %v2921 = vsel %vm551, %v2889, %v2891
      %v2922 = vsel %vm551, %v2891, %v2893
      %v2923 = vsel %vm551, %v2893, %v2895
      %v2924 = vsel %vm551, %v2895, %v2897
      %v2925 = vsel %vm551, %v2897, %v2899
      %v2926 = vsel %vm551, %v2899, %v2901
      %v2927 = vsel %vm551, %v2901, %v2903
      %v2928 = vsel %vm551, %v2903, %v2905
      %v2929 = vsel %vm551, %v2905, %v2907
      %v2930 = vsel %vm551, %v2907, %v2909
      %v2931 = vsel %vm551, %v2909, %v2911
      %v2932 = vsel %vm551, %v2911, %v2913
      %v2933 = vsel %vm551, %v2913, %v2915
      %v2952 = vmax.f32 %v2840, %v2916
      %v2953 = vmax.f32 %v2841, %v2917
      %v2954 = vmax.f32 %v2842, %v2918
      %v2955 = vmax.f32 %v2843, %v2919
      %v2956 = vmax.f32 %v2844, %v2920
      %v2957 = vmax.f32 %v2845, %v2921
      %v2958 = vmax.f32 %v2846, %v2922
      %v2959 = vmax.f32 %v2847, %v2923
      %v2960 = vmax.f32 %v2848, %v2924
      %v2961 = vmax.f32 %v2849, %v2925
      %v2962 = vmax.f32 %v2850, %v2926
      %v2963 = vmax.f32 %v2851, %v2927
      %v2964 = vmax.f32 %v2852, %v2928
      %v2965 = vmax.f32 %v2853, %v2929
      %v2966 = vmax.f32 %v2854, %v2930
      %v2967 = vmax.f32 %v2855, %v2931
      %v2968 = vmax.f32 %v2856, %v2932
      %v2969 = vmax.f32 %v2857, %v2933
      %2970 = vst [vmem:[%s170] sm:$0xff] %v2952
      %2971 = vst [vmem:[%s170 + $0x8] sm:$0xff] %v2953
      %2972 = vst [vmem:[%s170 + $0x10] sm:$0xff] %v2954
      %2973 = vst [vmem:[%s170 + $0x18] sm:$0xff] %v2955
      %2974 = vst [vmem:[%s170 + $0x20] sm:$0xff] %v2956
      %2975 = vst [vmem:[%s170 + $0x28] sm:$0xff] %v2957
      %2976 = vst [vmem:[%s170 + $0x30] sm:$0xff] %v2958
      %2977 = vst [vmem:[%s170 + $0x38] sm:$0xff] %v2959
      %2978 = vst [vmem:[%s170 + $0x40] sm:$0xff] %v2960
      %2979 = vst [vmem:[%s170 + $0x48] sm:$0xff] %v2961
      %2980 = vst [vmem:[%s170 + $0x50] sm:$0xff] %v2962
      %2981 = vst [vmem:[%s170 + $0x58] sm:$0xff] %v2963
      %2982 = vst [vmem:[%s170 + $0x60] sm:$0xff] %v2964
      %2983 = vst [vmem:[%s170 + $0x68] sm:$0xff] %v2965
      %2984 = vst [vmem:[%s170 + $0x70] sm:$0xff] %v2966
      %2985 = vst [vmem:[%s170 + $0x78] sm:$0xff] %v2967
      %2986 = vst [vmem:[%s170 + $0x80] sm:$0xff] %v2968
      %2987 = vst [vmem:[%s170 + $0x88] sm:$0xff] %v2969
      %p2988 = scmp.lt.s32.totalorder %s14, 1
      %s2989 = scalar_select %p2988, %s14, 1
      %s2990 = smul.addr %s2989, 18
      %s2991 = smul.addr %s2990, 8
      %s2992 = scalar_lea.vmem %s3, %s2991
      // Predicated region
      $region33: #{simple_convnet_forward.3} parent=31 // pred_check
        %p2993 = pneg %p100
      $region34: #{simple_convnet_forward.3} parent=31 // pred_check_branch
        %2995 = sbr.rel (%p2993) target = $region36
      $region35: #{simple_convnet_forward.3} parent=31 // pred_region
        _
      $region36: #{simple_convnet_forward.3} parent=31 // pred_fallthru
        _
    $region32: #{simple_convnet_forward.3} parent=5 // pred_fallthru
      _
    %p2996 = scmp.le.s32.totalorder 2, %s9
    // Predicated region
    $region37: #{simple_convnet_forward.3} parent=5 // pred_check
      %p2997 = pneg %p2996
    $region38: #{simple_convnet_forward.3} parent=5 // pred_check_branch
      %2999 = sbr.rel (%p2997) target = $region40
    $region39: #{simple_convnet_forward.3} parent=5 // pred_region
      %s3000 = ssub.s32 %s9, 2
      // Predicated region
      $region41: #{simple_convnet_forward.3} parent=39 // pred_check
        %p3001 = pneg %p106
      $region42: #{simple_convnet_forward.3} parent=39 // pred_check_branch
        %3003 = sbr.rel (%p3001) target = $region44
      $region43: #{simple_convnet_forward.3} parent=39 // pred_region
        %p3004 = scmp.lt.s32.totalorder %s15, 1
        %s3005 = scalar_select %p3004, %s15, 1
        %s3006 = smul.addr %s3005, 18
        %s3007 = smul.addr %s3006, 8
        %s3008 = scalar_lea.vmem %s3, %s3007
      $region44: #{simple_convnet_forward.3} parent=39 // pred_fallthru
        _
    $region40: #{simple_convnet_forward.3} parent=5 // pred_fallthru
      _
  $region6: #{simple_convnet_forward.3} parent=0 // loop_footer
    %s13 = sadd.s32 1, %s9
  $region7: #{simple_convnet_forward.3} parent=0 // loop_footer_branch
    %8 = sbr.rel target = $region3
  $region8: #{simple_convnet_forward.3} parent=0 // loop_exit
    _

// kernel: simple_convnet_forward.5
$region0: #{simple_convnet_forward.5}
  #allocation0 [shape = 'u32[]', space=smem, size = 0x4, offset = 0x4, fixed_abs, tag = 'smem constant byte address 0x4 - core index']
  #allocation1 [shape = 'u32[144,128]{1,0:T(1,128)}', space=vmem, size = 0x12000, scoped, tag = 'internal scratch']
  %s0 = inlined_call_operand.vmem [shape: bf16[8,2048], index: 0, kind: input, shape index: {}]
  %s1 = inlined_call_operand.vmem [shape: bf16[2048,128], index: 1, kind: input, shape index: {}]
  %s2 = inlined_call_operand.vmem [shape: f32[1,128], index: 2, kind: input, shape index: {}]
  %s3 = inlined_call_operand.vmem [shape: bf16[128,128], index: 3, kind: input, shape index: {}]
  %s4 = inlined_call_operand.vmem [shape: f32[1,128], index: 4, kind: input, shape index: {}]
  %s5 = inlined_call_operand.vmem [shape: bf16[128,128], index: 5, kind: input, shape index: {}]
  %s6 = inlined_call_operand.vmem [shape: f32[1,128], index: 6, kind: input, shape index: {}]
  %s7 = inlined_call_operand.vmem [shape: f32[8,128], index: 7, kind: output, shape index: {}]
  %s8 = sld [smem:[#allocation0]]
  $region38: #{simple_convnet_forward.5} parent=0
    _
  %s10 = ssub.s32 1, %s8
  %s11 = scalar_select 0, %s10, %s8
  // Predicated region
  $region2: #{simple_convnet_forward.5} parent=0 // pred_check
    _
  $region3: #{simple_convnet_forward.5} parent=0 // pred_check_branch
    %13 = sbr.rel (0) target = $region5
  $region4: #{simple_convnet_forward.5} parent=0 // pred_region
    _
  $region5: #{simple_convnet_forward.5} parent=0 // pred_fallthru
    _
  // Predicated region
  $region6: #{simple_convnet_forward.5} parent=0 // pred_check
    _
  $region7: #{simple_convnet_forward.5} parent=0 // pred_check_branch
    %15 = sbr.rel (0) target = $region9
  $region8: #{simple_convnet_forward.5} parent=0 // pred_region
    _
  $region9: #{simple_convnet_forward.5} parent=0 // pred_fallthru
    _
  // Predicated region
  $region10: #{simple_convnet_forward.5} parent=0 // pred_check
    _
  $region11: #{simple_convnet_forward.5} parent=0 // pred_check_branch
    %17 = sbr.rel (0) target = $region13
  $region12: #{simple_convnet_forward.5} parent=0 // pred_region
    _
  $region13: #{simple_convnet_forward.5} parent=0 // pred_fallthru
    _
  // Predicated region
  $region14: #{simple_convnet_forward.5} parent=0 // pred_check
    _
  $region15: #{simple_convnet_forward.5} parent=0 // pred_check_branch
    %19 = sbr.rel (0) target = $region17
  $region16: #{simple_convnet_forward.5} parent=0 // pred_region
    _
  $region17: #{simple_convnet_forward.5} parent=0 // pred_fallthru
    _
  // Predicated region
  $region18: #{simple_convnet_forward.5} parent=0 // pred_check
    _
  $region19: #{simple_convnet_forward.5} parent=0 // pred_check_branch
    %21 = sbr.rel (0) target = $region21
  $region20: #{simple_convnet_forward.5} parent=0 // pred_region
    _
  $region21: #{simple_convnet_forward.5} parent=0 // pred_fallthru
    _
  // Predicated region
  $region22: #{simple_convnet_forward.5} parent=0 // pred_check
    _
  $region23: #{simple_convnet_forward.5} parent=0 // pred_check_branch
    %23 = sbr.rel (0) target = $region25
  $region24: #{simple_convnet_forward.5} parent=0 // pred_region
    _
  $region25: #{simple_convnet_forward.5} parent=0 // pred_fallthru
    _
  // Predicated region
  $region26: #{simple_convnet_forward.5} parent=0 // pred_check
    _
  $region27: #{simple_convnet_forward.5} parent=0 // pred_check_branch
    %25 = sbr.rel (0) target = $region29
  $region28: #{simple_convnet_forward.5} parent=0 // pred_region
    _
  $region29: #{simple_convnet_forward.5} parent=0 // pred_fallthru
    _
  %v27 = vld [vmem:[%s0] sm:$0xff]
  %v28 = vld [vmem:[%s0 + $0x8] sm:$0xff]
  %v29 = vld [vmem:[%s0 + $0x10] sm:$0xff]
  %v30 = vld [vmem:[%s0 + $0x18] sm:$0xff]
  %v31 = vld [vmem:[%s0 + $0x20] sm:$0xff]
  %v32 = vld [vmem:[%s0 + $0x28] sm:$0xff]
  %v33 = vld [vmem:[%s0 + $0x30] sm:$0xff]
  %v34 = vld [vmem:[%s0 + $0x38] sm:$0xff]
  %v35 = vld [vmem:[%s1] sm:$0xf]
  %v36 = vld [vmem:[%s1 + $0x4] sm:$0xf]
  %v37 = vld [vmem:[%s1 + $0x8] sm:$0xf]
  %v38 = vld [vmem:[%s1 + $0xc] sm:$0xf]
  %v39 = vld [vmem:[%s1 + $0x10] sm:$0xf]
  %v40 = vld [vmem:[%s1 + $0x14] sm:$0xf]
  %v41 = vld [vmem:[%s1 + $0x18] sm:$0xf]
  %v42 = vld [vmem:[%s1 + $0x1c] sm:$0xf]
  %v43 = vld [vmem:[%s1 + $0x20] sm:$0xf]
  %v44 = vld [vmem:[%s1 + $0x24] sm:$0xf]
  %v45 = vld [vmem:[%s1 + $0x28] sm:$0xf]
  %v46 = vld [vmem:[%s1 + $0x2c] sm:$0xf]
  %v47 = vld [vmem:[%s1 + $0x30] sm:$0xf]
  %v48 = vld [vmem:[%s1 + $0x34] sm:$0xf]
  %v49 = vld [vmem:[%s1 + $0x38] sm:$0xf]
  %v50 = vld [vmem:[%s1 + $0x3c] sm:$0xf]
  %v51 = vld [vmem:[%s1 + $0x40] sm:$0xf]
  %v52 = vld [vmem:[%s1 + $0x44] sm:$0xf]
  %v53 = vld [vmem:[%s1 + $0x48] sm:$0xf]
  %v54 = vld [vmem:[%s1 + $0x4c] sm:$0xf]
  %v55 = vld [vmem:[%s1 + $0x50] sm:$0xf]
  %v56 = vld [vmem:[%s1 + $0x54] sm:$0xf]
  %v57 = vld [vmem:[%s1 + $0x58] sm:$0xf]
  %v58 = vld [vmem:[%s1 + $0x5c] sm:$0xf]
  %v59 = vld [vmem:[%s1 + $0x60] sm:$0xf]
  %v60 = vld [vmem:[%s1 + $0x64] sm:$0xf]
  %v61 = vld [vmem:[%s1 + $0x68] sm:$0xf]
  %v62 = vld [vmem:[%s1 + $0x6c] sm:$0xf]
  %v63 = vld [vmem:[%s1 + $0x70] sm:$0xf]
  %v64 = vld [vmem:[%s1 + $0x74] sm:$0xf]
  %v65 = vld [vmem:[%s1 + $0x78] sm:$0xf]
  %v66 = vld [vmem:[%s1 + $0x7c] sm:$0xf]
  %v67 = vld [vmem:[%s1 + $0x80] sm:$0xf]
  %v68 = vld [vmem:[%s1 + $0x84] sm:$0xf]
  %v69 = vld [vmem:[%s1 + $0x88] sm:$0xf]
  %v70 = vld [vmem:[%s1 + $0x8c] sm:$0xf]
  %v71 = vld [vmem:[%s1 + $0x90] sm:$0xf]
  %v72 = vld [vmem:[%s1 + $0x94] sm:$0xf]
  %v73 = vld [vmem:[%s1 + $0x98] sm:$0xf]
  %v74 = vld [vmem:[%s1 + $0x9c] sm:$0xf]
  %v75 = vld [vmem:[%s1 + $0xa0] sm:$0xf]
  %v76 = vld [vmem:[%s1 + $0xa4] sm:$0xf]
  %v77 = vld [vmem:[%s1 + $0xa8] sm:$0xf]
  %v78 = vld [vmem:[%s1 + $0xac] sm:$0xf]
  %v79 = vld [vmem:[%s1 + $0xb0] sm:$0xf]
  %v80 = vld [vmem:[%s1 + $0xb4] sm:$0xf]
  %v81 = vld [vmem:[%s1 + $0xb8] sm:$0xf]
  %v82 = vld [vmem:[%s1 + $0xbc] sm:$0xf]
  %v83 = vld [vmem:[%s1 + $0xc0] sm:$0xf]
  %v84 = vld [vmem:[%s1 + $0xc4] sm:$0xf]
  %v85 = vld [vmem:[%s1 + $0xc8] sm:$0xf]
  %v86 = vld [vmem:[%s1 + $0xcc] sm:$0xf]
  %v87 = vld [vmem:[%s1 + $0xd0] sm:$0xf]
  %v88 = vld [vmem:[%s1 + $0xd4] sm:$0xf]
  %v89 = vld [vmem:[%s1 + $0xd8] sm:$0xf]
  %v90 = vld [vmem:[%s1 + $0xdc] sm:$0xf]
  %v91 = vld [vmem:[%s1 + $0xe0] sm:$0xf]
  %v92 = vld [vmem:[%s1 + $0xe4] sm:$0xf]
  %v93 = vld [vmem:[%s1 + $0xe8] sm:$0xf]
  %v94 = vld [vmem:[%s1 + $0xec] sm:$0xf]
  %v95 = vld [vmem:[%s1 + $0xf0] sm:$0xf]
  %v96 = vld [vmem:[%s1 + $0xf4] sm:$0xf]
  %v97 = vld [vmem:[%s1 + $0xf8] sm:$0xf]
  %v98 = vld [vmem:[%s1 + $0xfc] sm:$0xf]
  %v99 = vld [vmem:[%s1 + $0x100] sm:$0xf]
  %v100 = vld [vmem:[%s1 + $0x104] sm:$0xf]
  %v101 = vld [vmem:[%s1 + $0x108] sm:$0xf]
  %v102 = vld [vmem:[%s1 + $0x10c] sm:$0xf]
  %v103 = vld [vmem:[%s1 + $0x110] sm:$0xf]
  %v104 = vld [vmem:[%s1 + $0x114] sm:$0xf]
  %v105 = vld [vmem:[%s1 + $0x118] sm:$0xf]
  %v106 = vld [vmem:[%s1 + $0x11c] sm:$0xf]
  %v107 = vld [vmem:[%s1 + $0x120] sm:$0xf]
  %v108 = vld [vmem:[%s1 + $0x124] sm:$0xf]
  %v109 = vld [vmem:[%s1 + $0x128] sm:$0xf]
  %v110 = vld [vmem:[%s1 + $0x12c] sm:$0xf]
  %v111 = vld [vmem:[%s1 + $0x130] sm:$0xf]
  %v112 = vld [vmem:[%s1 + $0x134] sm:$0xf]
  %v113 = vld [vmem:[%s1 + $0x138] sm:$0xf]
  %v114 = vld [vmem:[%s1 + $0x13c] sm:$0xf]
  %v115 = vld [vmem:[%s1 + $0x140] sm:$0xf]
  %v116 = vld [vmem:[%s1 + $0x144] sm:$0xf]
  %v117 = vld [vmem:[%s1 + $0x148] sm:$0xf]
  %v118 = vld [vmem:[%s1 + $0x14c] sm:$0xf]
  %v119 = vld [vmem:[%s1 + $0x150] sm:$0xf]
  %v120 = vld [vmem:[%s1 + $0x154] sm:$0xf]
  %v121 = vld [vmem:[%s1 + $0x158] sm:$0xf]
  %v122 = vld [vmem:[%s1 + $0x15c] sm:$0xf]
  %v123 = vld [vmem:[%s1 + $0x160] sm:$0xf]
  %v124 = vld [vmem:[%s1 + $0x164] sm:$0xf]
  %v125 = vld [vmem:[%s1 + $0x168] sm:$0xf]
  %v126 = vld [vmem:[%s1 + $0x16c] sm:$0xf]
  %v127 = vld [vmem:[%s1 + $0x170] sm:$0xf]
  %v128 = vld [vmem:[%s1 + $0x174] sm:$0xf]
  %v129 = vld [vmem:[%s1 + $0x178] sm:$0xf]
  %v130 = vld [vmem:[%s1 + $0x17c] sm:$0xf]
  %v131 = vld [vmem:[%s1 + $0x180] sm:$0xf]
  %v132 = vld [vmem:[%s1 + $0x184] sm:$0xf]
  %v133 = vld [vmem:[%s1 + $0x188] sm:$0xf]
  %v134 = vld [vmem:[%s1 + $0x18c] sm:$0xf]
  %v135 = vld [vmem:[%s1 + $0x190] sm:$0xf]
  %v136 = vld [vmem:[%s1 + $0x194] sm:$0xf]
  %v137 = vld [vmem:[%s1 + $0x198] sm:$0xf]
  %v138 = vld [vmem:[%s1 + $0x19c] sm:$0xf]
  %v139 = vld [vmem:[%s1 + $0x1a0] sm:$0xf]
  %v140 = vld [vmem:[%s1 + $0x1a4] sm:$0xf]
  %v141 = vld [vmem:[%s1 + $0x1a8] sm:$0xf]
  %v142 = vld [vmem:[%s1 + $0x1ac] sm:$0xf]
  %v143 = vld [vmem:[%s1 + $0x1b0] sm:$0xf]
  %v144 = vld [vmem:[%s1 + $0x1b4] sm:$0xf]
  %v145 = vld [vmem:[%s1 + $0x1b8] sm:$0xf]
  %v146 = vld [vmem:[%s1 + $0x1bc] sm:$0xf]
  %v147 = vld [vmem:[%s1 + $0x1c0] sm:$0xf]
  %v148 = vld [vmem:[%s1 + $0x1c4] sm:$0xf]
  %v149 = vld [vmem:[%s1 + $0x1c8] sm:$0xf]
  %v150 = vld [vmem:[%s1 + $0x1cc] sm:$0xf]
  %v151 = vld [vmem:[%s1 + $0x1d0] sm:$0xf]
  %v152 = vld [vmem:[%s1 + $0x1d4] sm:$0xf]
  %v153 = vld [vmem:[%s1 + $0x1d8] sm:$0xf]
  %v154 = vld [vmem:[%s1 + $0x1dc] sm:$0xf]
  %v155 = vld [vmem:[%s1 + $0x1e0] sm:$0xf]
  %v156 = vld [vmem:[%s1 + $0x1e4] sm:$0xf]
  %v157 = vld [vmem:[%s1 + $0x1e8] sm:$0xf]
  %v158 = vld [vmem:[%s1 + $0x1ec] sm:$0xf]
  %v159 = vld [vmem:[%s1 + $0x1f0] sm:$0xf]
  %v160 = vld [vmem:[%s1 + $0x1f4] sm:$0xf]
  %v161 = vld [vmem:[%s1 + $0x1f8] sm:$0xf]
  %v162 = vld [vmem:[%s1 + $0x1fc] sm:$0xf]
  %v163 = vld [vmem:[%s1 + $0x200] sm:$0xf]
  %v164 = vld [vmem:[%s1 + $0x204] sm:$0xf]
  %v165 = vld [vmem:[%s1 + $0x208] sm:$0xf]
  %v166 = vld [vmem:[%s1 + $0x20c] sm:$0xf]
  %v167 = vld [vmem:[%s1 + $0x210] sm:$0xf]
  %v168 = vld [vmem:[%s1 + $0x214] sm:$0xf]
  %v169 = vld [vmem:[%s1 + $0x218] sm:$0xf]
  %v170 = vld [vmem:[%s1 + $0x21c] sm:$0xf]
  %v171 = vld [vmem:[%s1 + $0x220] sm:$0xf]
  %v172 = vld [vmem:[%s1 + $0x224] sm:$0xf]
  %v173 = vld [vmem:[%s1 + $0x228] sm:$0xf]
  %v174 = vld [vmem:[%s1 + $0x22c] sm:$0xf]
  %v175 = vld [vmem:[%s1 + $0x230] sm:$0xf]
  %v176 = vld [vmem:[%s1 + $0x234] sm:$0xf]
  %v177 = vld [vmem:[%s1 + $0x238] sm:$0xf]
  %v178 = vld [vmem:[%s1 + $0x23c] sm:$0xf]
  %v179 = vld [vmem:[%s1 + $0x240] sm:$0xf]
  %v180 = vld [vmem:[%s1 + $0x244] sm:$0xf]
  %v181 = vld [vmem:[%s1 + $0x248] sm:$0xf]
  %v182 = vld [vmem:[%s1 + $0x24c] sm:$0xf]
  %v183 = vld [vmem:[%s1 + $0x250] sm:$0xf]
  %v184 = vld [vmem:[%s1 + $0x254] sm:$0xf]
  %v185 = vld [vmem:[%s1 + $0x258] sm:$0xf]
  %v186 = vld [vmem:[%s1 + $0x25c] sm:$0xf]
  %v187 = vld [vmem:[%s1 + $0x260] sm:$0xf]
  %v188 = vld [vmem:[%s1 + $0x264] sm:$0xf]
  %v189 = vld [vmem:[%s1 + $0x268] sm:$0xf]
  %v190 = vld [vmem:[%s1 + $0x26c] sm:$0xf]
  %v191 = vld [vmem:[%s1 + $0x270] sm:$0xf]
  %v192 = vld [vmem:[%s1 + $0x274] sm:$0xf]
  %v193 = vld [vmem:[%s1 + $0x278] sm:$0xf]
  %v194 = vld [vmem:[%s1 + $0x27c] sm:$0xf]
  %v195 = vld [vmem:[%s1 + $0x280] sm:$0xf]
  %v196 = vld [vmem:[%s1 + $0x284] sm:$0xf]
  %v197 = vld [vmem:[%s1 + $0x288] sm:$0xf]
  %v198 = vld [vmem:[%s1 + $0x28c] sm:$0xf]
  %v199 = vld [vmem:[%s1 + $0x290] sm:$0xf]
  %v200 = vld [vmem:[%s1 + $0x294] sm:$0xf]
  %v201 = vld [vmem:[%s1 + $0x298] sm:$0xf]
  %v202 = vld [vmem:[%s1 + $0x29c] sm:$0xf]
  %v203 = vld [vmem:[%s1 + $0x2a0] sm:$0xf]
  %v204 = vld [vmem:[%s1 + $0x2a4] sm:$0xf]
  %v205 = vld [vmem:[%s1 + $0x2a8] sm:$0xf]
  %v206 = vld [vmem:[%s1 + $0x2ac] sm:$0xf]
  %v207 = vld [vmem:[%s1 + $0x2b0] sm:$0xf]
  %v208 = vld [vmem:[%s1 + $0x2b4] sm:$0xf]
  %v209 = vld [vmem:[%s1 + $0x2b8] sm:$0xf]
  %v210 = vld [vmem:[%s1 + $0x2bc] sm:$0xf]
  %v211 = vld [vmem:[%s1 + $0x2c0] sm:$0xf]
  %v212 = vld [vmem:[%s1 + $0x2c4] sm:$0xf]
  %v213 = vld [vmem:[%s1 + $0x2c8] sm:$0xf]
  %v214 = vld [vmem:[%s1 + $0x2cc] sm:$0xf]
  %v215 = vld [vmem:[%s1 + $0x2d0] sm:$0xf]
  %v216 = vld [vmem:[%s1 + $0x2d4] sm:$0xf]
  %v217 = vld [vmem:[%s1 + $0x2d8] sm:$0xf]
  %v218 = vld [vmem:[%s1 + $0x2dc] sm:$0xf]
  %v219 = vld [vmem:[%s1 + $0x2e0] sm:$0xf]
  %v220 = vld [vmem:[%s1 + $0x2e4] sm:$0xf]
  %v221 = vld [vmem:[%s1 + $0x2e8] sm:$0xf]
  %v222 = vld [vmem:[%s1 + $0x2ec] sm:$0xf]
  %v223 = vld [vmem:[%s1 + $0x2f0] sm:$0xf]
  %v224 = vld [vmem:[%s1 + $0x2f4] sm:$0xf]
  %v225 = vld [vmem:[%s1 + $0x2f8] sm:$0xf]
  %v226 = vld [vmem:[%s1 + $0x2fc] sm:$0xf]
  %v227 = vld [vmem:[%s1 + $0x300] sm:$0xf]
  %v228 = vld [vmem:[%s1 + $0x304] sm:$0xf]
  %v229 = vld [vmem:[%s1 + $0x308] sm:$0xf]
  %v230 = vld [vmem:[%s1 + $0x30c] sm:$0xf]
  %v231 = vld [vmem:[%s1 + $0x310] sm:$0xf]
  %v232 = vld [vmem:[%s1 + $0x314] sm:$0xf]
  %v233 = vld [vmem:[%s1 + $0x318] sm:$0xf]
  %v234 = vld [vmem:[%s1 + $0x31c] sm:$0xf]
  %v235 = vld [vmem:[%s1 + $0x320] sm:$0xf]
  %v236 = vld [vmem:[%s1 + $0x324] sm:$0xf]
  %v237 = vld [vmem:[%s1 + $0x328] sm:$0xf]
  %v238 = vld [vmem:[%s1 + $0x32c] sm:$0xf]
  %v239 = vld [vmem:[%s1 + $0x330] sm:$0xf]
  %v240 = vld [vmem:[%s1 + $0x334] sm:$0xf]
  %v241 = vld [vmem:[%s1 + $0x338] sm:$0xf]
  %v242 = vld [vmem:[%s1 + $0x33c] sm:$0xf]
  %v243 = vld [vmem:[%s1 + $0x340] sm:$0xf]
  %v244 = vld [vmem:[%s1 + $0x344] sm:$0xf]
  %v245 = vld [vmem:[%s1 + $0x348] sm:$0xf]
  %v246 = vld [vmem:[%s1 + $0x34c] sm:$0xf]
  %v247 = vld [vmem:[%s1 + $0x350] sm:$0xf]
  %v248 = vld [vmem:[%s1 + $0x354] sm:$0xf]
  %v249 = vld [vmem:[%s1 + $0x358] sm:$0xf]
  %v250 = vld [vmem:[%s1 + $0x35c] sm:$0xf]
  %v251 = vld [vmem:[%s1 + $0x360] sm:$0xf]
  %v252 = vld [vmem:[%s1 + $0x364] sm:$0xf]
  %v253 = vld [vmem:[%s1 + $0x368] sm:$0xf]
  %v254 = vld [vmem:[%s1 + $0x36c] sm:$0xf]
  %v255 = vld [vmem:[%s1 + $0x370] sm:$0xf]
  %v256 = vld [vmem:[%s1 + $0x374] sm:$0xf]
  %v257 = vld [vmem:[%s1 + $0x378] sm:$0xf]
  %v258 = vld [vmem:[%s1 + $0x37c] sm:$0xf]
  %v259 = vld [vmem:[%s1 + $0x380] sm:$0xf]
  %v260 = vld [vmem:[%s1 + $0x384] sm:$0xf]
  %v261 = vld [vmem:[%s1 + $0x388] sm:$0xf]
  %v262 = vld [vmem:[%s1 + $0x38c] sm:$0xf]
  %v263 = vld [vmem:[%s1 + $0x390] sm:$0xf]
  %v264 = vld [vmem:[%s1 + $0x394] sm:$0xf]
  %v265 = vld [vmem:[%s1 + $0x398] sm:$0xf]
  %v266 = vld [vmem:[%s1 + $0x39c] sm:$0xf]
  %v267 = vld [vmem:[%s1 + $0x3a0] sm:$0xf]
  %v268 = vld [vmem:[%s1 + $0x3a4] sm:$0xf]
  %v269 = vld [vmem:[%s1 + $0x3a8] sm:$0xf]
  %v270 = vld [vmem:[%s1 + $0x3ac] sm:$0xf]
  %v271 = vld [vmem:[%s1 + $0x3b0] sm:$0xf]
  %v272 = vld [vmem:[%s1 + $0x3b4] sm:$0xf]
  %v273 = vld [vmem:[%s1 + $0x3b8] sm:$0xf]
  %v274 = vld [vmem:[%s1 + $0x3bc] sm:$0xf]
  %v275 = vld [vmem:[%s1 + $0x3c0] sm:$0xf]
  %v276 = vld [vmem:[%s1 + $0x3c4] sm:$0xf]
  %v277 = vld [vmem:[%s1 + $0x3c8] sm:$0xf]
  %v278 = vld [vmem:[%s1 + $0x3cc] sm:$0xf]
  %v279 = vld [vmem:[%s1 + $0x3d0] sm:$0xf]
  %v280 = vld [vmem:[%s1 + $0x3d4] sm:$0xf]
  %v281 = vld [vmem:[%s1 + $0x3d8] sm:$0xf]
  %v282 = vld [vmem:[%s1 + $0x3dc] sm:$0xf]
  %v283 = vld [vmem:[%s1 + $0x3e0] sm:$0xf]
  %v284 = vld [vmem:[%s1 + $0x3e4] sm:$0xf]
  %v285 = vld [vmem:[%s1 + $0x3e8] sm:$0xf]
  %v286 = vld [vmem:[%s1 + $0x3ec] sm:$0xf]
  %v287 = vld [vmem:[%s1 + $0x3f0] sm:$0xf]
  %v288 = vld [vmem:[%s1 + $0x3f4] sm:$0xf]
  %v289 = vld [vmem:[%s1 + $0x3f8] sm:$0xf]
  %v290 = vld [vmem:[%s1 + $0x3fc] sm:$0xf]
  %v291 = vld [vmem:[%s2] sm:$0x1]
  %v293 = vlaneseq
  %v294 = vshrl.u32 %v293, 7
  %v295 = vsub.s32 0, %v294
  %v296 = vrot.slane %v291, %v295
  %v306 = vunpack.c.l.b16 %v27
  %v307 = vunpack.c.h.b16 %v27
  %v308 = vunpack.c.l.b16 %v28
  %v309 = vunpack.c.h.b16 %v28
  %v310 = vunpack.c.l.b16 %v29
  %v311 = vunpack.c.h.b16 %v29
  %v312 = vunpack.c.l.b16 %v30
  %v313 = vunpack.c.h.b16 %v30
  %v314 = vunpack.c.l.b16 %v31
  %v315 = vunpack.c.h.b16 %v31
  %v316 = vunpack.c.l.b16 %v32
  %v317 = vunpack.c.h.b16 %v32
  %v318 = vunpack.c.l.b16 %v33
  %v319 = vunpack.c.h.b16 %v33
  %v320 = vunpack.c.l.b16 %v34
  %v321 = vunpack.c.h.b16 %v34
  %v322 = vpack.c.b16 %v306, %v306
  %v323 = vpack.c.b16 %v307, %v307
  %v324 = vpack.c.b16 %v308, %v308
  %v325 = vpack.c.b16 %v309, %v309
  %v326 = vpack.c.b16 %v310, %v310
  %v327 = vpack.c.b16 %v311, %v311
  %v328 = vpack.c.b16 %v312, %v312
  %v329 = vpack.c.b16 %v313, %v313
  %v330 = vpack.c.b16 %v314, %v314
  %v331 = vpack.c.b16 %v315, %v315
  %v332 = vpack.c.b16 %v316, %v316
  %v333 = vpack.c.b16 %v317, %v317
  %v334 = vpack.c.b16 %v318, %v318
  %v335 = vpack.c.b16 %v319, %v319
  %v336 = vpack.c.b16 %v320, %v320
  %v337 = vpack.c.b16 %v321, %v321
  %v610 = vunpack.c.l.b16 %v35
  %v611 = vunpack.c.l.b16 %v36
  %v612 = vunpack.c.l.b16 %v37
  %v613 = vunpack.c.l.b16 %v38
  %v614 = vunpack.c.l.b16 %v39
  %v615 = vunpack.c.l.b16 %v40
  %v616 = vunpack.c.l.b16 %v41
  %v617 = vunpack.c.l.b16 %v42
  %v618 = vunpack.c.l.b16 %v43
  %v619 = vunpack.c.l.b16 %v44
  %v620 = vunpack.c.l.b16 %v45
  %v621 = vunpack.c.l.b16 %v46
  %v622 = vunpack.c.l.b16 %v47
  %v623 = vunpack.c.l.b16 %v48
  %v624 = vunpack.c.l.b16 %v49
  %v625 = vunpack.c.l.b16 %v50
  %v626 = vunpack.c.l.b16 %v51
  %v627 = vunpack.c.l.b16 %v52
  %v628 = vunpack.c.l.b16 %v53
  %v629 = vunpack.c.l.b16 %v54
  %v630 = vunpack.c.l.b16 %v55
  %v631 = vunpack.c.l.b16 %v56
  %v632 = vunpack.c.l.b16 %v57
  %v633 = vunpack.c.l.b16 %v58
  %v634 = vunpack.c.l.b16 %v59
  %v635 = vunpack.c.l.b16 %v60
  %v636 = vunpack.c.l.b16 %v61
  %v637 = vunpack.c.l.b16 %v62
  %v638 = vunpack.c.l.b16 %v63
  %v639 = vunpack.c.l.b16 %v64
  %v640 = vunpack.c.l.b16 %v65
  %v641 = vunpack.c.l.b16 %v66
  %v642 = vunpack.c.l.b16 %v67
  %v643 = vunpack.c.l.b16 %v68
  %v644 = vunpack.c.l.b16 %v69
  %v645 = vunpack.c.l.b16 %v70
  %v646 = vunpack.c.l.b16 %v71
  %v647 = vunpack.c.l.b16 %v72
  %v648 = vunpack.c.l.b16 %v73
  %v649 = vunpack.c.l.b16 %v74
  %v650 = vunpack.c.l.b16 %v75
  %v651 = vunpack.c.l.b16 %v76
  %v652 = vunpack.c.l.b16 %v77
  %v653 = vunpack.c.l.b16 %v78
  %v654 = vunpack.c.l.b16 %v79
  %v655 = vunpack.c.l.b16 %v80
  %v656 = vunpack.c.l.b16 %v81
  %v657 = vunpack.c.l.b16 %v82
  %v658 = vunpack.c.l.b16 %v83
  %v659 = vunpack.c.l.b16 %v84
  %v660 = vunpack.c.l.b16 %v85
  %v661 = vunpack.c.l.b16 %v86
  %v662 = vunpack.c.l.b16 %v87
  %v663 = vunpack.c.l.b16 %v88
  %v664 = vunpack.c.l.b16 %v89
  %v665 = vunpack.c.l.b16 %v90
  %v666 = vunpack.c.l.b16 %v91
  %v667 = vunpack.c.l.b16 %v92
  %v668 = vunpack.c.l.b16 %v93
  %v669 = vunpack.c.l.b16 %v94
  %v670 = vunpack.c.l.b16 %v95
  %v671 = vunpack.c.l.b16 %v96
  %v672 = vunpack.c.l.b16 %v97
  %v673 = vunpack.c.l.b16 %v98
  %v674 = vunpack.c.l.b16 %v99
  %v675 = vunpack.c.l.b16 %v100
  %v676 = vunpack.c.l.b16 %v101
  %v677 = vunpack.c.l.b16 %v102
  %v678 = vunpack.c.l.b16 %v103
  %v679 = vunpack.c.l.b16 %v104
  %v680 = vunpack.c.l.b16 %v105
  %v681 = vunpack.c.l.b16 %v106
  %v682 = vunpack.c.l.b16 %v107
  %v683 = vunpack.c.l.b16 %v108
  %v684 = vunpack.c.l.b16 %v109
  %v685 = vunpack.c.l.b16 %v110
  %v686 = vunpack.c.l.b16 %v111
  %v687 = vunpack.c.l.b16 %v112
  %v688 = vunpack.c.l.b16 %v113
  %v689 = vunpack.c.l.b16 %v114
  %v690 = vunpack.c.l.b16 %v115
  %v691 = vunpack.c.l.b16 %v116
  %v692 = vunpack.c.l.b16 %v117
  %v693 = vunpack.c.l.b16 %v118
  %v694 = vunpack.c.l.b16 %v119
  %v695 = vunpack.c.l.b16 %v120
  %v696 = vunpack.c.l.b16 %v121
  %v697 = vunpack.c.l.b16 %v122
  %v698 = vunpack.c.l.b16 %v123
  %v699 = vunpack.c.l.b16 %v124
  %v700 = vunpack.c.l.b16 %v125
  %v701 = vunpack.c.l.b16 %v126
  %v702 = vunpack.c.l.b16 %v127
  %v703 = vunpack.c.l.b16 %v128
  %v704 = vunpack.c.l.b16 %v129
  %v705 = vunpack.c.l.b16 %v130
  %v706 = vunpack.c.l.b16 %v131
  %v707 = vunpack.c.l.b16 %v132
  %v708 = vunpack.c.l.b16 %v133
  %v709 = vunpack.c.l.b16 %v134
  %v710 = vunpack.c.l.b16 %v135
  %v711 = vunpack.c.l.b16 %v136
  %v712 = vunpack.c.l.b16 %v137
  %v713 = vunpack.c.l.b16 %v138
  %v714 = vunpack.c.l.b16 %v139
  %v715 = vunpack.c.l.b16 %v140
  %v716 = vunpack.c.l.b16 %v141
  %v717 = vunpack.c.l.b16 %v142
  %v718 = vunpack.c.l.b16 %v143
  %v719 = vunpack.c.l.b16 %v144
  %v720 = vunpack.c.l.b16 %v145
  %v721 = vunpack.c.l.b16 %v146
  %v722 = vunpack.c.l.b16 %v147
  %v723 = vunpack.c.l.b16 %v148
  %v724 = vunpack.c.l.b16 %v149
  %v725 = vunpack.c.l.b16 %v150
  %v726 = vunpack.c.l.b16 %v151
  %v727 = vunpack.c.l.b16 %v152
  %v728 = vunpack.c.l.b16 %v153
  %v729 = vunpack.c.l.b16 %v154
  %v730 = vunpack.c.l.b16 %v155
  %v731 = vunpack.c.l.b16 %v156
  %v732 = vunpack.c.l.b16 %v157
  %v733 = vunpack.c.l.b16 %v158
  %v734 = vunpack.c.l.b16 %v159
  %v735 = vunpack.c.l.b16 %v160
  %v736 = vunpack.c.l.b16 %v161
  %v737 = vunpack.c.l.b16 %v162
  %v738 = vunpack.c.l.b16 %v163
  %v739 = vunpack.c.l.b16 %v164
  %v740 = vunpack.c.l.b16 %v165
  %v741 = vunpack.c.l.b16 %v166
  %v742 = vunpack.c.l.b16 %v167
  %v743 = vunpack.c.l.b16 %v168
  %v744 = vunpack.c.l.b16 %v169
  %v745 = vunpack.c.l.b16 %v170
  %v746 = vunpack.c.l.b16 %v171
  %v747 = vunpack.c.l.b16 %v172
  %v748 = vunpack.c.l.b16 %v173
  %v749 = vunpack.c.l.b16 %v174
  %v750 = vunpack.c.l.b16 %v175
  %v751 = vunpack.c.l.b16 %v176
  %v752 = vunpack.c.l.b16 %v177
  %v753 = vunpack.c.l.b16 %v178
  %v754 = vunpack.c.l.b16 %v179
  %v755 = vunpack.c.l.b16 %v180
  %v756 = vunpack.c.l.b16 %v181
  %v757 = vunpack.c.l.b16 %v182
  %v758 = vunpack.c.l.b16 %v183
  %v759 = vunpack.c.l.b16 %v184
  %v760 = vunpack.c.l.b16 %v185
  %v761 = vunpack.c.l.b16 %v186
  %v762 = vunpack.c.l.b16 %v187
  %v763 = vunpack.c.l.b16 %v188
  %v764 = vunpack.c.l.b16 %v189
  %v765 = vunpack.c.l.b16 %v190
  %v766 = vunpack.c.l.b16 %v191
  %v767 = vunpack.c.l.b16 %v192
  %v768 = vunpack.c.l.b16 %v193
  %v769 = vunpack.c.l.b16 %v194
  %v770 = vunpack.c.l.b16 %v195
  %v771 = vunpack.c.l.b16 %v196
  %v772 = vunpack.c.l.b16 %v197
  %v773 = vunpack.c.l.b16 %v198
  %v774 = vunpack.c.l.b16 %v199
  %v775 = vunpack.c.l.b16 %v200
  %v776 = vunpack.c.l.b16 %v201
  %v777 = vunpack.c.l.b16 %v202
  %v778 = vunpack.c.l.b16 %v203
  %v779 = vunpack.c.l.b16 %v204
  %v780 = vunpack.c.l.b16 %v205
  %v781 = vunpack.c.l.b16 %v206
  %v782 = vunpack.c.l.b16 %v207
  %v783 = vunpack.c.l.b16 %v208
  %v784 = vunpack.c.l.b16 %v209
  %v785 = vunpack.c.l.b16 %v210
  %v786 = vunpack.c.l.b16 %v211
  %v787 = vunpack.c.l.b16 %v212
  %v788 = vunpack.c.l.b16 %v213
  %v789 = vunpack.c.l.b16 %v214
  %v790 = vunpack.c.l.b16 %v215
  %v791 = vunpack.c.l.b16 %v216
  %v792 = vunpack.c.l.b16 %v217
  %v793 = vunpack.c.l.b16 %v218
  %v794 = vunpack.c.l.b16 %v219
  %v795 = vunpack.c.l.b16 %v220
  %v796 = vunpack.c.l.b16 %v221
  %v797 = vunpack.c.l.b16 %v222
  %v798 = vunpack.c.l.b16 %v223
  %v799 = vunpack.c.l.b16 %v224
  %v800 = vunpack.c.l.b16 %v225
  %v801 = vunpack.c.l.b16 %v226
  %v802 = vunpack.c.l.b16 %v227
  %v803 = vunpack.c.l.b16 %v228
  %v804 = vunpack.c.l.b16 %v229
  %v805 = vunpack.c.l.b16 %v230
  %v806 = vunpack.c.l.b16 %v231
  %v807 = vunpack.c.l.b16 %v232
  %v808 = vunpack.c.l.b16 %v233
  %v809 = vunpack.c.l.b16 %v234
  %v810 = vunpack.c.l.b16 %v235
  %v811 = vunpack.c.l.b16 %v236
  %v812 = vunpack.c.l.b16 %v237
  %v813 = vunpack.c.l.b16 %v238
  %v814 = vunpack.c.l.b16 %v239
  %v815 = vunpack.c.l.b16 %v240
  %v816 = vunpack.c.l.b16 %v241
  %v817 = vunpack.c.l.b16 %v242
  %v818 = vunpack.c.l.b16 %v243
  %v819 = vunpack.c.l.b16 %v244
  %v820 = vunpack.c.l.b16 %v245
  %v821 = vunpack.c.l.b16 %v246
  %v822 = vunpack.c.l.b16 %v247
  %v823 = vunpack.c.l.b16 %v248
  %v824 = vunpack.c.l.b16 %v249
  %v825 = vunpack.c.l.b16 %v250
  %v826 = vunpack.c.l.b16 %v251
  %v827 = vunpack.c.l.b16 %v252
  %v828 = vunpack.c.l.b16 %v253
  %v829 = vunpack.c.l.b16 %v254
  %v830 = vunpack.c.l.b16 %v255
  %v831 = vunpack.c.l.b16 %v256
  %v832 = vunpack.c.l.b16 %v257
  %v833 = vunpack.c.l.b16 %v258
  %v834 = vunpack.c.l.b16 %v259
  %v835 = vunpack.c.l.b16 %v260
  %v836 = vunpack.c.l.b16 %v261
  %v837 = vunpack.c.l.b16 %v262
  %v838 = vunpack.c.l.b16 %v263
  %v839 = vunpack.c.l.b16 %v264
  %v840 = vunpack.c.l.b16 %v265
  %v841 = vunpack.c.l.b16 %v266
  %v842 = vunpack.c.l.b16 %v267
  %v843 = vunpack.c.l.b16 %v268
  %v844 = vunpack.c.l.b16 %v269
  %v845 = vunpack.c.l.b16 %v270
  %v846 = vunpack.c.l.b16 %v271
  %v847 = vunpack.c.l.b16 %v272
  %v848 = vunpack.c.l.b16 %v273
  %v849 = vunpack.c.l.b16 %v274
  %v850 = vunpack.c.l.b16 %v275
  %v851 = vunpack.c.l.b16 %v276
  %v852 = vunpack.c.l.b16 %v277
  %v853 = vunpack.c.l.b16 %v278
  %v854 = vunpack.c.l.b16 %v279
  %v855 = vunpack.c.l.b16 %v280
  %v856 = vunpack.c.l.b16 %v281
  %v857 = vunpack.c.l.b16 %v282
  %v858 = vunpack.c.l.b16 %v283
  %v859 = vunpack.c.l.b16 %v284
  %v860 = vunpack.c.l.b16 %v285
  %v861 = vunpack.c.l.b16 %v286
  %v862 = vunpack.c.l.b16 %v287
  %v863 = vunpack.c.l.b16 %v288
  %v864 = vunpack.c.l.b16 %v289
  %v865 = vunpack.c.l.b16 %v290
  %v866 = vpack.c.b16 %v611, %v610
  %v867 = vpack.c.b16 %v613, %v612
  %v868 = vpack.c.b16 %v615, %v614
  %v869 = vpack.c.b16 %v617, %v616
  %v870 = vpack.c.b16 %v619, %v618
  %v871 = vpack.c.b16 %v621, %v620
  %v872 = vpack.c.b16 %v623, %v622
  %v873 = vpack.c.b16 %v625, %v624
  %v874 = vpack.c.b16 %v627, %v626
  %v875 = vpack.c.b16 %v629, %v628
  %v876 = vpack.c.b16 %v631, %v630
  %v877 = vpack.c.b16 %v633, %v632
  %v878 = vpack.c.b16 %v635, %v634
  %v879 = vpack.c.b16 %v637, %v636
  %v880 = vpack.c.b16 %v639, %v638
  %v881 = vpack.c.b16 %v641, %v640
  %v882 = vpack.c.b16 %v643, %v642
  %v883 = vpack.c.b16 %v645, %v644
  %v884 = vpack.c.b16 %v647, %v646
  %v885 = vpack.c.b16 %v649, %v648
  %v886 = vpack.c.b16 %v651, %v650
  %v887 = vpack.c.b16 %v653, %v652
  %v888 = vpack.c.b16 %v655, %v654
  %v889 = vpack.c.b16 %v657, %v656
  %v890 = vpack.c.b16 %v659, %v658
  %v891 = vpack.c.b16 %v661, %v660
  %v892 = vpack.c.b16 %v663, %v662
  %v893 = vpack.c.b16 %v665, %v664
  %v894 = vpack.c.b16 %v667, %v666
  %v895 = vpack.c.b16 %v669, %v668
  %v896 = vpack.c.b16 %v671, %v670
  %v897 = vpack.c.b16 %v673, %v672
  %v898 = vpack.c.b16 %v675, %v674
  %v899 = vpack.c.b16 %v677, %v676
  %v900 = vpack.c.b16 %v679, %v678
  %v901 = vpack.c.b16 %v681, %v680
  %v902 = vpack.c.b16 %v683, %v682
  %v903 = vpack.c.b16 %v685, %v684
  %v904 = vpack.c.b16 %v687, %v686
  %v905 = vpack.c.b16 %v689, %v688
  %v906 = vpack.c.b16 %v691, %v690
  %v907 = vpack.c.b16 %v693, %v692
  %v908 = vpack.c.b16 %v695, %v694
  %v909 = vpack.c.b16 %v697, %v696
  %v910 = vpack.c.b16 %v699, %v698
  %v911 = vpack.c.b16 %v701, %v700
  %v912 = vpack.c.b16 %v703, %v702
  %v913 = vpack.c.b16 %v705, %v704
  %v914 = vpack.c.b16 %v707, %v706
  %v915 = vpack.c.b16 %v709, %v708
  %v916 = vpack.c.b16 %v711, %v710
  %v917 = vpack.c.b16 %v713, %v712
  %v918 = vpack.c.b16 %v715, %v714
  %v919 = vpack.c.b16 %v717, %v716
  %v920 = vpack.c.b16 %v719, %v718
  %v921 = vpack.c.b16 %v721, %v720
  %v922 = vpack.c.b16 %v723, %v722
  %v923 = vpack.c.b16 %v725, %v724
  %v924 = vpack.c.b16 %v727, %v726
  %v925 = vpack.c.b16 %v729, %v728
  %v926 = vpack.c.b16 %v731, %v730
  %v927 = vpack.c.b16 %v733, %v732
  %v928 = vpack.c.b16 %v735, %v734
  %v929 = vpack.c.b16 %v737, %v736
  %v930 = vpack.c.b16 %v739, %v738
  %v931 = vpack.c.b16 %v741, %v740
  %v932 = vpack.c.b16 %v743, %v742
  %v933 = vpack.c.b16 %v745, %v744
  %v934 = vpack.c.b16 %v747, %v746
  %v935 = vpack.c.b16 %v749, %v748
  %v936 = vpack.c.b16 %v751, %v750
  %v937 = vpack.c.b16 %v753, %v752
  %v938 = vpack.c.b16 %v755, %v754
  %v939 = vpack.c.b16 %v757, %v756
  %v940 = vpack.c.b16 %v759, %v758
  %v941 = vpack.c.b16 %v761, %v760
  %v942 = vpack.c.b16 %v763, %v762
  %v943 = vpack.c.b16 %v765, %v764
  %v944 = vpack.c.b16 %v767, %v766
  %v945 = vpack.c.b16 %v769, %v768
  %v946 = vpack.c.b16 %v771, %v770
  %v947 = vpack.c.b16 %v773, %v772
  %v948 = vpack.c.b16 %v775, %v774
  %v949 = vpack.c.b16 %v777, %v776
  %v950 = vpack.c.b16 %v779, %v778
  %v951 = vpack.c.b16 %v781, %v780
  %v952 = vpack.c.b16 %v783, %v782
  %v953 = vpack.c.b16 %v785, %v784
  %v954 = vpack.c.b16 %v787, %v786
  %v955 = vpack.c.b16 %v789, %v788
  %v956 = vpack.c.b16 %v791, %v790
  %v957 = vpack.c.b16 %v793, %v792
  %v958 = vpack.c.b16 %v795, %v794
  %v959 = vpack.c.b16 %v797, %v796
  %v960 = vpack.c.b16 %v799, %v798
  %v961 = vpack.c.b16 %v801, %v800
  %v962 = vpack.c.b16 %v803, %v802
  %v963 = vpack.c.b16 %v805, %v804
  %v964 = vpack.c.b16 %v807, %v806
  %v965 = vpack.c.b16 %v809, %v808
  %v966 = vpack.c.b16 %v811, %v810
  %v967 = vpack.c.b16 %v813, %v812
  %v968 = vpack.c.b16 %v815, %v814
  %v969 = vpack.c.b16 %v817, %v816
  %v970 = vpack.c.b16 %v819, %v818
  %v971 = vpack.c.b16 %v821, %v820
  %v972 = vpack.c.b16 %v823, %v822
  %v973 = vpack.c.b16 %v825, %v824
  %v974 = vpack.c.b16 %v827, %v826
  %v975 = vpack.c.b16 %v829, %v828
  %v976 = vpack.c.b16 %v831, %v830
  %v977 = vpack.c.b16 %v833, %v832
  %v978 = vpack.c.b16 %v835, %v834
  %v979 = vpack.c.b16 %v837, %v836
  %v980 = vpack.c.b16 %v839, %v838
  %v981 = vpack.c.b16 %v841, %v840
  %v982 = vpack.c.b16 %v843, %v842
  %v983 = vpack.c.b16 %v845, %v844
  %v984 = vpack.c.b16 %v847, %v846
  %v985 = vpack.c.b16 %v849, %v848
  %v986 = vpack.c.b16 %v851, %v850
  %v987 = vpack.c.b16 %v853, %v852
  %v988 = vpack.c.b16 %v855, %v854
  %v989 = vpack.c.b16 %v857, %v856
  %v990 = vpack.c.b16 %v859, %v858
  %v991 = vpack.c.b16 %v861, %v860
  %v992 = vpack.c.b16 %v863, %v862
  %v993 = vpack.c.b16 %v865, %v864
  %1122 = vmatprep.subr.bf16.mxu0 0
  %1123 = vmatpush1.bf16.msra.mxu0 %v866
  %1124 = vmatprep.subr.bf16.mxu0 0
  %1125 = vmatpush1.bf16.msra.mxu0 %v867
  %1126 = vmatprep.subr.bf16.mxu0 0
  %1127 = vmatpush1.bf16.msra.mxu0 %v868
  %1128 = vmatprep.subr.bf16.mxu0 0
  %1129 = vmatpush1.bf16.msra.mxu0 %v869
  %1130 = vmatprep.subr.bf16.mxu0 0
  %1131 = vmatpush1.bf16.msra.mxu0 %v870
  %1132 = vmatprep.subr.bf16.mxu0 0
  %1133 = vmatpush1.bf16.msra.mxu0 %v871
  %1134 = vmatprep.subr.bf16.mxu0 0
  %1135 = vmatpush1.bf16.msra.mxu0 %v872
  %1136 = vmatprep.subr.bf16.mxu0 0
  %1137 = vmatpush1.bf16.msra.mxu0 %v873
  %1138 = vmatprep.subr.bf16.mxu0 0
  %1139 = vmatpush1.bf16.msra.mxu0 %v874
  %1140 = vmatprep.subr.bf16.mxu0 0
  %1141 = vmatpush1.bf16.msra.mxu0 %v875
  %1142 = vmatprep.subr.bf16.mxu0 0
  %1143 = vmatpush1.bf16.msra.mxu0 %v876
  %1144 = vmatprep.subr.bf16.mxu0 0
  %1145 = vmatpush1.bf16.msra.mxu0 %v877
  %1146 = vmatprep.subr.bf16.mxu0 0
  %1147 = vmatpush1.bf16.msra.mxu0 %v878
  %1148 = vmatprep.subr.bf16.mxu0 0
  %1149 = vmatpush1.bf16.msra.mxu0 %v879
  %1150 = vmatprep.subr.bf16.mxu0 0
  %1151 = vmatpush1.bf16.msra.mxu0 %v880
  %1152 = vmatprep.subr.bf16.mxu0 0
  %1153 = vmatpush1.bf16.msra.mxu0 %v881
  %1154 = vmatprep.mubr.bf16.mxu0 %v323
  %1155 = vmatmul.mubr.bf16.gmra.mrb[0].mxu0 %v322
  %v1156 = vpop.f32.mrb[0].mxu0
  %v1157 = vadd.f32 %v296, %v1156
  %v1158 = vpop.f32.mrb[0].mxu0
  %v1159 = vpop.f32.mrb[0].mxu0
  %v1160 = vpop.f32.mrb[0].mxu0
  %1161 = vdwg.mxu0
  %1162 = vmatprep.subr.bf16.mxu0 0
  %1163 = vmatpush1.bf16.msra.mxu0 %v882
  %1164 = vmatprep.subr.bf16.mxu0 0
  %1165 = vmatpush1.bf16.msra.mxu0 %v883
  %1166 = vmatprep.subr.bf16.mxu0 0
  %1167 = vmatpush1.bf16.msra.mxu0 %v884
  %1168 = vmatprep.subr.bf16.mxu0 0
  %1169 = vmatpush1.bf16.msra.mxu0 %v885
  %1170 = vmatprep.subr.bf16.mxu0 0
  %1171 = vmatpush1.bf16.msra.mxu0 %v886
  %1172 = vmatprep.subr.bf16.mxu0 0
  %1173 = vmatpush1.bf16.msra.mxu0 %v887
  %1174 = vmatprep.subr.bf16.mxu0 0
  %1175 = vmatpush1.bf16.msra.mxu0 %v888
  %1176 = vmatprep.subr.bf16.mxu0 0
  %1177 = vmatpush1.bf16.msra.mxu0 %v889
  %1178 = vmatprep.subr.bf16.mxu0 0
  %1179 = vmatpush1.bf16.msra.mxu0 %v890
  %1180 = vmatprep.subr.bf16.mxu0 0
  %1181 = vmatpush1.bf16.msra.mxu0 %v891
  %1182 = vmatprep.subr.bf16.mxu0 0
  %1183 = vmatpush1.bf16.msra.mxu0 %v892
  %1184 = vmatprep.subr.bf16.mxu0 0
  %1185 = vmatpush1.bf16.msra.mxu0 %v893
  %1186 = vmatprep.subr.bf16.mxu0 0
  %1187 = vmatpush1.bf16.msra.mxu0 %v894
  %1188 = vmatprep.subr.bf16.mxu0 0
  %1189 = vmatpush1.bf16.msra.mxu0 %v895
  %1190 = vmatprep.subr.bf16.mxu0 0
  %1191 = vmatpush1.bf16.msra.mxu0 %v896
  %1192 = vmatprep.subr.bf16.mxu0 0
  %1193 = vmatpush1.bf16.msra.mxu0 %v897
  %1194 = vmatprep.mubr.bf16.mxu0 %v325
  %1195 = vmatmul.mubr.bf16.gmra.mrb[0].mxu0 %v324
  %v1196 = vpop.f32.mrb[0].mxu0
  %v1197 = vadd.f32 %v1157, %v1196
  %v1198 = vpop.f32.mrb[0].mxu0
  %v1199 = vpop.f32.mrb[0].mxu0
  %v1200 = vpop.f32.mrb[0].mxu0
  %1201 = vdwg.mxu0
  %1202 = vmatprep.subr.bf16.mxu0 0
  %1203 = vmatpush1.bf16.msra.mxu0 %v898
  %1204 = vmatprep.subr.bf16.mxu0 0
  %1205 = vmatpush1.bf16.msra.mxu0 %v899
  %1206 = vmatprep.subr.bf16.mxu0 0
  %1207 = vmatpush1.bf16.msra.mxu0 %v900
  %1208 = vmatprep.subr.bf16.mxu0 0
  %1209 = vmatpush1.bf16.msra.mxu0 %v901
  %1210 = vmatprep.subr.bf16.mxu0 0
  %1211 = vmatpush1.bf16.msra.mxu0 %v902
  %1212 = vmatprep.subr.bf16.mxu0 0
  %1213 = vmatpush1.bf16.msra.mxu0 %v903
  %1214 = vmatprep.subr.bf16.mxu0 0
  %1215 = vmatpush1.bf16.msra.mxu0 %v904
  %1216 = vmatprep.subr.bf16.mxu0 0
  %1217 = vmatpush1.bf16.msra.mxu0 %v905
  %1218 = vmatprep.subr.bf16.mxu0 0
  %1219 = vmatpush1.bf16.msra.mxu0 %v906
  %1220 = vmatprep.subr.bf16.mxu0 0
  %1221 = vmatpush1.bf16.msra.mxu0 %v907
  %1222 = vmatprep.subr.bf16.mxu0 0
  %1223 = vmatpush1.bf16.msra.mxu0 %v908
  %1224 = vmatprep.subr.bf16.mxu0 0
  %1225 = vmatpush1.bf16.msra.mxu0 %v909
  %1226 = vmatprep.subr.bf16.mxu0 0
  %1227 = vmatpush1.bf16.msra.mxu0 %v910
  %1228 = vmatprep.subr.bf16.mxu0 0
  %1229 = vmatpush1.bf16.msra.mxu0 %v911
  %1230 = vmatprep.subr.bf16.mxu0 0
  %1231 = vmatpush1.bf16.msra.mxu0 %v912
  %1232 = vmatprep.subr.bf16.mxu0 0
  %1233 = vmatpush1.bf16.msra.mxu0 %v913
  %1234 = vmatprep.mubr.bf16.mxu0 %v327
  %1235 = vmatmul.mubr.bf16.gmra.mrb[0].mxu0 %v326
  %v1236 = vpop.f32.mrb[0].mxu0
  %v1237 = vadd.f32 %v1197, %v1236
  %v1238 = vpop.f32.mrb[0].mxu0
  %v1239 = vpop.f32.mrb[0].mxu0
  %v1240 = vpop.f32.mrb[0].mxu0
  %1241 = vdwg.mxu0
  %1242 = vmatprep.subr.bf16.mxu0 0
  %1243 = vmatpush1.bf16.msra.mxu0 %v914
  %1244 = vmatprep.subr.bf16.mxu0 0
  %1245 = vmatpush1.bf16.msra.mxu0 %v915
  %1246 = vmatprep.subr.bf16.mxu0 0
  %1247 = vmatpush1.bf16.msra.mxu0 %v916
  %1248 = vmatprep.subr.bf16.mxu0 0
  %1249 = vmatpush1.bf16.msra.mxu0 %v917
  %1250 = vmatprep.subr.bf16.mxu0 0
  %1251 = vmatpush1.bf16.msra.mxu0 %v918
  %1252 = vmatprep.subr.bf16.mxu0 0
  %1253 = vmatpush1.bf16.msra.mxu0 %v919
  %1254 = vmatprep.subr.bf16.mxu0 0
  %1255 = vmatpush1.bf16.msra.mxu0 %v920
  %1256 = vmatprep.subr.bf16.mxu0 0
  %1257 = vmatpush1.bf16.msra.mxu0 %v921
  %1258 = vmatprep.subr.bf16.mxu0 0
  %1259 = vmatpush1.bf16.msra.mxu0 %v922
  %1260 = vmatprep.subr.bf16.mxu0 0
  %1261 = vmatpush1.bf16.msra.mxu0 %v923
  %1262 = vmatprep.subr.bf16.mxu0 0
  %1263 = vmatpush1.bf16.msra.mxu0 %v924
  %1264 = vmatprep.subr.bf16.mxu0 0
  %1265 = vmatpush1.bf16.msra.mxu0 %v925
  %1266 = vmatprep.subr.bf16.mxu0 0
  %1267 = vmatpush1.bf16.msra.mxu0 %v926
  %1268 = vmatprep.subr.bf16.mxu0 0
  %1269 = vmatpush1.bf16.msra.mxu0 %v927
  %1270 = vmatprep.subr.bf16.mxu0 0
  %1271 = vmatpush1.bf16.msra.mxu0 %v928
  %1272 = vmatprep.subr.bf16.mxu0 0
  %1273 = vmatpush1.bf16.msra.mxu0 %v929
  %1274 = vmatprep.mubr.bf16.mxu0 %v329
  %1275 = vmatmul.mubr.bf16.gmra.mrb[0].mxu0 %v328
  %v1276 = vpop.f32.mrb[0].mxu0
  %v1277 = vadd.f32 %v1237, %v1276
  %v1278 = vpop.f32.mrb[0].mxu0
  %v1279 = vpop.f32.mrb[0].mxu0
  %v1280 = vpop.f32.mrb[0].mxu0
  %1281 = vdwg.mxu0
  %1282 = vmatprep.subr.bf16.mxu0 0
  %1283 = vmatpush1.bf16.msra.mxu0 %v930
  %1284 = vmatprep.subr.bf16.mxu0 0
  %1285 = vmatpush1.bf16.msra.mxu0 %v931
  %1286 = vmatprep.subr.bf16.mxu0 0
  %1287 = vmatpush1.bf16.msra.mxu0 %v932
  %1288 = vmatprep.subr.bf16.mxu0 0
  %1289 = vmatpush1.bf16.msra.mxu0 %v933
  %1290 = vmatprep.subr.bf16.mxu0 0
  %1291 = vmatpush1.bf16.msra.mxu0 %v934
  %1292 = vmatprep.subr.bf16.mxu0 0
  %1293 = vmatpush1.bf16.msra.mxu0 %v935
  %1294 = vmatprep.subr.bf16.mxu0 0
  %1295 = vmatpush1.bf16.msra.mxu0 %v936
  %1296 = vmatprep.subr.bf16.mxu0 0
  %1297 = vmatpush1.bf16.msra.mxu0 %v937
  %1298 = vmatprep.subr.bf16.mxu0 0
  %1299 = vmatpush1.bf16.msra.mxu0 %v938
  %1300 = vmatprep.subr.bf16.mxu0 0
  %1301 = vmatpush1.bf16.msra.mxu0 %v939
  %1302 = vmatprep.subr.bf16.mxu0 0
  %1303 = vmatpush1.bf16.msra.mxu0 %v940
  %1304 = vmatprep.subr.bf16.mxu0 0
  %1305 = vmatpush1.bf16.msra.mxu0 %v941
  %1306 = vmatprep.subr.bf16.mxu0 0
  %1307 = vmatpush1.bf16.msra.mxu0 %v942
  %1308 = vmatprep.subr.bf16.mxu0 0
  %1309 = vmatpush1.bf16.msra.mxu0 %v943
  %1310 = vmatprep.subr.bf16.mxu0 0
  %1311 = vmatpush1.bf16.msra.mxu0 %v944
  %1312 = vmatprep.subr.bf16.mxu0 0
  %1313 = vmatpush1.bf16.msra.mxu0 %v945
  %1314 = vmatprep.mubr.bf16.mxu0 %v331
  %1315 = vmatmul.mubr.bf16.gmra.mrb[0].mxu0 %v330
  %v1316 = vpop.f32.mrb[0].mxu0
  %v1317 = vadd.f32 %v1277, %v1316
  %v1318 = vpop.f32.mrb[0].mxu0
  %v1319 = vpop.f32.mrb[0].mxu0
  %v1320 = vpop.f32.mrb[0].mxu0
  %1321 = vdwg.mxu0
  %1322 = vmatprep.subr.bf16.mxu0 0
  %1323 = vmatpush1.bf16.msra.mxu0 %v946
  %1324 = vmatprep.subr.bf16.mxu0 0
  %1325 = vmatpush1.bf16.msra.mxu0 %v947
  %1326 = vmatprep.subr.bf16.mxu0 0
  %1327 = vmatpush1.bf16.msra.mxu0 %v948
  %1328 = vmatprep.subr.bf16.mxu0 0
  %1329 = vmatpush1.bf16.msra.mxu0 %v949
  %1330 = vmatprep.subr.bf16.mxu0 0
  %1331 = vmatpush1.bf16.msra.mxu0 %v950
  %1332 = vmatprep.subr.bf16.mxu0 0
  %1333 = vmatpush1.bf16.msra.mxu0 %v951
  %1334 = vmatprep.subr.bf16.mxu0 0
  %1335 = vmatpush1.bf16.msra.mxu0 %v952
  %1336 = vmatprep.subr.bf16.mxu0 0
  %1337 = vmatpush1.bf16.msra.mxu0 %v953
  %1338 = vmatprep.subr.bf16.mxu0 0
  %1339 = vmatpush1.bf16.msra.mxu0 %v954
  %1340 = vmatprep.subr.bf16.mxu0 0
  %1341 = vmatpush1.bf16.msra.mxu0 %v955
  %1342 = vmatprep.subr.bf16.mxu0 0
  %1343 = vmatpush1.bf16.msra.mxu0 %v956
  %1344 = vmatprep.subr.bf16.mxu0 0
  %1345 = vmatpush1.bf16.msra.mxu0 %v957
  %1346 = vmatprep.subr.bf16.mxu0 0
  %1347 = vmatpush1.bf16.msra.mxu0 %v958
  %1348 = vmatprep.subr.bf16.mxu0 0
  %1349 = vmatpush1.bf16.msra.mxu0 %v959
  %1350 = vmatprep.subr.bf16.mxu0 0
  %1351 = vmatpush1.bf16.msra.mxu0 %v960
  %1352 = vmatprep.subr.bf16.mxu0 0
  %1353 = vmatpush1.bf16.msra.mxu0 %v961
  %1354 = vmatprep.mubr.bf16.mxu0 %v333
  %1355 = vmatmul.mubr.bf16.gmra.mrb[0].mxu0 %v332
  %v1356 = vpop.f32.mrb[0].mxu0
  %v1357 = vadd.f32 %v1317, %v1356
  %v1358 = vpop.f32.mrb[0].mxu0
  %v1359 = vpop.f32.mrb[0].mxu0
  %v1360 = vpop.f32.mrb[0].mxu0
  %1361 = vdwg.mxu0
  %1362 = vmatprep.subr.bf16.mxu0 0
  %1363 = vmatpush1.bf16.msra.mxu0 %v962
  %1364 = vmatprep.subr.bf16.mxu0 0
  %1365 = vmatpush1.bf16.msra.mxu0 %v963
  %1366 = vmatprep.subr.bf16.mxu0 0
  %1367 = vmatpush1.bf16.msra.mxu0 %v964
  %1368 = vmatprep.subr.bf16.mxu0 0
  %1369 = vmatpush1.bf16.msra.mxu0 %v965
  %1370 = vmatprep.subr.bf16.mxu0 0
  %1371 = vmatpush1.bf16.msra.mxu0 %v966
  %1372 = vmatprep.subr.bf16.mxu0 0
  %1373 = vmatpush1.bf16.msra.mxu0 %v967
  %1374 = vmatprep.subr.bf16.mxu0 0
  %1375 = vmatpush1.bf16.msra.mxu0 %v968
  %1376 = vmatprep.subr.bf16.mxu0 0
  %1377 = vmatpush1.bf16.msra.mxu0 %v969
  %1378 = vmatprep.subr.bf16.mxu0 0
  %1379 = vmatpush1.bf16.msra.mxu0 %v970
  %1380 = vmatprep.subr.bf16.mxu0 0
  %1381 = vmatpush1.bf16.msra.mxu0 %v971
  %1382 = vmatprep.subr.bf16.mxu0 0
  %1383 = vmatpush1.bf16.msra.mxu0 %v972
  %1384 = vmatprep.subr.bf16.mxu0 0
  %1385 = vmatpush1.bf16.msra.mxu0 %v973
  %1386 = vmatprep.subr.bf16.mxu0 0
  %1387 = vmatpush1.bf16.msra.mxu0 %v974
  %1388 = vmatprep.subr.bf16.mxu0 0
  %1389 = vmatpush1.bf16.msra.mxu0 %v975
  %1390 = vmatprep.subr.bf16.mxu0 0
  %1391 = vmatpush1.bf16.msra.mxu0 %v976
  %1392 = vmatprep.subr.bf16.mxu0 0
  %1393 = vmatpush1.bf16.msra.mxu0 %v977
  %1394 = vmatprep.mubr.bf16.mxu0 %v335
  %1395 = vmatmul.mubr.bf16.gmra.mrb[0].mxu0 %v334
  %v1396 = vpop.f32.mrb[0].mxu0
  %v1397 = vadd.f32 %v1357, %v1396
  %v1398 = vpop.f32.mrb[0].mxu0
  %v1399 = vpop.f32.mrb[0].mxu0
  %v1400 = vpop.f32.mrb[0].mxu0
  %1401 = vdwg.mxu0
  %1402 = vmatprep.subr.bf16.mxu0 0
  %1403 = vmatpush1.bf16.msra.mxu0 %v978
  %1404 = vmatprep.subr.bf16.mxu0 0
  %1405 = vmatpush1.bf16.msra.mxu0 %v979
  %1406 = vmatprep.subr.bf16.mxu0 0
  %1407 = vmatpush1.bf16.msra.mxu0 %v980
  %1408 = vmatprep.subr.bf16.mxu0 0
  %1409 = vmatpush1.bf16.msra.mxu0 %v981
  %1410 = vmatprep.subr.bf16.mxu0 0
  %1411 = vmatpush1.bf16.msra.mxu0 %v982
  %1412 = vmatprep.subr.bf16.mxu0 0
  %1413 = vmatpush1.bf16.msra.mxu0 %v983
  %1414 = vmatprep.subr.bf16.mxu0 0
  %1415 = vmatpush1.bf16.msra.mxu0 %v984
  %1416 = vmatprep.subr.bf16.mxu0 0
  %1417 = vmatpush1.bf16.msra.mxu0 %v985
  %1418 = vmatprep.subr.bf16.mxu0 0
  %1419 = vmatpush1.bf16.msra.mxu0 %v986
  %1420 = vmatprep.subr.bf16.mxu0 0
  %1421 = vmatpush1.bf16.msra.mxu0 %v987
  %1422 = vmatprep.subr.bf16.mxu0 0
  %1423 = vmatpush1.bf16.msra.mxu0 %v988
  %1424 = vmatprep.subr.bf16.mxu0 0
  %1425 = vmatpush1.bf16.msra.mxu0 %v989
  %1426 = vmatprep.subr.bf16.mxu0 0
  %1427 = vmatpush1.bf16.msra.mxu0 %v990
  %1428 = vmatprep.subr.bf16.mxu0 0
  %1429 = vmatpush1.bf16.msra.mxu0 %v991
  %1430 = vmatprep.subr.bf16.mxu0 0
  %1431 = vmatpush1.bf16.msra.mxu0 %v992
  %1432 = vmatprep.subr.bf16.mxu0 0
  %1433 = vmatpush1.bf16.msra.mxu0 %v993
  %1434 = vmatprep.mubr.bf16.mxu0 %v337
  %1435 = vmatmul.mubr.bf16.gmra.mrb[0].mxu0 %v336
  %v1436 = vpop.f32.mrb[0].mxu0
  %v1437 = vadd.f32 %v1397, %v1436
  %v1438 = vpop.f32.mrb[0].mxu0
  %v1439 = vpop.f32.mrb[0].mxu0
  %v1440 = vpop.f32.mrb[0].mxu0
  %1441 = vdwg.mxu0
  %v1442 = vmax.f32 %v1437, 0.0
  %v1443 = vpack.c.bf16 %v1442, %v1442
  %v1444 = vld [vmem:[%s3] sm:$0xf]
  %v1445 = vld [vmem:[%s3 + $0x4] sm:$0xf]
  %v1446 = vld [vmem:[%s3 + $0x8] sm:$0xf]
  %v1447 = vld [vmem:[%s3 + $0xc] sm:$0xf]
  %v1448 = vld [vmem:[%s3 + $0x10] sm:$0xf]
  %v1449 = vld [vmem:[%s3 + $0x14] sm:$0xf]
  %v1450 = vld [vmem:[%s3 + $0x18] sm:$0xf]
  %v1451 = vld [vmem:[%s3 + $0x1c] sm:$0xf]
  %v1452 = vld [vmem:[%s3 + $0x20] sm:$0xf]
  %v1453 = vld [vmem:[%s3 + $0x24] sm:$0xf]
  %v1454 = vld [vmem:[%s3 + $0x28] sm:$0xf]
  %v1455 = vld [vmem:[%s3 + $0x2c] sm:$0xf]
  %v1456 = vld [vmem:[%s3 + $0x30] sm:$0xf]
  %v1457 = vld [vmem:[%s3 + $0x34] sm:$0xf]
  %v1458 = vld [vmem:[%s3 + $0x38] sm:$0xf]
  %v1459 = vld [vmem:[%s3 + $0x3c] sm:$0xf]
  %v1460 = vld [vmem:[%s4] sm:$0x1]
  %v1462 = vlaneseq
  %v1463 = vshrl.u32 %v1462, 7
  %v1464 = vsub.s32 0, %v1463
  %v1465 = vrot.slane %v1460, %v1464
  %v1483 = vunpack.c.l.b16 %v1444
  %v1484 = vunpack.c.l.b16 %v1445
  %v1485 = vunpack.c.l.b16 %v1446
  %v1486 = vunpack.c.l.b16 %v1447
  %v1487 = vunpack.c.l.b16 %v1448
  %v1488 = vunpack.c.l.b16 %v1449
  %v1489 = vunpack.c.l.b16 %v1450
  %v1490 = vunpack.c.l.b16 %v1451
  %v1491 = vunpack.c.l.b16 %v1452
  %v1492 = vunpack.c.l.b16 %v1453
  %v1493 = vunpack.c.l.b16 %v1454
  %v1494 = vunpack.c.l.b16 %v1455
  %v1495 = vunpack.c.l.b16 %v1456
  %v1496 = vunpack.c.l.b16 %v1457
  %v1497 = vunpack.c.l.b16 %v1458
  %v1498 = vunpack.c.l.b16 %v1459
  %v1499 = vpack.c.b16 %v1484, %v1483
  %v1500 = vpack.c.b16 %v1486, %v1485
  %v1501 = vpack.c.b16 %v1488, %v1487
  %v1502 = vpack.c.b16 %v1490, %v1489
  %v1503 = vpack.c.b16 %v1492, %v1491
  %v1504 = vpack.c.b16 %v1494, %v1493
  %v1505 = vpack.c.b16 %v1496, %v1495
  %v1506 = vpack.c.b16 %v1498, %v1497
  %1515 = vmatprep.subr.bf16.mxu0 0
  %1516 = vmatpush1.bf16.msra.mxu0 %v1499
  %1517 = vmatprep.subr.bf16.mxu0 0
  %1518 = vmatpush1.bf16.msra.mxu0 %v1500
  %1519 = vmatprep.subr.bf16.mxu0 0
  %1520 = vmatpush1.bf16.msra.mxu0 %v1501
  %1521 = vmatprep.subr.bf16.mxu0 0
  %1522 = vmatpush1.bf16.msra.mxu0 %v1502
  %1523 = vmatprep.subr.bf16.mxu0 0
  %1524 = vmatpush1.bf16.msra.mxu0 %v1503
  %1525 = vmatprep.subr.bf16.mxu0 0
  %1526 = vmatpush1.bf16.msra.mxu0 %v1504
  %1527 = vmatprep.subr.bf16.mxu0 0
  %1528 = vmatpush1.bf16.msra.mxu0 %v1505
  %1529 = vmatprep.subr.bf16.mxu0 0
  %1530 = vmatpush1.bf16.msra.mxu0 %v1506
  %1531 = vmatprep.subr.bf16.mxu0 0
  %1532 = vmatpush1.bf16.msra.mxu0 0
  %1533 = vmatprep.subr.bf16.mxu0 0
  %1534 = vmatpush1.bf16.msra.mxu0 0
  %1535 = vmatprep.subr.bf16.mxu0 0
  %1536 = vmatpush1.bf16.msra.mxu0 0
  %1537 = vmatprep.subr.bf16.mxu0 0
  %1538 = vmatpush1.bf16.msra.mxu0 0
  %1539 = vmatprep.subr.bf16.mxu0 0
  %1540 = vmatpush1.bf16.msra.mxu0 0
  %1541 = vmatprep.subr.bf16.mxu0 0
  %1542 = vmatpush1.bf16.msra.mxu0 0
  %1543 = vmatprep.subr.bf16.mxu0 0
  %1544 = vmatpush1.bf16.msra.mxu0 0
  %1545 = vmatprep.subr.bf16.mxu0 0
  %1546 = vmatpush1.bf16.msra.mxu0 0
  %1547 = vmatprep.mubr.bf16.mxu0 0
  %1548 = vmatmul.mubr.bf16.gmra.mrb[0].mxu0 %v1443
  %v1549 = vpop.f32.mrb[0].mxu0
  %v1550 = vadd.f32 %v1465, %v1549
  %v1551 = vpop.f32.mrb[0].mxu0
  %v1552 = vpop.f32.mrb[0].mxu0
  %v1553 = vpop.f32.mrb[0].mxu0
  %1554 = vdwg.mxu0
  %v1555 = vmax.f32 %v1550, 0.0
  %v1556 = vpack.c.bf16 %v1555, %v1555
  %v1557 = vld [vmem:[%s5] sm:$0xf]
  %v1558 = vld [vmem:[%s5 + $0x4] sm:$0xf]
  %v1559 = vld [vmem:[%s5 + $0x8] sm:$0xf]
  %v1560 = vld [vmem:[%s5 + $0xc] sm:$0xf]
  %v1561 = vld [vmem:[%s5 + $0x10] sm:$0xf]
  %v1562 = vld [vmem:[%s5 + $0x14] sm:$0xf]
  %v1563 = vld [vmem:[%s5 + $0x18] sm:$0xf]
  %v1564 = vld [vmem:[%s5 + $0x1c] sm:$0xf]
  %v1565 = vld [vmem:[%s5 + $0x20] sm:$0xf]
  %v1566 = vld [vmem:[%s5 + $0x24] sm:$0xf]
  %v1567 = vld [vmem:[%s5 + $0x28] sm:$0xf]
  %v1568 = vld [vmem:[%s5 + $0x2c] sm:$0xf]
  %v1569 = vld [vmem:[%s5 + $0x30] sm:$0xf]
  %v1570 = vld [vmem:[%s5 + $0x34] sm:$0xf]
  %v1571 = vld [vmem:[%s5 + $0x38] sm:$0xf]
  %v1572 = vld [vmem:[%s5 + $0x3c] sm:$0xf]
  %v1573 = vld [vmem:[%s6] sm:$0x1]
  %v1575 = vlaneseq
  %v1576 = vshrl.u32 %v1575, 7
  %v1577 = vsub.s32 0, %v1576
  %v1578 = vrot.slane %v1573, %v1577
  %v1596 = vunpack.c.l.b16 %v1557
  %v1597 = vunpack.c.l.b16 %v1558
  %v1598 = vunpack.c.l.b16 %v1559
  %v1599 = vunpack.c.l.b16 %v1560
  %v1600 = vunpack.c.l.b16 %v1561
  %v1601 = vunpack.c.l.b16 %v1562
  %v1602 = vunpack.c.l.b16 %v1563
  %v1603 = vunpack.c.l.b16 %v1564
  %v1604 = vunpack.c.l.b16 %v1565
  %v1605 = vunpack.c.l.b16 %v1566
  %v1606 = vunpack.c.l.b16 %v1567
  %v1607 = vunpack.c.l.b16 %v1568
  %v1608 = vunpack.c.l.b16 %v1569
  %v1609 = vunpack.c.l.b16 %v1570
  %v1610 = vunpack.c.l.b16 %v1571
  %v1611 = vunpack.c.l.b16 %v1572
  %v1612 = vpack.c.b16 %v1597, %v1596
  %v1613 = vpack.c.b16 %v1599, %v1598
  %v1614 = vpack.c.b16 %v1601, %v1600
  %v1615 = vpack.c.b16 %v1603, %v1602
  %v1616 = vpack.c.b16 %v1605, %v1604
  %v1617 = vpack.c.b16 %v1607, %v1606
  %v1618 = vpack.c.b16 %v1609, %v1608
  %v1619 = vpack.c.b16 %v1611, %v1610
  %1628 = vmatprep.subr.bf16.mxu0 0
  %1629 = vmatpush1.bf16.msra.mxu0 %v1612
  %1630 = vmatprep.subr.bf16.mxu0 0
  %1631 = vmatpush1.bf16.msra.mxu0 %v1613
  %1632 = vmatprep.subr.bf16.mxu0 0
  %1633 = vmatpush1.bf16.msra.mxu0 %v1614
  %1634 = vmatprep.subr.bf16.mxu0 0
  %1635 = vmatpush1.bf16.msra.mxu0 %v1615
  %1636 = vmatprep.subr.bf16.mxu0 0
  %1637 = vmatpush1.bf16.msra.mxu0 %v1616
  %1638 = vmatprep.subr.bf16.mxu0 0
  %1639 = vmatpush1.bf16.msra.mxu0 %v1617
  %1640 = vmatprep.subr.bf16.mxu0 0
  %1641 = vmatpush1.bf16.msra.mxu0 %v1618
  %1642 = vmatprep.subr.bf16.mxu0 0
  %1643 = vmatpush1.bf16.msra.mxu0 %v1619
  %1644 = vmatprep.subr.bf16.mxu0 0
  %1645 = vmatpush1.bf16.msra.mxu0 0
  %1646 = vmatprep.subr.bf16.mxu0 0
  %1647 = vmatpush1.bf16.msra.mxu0 0
  %1648 = vmatprep.subr.bf16.mxu0 0
  %1649 = vmatpush1.bf16.msra.mxu0 0
  %1650 = vmatprep.subr.bf16.mxu0 0
  %1651 = vmatpush1.bf16.msra.mxu0 0
  %1652 = vmatprep.subr.bf16.mxu0 0
  %1653 = vmatpush1.bf16.msra.mxu0 0
  %1654 = vmatprep.subr.bf16.mxu0 0
  %1655 = vmatpush1.bf16.msra.mxu0 0
  %1656 = vmatprep.subr.bf16.mxu0 0
  %1657 = vmatpush1.bf16.msra.mxu0 0
  %1658 = vmatprep.subr.bf16.mxu0 0
  %1659 = vmatpush1.bf16.msra.mxu0 0
  %1660 = vmatprep.mubr.bf16.mxu0 0
  %1661 = vmatmul.mubr.bf16.gmra.mrb[0].mxu0 %v1556
  %v1662 = vpop.f32.mrb[0].mxu0
  %v1663 = vadd.f32 %v1578, %v1662
  %v1664 = vpop.f32.mrb[0].mxu0
  %v1665 = vpop.f32.mrb[0].mxu0
  %v1666 = vpop.f32.mrb[0].mxu0
  %1667 = vdwg.mxu0
  %1668 = vst [vmem:[%s7] sm:$0xff] %v1663
  // Predicated region
  $region30: #{simple_convnet_forward.5} parent=0 // pred_check
    _
  $region31: #{simple_convnet_forward.5} parent=0 // pred_check_branch
    %1670 = sbr.rel (0) target = $region33
  $region32: #{simple_convnet_forward.5} parent=0 // pred_region
    _
  $region33: #{simple_convnet_forward.5} parent=0 // pred_fallthru
    _
  // Predicated region
  $region34: #{simple_convnet_forward.5} parent=0 // pred_check
    _
  $region35: #{simple_convnet_forward.5} parent=0 // pred_check_branch
    %1672 = sbr.rel (0) target = $region37
  $region36: #{simple_convnet_forward.5} parent=0 // pred_region
    _
  $region37: #{simple_convnet_forward.5} parent=0 // pred_fallthru
    _

// kernel: simple_convnet_forward.4
$region0: #{simple_convnet_forward.4}
  #allocation0 [shape = 'u32[]', space=smem, size = 0x4, offset = 0x4, fixed_abs, tag = 'smem constant byte address 0x4 - core index']
  #allocation1 [shape = 'u32[144,128]{1,0:T(1,128)}', space=vmem, size = 0x12000, scoped, tag = 'internal scratch']
  %s0 = inlined_call_operand.vmem [shape: f32[2,8,2304], index: 0, kind: input, shape index: {}]
  %s1 = inlined_call_operand.vmem [shape: bf16[16,208], index: 1, kind: input, shape index: {}]
  %s2 = inlined_call_operand.vmem [shape: f32[16,1], index: 2, kind: input, shape index: {}]
  %s3 = inlined_call_operand.vmem [shape: bf16[1664,128], index: 3, kind: input, shape index: {}]
  %s4 = inlined_call_operand.vmem [shape: bf16[2,16,128], index: 4, kind: output, shape index: {}]
  %s5 = sld [smem:[#allocation0]]
  $region49: #{simple_convnet_forward.4} parent=0
    _
  %s7 = ssub.s32 1, %s5
  %s8 = scalar_select 0, %s7, %s5
  loop: start=0, step=1, limit=4
  $region2: #{simple_convnet_forward.4} parent=0 // loop_pre_header
    _
  $region3: #{simple_convnet_forward.4} parent=0 // loop_header
    %s10 = sphi 0, %s14
    %p11 = scmp.ge.s32.totalorder %s10, 4
    %s20 = sphi 0, %s22
    %s23 = sphi 0, %s20
    %s24 = sphi 0, %s23
    %s40 = sphi 0, %s24
    %s44 = sphi 0, %s44
    %s46 = sphi 0, %s44
    %s47 = sphi 0, %s46
    %s61 = sphi 0, %s47
    %s65 = sphi 0, %s65
    %s67 = sphi 0, %s65
    %s68 = sphi 0, %s67
    %s82 = sphi 0, %s68
    %s86 = sphi 0, %s86
    %s88 = sphi 0, %s86
    %s89 = sphi 0, %s88
    %s103 = sphi 0, %s89
    %s109 = sphi 0, %s111
    %s112 = sphi 0, %s109
    %s113 = sphi 0, %s112
    %s129 = sphi 0, %s113
  $region4: #{simple_convnet_forward.4} parent=0 // loop_header_branch
    %13 = sbr.rel (%p11) target = $region8
  $region5: #{simple_convnet_forward.4} parent=0 // loop_body
    %s15 = ssub.s32 %s10, 1
    %s16 = ssub.s32 %s10, 2
    %s17 = sadd.s32 %s10, 1
    %s18 = ssub.s32 %s10, %s17
    %p19 = scmp.eq.s32.totalorder %s18, 0
    %s21 = sadd.s32 %s20, 1
    %s22 = scalar_select %p19, %s20, %s21
    %p25 = pneg %p19
    %p26 = scmp.eq.s32.totalorder %s10, 1
    %p27 = por %p25, %p26
    %p28 = scmp.ne.s32.totalorder %s20, %s23
    %p29 = scmp.eq.s32.totalorder %s10, 0
    %p30 = por %p28, %p29
    %p31 = scmp.ne.s32.totalorder %s20, %s23
    %p32 = scmp.eq.s32.totalorder %s15, 1
    %p33 = por %p31, %p32
    %p34 = scmp.ne.s32.totalorder %s23, %s24
    %p35 = scmp.eq.s32.totalorder %s15, 0
    %p36 = por %p34, %p35
    %p37 = scmp.ne.s32.totalorder %s23, %s24
    %p38 = scmp.eq.s32.totalorder %s16, 1
    %p39 = por %p37, %p38
    %p41 = scmp.ne.s32.totalorder %s24, %s40
    %p42 = scmp.eq.s32.totalorder %s16, 0
    %p43 = por %p41, %p42
    %s45 = sadd.s32 %s44, 1
    %p48 = scmp.eq.s32.totalorder %s10, 1
    %p49 = scmp.ne.s32.totalorder %s44, %s46
    %p50 = scmp.eq.s32.totalorder %s10, 0
    %p51 = por %p49, %p50
    %p52 = scmp.ne.s32.totalorder %s44, %s46
    %p53 = scmp.eq.s32.totalorder %s15, 1
    %p54 = por %p52, %p53
    %p55 = scmp.ne.s32.totalorder %s46, %s47
    %p56 = scmp.eq.s32.totalorder %s15, 0
    %p57 = por %p55, %p56
    %p58 = scmp.ne.s32.totalorder %s46, %s47
    %p59 = scmp.eq.s32.totalorder %s16, 1
    %p60 = por %p58, %p59
    %p62 = scmp.ne.s32.totalorder %s47, %s61
    %p63 = scmp.eq.s32.totalorder %s16, 0
    %p64 = por %p62, %p63
    %s66 = sadd.s32 %s65, 1
    %p69 = scmp.eq.s32.totalorder %s10, 1
    %p70 = scmp.ne.s32.totalorder %s65, %s67
    %p71 = scmp.eq.s32.totalorder %s10, 0
    %p72 = por %p70, %p71
    %p73 = scmp.ne.s32.totalorder %s65, %s67
    %p74 = scmp.eq.s32.totalorder %s15, 1
    %p75 = por %p73, %p74
    %p76 = scmp.ne.s32.totalorder %s67, %s68
    %p77 = scmp.eq.s32.totalorder %s15, 0
    %p78 = por %p76, %p77
    %p79 = scmp.ne.s32.totalorder %s67, %s68
    %p80 = scmp.eq.s32.totalorder %s16, 1
    %p81 = por %p79, %p80
    %p83 = scmp.ne.s32.totalorder %s68, %s82
    %p84 = scmp.eq.s32.totalorder %s16, 0
    %p85 = por %p83, %p84
    %s87 = sadd.s32 %s86, 1
    %p90 = scmp.eq.s32.totalorder %s10, 1
    %p91 = scmp.ne.s32.totalorder %s86, %s88
    %p92 = scmp.eq.s32.totalorder %s10, 0
    %p93 = por %p91, %p92
    %p94 = scmp.ne.s32.totalorder %s86, %s88
    %p95 = scmp.eq.s32.totalorder %s15, 1
    %p96 = por %p94, %p95
    %p97 = scmp.ne.s32.totalorder %s88, %s89
    %p98 = scmp.eq.s32.totalorder %s15, 0
    %p99 = por %p97, %p98
    %p100 = scmp.ne.s32.totalorder %s88, %s89
    %p101 = scmp.eq.s32.totalorder %s16, 1
    %p102 = por %p100, %p101
    %p104 = scmp.ne.s32.totalorder %s89, %s103
    %p105 = scmp.eq.s32.totalorder %s16, 0
    %p106 = por %p104, %p105
    %s107 = ssub.s32 %s10, %s17
    %p108 = scmp.eq.s32.totalorder %s107, 0
    %s110 = sadd.s32 %s109, 1
    %s111 = scalar_select %p108, %s109, %s110
    %p114 = pneg %p108
    %p115 = scmp.eq.s32.totalorder %s10, 1
    %p116 = por %p114, %p115
    %p117 = scmp.ne.s32.totalorder %s109, %s112
    %p118 = scmp.eq.s32.totalorder %s10, 0
    %p119 = por %p117, %p118
    %p120 = scmp.ne.s32.totalorder %s109, %s112
    %p121 = scmp.eq.s32.totalorder %s15, 1
    %p122 = por %p120, %p121
    %p123 = scmp.ne.s32.totalorder %s112, %s113
    %p124 = scmp.eq.s32.totalorder %s15, 0
    %p125 = por %p123, %p124
    %p126 = scmp.ne.s32.totalorder %s112, %s113
    %p127 = scmp.eq.s32.totalorder %s16, 1
    %p128 = por %p126, %p127
    %p130 = scmp.ne.s32.totalorder %s113, %s129
    %p131 = scmp.eq.s32.totalorder %s16, 0
    %p132 = por %p130, %p131
    %p133 = scmp.le.s32.totalorder 1, %s10
    %p134 = scmp.lt.s32.totalorder %s10, 3
    %p135 = pnand %p133, %p134
    %p136 = pneg %p135
    // Predicated region
    $region9: #{simple_convnet_forward.4} parent=5 // pred_check
      _
    $region10: #{simple_convnet_forward.4} parent=5 // pred_check_branch
      %138 = sbr.rel (%p135) target = $region12
    $region11: #{simple_convnet_forward.4} parent=5 // pred_region
      %s139 = ssub.s32 %s10, 1
      // Predicated region
      $region13: #{simple_convnet_forward.4} parent=11 // pred_check
        %p140 = pneg %p57
      $region14: #{simple_convnet_forward.4} parent=11 // pred_check_branch
        %142 = sbr.rel (%p140) target = $region16
      $region15: #{simple_convnet_forward.4} parent=11 // pred_region
        _
      $region16: #{simple_convnet_forward.4} parent=11 // pred_fallthru
        _
      // Predicated region
      $region17: #{simple_convnet_forward.4} parent=11 // pred_check
        %p143 = pneg %p78
      $region18: #{simple_convnet_forward.4} parent=11 // pred_check_branch
        %145 = sbr.rel (%p143) target = $region20
      $region19: #{simple_convnet_forward.4} parent=11 // pred_region
        _
      $region20: #{simple_convnet_forward.4} parent=11 // pred_fallthru
        _
      // Predicated region
      $region21: #{simple_convnet_forward.4} parent=11 // pred_check
        %p146 = pneg %p99
      $region22: #{simple_convnet_forward.4} parent=11 // pred_check_branch
        %148 = sbr.rel (%p146) target = $region24
      $region23: #{simple_convnet_forward.4} parent=11 // pred_region
        _
      $region24: #{simple_convnet_forward.4} parent=11 // pred_fallthru
        _
    $region12: #{simple_convnet_forward.4} parent=5 // pred_fallthru
      _
    %p149 = scmp.lt.s32.totalorder %s10, 2
    // Predicated region
    $region25: #{simple_convnet_forward.4} parent=5 // pred_check
      %p150 = pneg %p149
    $region26: #{simple_convnet_forward.4} parent=5 // pred_check_branch
      %152 = sbr.rel (%p150) target = $region28
    $region27: #{simple_convnet_forward.4} parent=5 // pred_region
      // Predicated region
      $region29: #{simple_convnet_forward.4} parent=27 // pred_check
        %p153 = pneg %p30
      $region30: #{simple_convnet_forward.4} parent=27 // pred_check_branch
        %155 = sbr.rel (%p153) target = $region32
      $region31: #{simple_convnet_forward.4} parent=27 // pred_region
        %p156 = scmp.lt.s32.totalorder %s10, 1
        %s157 = scalar_select %p156, %s10, 1
        %s158 = smul.addr %s157, 18
        %s159 = smul.addr %s158, 8
        %s160 = scalar_lea.vmem %s0, %s159
      $region32: #{simple_convnet_forward.4} parent=27 // pred_fallthru
        _
    $region28: #{simple_convnet_forward.4} parent=5 // pred_fallthru
      _
    %p161 = scmp.le.s32.totalorder 1, %s10
    %p162 = scmp.lt.s32.totalorder %s10, 3
    %p163 = pnand %p161, %p162
    %p164 = pneg %p163
    // Predicated region
    $region33: #{simple_convnet_forward.4} parent=5 // pred_check
      _
    $region34: #{simple_convnet_forward.4} parent=5 // pred_check_branch
      %166 = sbr.rel (%p163) target = $region36
    $region35: #{simple_convnet_forward.4} parent=5 // pred_region
      %s167 = ssub.s32 %s10, 1
      %p168 = scmp.lt.s32.totalorder %s15, 1
      %s169 = scalar_select %p168, %s15, 1
      %s170 = smul.addr %s169, 18
      %s171 = smul.addr %s170, 8
      %s172 = scalar_lea.vmem %s0, %s171
      %p173 = pneg %p36
      %p174 = pneg %p33
      %p175 = pneg %p57
      %p176 = pneg %p54
      %p177 = pneg %p78
      %p178 = pneg %p75
      %p179 = pneg %p99
      %p180 = pneg %p96
      %p181 = pneg %p125
      %p182 = pneg %p122
      %p183 = scmp.lt.s32.totalorder %s15, 1
      %s184 = scalar_select %p183, %s15, 1
      %s185 = smul.addr %s184, 2
      %s186 = smul.addr %s185, 4
      %s187 = scalar_lea.vmem %s4, %s186
      %p188 = scmp.lt.s32.totalorder %s15, 1
      %s189 = scalar_select %p188, %s15, 1
      %s190 = smul.addr %s189, 18
      %s191 = smul.addr %s190, 8
      %s192 = scalar_lea.vmem %s0, %s191
      %p193 = scmp.lt.s32.totalorder %s15, 1
      %s194 = scalar_select %p193, %s15, 1
      %s195 = smul.addr %s194, 2
      %s196 = smul.addr %s195, 4
      %s197 = scalar_lea.vmem %s4, %s196
      %v199 = vld [vmem:[%s192] sm:$0xff]
      %v200 = vld [vmem:[%s192 + $0x8] sm:$0xff]
      %v201 = vld [vmem:[%s192 + $0x10] sm:$0xff]
      %v202 = vld [vmem:[%s192 + $0x18] sm:$0xff]
      %v203 = vld [vmem:[%s192 + $0x20] sm:$0xff]
      %v204 = vld [vmem:[%s192 + $0x28] sm:$0xff]
      %v205 = vld [vmem:[%s192 + $0x30] sm:$0xff]
      %v206 = vld [vmem:[%s192 + $0x38] sm:$0xff]
      %v207 = vld [vmem:[%s192 + $0x40] sm:$0xff]
      %v208 = vld [vmem:[%s192 + $0x48] sm:$0xff]
      %v209 = vld [vmem:[%s192 + $0x50] sm:$0xff]
      %v210 = vld [vmem:[%s192 + $0x58] sm:$0xff]
      %v211 = vld [vmem:[%s192 + $0x60] sm:$0xff]
      %v212 = vld [vmem:[%s192 + $0x68] sm:$0xff]
      %v213 = vld [vmem:[%s192 + $0x70] sm:$0xff]
      %v214 = vld [vmem:[%s192 + $0x78] sm:$0xff]
      %v215 = vld [vmem:[%s192 + $0x80] sm:$0xff]
      %v216 = vld [vmem:[%s192 + $0x88] sm:$0xff]
      %234 = vrot.lane.b32.xlu0 %v199, 126
      %v235 = vpop.permute.xlu0 %234
      %236 = vrot.lane.b32.xlu0 %v200, 126
      %v237 = vpop.permute.xlu0 %236
      %238 = vrot.lane.b32.xlu0 %v201, 126
      %v239 = vpop.permute.xlu0 %238
      %240 = vrot.lane.b32.xlu0 %v202, 126
      %v241 = vpop.permute.xlu0 %240
      %242 = vrot.lane.b32.xlu0 %v203, 126
      %v243 = vpop.permute.xlu0 %242
      %244 = vrot.lane.b32.xlu0 %v204, 126
      %v245 = vpop.permute.xlu0 %244
      %246 = vrot.lane.b32.xlu0 %v205, 126
      %v247 = vpop.permute.xlu0 %246
      %248 = vrot.lane.b32.xlu0 %v206, 126
      %v249 = vpop.permute.xlu0 %248
      %250 = vrot.lane.b32.xlu0 %v207, 126
      %v251 = vpop.permute.xlu0 %250
      %252 = vrot.lane.b32.xlu0 %v208, 126
      %v253 = vpop.permute.xlu0 %252
      %254 = vrot.lane.b32.xlu0 %v209, 126
      %v255 = vpop.permute.xlu0 %254
      %256 = vrot.lane.b32.xlu0 %v210, 126
      %v257 = vpop.permute.xlu0 %256
      %258 = vrot.lane.b32.xlu0 %v211, 126
      %v259 = vpop.permute.xlu0 %258
      %260 = vrot.lane.b32.xlu0 %v212, 126
      %v261 = vpop.permute.xlu0 %260
      %262 = vrot.lane.b32.xlu0 %v213, 126
      %v263 = vpop.permute.xlu0 %262
      %264 = vrot.lane.b32.xlu0 %v214, 126
      %v265 = vpop.permute.xlu0 %264
      %266 = vrot.lane.b32.xlu0 %v215, 126
      %v267 = vpop.permute.xlu0 %266
      %vm268 = vcmask 1031168
      %v269 = vsel %vm268, %v235, %v237
      %v270 = vsel %vm268, %v237, %v239
      %v271 = vsel %vm268, %v239, %v241
      %v272 = vsel %vm268, %v241, %v243
      %v273 = vsel %vm268, %v243, %v245
      %v274 = vsel %vm268, %v245, %v247
      %v275 = vsel %vm268, %v247, %v249
      %v276 = vsel %vm268, %v249, %v251
      %v277 = vsel %vm268, %v251, %v253
      %v278 = vsel %vm268, %v253, %v255
      %v279 = vsel %vm268, %v255, %v257
      %v280 = vsel %vm268, %v257, %v259
      %v281 = vsel %vm268, %v259, %v261
      %v282 = vsel %vm268, %v261, %v263
      %v283 = vsel %vm268, %v263, %v265
      %v284 = vsel %vm268, %v265, %v267
      %301 = vrot.lane.b32.xlu0 %v199, 124
      %v302 = vpop.permute.xlu0 %301
      %303 = vrot.lane.b32.xlu0 %v200, 124
      %v304 = vpop.permute.xlu0 %303
      %305 = vrot.lane.b32.xlu0 %v201, 124
      %v306 = vpop.permute.xlu0 %305
      %307 = vrot.lane.b32.xlu0 %v202, 124
      %v308 = vpop.permute.xlu0 %307
      %309 = vrot.lane.b32.xlu0 %v203, 124
      %v310 = vpop.permute.xlu0 %309
      %311 = vrot.lane.b32.xlu0 %v204, 124
      %v312 = vpop.permute.xlu0 %311
      %313 = vrot.lane.b32.xlu0 %v205, 124
      %v314 = vpop.permute.xlu0 %313
      %315 = vrot.lane.b32.xlu0 %v206, 124
      %v316 = vpop.permute.xlu0 %315
      %317 = vrot.lane.b32.xlu0 %v207, 124
      %v318 = vpop.permute.xlu0 %317
      %319 = vrot.lane.b32.xlu0 %v208, 124
      %v320 = vpop.permute.xlu0 %319
      %321 = vrot.lane.b32.xlu0 %v209, 124
      %v322 = vpop.permute.xlu0 %321
      %323 = vrot.lane.b32.xlu0 %v210, 124
      %v324 = vpop.permute.xlu0 %323
      %325 = vrot.lane.b32.xlu0 %v211, 124
      %v326 = vpop.permute.xlu0 %325
      %327 = vrot.lane.b32.xlu0 %v212, 124
      %v328 = vpop.permute.xlu0 %327
      %329 = vrot.lane.b32.xlu0 %v213, 124
      %v330 = vpop.permute.xlu0 %329
      %331 = vrot.lane.b32.xlu0 %v214, 124
      %v332 = vpop.permute.xlu0 %331
      %333 = vrot.lane.b32.xlu0 %v215, 124
      %v334 = vpop.permute.xlu0 %333
      %vm335 = vcmask 1014784
      %v336 = vsel %vm335, %v302, %v304
      %v337 = vsel %vm335, %v304, %v306
      %v338 = vsel %vm335, %v306, %v308
      %v339 = vsel %vm335, %v308, %v310
      %v340 = vsel %vm335, %v310, %v312
      %v341 = vsel %vm335, %v312, %v314
      %v342 = vsel %vm335, %v314, %v316
      %v343 = vsel %vm335, %v316, %v318
      %v344 = vsel %vm335, %v318, %v320
      %v345 = vsel %vm335, %v320, %v322
      %v346 = vsel %vm335, %v322, %v324
      %v347 = vsel %vm335, %v324, %v326
      %v348 = vsel %vm335, %v326, %v328
      %v349 = vsel %vm335, %v328, %v330
      %v350 = vsel %vm335, %v330, %v332
      %v351 = vsel %vm335, %v332, %v334
      %368 = vrot.lane.b32.xlu0 %v199, 122
      %v369 = vpop.permute.xlu0 %368
      %370 = vrot.lane.b32.xlu0 %v200, 122
      %v371 = vpop.permute.xlu0 %370
      %372 = vrot.lane.b32.xlu0 %v201, 122
      %v373 = vpop.permute.xlu0 %372
      %374 = vrot.lane.b32.xlu0 %v202, 122
      %v375 = vpop.permute.xlu0 %374
      %376 = vrot.lane.b32.xlu0 %v203, 122
      %v377 = vpop.permute.xlu0 %376
      %378 = vrot.lane.b32.xlu0 %v204, 122
      %v379 = vpop.permute.xlu0 %378
      %380 = vrot.lane.b32.xlu0 %v205, 122
      %v381 = vpop.permute.xlu0 %380
      %382 = vrot.lane.b32.xlu0 %v206, 122
      %v383 = vpop.permute.xlu0 %382
      %384 = vrot.lane.b32.xlu0 %v207, 122
      %v385 = vpop.permute.xlu0 %384
      %386 = vrot.lane.b32.xlu0 %v208, 122
      %v387 = vpop.permute.xlu0 %386
      %388 = vrot.lane.b32.xlu0 %v209, 122
      %v389 = vpop.permute.xlu0 %388
      %390 = vrot.lane.b32.xlu0 %v210, 122
      %v391 = vpop.permute.xlu0 %390
      %392 = vrot.lane.b32.xlu0 %v211, 122
      %v393 = vpop.permute.xlu0 %392
      %394 = vrot.lane.b32.xlu0 %v212, 122
      %v395 = vpop.permute.xlu0 %394
      %396 = vrot.lane.b32.xlu0 %v213, 122
      %v397 = vpop.permute.xlu0 %396
      %398 = vrot.lane.b32.xlu0 %v214, 122
      %v399 = vpop.permute.xlu0 %398
      %400 = vrot.lane.b32.xlu0 %v215, 122
      %v401 = vpop.permute.xlu0 %400
      %vm402 = vcmask 998400
      %v403 = vsel %vm402, %v369, %v371
      %v404 = vsel %vm402, %v371, %v373
      %v405 = vsel %vm402, %v373, %v375
      %v406 = vsel %vm402, %v375, %v377
      %v407 = vsel %vm402, %v377, %v379
      %v408 = vsel %vm402, %v379, %v381
      %v409 = vsel %vm402, %v381, %v383
      %v410 = vsel %vm402, %v383, %v385
      %v411 = vsel %vm402, %v385, %v387
      %v412 = vsel %vm402, %v387, %v389
      %v413 = vsel %vm402, %v389, %v391
      %v414 = vsel %vm402, %v391, %v393
      %v415 = vsel %vm402, %v393, %v395
      %v416 = vsel %vm402, %v395, %v397
      %v417 = vsel %vm402, %v397, %v399
      %v418 = vsel %vm402, %v399, %v401
      %435 = vrot.lane.b32.xlu0 %v199, 120
      %v436 = vpop.permute.xlu0 %435
      %437 = vrot.lane.b32.xlu0 %v200, 120
      %v438 = vpop.permute.xlu0 %437
      %439 = vrot.lane.b32.xlu0 %v201, 120
      %v440 = vpop.permute.xlu0 %439
      %441 = vrot.lane.b32.xlu0 %v202, 120
      %v442 = vpop.permute.xlu0 %441
      %443 = vrot.lane.b32.xlu0 %v203, 120
      %v444 = vpop.permute.xlu0 %443
      %445 = vrot.lane.b32.xlu0 %v204, 120
      %v446 = vpop.permute.xlu0 %445
      %447 = vrot.lane.b32.xlu0 %v205, 120
      %v448 = vpop.permute.xlu0 %447
      %449 = vrot.lane.b32.xlu0 %v206, 120
      %v450 = vpop.permute.xlu0 %449
      %451 = vrot.lane.b32.xlu0 %v207, 120
      %v452 = vpop.permute.xlu0 %451
      %453 = vrot.lane.b32.xlu0 %v208, 120
      %v454 = vpop.permute.xlu0 %453
      %455 = vrot.lane.b32.xlu0 %v209, 120
      %v456 = vpop.permute.xlu0 %455
      %457 = vrot.lane.b32.xlu0 %v210, 120
      %v458 = vpop.permute.xlu0 %457
      %459 = vrot.lane.b32.xlu0 %v211, 120
      %v460 = vpop.permute.xlu0 %459
      %461 = vrot.lane.b32.xlu0 %v212, 120
      %v462 = vpop.permute.xlu0 %461
      %463 = vrot.lane.b32.xlu0 %v213, 120
      %v464 = vpop.permute.xlu0 %463
      %465 = vrot.lane.b32.xlu0 %v214, 120
      %v466 = vpop.permute.xlu0 %465
      %467 = vrot.lane.b32.xlu0 %v215, 120
      %v468 = vpop.permute.xlu0 %467
      %vm469 = vcmask 982016
      %v470 = vsel %vm469, %v436, %v438
      %v471 = vsel %vm469, %v438, %v440
      %v472 = vsel %vm469, %v440, %v442
      %v473 = vsel %vm469, %v442, %v444
      %v474 = vsel %vm469, %v444, %v446
      %v475 = vsel %vm469, %v446, %v448
      %v476 = vsel %vm469, %v448, %v450
      %v477 = vsel %vm469, %v450, %v452
      %v478 = vsel %vm469, %v452, %v454
      %v479 = vsel %vm469, %v454, %v456
      %v480 = vsel %vm469, %v456, %v458
      %v481 = vsel %vm469, %v458, %v460
      %v482 = vsel %vm469, %v460, %v462
      %v483 = vsel %vm469, %v462, %v464
      %v484 = vsel %vm469, %v464, %v466
      %v485 = vsel %vm469, %v466, %v468
      %502 = vrot.lane.b32.xlu0 %v199, 32
      %v503 = vpop.permute.xlu0 %502
      %504 = vrot.lane.b32.xlu0 %v200, 32
      %v505 = vpop.permute.xlu0 %504
      %506 = vrot.lane.b32.xlu0 %v201, 32
      %v507 = vpop.permute.xlu0 %506
      %508 = vrot.lane.b32.xlu0 %v202, 32
      %v509 = vpop.permute.xlu0 %508
      %510 = vrot.lane.b32.xlu0 %v203, 32
      %v511 = vpop.permute.xlu0 %510
      %512 = vrot.lane.b32.xlu0 %v204, 32
      %v513 = vpop.permute.xlu0 %512
      %514 = vrot.lane.b32.xlu0 %v205, 32
      %v515 = vpop.permute.xlu0 %514
      %516 = vrot.lane.b32.xlu0 %v206, 32
      %v517 = vpop.permute.xlu0 %516
      %518 = vrot.lane.b32.xlu0 %v207, 32
      %v519 = vpop.permute.xlu0 %518
      %520 = vrot.lane.b32.xlu0 %v208, 32
      %v521 = vpop.permute.xlu0 %520
      %522 = vrot.lane.b32.xlu0 %v209, 32
      %v523 = vpop.permute.xlu0 %522
      %524 = vrot.lane.b32.xlu0 %v210, 32
      %v525 = vpop.permute.xlu0 %524
      %526 = vrot.lane.b32.xlu0 %v211, 32
      %v527 = vpop.permute.xlu0 %526
      %528 = vrot.lane.b32.xlu0 %v212, 32
      %v529 = vpop.permute.xlu0 %528
      %530 = vrot.lane.b32.xlu0 %v213, 32
      %v531 = vpop.permute.xlu0 %530
      %532 = vrot.lane.b32.xlu0 %v214, 32
      %v533 = vpop.permute.xlu0 %532
      %534 = vrot.lane.b32.xlu0 %v215, 32
      %v535 = vpop.permute.xlu0 %534
      %vm536 = vcmask 261120
      %v537 = vsel %vm536, %v503, %v505
      %v538 = vsel %vm536, %v505, %v507
      %v539 = vsel %vm536, %v507, %v509
      %v540 = vsel %vm536, %v509, %v511
      %v541 = vsel %vm536, %v511, %v513
      %v542 = vsel %vm536, %v513, %v515
      %v543 = vsel %vm536, %v515, %v517
      %v544 = vsel %vm536, %v517, %v519
      %v545 = vsel %vm536, %v519, %v521
      %v546 = vsel %vm536, %v521, %v523
      %v547 = vsel %vm536, %v523, %v525
      %v548 = vsel %vm536, %v525, %v527
      %v549 = vsel %vm536, %v527, %v529
      %v550 = vsel %vm536, %v529, %v531
      %v551 = vsel %vm536, %v531, %v533
      %v552 = vsel %vm536, %v533, %v535
      %569 = vrot.lane.b32.xlu0 %v199, 30
      %v570 = vpop.permute.xlu0 %569
      %571 = vrot.lane.b32.xlu0 %v200, 30
      %v572 = vpop.permute.xlu0 %571
      %573 = vrot.lane.b32.xlu0 %v201, 30
      %v574 = vpop.permute.xlu0 %573
      %575 = vrot.lane.b32.xlu0 %v202, 30
      %v576 = vpop.permute.xlu0 %575
      %577 = vrot.lane.b32.xlu0 %v203, 30
      %v578 = vpop.permute.xlu0 %577
      %579 = vrot.lane.b32.xlu0 %v204, 30
      %v580 = vpop.permute.xlu0 %579
      %581 = vrot.lane.b32.xlu0 %v205, 30
      %v582 = vpop.permute.xlu0 %581
      %583 = vrot.lane.b32.xlu0 %v206, 30
      %v584 = vpop.permute.xlu0 %583
      %585 = vrot.lane.b32.xlu0 %v207, 30
      %v586 = vpop.permute.xlu0 %585
      %587 = vrot.lane.b32.xlu0 %v208, 30
      %v588 = vpop.permute.xlu0 %587
      %589 = vrot.lane.b32.xlu0 %v209, 30
      %v590 = vpop.permute.xlu0 %589
      %591 = vrot.lane.b32.xlu0 %v210, 30
      %v592 = vpop.permute.xlu0 %591
      %593 = vrot.lane.b32.xlu0 %v211, 30
      %v594 = vpop.permute.xlu0 %593
      %595 = vrot.lane.b32.xlu0 %v212, 30
      %v596 = vpop.permute.xlu0 %595
      %597 = vrot.lane.b32.xlu0 %v213, 30
      %v598 = vpop.permute.xlu0 %597
      %599 = vrot.lane.b32.xlu0 %v214, 30
      %v600 = vpop.permute.xlu0 %599
      %601 = vrot.lane.b32.xlu0 %v215, 30
      %v602 = vpop.permute.xlu0 %601
      %vm603 = vcmask 244736
      %v604 = vsel %vm603, %v570, %v572
      %v605 = vsel %vm603, %v572, %v574
      %v606 = vsel %vm603, %v574, %v576
      %v607 = vsel %vm603, %v576, %v578
      %v608 = vsel %vm603, %v578, %v580
      %v609 = vsel %vm603, %v580, %v582
      %v610 = vsel %vm603, %v582, %v584
      %v611 = vsel %vm603, %v584, %v586
      %v612 = vsel %vm603, %v586, %v588
      %v613 = vsel %vm603, %v588, %v590
      %v614 = vsel %vm603, %v590, %v592
      %v615 = vsel %vm603, %v592, %v594
      %v616 = vsel %vm603, %v594, %v596
      %v617 = vsel %vm603, %v596, %v598
      %v618 = vsel %vm603, %v598, %v600
      %v619 = vsel %vm603, %v600, %v602
      %636 = vrot.lane.b32.xlu0 %v199, 28
      %v637 = vpop.permute.xlu0 %636
      %638 = vrot.lane.b32.xlu0 %v200, 28
      %v639 = vpop.permute.xlu0 %638
      %640 = vrot.lane.b32.xlu0 %v201, 28
      %v641 = vpop.permute.xlu0 %640
      %642 = vrot.lane.b32.xlu0 %v202, 28
      %v643 = vpop.permute.xlu0 %642
      %644 = vrot.lane.b32.xlu0 %v203, 28
      %v645 = vpop.permute.xlu0 %644
      %646 = vrot.lane.b32.xlu0 %v204, 28
      %v647 = vpop.permute.xlu0 %646
      %648 = vrot.lane.b32.xlu0 %v205, 28
      %v649 = vpop.permute.xlu0 %648
      %650 = vrot.lane.b32.xlu0 %v206, 28
      %v651 = vpop.permute.xlu0 %650
      %652 = vrot.lane.b32.xlu0 %v207, 28
      %v653 = vpop.permute.xlu0 %652
      %654 = vrot.lane.b32.xlu0 %v208, 28
      %v655 = vpop.permute.xlu0 %654
      %656 = vrot.lane.b32.xlu0 %v209, 28
      %v657 = vpop.permute.xlu0 %656
      %658 = vrot.lane.b32.xlu0 %v210, 28
      %v659 = vpop.permute.xlu0 %658
      %660 = vrot.lane.b32.xlu0 %v211, 28
      %v661 = vpop.permute.xlu0 %660
      %662 = vrot.lane.b32.xlu0 %v212, 28
      %v663 = vpop.permute.xlu0 %662
      %664 = vrot.lane.b32.xlu0 %v213, 28
      %v665 = vpop.permute.xlu0 %664
      %666 = vrot.lane.b32.xlu0 %v214, 28
      %v667 = vpop.permute.xlu0 %666
      %668 = vrot.lane.b32.xlu0 %v215, 28
      %v669 = vpop.permute.xlu0 %668
      %vm670 = vcmask 228352
      %v671 = vsel %vm670, %v637, %v639
      %v672 = vsel %vm670, %v639, %v641
      %v673 = vsel %vm670, %v641, %v643
      %v674 = vsel %vm670, %v643, %v645
      %v675 = vsel %vm670, %v645, %v647
      %v676 = vsel %vm670, %v647, %v649
      %v677 = vsel %vm670, %v649, %v651
      %v678 = vsel %vm670, %v651, %v653
      %v679 = vsel %vm670, %v653, %v655
      %v680 = vsel %vm670, %v655, %v657
      %v681 = vsel %vm670, %v657, %v659
      %v682 = vsel %vm670, %v659, %v661
      %v683 = vsel %vm670, %v661, %v663
      %v684 = vsel %vm670, %v663, %v665
      %v685 = vsel %vm670, %v665, %v667
      %v686 = vsel %vm670, %v667, %v669
      %703 = vrot.lane.b32.xlu0 %v199, 26
      %v704 = vpop.permute.xlu0 %703
      %705 = vrot.lane.b32.xlu0 %v200, 26
      %v706 = vpop.permute.xlu0 %705
      %707 = vrot.lane.b32.xlu0 %v201, 26
      %v708 = vpop.permute.xlu0 %707
      %709 = vrot.lane.b32.xlu0 %v202, 26
      %v710 = vpop.permute.xlu0 %709
      %711 = vrot.lane.b32.xlu0 %v203, 26
      %v712 = vpop.permute.xlu0 %711
      %713 = vrot.lane.b32.xlu0 %v204, 26
      %v714 = vpop.permute.xlu0 %713
      %715 = vrot.lane.b32.xlu0 %v205, 26
      %v716 = vpop.permute.xlu0 %715
      %717 = vrot.lane.b32.xlu0 %v206, 26
      %v718 = vpop.permute.xlu0 %717
      %719 = vrot.lane.b32.xlu0 %v207, 26
      %v720 = vpop.permute.xlu0 %719
      %721 = vrot.lane.b32.xlu0 %v208, 26
      %v722 = vpop.permute.xlu0 %721
      %723 = vrot.lane.b32.xlu0 %v209, 26
      %v724 = vpop.permute.xlu0 %723
      %725 = vrot.lane.b32.xlu0 %v210, 26
      %v726 = vpop.permute.xlu0 %725
      %727 = vrot.lane.b32.xlu0 %v211, 26
      %v728 = vpop.permute.xlu0 %727
      %729 = vrot.lane.b32.xlu0 %v212, 26
      %v730 = vpop.permute.xlu0 %729
      %731 = vrot.lane.b32.xlu0 %v213, 26
      %v732 = vpop.permute.xlu0 %731
      %733 = vrot.lane.b32.xlu0 %v214, 26
      %v734 = vpop.permute.xlu0 %733
      %735 = vrot.lane.b32.xlu0 %v215, 26
      %v736 = vpop.permute.xlu0 %735
      %vm737 = vcmask 211968
      %v738 = vsel %vm737, %v704, %v706
      %v739 = vsel %vm737, %v706, %v708
      %v740 = vsel %vm737, %v708, %v710
      %v741 = vsel %vm737, %v710, %v712
      %v742 = vsel %vm737, %v712, %v714
      %v743 = vsel %vm737, %v714, %v716
      %v744 = vsel %vm737, %v716, %v718
      %v745 = vsel %vm737, %v718, %v720
      %v746 = vsel %vm737, %v720, %v722
      %v747 = vsel %vm737, %v722, %v724
      %v748 = vsel %vm737, %v724, %v726
      %v749 = vsel %vm737, %v726, %v728
      %v750 = vsel %vm737, %v728, %v730
      %v751 = vsel %vm737, %v730, %v732
      %v752 = vsel %vm737, %v732, %v734
      %v753 = vsel %vm737, %v734, %v736
      %770 = vrot.lane.b32.xlu0 %v199, 24
      %v771 = vpop.permute.xlu0 %770
      %772 = vrot.lane.b32.xlu0 %v200, 24
      %v773 = vpop.permute.xlu0 %772
      %774 = vrot.lane.b32.xlu0 %v201, 24
      %v775 = vpop.permute.xlu0 %774
      %776 = vrot.lane.b32.xlu0 %v202, 24
      %v777 = vpop.permute.xlu0 %776
      %778 = vrot.lane.b32.xlu0 %v203, 24
      %v779 = vpop.permute.xlu0 %778
      %780 = vrot.lane.b32.xlu0 %v204, 24
      %v781 = vpop.permute.xlu0 %780
      %782 = vrot.lane.b32.xlu0 %v205, 24
      %v783 = vpop.permute.xlu0 %782
      %784 = vrot.lane.b32.xlu0 %v206, 24
      %v785 = vpop.permute.xlu0 %784
      %786 = vrot.lane.b32.xlu0 %v207, 24
      %v787 = vpop.permute.xlu0 %786
      %788 = vrot.lane.b32.xlu0 %v208, 24
      %v789 = vpop.permute.xlu0 %788
      %790 = vrot.lane.b32.xlu0 %v209, 24
      %v791 = vpop.permute.xlu0 %790
      %792 = vrot.lane.b32.xlu0 %v210, 24
      %v793 = vpop.permute.xlu0 %792
      %794 = vrot.lane.b32.xlu0 %v211, 24
      %v795 = vpop.permute.xlu0 %794
      %796 = vrot.lane.b32.xlu0 %v212, 24
      %v797 = vpop.permute.xlu0 %796
      %798 = vrot.lane.b32.xlu0 %v213, 24
      %v799 = vpop.permute.xlu0 %798
      %800 = vrot.lane.b32.xlu0 %v214, 24
      %v801 = vpop.permute.xlu0 %800
      %802 = vrot.lane.b32.xlu0 %v215, 24
      %v803 = vpop.permute.xlu0 %802
      %vm804 = vcmask 195584
      %v805 = vsel %vm804, %v771, %v773
      %v806 = vsel %vm804, %v773, %v775
      %v807 = vsel %vm804, %v775, %v777
      %v808 = vsel %vm804, %v777, %v779
      %v809 = vsel %vm804, %v779, %v781
      %v810 = vsel %vm804, %v781, %v783
      %v811 = vsel %vm804, %v783, %v785
      %v812 = vsel %vm804, %v785, %v787
      %v813 = vsel %vm804, %v787, %v789
      %v814 = vsel %vm804, %v789, %v791
      %v815 = vsel %vm804, %v791, %v793
      %v816 = vsel %vm804, %v793, %v795
      %v817 = vsel %vm804, %v795, %v797
      %v818 = vsel %vm804, %v797, %v799
      %v819 = vsel %vm804, %v799, %v801
      %v820 = vsel %vm804, %v801, %v803
      %838 = vrot.lane.b32.xlu0 %v200, 64
      %v839 = vpop.permute.xlu0 %838
      %840 = vrot.lane.b32.xlu0 %v201, 64
      %v841 = vpop.permute.xlu0 %840
      %842 = vrot.lane.b32.xlu0 %v202, 64
      %v843 = vpop.permute.xlu0 %842
      %844 = vrot.lane.b32.xlu0 %v203, 64
      %v845 = vpop.permute.xlu0 %844
      %846 = vrot.lane.b32.xlu0 %v204, 64
      %v847 = vpop.permute.xlu0 %846
      %848 = vrot.lane.b32.xlu0 %v205, 64
      %v849 = vpop.permute.xlu0 %848
      %850 = vrot.lane.b32.xlu0 %v206, 64
      %v851 = vpop.permute.xlu0 %850
      %852 = vrot.lane.b32.xlu0 %v207, 64
      %v853 = vpop.permute.xlu0 %852
      %854 = vrot.lane.b32.xlu0 %v208, 64
      %v855 = vpop.permute.xlu0 %854
      %856 = vrot.lane.b32.xlu0 %v209, 64
      %v857 = vpop.permute.xlu0 %856
      %858 = vrot.lane.b32.xlu0 %v210, 64
      %v859 = vpop.permute.xlu0 %858
      %860 = vrot.lane.b32.xlu0 %v211, 64
      %v861 = vpop.permute.xlu0 %860
      %862 = vrot.lane.b32.xlu0 %v212, 64
      %v863 = vpop.permute.xlu0 %862
      %864 = vrot.lane.b32.xlu0 %v213, 64
      %v865 = vpop.permute.xlu0 %864
      %866 = vrot.lane.b32.xlu0 %v214, 64
      %v867 = vpop.permute.xlu0 %866
      %868 = vrot.lane.b32.xlu0 %v215, 64
      %v869 = vpop.permute.xlu0 %868
      %870 = vrot.lane.b32.xlu0 %v216, 64
      %v871 = vpop.permute.xlu0 %870
      %vm872 = vcmask 523264
      %v873 = vsel %vm872, %v839, %v841
      %v874 = vsel %vm872, %v841, %v843
      %v875 = vsel %vm872, %v843, %v845
      %v876 = vsel %vm872, %v845, %v847
      %v877 = vsel %vm872, %v847, %v849
      %v878 = vsel %vm872, %v849, %v851
      %v879 = vsel %vm872, %v851, %v853
      %v880 = vsel %vm872, %v853, %v855
      %v881 = vsel %vm872, %v855, %v857
      %v882 = vsel %vm872, %v857, %v859
      %v883 = vsel %vm872, %v859, %v861
      %v884 = vsel %vm872, %v861, %v863
      %v885 = vsel %vm872, %v863, %v865
      %v886 = vsel %vm872, %v865, %v867
      %v887 = vsel %vm872, %v867, %v869
      %v888 = vsel %vm872, %v869, %v871
      %905 = vrot.lane.b32.xlu0 %v200, 62
      %v906 = vpop.permute.xlu0 %905
      %907 = vrot.lane.b32.xlu0 %v201, 62
      %v908 = vpop.permute.xlu0 %907
      %909 = vrot.lane.b32.xlu0 %v202, 62
      %v910 = vpop.permute.xlu0 %909
      %911 = vrot.lane.b32.xlu0 %v203, 62
      %v912 = vpop.permute.xlu0 %911
      %913 = vrot.lane.b32.xlu0 %v204, 62
      %v914 = vpop.permute.xlu0 %913
      %915 = vrot.lane.b32.xlu0 %v205, 62
      %v916 = vpop.permute.xlu0 %915
      %917 = vrot.lane.b32.xlu0 %v206, 62
      %v918 = vpop.permute.xlu0 %917
      %919 = vrot.lane.b32.xlu0 %v207, 62
      %v920 = vpop.permute.xlu0 %919
      %921 = vrot.lane.b32.xlu0 %v208, 62
      %v922 = vpop.permute.xlu0 %921
      %923 = vrot.lane.b32.xlu0 %v209, 62
      %v924 = vpop.permute.xlu0 %923
      %925 = vrot.lane.b32.xlu0 %v210, 62
      %v926 = vpop.permute.xlu0 %925
      %927 = vrot.lane.b32.xlu0 %v211, 62
      %v928 = vpop.permute.xlu0 %927
      %929 = vrot.lane.b32.xlu0 %v212, 62
      %v930 = vpop.permute.xlu0 %929
      %931 = vrot.lane.b32.xlu0 %v213, 62
      %v932 = vpop.permute.xlu0 %931
      %933 = vrot.lane.b32.xlu0 %v214, 62
      %v934 = vpop.permute.xlu0 %933
      %935 = vrot.lane.b32.xlu0 %v215, 62
      %v936 = vpop.permute.xlu0 %935
      %937 = vrot.lane.b32.xlu0 %v216, 62
      %v938 = vpop.permute.xlu0 %937
      %vm939 = vcmask 506880
      %v940 = vsel %vm939, %v906, %v908
      %v941 = vsel %vm939, %v908, %v910
      %v942 = vsel %vm939, %v910, %v912
      %v943 = vsel %vm939, %v912, %v914
      %v944 = vsel %vm939, %v914, %v916
      %v945 = vsel %vm939, %v916, %v918
      %v946 = vsel %vm939, %v918, %v920
      %v947 = vsel %vm939, %v920, %v922
      %v948 = vsel %vm939, %v922, %v924
      %v949 = vsel %vm939, %v924, %v926
      %v950 = vsel %vm939, %v926, %v928
      %v951 = vsel %vm939, %v928, %v930
      %v952 = vsel %vm939, %v930, %v932
      %v953 = vsel %vm939, %v932, %v934
      %v954 = vsel %vm939, %v934, %v936
      %v955 = vsel %vm939, %v936, %v938
      %972 = vrot.lane.b32.xlu0 %v200, 60
      %v973 = vpop.permute.xlu0 %972
      %974 = vrot.lane.b32.xlu0 %v201, 60
      %v975 = vpop.permute.xlu0 %974
      %976 = vrot.lane.b32.xlu0 %v202, 60
      %v977 = vpop.permute.xlu0 %976
      %978 = vrot.lane.b32.xlu0 %v203, 60
      %v979 = vpop.permute.xlu0 %978
      %980 = vrot.lane.b32.xlu0 %v204, 60
      %v981 = vpop.permute.xlu0 %980
      %982 = vrot.lane.b32.xlu0 %v205, 60
      %v983 = vpop.permute.xlu0 %982
      %984 = vrot.lane.b32.xlu0 %v206, 60
      %v985 = vpop.permute.xlu0 %984
      %986 = vrot.lane.b32.xlu0 %v207, 60
      %v987 = vpop.permute.xlu0 %986
      %988 = vrot.lane.b32.xlu0 %v208, 60
      %v989 = vpop.permute.xlu0 %988
      %990 = vrot.lane.b32.xlu0 %v209, 60
      %v991 = vpop.permute.xlu0 %990
      %992 = vrot.lane.b32.xlu0 %v210, 60
      %v993 = vpop.permute.xlu0 %992
      %994 = vrot.lane.b32.xlu0 %v211, 60
      %v995 = vpop.permute.xlu0 %994
      %996 = vrot.lane.b32.xlu0 %v212, 60
      %v997 = vpop.permute.xlu0 %996
      %998 = vrot.lane.b32.xlu0 %v213, 60
      %v999 = vpop.permute.xlu0 %998
      %1000 = vrot.lane.b32.xlu0 %v214, 60
      %v1001 = vpop.permute.xlu0 %1000
      %1002 = vrot.lane.b32.xlu0 %v215, 60
      %v1003 = vpop.permute.xlu0 %1002
      %1004 = vrot.lane.b32.xlu0 %v216, 60
      %v1005 = vpop.permute.xlu0 %1004
      %vm1006 = vcmask 490496
      %v1007 = vsel %vm1006, %v973, %v975
      %v1008 = vsel %vm1006, %v975, %v977
      %v1009 = vsel %vm1006, %v977, %v979
      %v1010 = vsel %vm1006, %v979, %v981
      %v1011 = vsel %vm1006, %v981, %v983
      %v1012 = vsel %vm1006, %v983, %v985
      %v1013 = vsel %vm1006, %v985, %v987
      %v1014 = vsel %vm1006, %v987, %v989
      %v1015 = vsel %vm1006, %v989, %v991
      %v1016 = vsel %vm1006, %v991, %v993
      %v1017 = vsel %vm1006, %v993, %v995
      %v1018 = vsel %vm1006, %v995, %v997
      %v1019 = vsel %vm1006, %v997, %v999
      %v1020 = vsel %vm1006, %v999, %v1001
      %v1021 = vsel %vm1006, %v1001, %v1003
      %v1022 = vsel %vm1006, %v1003, %v1005
      %1039 = vrot.lane.b32.xlu0 %v200, 58
      %v1040 = vpop.permute.xlu0 %1039
      %1041 = vrot.lane.b32.xlu0 %v201, 58
      %v1042 = vpop.permute.xlu0 %1041
      %1043 = vrot.lane.b32.xlu0 %v202, 58
      %v1044 = vpop.permute.xlu0 %1043
      %1045 = vrot.lane.b32.xlu0 %v203, 58
      %v1046 = vpop.permute.xlu0 %1045
      %1047 = vrot.lane.b32.xlu0 %v204, 58
      %v1048 = vpop.permute.xlu0 %1047
      %1049 = vrot.lane.b32.xlu0 %v205, 58
      %v1050 = vpop.permute.xlu0 %1049
      %1051 = vrot.lane.b32.xlu0 %v206, 58
      %v1052 = vpop.permute.xlu0 %1051
      %1053 = vrot.lane.b32.xlu0 %v207, 58
      %v1054 = vpop.permute.xlu0 %1053
      %1055 = vrot.lane.b32.xlu0 %v208, 58
      %v1056 = vpop.permute.xlu0 %1055
      %1057 = vrot.lane.b32.xlu0 %v209, 58
      %v1058 = vpop.permute.xlu0 %1057
      %1059 = vrot.lane.b32.xlu0 %v210, 58
      %v1060 = vpop.permute.xlu0 %1059
      %1061 = vrot.lane.b32.xlu0 %v211, 58
      %v1062 = vpop.permute.xlu0 %1061
      %1063 = vrot.lane.b32.xlu0 %v212, 58
      %v1064 = vpop.permute.xlu0 %1063
      %1065 = vrot.lane.b32.xlu0 %v213, 58
      %v1066 = vpop.permute.xlu0 %1065
      %1067 = vrot.lane.b32.xlu0 %v214, 58
      %v1068 = vpop.permute.xlu0 %1067
      %1069 = vrot.lane.b32.xlu0 %v215, 58
      %v1070 = vpop.permute.xlu0 %1069
      %1071 = vrot.lane.b32.xlu0 %v216, 58
      %v1072 = vpop.permute.xlu0 %1071
      %vm1073 = vcmask 474112
      %v1074 = vsel %vm1073, %v1040, %v1042
      %v1075 = vsel %vm1073, %v1042, %v1044
      %v1076 = vsel %vm1073, %v1044, %v1046
      %v1077 = vsel %vm1073, %v1046, %v1048
      %v1078 = vsel %vm1073, %v1048, %v1050
      %v1079 = vsel %vm1073, %v1050, %v1052
      %v1080 = vsel %vm1073, %v1052, %v1054
      %v1081 = vsel %vm1073, %v1054, %v1056
      %v1082 = vsel %vm1073, %v1056, %v1058
      %v1083 = vsel %vm1073, %v1058, %v1060
      %v1084 = vsel %vm1073, %v1060, %v1062
      %v1085 = vsel %vm1073, %v1062, %v1064
      %v1086 = vsel %vm1073, %v1064, %v1066
      %v1087 = vsel %vm1073, %v1066, %v1068
      %v1088 = vsel %vm1073, %v1068, %v1070
      %v1089 = vsel %vm1073, %v1070, %v1072
      %1106 = vrot.lane.b32.xlu0 %v200, 56
      %v1107 = vpop.permute.xlu0 %1106
      %1108 = vrot.lane.b32.xlu0 %v201, 56
      %v1109 = vpop.permute.xlu0 %1108
      %1110 = vrot.lane.b32.xlu0 %v202, 56
      %v1111 = vpop.permute.xlu0 %1110
      %1112 = vrot.lane.b32.xlu0 %v203, 56
      %v1113 = vpop.permute.xlu0 %1112
      %1114 = vrot.lane.b32.xlu0 %v204, 56
      %v1115 = vpop.permute.xlu0 %1114
      %1116 = vrot.lane.b32.xlu0 %v205, 56
      %v1117 = vpop.permute.xlu0 %1116
      %1118 = vrot.lane.b32.xlu0 %v206, 56
      %v1119 = vpop.permute.xlu0 %1118
      %1120 = vrot.lane.b32.xlu0 %v207, 56
      %v1121 = vpop.permute.xlu0 %1120
      %1122 = vrot.lane.b32.xlu0 %v208, 56
      %v1123 = vpop.permute.xlu0 %1122
      %1124 = vrot.lane.b32.xlu0 %v209, 56
      %v1125 = vpop.permute.xlu0 %1124
      %1126 = vrot.lane.b32.xlu0 %v210, 56
      %v1127 = vpop.permute.xlu0 %1126
      %1128 = vrot.lane.b32.xlu0 %v211, 56
      %v1129 = vpop.permute.xlu0 %1128
      %1130 = vrot.lane.b32.xlu0 %v212, 56
      %v1131 = vpop.permute.xlu0 %1130
      %1132 = vrot.lane.b32.xlu0 %v213, 56
      %v1133 = vpop.permute.xlu0 %1132
      %1134 = vrot.lane.b32.xlu0 %v214, 56
      %v1135 = vpop.permute.xlu0 %1134
      %1136 = vrot.lane.b32.xlu0 %v215, 56
      %v1137 = vpop.permute.xlu0 %1136
      %1138 = vrot.lane.b32.xlu0 %v216, 56
      %v1139 = vpop.permute.xlu0 %1138
      %vm1140 = vcmask 457728
      %v1141 = vsel %vm1140, %v1107, %v1109
      %v1142 = vsel %vm1140, %v1109, %v1111
      %v1143 = vsel %vm1140, %v1111, %v1113
      %v1144 = vsel %vm1140, %v1113, %v1115
      %v1145 = vsel %vm1140, %v1115, %v1117
      %v1146 = vsel %vm1140, %v1117, %v1119
      %v1147 = vsel %vm1140, %v1119, %v1121
      %v1148 = vsel %vm1140, %v1121, %v1123
      %v1149 = vsel %vm1140, %v1123, %v1125
      %v1150 = vsel %vm1140, %v1125, %v1127
      %v1151 = vsel %vm1140, %v1127, %v1129
      %v1152 = vsel %vm1140, %v1129, %v1131
      %v1153 = vsel %vm1140, %v1131, %v1133
      %v1154 = vsel %vm1140, %v1133, %v1135
      %v1155 = vsel %vm1140, %v1135, %v1137
      %v1156 = vsel %vm1140, %v1137, %v1139
      %1174 = vrot.lane.b32.xlu0 %v201, 96
      %v1175 = vpop.permute.xlu0 %1174
      %1176 = vrot.lane.b32.xlu0 %v202, 96
      %v1177 = vpop.permute.xlu0 %1176
      %1178 = vrot.lane.b32.xlu0 %v203, 96
      %v1179 = vpop.permute.xlu0 %1178
      %1180 = vrot.lane.b32.xlu0 %v204, 96
      %v1181 = vpop.permute.xlu0 %1180
      %1182 = vrot.lane.b32.xlu0 %v205, 96
      %v1183 = vpop.permute.xlu0 %1182
      %1184 = vrot.lane.b32.xlu0 %v206, 96
      %v1185 = vpop.permute.xlu0 %1184
      %1186 = vrot.lane.b32.xlu0 %v207, 96
      %v1187 = vpop.permute.xlu0 %1186
      %1188 = vrot.lane.b32.xlu0 %v208, 96
      %v1189 = vpop.permute.xlu0 %1188
      %1190 = vrot.lane.b32.xlu0 %v209, 96
      %v1191 = vpop.permute.xlu0 %1190
      %1192 = vrot.lane.b32.xlu0 %v210, 96
      %v1193 = vpop.permute.xlu0 %1192
      %1194 = vrot.lane.b32.xlu0 %v211, 96
      %v1195 = vpop.permute.xlu0 %1194
      %1196 = vrot.lane.b32.xlu0 %v212, 96
      %v1197 = vpop.permute.xlu0 %1196
      %1198 = vrot.lane.b32.xlu0 %v213, 96
      %v1199 = vpop.permute.xlu0 %1198
      %1200 = vrot.lane.b32.xlu0 %v214, 96
      %v1201 = vpop.permute.xlu0 %1200
      %1202 = vrot.lane.b32.xlu0 %v215, 96
      %v1203 = vpop.permute.xlu0 %1202
      %1204 = vrot.lane.b32.xlu0 %v216, 96
      %v1205 = vpop.permute.xlu0 %1204
      %1206 = vrot.lane.b32.xlu0 0.0, 96
      %v1207 = vpop.permute.xlu0 %1206
      %vm1208 = vcmask 785408
      %v1209 = vsel %vm1208, %v1175, %v1177
      %v1210 = vsel %vm1208, %v1177, %v1179
      %v1211 = vsel %vm1208, %v1179, %v1181
      %v1212 = vsel %vm1208, %v1181, %v1183
      %v1213 = vsel %vm1208, %v1183, %v1185
      %v1214 = vsel %vm1208, %v1185, %v1187
      %v1215 = vsel %vm1208, %v1187, %v1189
      %v1216 = vsel %vm1208, %v1189, %v1191
      %v1217 = vsel %vm1208, %v1191, %v1193
      %v1218 = vsel %vm1208, %v1193, %v1195
      %v1219 = vsel %vm1208, %v1195, %v1197
      %v1220 = vsel %vm1208, %v1197, %v1199
      %v1221 = vsel %vm1208, %v1199, %v1201
      %v1222 = vsel %vm1208, %v1201, %v1203
      %v1223 = vsel %vm1208, %v1203, %v1205
      %v1224 = vsel %vm1208, %v1205, %v1207
      %1241 = vrot.lane.b32.xlu0 %v216, 126
      %v1242 = vpop.permute.xlu0 %1241
      %1243 = vrot.lane.b32.xlu0 0.0, 126
      %v1244 = vpop.permute.xlu0 %1243
      %v1245 = vsel %vm268, %v267, %v1242
      %v1246 = vsel %vm268, %v1242, %v1244
      %1247 = vrot.lane.b32.xlu0 %v216, 124
      %v1248 = vpop.permute.xlu0 %1247
      %1249 = vrot.lane.b32.xlu0 0.0, 124
      %v1250 = vpop.permute.xlu0 %1249
      %v1251 = vsel %vm335, %v334, %v1248
      %v1252 = vsel %vm335, %v1248, %v1250
      %1253 = vrot.lane.b32.xlu0 %v216, 122
      %v1254 = vpop.permute.xlu0 %1253
      %1255 = vrot.lane.b32.xlu0 0.0, 122
      %v1256 = vpop.permute.xlu0 %1255
      %v1257 = vsel %vm402, %v401, %v1254
      %v1258 = vsel %vm402, %v1254, %v1256
      %1259 = vrot.lane.b32.xlu0 %v202, 34
      %v1260 = vpop.permute.xlu0 %1259
      %1261 = vrot.lane.b32.xlu0 %v203, 34
      %v1262 = vpop.permute.xlu0 %1261
      %1263 = vrot.lane.b32.xlu0 %v204, 34
      %v1264 = vpop.permute.xlu0 %1263
      %1265 = vrot.lane.b32.xlu0 %v205, 34
      %v1266 = vpop.permute.xlu0 %1265
      %1267 = vrot.lane.b32.xlu0 %v206, 34
      %v1268 = vpop.permute.xlu0 %1267
      %1269 = vrot.lane.b32.xlu0 %v207, 34
      %v1270 = vpop.permute.xlu0 %1269
      %1271 = vrot.lane.b32.xlu0 %v208, 34
      %v1272 = vpop.permute.xlu0 %1271
      %1273 = vrot.lane.b32.xlu0 %v209, 34
      %v1274 = vpop.permute.xlu0 %1273
      %1275 = vrot.lane.b32.xlu0 %v210, 34
      %v1276 = vpop.permute.xlu0 %1275
      %1277 = vrot.lane.b32.xlu0 %v211, 34
      %v1278 = vpop.permute.xlu0 %1277
      %1279 = vrot.lane.b32.xlu0 %v212, 34
      %v1280 = vpop.permute.xlu0 %1279
      %1281 = vrot.lane.b32.xlu0 %v213, 34
      %v1282 = vpop.permute.xlu0 %1281
      %1283 = vrot.lane.b32.xlu0 %v214, 34
      %v1284 = vpop.permute.xlu0 %1283
      %1285 = vrot.lane.b32.xlu0 %v215, 34
      %v1286 = vpop.permute.xlu0 %1285
      %1287 = vrot.lane.b32.xlu0 %v216, 34
      %v1288 = vpop.permute.xlu0 %1287
      %1289 = vrot.lane.b32.xlu0 0.0, 34
      %v1290 = vpop.permute.xlu0 %1289
      %vm1291 = vcmask 277504
      %v1292 = vsel %vm1291, %v1260, %v1262
      %v1293 = vsel %vm1291, %v1262, %v1264
      %v1294 = vsel %vm1291, %v1264, %v1266
      %v1295 = vsel %vm1291, %v1266, %v1268
      %v1296 = vsel %vm1291, %v1268, %v1270
      %v1297 = vsel %vm1291, %v1270, %v1272
      %v1298 = vsel %vm1291, %v1272, %v1274
      %v1299 = vsel %vm1291, %v1274, %v1276
      %v1300 = vsel %vm1291, %v1276, %v1278
      %v1301 = vsel %vm1291, %v1278, %v1280
      %v1302 = vsel %vm1291, %v1280, %v1282
      %v1303 = vsel %vm1291, %v1282, %v1284
      %v1304 = vsel %vm1291, %v1284, %v1286
      %v1305 = vsel %vm1291, %v1286, %v1288
      %v1306 = vsel %vm1291, %v1288, %v1290
      %1307 = vrot.lane.b32.xlu0 %v216, 32
      %v1308 = vpop.permute.xlu0 %1307
      %1309 = vrot.lane.b32.xlu0 0.0, 32
      %v1310 = vpop.permute.xlu0 %1309
      %v1311 = vsel %vm536, %v535, %v1308
      %v1312 = vsel %vm536, %v1308, %v1310
      %1313 = vrot.lane.b32.xlu0 %v216, 30
      %v1314 = vpop.permute.xlu0 %1313
      %1315 = vrot.lane.b32.xlu0 0.0, 30
      %v1316 = vpop.permute.xlu0 %1315
      %v1317 = vsel %vm603, %v602, %v1314
      %v1318 = vsel %vm603, %v1314, %v1316
      %1319 = vrot.lane.b32.xlu0 %v216, 28
      %v1320 = vpop.permute.xlu0 %1319
      %1321 = vrot.lane.b32.xlu0 0.0, 28
      %v1322 = vpop.permute.xlu0 %1321
      %v1323 = vsel %vm670, %v669, %v1320
      %v1324 = vsel %vm670, %v1320, %v1322
      %1325 = vrot.lane.b32.xlu0 %v216, 26
      %v1326 = vpop.permute.xlu0 %1325
      %1327 = vrot.lane.b32.xlu0 0.0, 26
      %v1328 = vpop.permute.xlu0 %1327
      %v1329 = vsel %vm737, %v736, %v1326
      %v1330 = vsel %vm737, %v1326, %v1328
      %1331 = vrot.lane.b32.xlu0 %v201, 94
      %v1332 = vpop.permute.xlu0 %1331
      %1333 = vrot.lane.b32.xlu0 %v202, 94
      %v1334 = vpop.permute.xlu0 %1333
      %1335 = vrot.lane.b32.xlu0 %v203, 94
      %v1336 = vpop.permute.xlu0 %1335
      %1337 = vrot.lane.b32.xlu0 %v204, 94
      %v1338 = vpop.permute.xlu0 %1337
      %1339 = vrot.lane.b32.xlu0 %v205, 94
      %v1340 = vpop.permute.xlu0 %1339
      %1341 = vrot.lane.b32.xlu0 %v206, 94
      %v1342 = vpop.permute.xlu0 %1341
      %1343 = vrot.lane.b32.xlu0 %v207, 94
      %v1344 = vpop.permute.xlu0 %1343
      %1345 = vrot.lane.b32.xlu0 %v208, 94
      %v1346 = vpop.permute.xlu0 %1345
      %1347 = vrot.lane.b32.xlu0 %v209, 94
      %v1348 = vpop.permute.xlu0 %1347
      %1349 = vrot.lane.b32.xlu0 %v210, 94
      %v1350 = vpop.permute.xlu0 %1349
      %1351 = vrot.lane.b32.xlu0 %v211, 94
      %v1352 = vpop.permute.xlu0 %1351
      %1353 = vrot.lane.b32.xlu0 %v212, 94
      %v1354 = vpop.permute.xlu0 %1353
      %1355 = vrot.lane.b32.xlu0 %v213, 94
      %v1356 = vpop.permute.xlu0 %1355
      %1357 = vrot.lane.b32.xlu0 %v214, 94
      %v1358 = vpop.permute.xlu0 %1357
      %1359 = vrot.lane.b32.xlu0 %v215, 94
      %v1360 = vpop.permute.xlu0 %1359
      %1361 = vrot.lane.b32.xlu0 %v216, 94
      %v1362 = vpop.permute.xlu0 %1361
      %1363 = vrot.lane.b32.xlu0 0.0, 94
      %v1364 = vpop.permute.xlu0 %1363
      %1365 = vrot.lane.b32.xlu0 %v271, 94
      %v1366 = vpop.permute.xlu0 %1365
      %1367 = vrot.lane.b32.xlu0 %v272, 94
      %v1368 = vpop.permute.xlu0 %1367
      %1369 = vrot.lane.b32.xlu0 %v273, 94
      %v1370 = vpop.permute.xlu0 %1369
      %1371 = vrot.lane.b32.xlu0 %v274, 94
      %v1372 = vpop.permute.xlu0 %1371
      %1373 = vrot.lane.b32.xlu0 %v275, 94
      %v1374 = vpop.permute.xlu0 %1373
      %1375 = vrot.lane.b32.xlu0 %v276, 94
      %v1376 = vpop.permute.xlu0 %1375
      %1377 = vrot.lane.b32.xlu0 %v277, 94
      %v1378 = vpop.permute.xlu0 %1377
      %1379 = vrot.lane.b32.xlu0 %v278, 94
      %v1380 = vpop.permute.xlu0 %1379
      %1381 = vrot.lane.b32.xlu0 %v279, 94
      %v1382 = vpop.permute.xlu0 %1381
      %1383 = vrot.lane.b32.xlu0 %v280, 94
      %v1384 = vpop.permute.xlu0 %1383
      %1385 = vrot.lane.b32.xlu0 %v281, 94
      %v1386 = vpop.permute.xlu0 %1385
      %1387 = vrot.lane.b32.xlu0 %v282, 94
      %v1388 = vpop.permute.xlu0 %1387
      %1389 = vrot.lane.b32.xlu0 %v283, 94
      %v1390 = vpop.permute.xlu0 %1389
      %1391 = vrot.lane.b32.xlu0 %v284, 94
      %v1392 = vpop.permute.xlu0 %1391
      %1393 = vrot.lane.b32.xlu0 %v1245, 94
      %v1394 = vpop.permute.xlu0 %1393
      %1395 = vrot.lane.b32.xlu0 %v1246, 94
      %v1396 = vpop.permute.xlu0 %1395
      %1397 = vrot.lane.b32.xlu0 %v1244, 94
      %v1398 = vpop.permute.xlu0 %1397
      %1399 = vrot.lane.b32.xlu0 %v338, 94
      %v1400 = vpop.permute.xlu0 %1399
      %1401 = vrot.lane.b32.xlu0 %v339, 94
      %v1402 = vpop.permute.xlu0 %1401
      %1403 = vrot.lane.b32.xlu0 %v340, 94
      %v1404 = vpop.permute.xlu0 %1403
      %1405 = vrot.lane.b32.xlu0 %v341, 94
      %v1406 = vpop.permute.xlu0 %1405
      %1407 = vrot.lane.b32.xlu0 %v342, 94
      %v1408 = vpop.permute.xlu0 %1407
      %1409 = vrot.lane.b32.xlu0 %v343, 94
      %v1410 = vpop.permute.xlu0 %1409
      %1411 = vrot.lane.b32.xlu0 %v344, 94
      %v1412 = vpop.permute.xlu0 %1411
      %1413 = vrot.lane.b32.xlu0 %v345, 94
      %v1414 = vpop.permute.xlu0 %1413
      %1415 = vrot.lane.b32.xlu0 %v346, 94
      %v1416 = vpop.permute.xlu0 %1415
      %1417 = vrot.lane.b32.xlu0 %v347, 94
      %v1418 = vpop.permute.xlu0 %1417
      %1419 = vrot.lane.b32.xlu0 %v348, 94
      %v1420 = vpop.permute.xlu0 %1419
      %1421 = vrot.lane.b32.xlu0 %v349, 94
      %v1422 = vpop.permute.xlu0 %1421
      %1423 = vrot.lane.b32.xlu0 %v350, 94
      %v1424 = vpop.permute.xlu0 %1423
      %1425 = vrot.lane.b32.xlu0 %v351, 94
      %v1426 = vpop.permute.xlu0 %1425
      %1427 = vrot.lane.b32.xlu0 %v1251, 94
      %v1428 = vpop.permute.xlu0 %1427
      %1429 = vrot.lane.b32.xlu0 %v1252, 94
      %v1430 = vpop.permute.xlu0 %1429
      %1431 = vrot.lane.b32.xlu0 %v1250, 94
      %v1432 = vpop.permute.xlu0 %1431
      %1433 = vrot.lane.b32.xlu0 %v405, 94
      %v1434 = vpop.permute.xlu0 %1433
      %1435 = vrot.lane.b32.xlu0 %v406, 94
      %v1436 = vpop.permute.xlu0 %1435
      %1437 = vrot.lane.b32.xlu0 %v407, 94
      %v1438 = vpop.permute.xlu0 %1437
      %1439 = vrot.lane.b32.xlu0 %v408, 94
      %v1440 = vpop.permute.xlu0 %1439
      %1441 = vrot.lane.b32.xlu0 %v409, 94
      %v1442 = vpop.permute.xlu0 %1441
      %1443 = vrot.lane.b32.xlu0 %v410, 94
      %v1444 = vpop.permute.xlu0 %1443
      %1445 = vrot.lane.b32.xlu0 %v411, 94
      %v1446 = vpop.permute.xlu0 %1445
      %1447 = vrot.lane.b32.xlu0 %v412, 94
      %v1448 = vpop.permute.xlu0 %1447
      %1449 = vrot.lane.b32.xlu0 %v413, 94
      %v1450 = vpop.permute.xlu0 %1449
      %1451 = vrot.lane.b32.xlu0 %v414, 94
      %v1452 = vpop.permute.xlu0 %1451
      %1453 = vrot.lane.b32.xlu0 %v415, 94
      %v1454 = vpop.permute.xlu0 %1453
      %1455 = vrot.lane.b32.xlu0 %v416, 94
      %v1456 = vpop.permute.xlu0 %1455
      %1457 = vrot.lane.b32.xlu0 %v417, 94
      %v1458 = vpop.permute.xlu0 %1457
      %1459 = vrot.lane.b32.xlu0 %v418, 94
      %v1460 = vpop.permute.xlu0 %1459
      %1461 = vrot.lane.b32.xlu0 %v1257, 94
      %v1462 = vpop.permute.xlu0 %1461
      %1463 = vrot.lane.b32.xlu0 %v1258, 94
      %v1464 = vpop.permute.xlu0 %1463
      %1465 = vrot.lane.b32.xlu0 %v1256, 94
      %v1466 = vpop.permute.xlu0 %1465
      %1467 = vrot.lane.b32.xlu0 %v1260, 94
      %v1468 = vpop.permute.xlu0 %1467
      %1469 = vrot.lane.b32.xlu0 %v1292, 94
      %v1470 = vpop.permute.xlu0 %1469
      %1471 = vrot.lane.b32.xlu0 %v1293, 94
      %v1472 = vpop.permute.xlu0 %1471
      %1473 = vrot.lane.b32.xlu0 %v1294, 94
      %v1474 = vpop.permute.xlu0 %1473
      %1475 = vrot.lane.b32.xlu0 %v1295, 94
      %v1476 = vpop.permute.xlu0 %1475
      %1477 = vrot.lane.b32.xlu0 %v1296, 94
      %v1478 = vpop.permute.xlu0 %1477
      %1479 = vrot.lane.b32.xlu0 %v1297, 94
      %v1480 = vpop.permute.xlu0 %1479
      %1481 = vrot.lane.b32.xlu0 %v1298, 94
      %v1482 = vpop.permute.xlu0 %1481
      %1483 = vrot.lane.b32.xlu0 %v1299, 94
      %v1484 = vpop.permute.xlu0 %1483
      %1485 = vrot.lane.b32.xlu0 %v1300, 94
      %v1486 = vpop.permute.xlu0 %1485
      %1487 = vrot.lane.b32.xlu0 %v1301, 94
      %v1488 = vpop.permute.xlu0 %1487
      %1489 = vrot.lane.b32.xlu0 %v1302, 94
      %v1490 = vpop.permute.xlu0 %1489
      %1491 = vrot.lane.b32.xlu0 %v1303, 94
      %v1492 = vpop.permute.xlu0 %1491
      %1493 = vrot.lane.b32.xlu0 %v1304, 94
      %v1494 = vpop.permute.xlu0 %1493
      %1495 = vrot.lane.b32.xlu0 %v1305, 94
      %v1496 = vpop.permute.xlu0 %1495
      %1497 = vrot.lane.b32.xlu0 %v1306, 94
      %v1498 = vpop.permute.xlu0 %1497
      %1499 = vrot.lane.b32.xlu0 %v1290, 94
      %v1500 = vpop.permute.xlu0 %1499
      %1501 = vrot.lane.b32.xlu0 %v509, 94
      %v1502 = vpop.permute.xlu0 %1501
      %1503 = vrot.lane.b32.xlu0 %v540, 94
      %v1504 = vpop.permute.xlu0 %1503
      %1505 = vrot.lane.b32.xlu0 %v541, 94
      %v1506 = vpop.permute.xlu0 %1505
      %1507 = vrot.lane.b32.xlu0 %v542, 94
      %v1508 = vpop.permute.xlu0 %1507
      %1509 = vrot.lane.b32.xlu0 %v543, 94
      %v1510 = vpop.permute.xlu0 %1509
      %1511 = vrot.lane.b32.xlu0 %v544, 94
      %v1512 = vpop.permute.xlu0 %1511
      %1513 = vrot.lane.b32.xlu0 %v545, 94
      %v1514 = vpop.permute.xlu0 %1513
      %1515 = vrot.lane.b32.xlu0 %v546, 94
      %v1516 = vpop.permute.xlu0 %1515
      %1517 = vrot.lane.b32.xlu0 %v547, 94
      %v1518 = vpop.permute.xlu0 %1517
      %1519 = vrot.lane.b32.xlu0 %v548, 94
      %v1520 = vpop.permute.xlu0 %1519
      %1521 = vrot.lane.b32.xlu0 %v549, 94
      %v1522 = vpop.permute.xlu0 %1521
      %1523 = vrot.lane.b32.xlu0 %v550, 94
      %v1524 = vpop.permute.xlu0 %1523
      %1525 = vrot.lane.b32.xlu0 %v551, 94
      %v1526 = vpop.permute.xlu0 %1525
      %1527 = vrot.lane.b32.xlu0 %v552, 94
      %v1528 = vpop.permute.xlu0 %1527
      %1529 = vrot.lane.b32.xlu0 %v1311, 94
      %v1530 = vpop.permute.xlu0 %1529
      %1531 = vrot.lane.b32.xlu0 %v1312, 94
      %v1532 = vpop.permute.xlu0 %1531
      %1533 = vrot.lane.b32.xlu0 %v1310, 94
      %v1534 = vpop.permute.xlu0 %1533
      %1535 = vrot.lane.b32.xlu0 %v576, 94
      %v1536 = vpop.permute.xlu0 %1535
      %1537 = vrot.lane.b32.xlu0 %v607, 94
      %v1538 = vpop.permute.xlu0 %1537
      %1539 = vrot.lane.b32.xlu0 %v608, 94
      %v1540 = vpop.permute.xlu0 %1539
      %1541 = vrot.lane.b32.xlu0 %v609, 94
      %v1542 = vpop.permute.xlu0 %1541
      %1543 = vrot.lane.b32.xlu0 %v610, 94
      %v1544 = vpop.permute.xlu0 %1543
      %1545 = vrot.lane.b32.xlu0 %v611, 94
      %v1546 = vpop.permute.xlu0 %1545
      %1547 = vrot.lane.b32.xlu0 %v612, 94
      %v1548 = vpop.permute.xlu0 %1547
      %1549 = vrot.lane.b32.xlu0 %v613, 94
      %v1550 = vpop.permute.xlu0 %1549
      %1551 = vrot.lane.b32.xlu0 %v614, 94
      %v1552 = vpop.permute.xlu0 %1551
      %1553 = vrot.lane.b32.xlu0 %v615, 94
      %v1554 = vpop.permute.xlu0 %1553
      %1555 = vrot.lane.b32.xlu0 %v616, 94
      %v1556 = vpop.permute.xlu0 %1555
      %1557 = vrot.lane.b32.xlu0 %v617, 94
      %v1558 = vpop.permute.xlu0 %1557
      %1559 = vrot.lane.b32.xlu0 %v618, 94
      %v1560 = vpop.permute.xlu0 %1559
      %1561 = vrot.lane.b32.xlu0 %v619, 94
      %v1562 = vpop.permute.xlu0 %1561
      %1563 = vrot.lane.b32.xlu0 %v1317, 94
      %v1564 = vpop.permute.xlu0 %1563
      %1565 = vrot.lane.b32.xlu0 %v1318, 94
      %v1566 = vpop.permute.xlu0 %1565
      %1567 = vrot.lane.b32.xlu0 %v1316, 94
      %v1568 = vpop.permute.xlu0 %1567
      %1569 = vrot.lane.b32.xlu0 %v643, 94
      %v1570 = vpop.permute.xlu0 %1569
      %1571 = vrot.lane.b32.xlu0 %v674, 94
      %v1572 = vpop.permute.xlu0 %1571
      %1573 = vrot.lane.b32.xlu0 %v675, 94
      %v1574 = vpop.permute.xlu0 %1573
      %1575 = vrot.lane.b32.xlu0 %v676, 94
      %v1576 = vpop.permute.xlu0 %1575
      %1577 = vrot.lane.b32.xlu0 %v677, 94
      %v1578 = vpop.permute.xlu0 %1577
      %1579 = vrot.lane.b32.xlu0 %v678, 94
      %v1580 = vpop.permute.xlu0 %1579
      %1581 = vrot.lane.b32.xlu0 %v679, 94
      %v1582 = vpop.permute.xlu0 %1581
      %1583 = vrot.lane.b32.xlu0 %v680, 94
      %v1584 = vpop.permute.xlu0 %1583
      %1585 = vrot.lane.b32.xlu0 %v681, 94
      %v1586 = vpop.permute.xlu0 %1585
      %1587 = vrot.lane.b32.xlu0 %v682, 94
      %v1588 = vpop.permute.xlu0 %1587
      %1589 = vrot.lane.b32.xlu0 %v683, 94
      %v1590 = vpop.permute.xlu0 %1589
      %1591 = vrot.lane.b32.xlu0 %v684, 94
      %v1592 = vpop.permute.xlu0 %1591
      %1593 = vrot.lane.b32.xlu0 %v685, 94
      %v1594 = vpop.permute.xlu0 %1593
      %1595 = vrot.lane.b32.xlu0 %v686, 94
      %v1596 = vpop.permute.xlu0 %1595
      %1597 = vrot.lane.b32.xlu0 %v1323, 94
      %v1598 = vpop.permute.xlu0 %1597
      %1599 = vrot.lane.b32.xlu0 %v1324, 94
      %v1600 = vpop.permute.xlu0 %1599
      %1601 = vrot.lane.b32.xlu0 %v1322, 94
      %v1602 = vpop.permute.xlu0 %1601
      %1603 = vrot.lane.b32.xlu0 %v710, 94
      %v1604 = vpop.permute.xlu0 %1603
      %1605 = vrot.lane.b32.xlu0 %v741, 94
      %v1606 = vpop.permute.xlu0 %1605
      %1607 = vrot.lane.b32.xlu0 %v742, 94
      %v1608 = vpop.permute.xlu0 %1607
      %1609 = vrot.lane.b32.xlu0 %v743, 94
      %v1610 = vpop.permute.xlu0 %1609
      %1611 = vrot.lane.b32.xlu0 %v744, 94
      %v1612 = vpop.permute.xlu0 %1611
      %1613 = vrot.lane.b32.xlu0 %v745, 94
      %v1614 = vpop.permute.xlu0 %1613
      %1615 = vrot.lane.b32.xlu0 %v746, 94
      %v1616 = vpop.permute.xlu0 %1615
      %1617 = vrot.lane.b32.xlu0 %v747, 94
      %v1618 = vpop.permute.xlu0 %1617
      %1619 = vrot.lane.b32.xlu0 %v748, 94
      %v1620 = vpop.permute.xlu0 %1619
      %1621 = vrot.lane.b32.xlu0 %v749, 94
      %v1622 = vpop.permute.xlu0 %1621
      %1623 = vrot.lane.b32.xlu0 %v750, 94
      %v1624 = vpop.permute.xlu0 %1623
      %1625 = vrot.lane.b32.xlu0 %v751, 94
      %v1626 = vpop.permute.xlu0 %1625
      %1627 = vrot.lane.b32.xlu0 %v752, 94
      %v1628 = vpop.permute.xlu0 %1627
      %1629 = vrot.lane.b32.xlu0 %v753, 94
      %v1630 = vpop.permute.xlu0 %1629
      %1631 = vrot.lane.b32.xlu0 %v1329, 94
      %v1632 = vpop.permute.xlu0 %1631
      %1633 = vrot.lane.b32.xlu0 %v1330, 94
      %v1634 = vpop.permute.xlu0 %1633
      %1635 = vrot.lane.b32.xlu0 %v1328, 94
      %v1636 = vpop.permute.xlu0 %1635
      %vm1637 = vcmask 769024
      %v1638 = vsel %vm1637, %v1332, %v1334
      %v1639 = vsel %vm1637, %v1334, %v1336
      %v1640 = vsel %vm1637, %v1336, %v1338
      %v1641 = vsel %vm1637, %v1338, %v1340
      %v1642 = vsel %vm1637, %v1340, %v1342
      %v1643 = vsel %vm1637, %v1342, %v1344
      %v1644 = vsel %vm1637, %v1344, %v1346
      %v1645 = vsel %vm1637, %v1346, %v1348
      %v1646 = vsel %vm1637, %v1348, %v1350
      %v1647 = vsel %vm1637, %v1350, %v1352
      %v1648 = vsel %vm1637, %v1352, %v1354
      %v1649 = vsel %vm1637, %v1354, %v1356
      %v1650 = vsel %vm1637, %v1356, %v1358
      %v1651 = vsel %vm1637, %v1358, %v1360
      %v1652 = vsel %vm1637, %v1360, %v1362
      %v1653 = vsel %vm1637, %v1362, %v1364
      %v1654 = vsel %vm1637, %v1366, %v1368
      %v1655 = vsel %vm1637, %v1368, %v1370
      %v1656 = vsel %vm1637, %v1370, %v1372
      %v1657 = vsel %vm1637, %v1372, %v1374
      %v1658 = vsel %vm1637, %v1374, %v1376
      %v1659 = vsel %vm1637, %v1376, %v1378
      %v1660 = vsel %vm1637, %v1378, %v1380
      %v1661 = vsel %vm1637, %v1380, %v1382
      %v1662 = vsel %vm1637, %v1382, %v1384
      %v1663 = vsel %vm1637, %v1384, %v1386
      %v1664 = vsel %vm1637, %v1386, %v1388
      %v1665 = vsel %vm1637, %v1388, %v1390
      %v1666 = vsel %vm1637, %v1390, %v1392
      %v1667 = vsel %vm1637, %v1392, %v1394
      %v1668 = vsel %vm1637, %v1394, %v1396
      %v1669 = vsel %vm1637, %v1396, %v1398
      %v1670 = vsel %vm1637, %v1400, %v1402
      %v1671 = vsel %vm1637, %v1402, %v1404
      %v1672 = vsel %vm1637, %v1404, %v1406
      %v1673 = vsel %vm1637, %v1406, %v1408
      %v1674 = vsel %vm1637, %v1408, %v1410
      %v1675 = vsel %vm1637, %v1410, %v1412
      %v1676 = vsel %vm1637, %v1412, %v1414
      %v1677 = vsel %vm1637, %v1414, %v1416
      %v1678 = vsel %vm1637, %v1416, %v1418
      %v1679 = vsel %vm1637, %v1418, %v1420
      %v1680 = vsel %vm1637, %v1420, %v1422
      %v1681 = vsel %vm1637, %v1422, %v1424
      %v1682 = vsel %vm1637, %v1424, %v1426
      %v1683 = vsel %vm1637, %v1426, %v1428
      %v1684 = vsel %vm1637, %v1428, %v1430
      %v1685 = vsel %vm1637, %v1430, %v1432
      %v1686 = vsel %vm1637, %v1434, %v1436
      %v1687 = vsel %vm1637, %v1436, %v1438
      %v1688 = vsel %vm1637, %v1438, %v1440
      %v1689 = vsel %vm1637, %v1440, %v1442
      %v1690 = vsel %vm1637, %v1442, %v1444
      %v1691 = vsel %vm1637, %v1444, %v1446
      %v1692 = vsel %vm1637, %v1446, %v1448
      %v1693 = vsel %vm1637, %v1448, %v1450
      %v1694 = vsel %vm1637, %v1450, %v1452
      %v1695 = vsel %vm1637, %v1452, %v1454
      %v1696 = vsel %vm1637, %v1454, %v1456
      %v1697 = vsel %vm1637, %v1456, %v1458
      %v1698 = vsel %vm1637, %v1458, %v1460
      %v1699 = vsel %vm1637, %v1460, %v1462
      %v1700 = vsel %vm1637, %v1462, %v1464
      %v1701 = vsel %vm1637, %v1464, %v1466
      %v1702 = vsel %vm1637, %v1468, %v1470
      %v1703 = vsel %vm1637, %v1470, %v1472
      %v1704 = vsel %vm1637, %v1472, %v1474
      %v1705 = vsel %vm1637, %v1474, %v1476
      %v1706 = vsel %vm1637, %v1476, %v1478
      %v1707 = vsel %vm1637, %v1478, %v1480
      %v1708 = vsel %vm1637, %v1480, %v1482
      %v1709 = vsel %vm1637, %v1482, %v1484
      %v1710 = vsel %vm1637, %v1484, %v1486
      %v1711 = vsel %vm1637, %v1486, %v1488
      %v1712 = vsel %vm1637, %v1488, %v1490
      %v1713 = vsel %vm1637, %v1490, %v1492
      %v1714 = vsel %vm1637, %v1492, %v1494
      %v1715 = vsel %vm1637, %v1494, %v1496
      %v1716 = vsel %vm1637, %v1496, %v1498
      %v1717 = vsel %vm1637, %v1498, %v1500
      %v1718 = vsel %vm1637, %v1502, %v1504
      %v1719 = vsel %vm1637, %v1504, %v1506
      %v1720 = vsel %vm1637, %v1506, %v1508
      %v1721 = vsel %vm1637, %v1508, %v1510
      %v1722 = vsel %vm1637, %v1510, %v1512
      %v1723 = vsel %vm1637, %v1512, %v1514
      %v1724 = vsel %vm1637, %v1514, %v1516
      %v1725 = vsel %vm1637, %v1516, %v1518
      %v1726 = vsel %vm1637, %v1518, %v1520
      %v1727 = vsel %vm1637, %v1520, %v1522
      %v1728 = vsel %vm1637, %v1522, %v1524
      %v1729 = vsel %vm1637, %v1524, %v1526
      %v1730 = vsel %vm1637, %v1526, %v1528
      %v1731 = vsel %vm1637, %v1528, %v1530
      %v1732 = vsel %vm1637, %v1530, %v1532
      %v1733 = vsel %vm1637, %v1532, %v1534
      %v1734 = vsel %vm1637, %v1536, %v1538
      %v1735 = vsel %vm1637, %v1538, %v1540
      %v1736 = vsel %vm1637, %v1540, %v1542
      %v1737 = vsel %vm1637, %v1542, %v1544
      %v1738 = vsel %vm1637, %v1544, %v1546
      %v1739 = vsel %vm1637, %v1546, %v1548
      %v1740 = vsel %vm1637, %v1548, %v1550
      %v1741 = vsel %vm1637, %v1550, %v1552
      %v1742 = vsel %vm1637, %v1552, %v1554
      %v1743 = vsel %vm1637, %v1554, %v1556
      %v1744 = vsel %vm1637, %v1556, %v1558
      %v1745 = vsel %vm1637, %v1558, %v1560
      %v1746 = vsel %vm1637, %v1560, %v1562
      %v1747 = vsel %vm1637, %v1562, %v1564
      %v1748 = vsel %vm1637, %v1564, %v1566
      %v1749 = vsel %vm1637, %v1566, %v1568
      %v1750 = vsel %vm1637, %v1570, %v1572
      %v1751 = vsel %vm1637, %v1572, %v1574
      %v1752 = vsel %vm1637, %v1574, %v1576
      %v1753 = vsel %vm1637, %v1576, %v1578
      %v1754 = vsel %vm1637, %v1578, %v1580
      %v1755 = vsel %vm1637, %v1580, %v1582
      %v1756 = vsel %vm1637, %v1582, %v1584
      %v1757 = vsel %vm1637, %v1584, %v1586
      %v1758 = vsel %vm1637, %v1586, %v1588
      %v1759 = vsel %vm1637, %v1588, %v1590
      %v1760 = vsel %vm1637, %v1590, %v1592
      %v1761 = vsel %vm1637, %v1592, %v1594
      %v1762 = vsel %vm1637, %v1594, %v1596
      %v1763 = vsel %vm1637, %v1596, %v1598
      %v1764 = vsel %vm1637, %v1598, %v1600
      %v1765 = vsel %vm1637, %v1600, %v1602
      %v1766 = vsel %vm1637, %v1604, %v1606
      %v1767 = vsel %vm1637, %v1606, %v1608
      %v1768 = vsel %vm1637, %v1608, %v1610
      %v1769 = vsel %vm1637, %v1610, %v1612
      %v1770 = vsel %vm1637, %v1612, %v1614
      %v1771 = vsel %vm1637, %v1614, %v1616
      %v1772 = vsel %vm1637, %v1616, %v1618
      %v1773 = vsel %vm1637, %v1618, %v1620
      %v1774 = vsel %vm1637, %v1620, %v1622
      %v1775 = vsel %vm1637, %v1622, %v1624
      %v1776 = vsel %vm1637, %v1624, %v1626
      %v1777 = vsel %vm1637, %v1626, %v1628
      %v1778 = vsel %vm1637, %v1628, %v1630
      %v1779 = vsel %vm1637, %v1630, %v1632
      %v1780 = vsel %vm1637, %v1632, %v1634
      %v1781 = vsel %vm1637, %v1634, %v1636
      %v1927 = vpack.c.bf16 %v269, %v199
      %v1928 = vpack.c.bf16 %v270, %v200
      %v1929 = vpack.c.bf16 %v271, %v201
      %v1930 = vpack.c.bf16 %v272, %v202
      %v1931 = vpack.c.bf16 %v273, %v203
      %v1932 = vpack.c.bf16 %v274, %v204
      %v1933 = vpack.c.bf16 %v275, %v205
      %v1934 = vpack.c.bf16 %v276, %v206
      %v1935 = vpack.c.bf16 %v277, %v207
      %v1936 = vpack.c.bf16 %v278, %v208
      %v1937 = vpack.c.bf16 %v279, %v209
      %v1938 = vpack.c.bf16 %v280, %v210
      %v1939 = vpack.c.bf16 %v281, %v211
      %v1940 = vpack.c.bf16 %v282, %v212
      %v1941 = vpack.c.bf16 %v283, %v213
      %v1942 = vpack.c.bf16 %v284, %v214
      %v1943 = vpack.c.bf16 %v403, %v336
      %v1944 = vpack.c.bf16 %v404, %v337
      %v1945 = vpack.c.bf16 %v405, %v338
      %v1946 = vpack.c.bf16 %v406, %v339
      %v1947 = vpack.c.bf16 %v407, %v340
      %v1948 = vpack.c.bf16 %v408, %v341
      %v1949 = vpack.c.bf16 %v409, %v342
      %v1950 = vpack.c.bf16 %v410, %v343
      %v1951 = vpack.c.bf16 %v411, %v344
      %v1952 = vpack.c.bf16 %v412, %v345
      %v1953 = vpack.c.bf16 %v413, %v346
      %v1954 = vpack.c.bf16 %v414, %v347
      %v1955 = vpack.c.bf16 %v415, %v348
      %v1956 = vpack.c.bf16 %v416, %v349
      %v1957 = vpack.c.bf16 %v417, %v350
      %v1958 = vpack.c.bf16 %v418, %v351
      %v1959 = vpack.c.bf16 %v537, %v470
      %v1960 = vpack.c.bf16 %v538, %v471
      %v1961 = vpack.c.bf16 %v539, %v472
      %v1962 = vpack.c.bf16 %v540, %v473
      %v1963 = vpack.c.bf16 %v541, %v474
      %v1964 = vpack.c.bf16 %v542, %v475
      %v1965 = vpack.c.bf16 %v543, %v476
      %v1966 = vpack.c.bf16 %v544, %v477
      %v1967 = vpack.c.bf16 %v545, %v478
      %v1968 = vpack.c.bf16 %v546, %v479
      %v1969 = vpack.c.bf16 %v547, %v480
      %v1970 = vpack.c.bf16 %v548, %v481
      %v1971 = vpack.c.bf16 %v549, %v482
      %v1972 = vpack.c.bf16 %v550, %v483
      %v1973 = vpack.c.bf16 %v551, %v484
      %v1974 = vpack.c.bf16 %v552, %v485
      %v1975 = vpack.c.bf16 %v671, %v604
      %v1976 = vpack.c.bf16 %v672, %v605
      %v1977 = vpack.c.bf16 %v673, %v606
      %v1978 = vpack.c.bf16 %v674, %v607
      %v1979 = vpack.c.bf16 %v675, %v608
      %v1980 = vpack.c.bf16 %v676, %v609
      %v1981 = vpack.c.bf16 %v677, %v610
      %v1982 = vpack.c.bf16 %v678, %v611
      %v1983 = vpack.c.bf16 %v679, %v612
      %v1984 = vpack.c.bf16 %v680, %v613
      %v1985 = vpack.c.bf16 %v681, %v614
      %v1986 = vpack.c.bf16 %v682, %v615
      %v1987 = vpack.c.bf16 %v683, %v616
      %v1988 = vpack.c.bf16 %v684, %v617
      %v1989 = vpack.c.bf16 %v685, %v618
      %v1990 = vpack.c.bf16 %v686, %v619
      %v1991 = vpack.c.bf16 %v805, %v738
      %v1992 = vpack.c.bf16 %v806, %v739
      %v1993 = vpack.c.bf16 %v807, %v740
      %v1994 = vpack.c.bf16 %v808, %v741
      %v1995 = vpack.c.bf16 %v809, %v742
      %v1996 = vpack.c.bf16 %v810, %v743
      %v1997 = vpack.c.bf16 %v811, %v744
      %v1998 = vpack.c.bf16 %v812, %v745
      %v1999 = vpack.c.bf16 %v813, %v746
      %v2000 = vpack.c.bf16 %v814, %v747
      %v2001 = vpack.c.bf16 %v815, %v748
      %v2002 = vpack.c.bf16 %v816, %v749
      %v2003 = vpack.c.bf16 %v817, %v750
      %v2004 = vpack.c.bf16 %v818, %v751
      %v2005 = vpack.c.bf16 %v819, %v752
      %v2006 = vpack.c.bf16 %v820, %v753
      %v2007 = vpack.c.bf16 %v940, %v873
      %v2008 = vpack.c.bf16 %v941, %v874
      %v2009 = vpack.c.bf16 %v942, %v875
      %v2010 = vpack.c.bf16 %v943, %v876
      %v2011 = vpack.c.bf16 %v944, %v877
      %v2012 = vpack.c.bf16 %v945, %v878
      %v2013 = vpack.c.bf16 %v946, %v879
      %v2014 = vpack.c.bf16 %v947, %v880
      %v2015 = vpack.c.bf16 %v948, %v881
      %v2016 = vpack.c.bf16 %v949, %v882
      %v2017 = vpack.c.bf16 %v950, %v883
      %v2018 = vpack.c.bf16 %v951, %v884
      %v2019 = vpack.c.bf16 %v952, %v885
      %v2020 = vpack.c.bf16 %v953, %v886
      %v2021 = vpack.c.bf16 %v954, %v887
      %v2022 = vpack.c.bf16 %v955, %v888
      %v2023 = vpack.c.bf16 %v1074, %v1007
      %v2024 = vpack.c.bf16 %v1075, %v1008
      %v2025 = vpack.c.bf16 %v1076, %v1009
      %v2026 = vpack.c.bf16 %v1077, %v1010
      %v2027 = vpack.c.bf16 %v1078, %v1011
      %v2028 = vpack.c.bf16 %v1079, %v1012
      %v2029 = vpack.c.bf16 %v1080, %v1013
      %v2030 = vpack.c.bf16 %v1081, %v1014
      %v2031 = vpack.c.bf16 %v1082, %v1015
      %v2032 = vpack.c.bf16 %v1083, %v1016
      %v2033 = vpack.c.bf16 %v1084, %v1017
      %v2034 = vpack.c.bf16 %v1085, %v1018
      %v2035 = vpack.c.bf16 %v1086, %v1019
      %v2036 = vpack.c.bf16 %v1087, %v1020
      %v2037 = vpack.c.bf16 %v1088, %v1021
      %v2038 = vpack.c.bf16 %v1089, %v1022
      %v2039 = vpack.c.bf16 %v1209, %v1141
      %v2040 = vpack.c.bf16 %v1210, %v1142
      %v2041 = vpack.c.bf16 %v1211, %v1143
      %v2042 = vpack.c.bf16 %v1212, %v1144
      %v2043 = vpack.c.bf16 %v1213, %v1145
      %v2044 = vpack.c.bf16 %v1214, %v1146
      %v2045 = vpack.c.bf16 %v1215, %v1147
      %v2046 = vpack.c.bf16 %v1216, %v1148
      %v2047 = vpack.c.bf16 %v1217, %v1149
      %v2048 = vpack.c.bf16 %v1218, %v1150
      %v2049 = vpack.c.bf16 %v1219, %v1151
      %v2050 = vpack.c.bf16 %v1220, %v1152
      %v2051 = vpack.c.bf16 %v1221, %v1153
      %v2052 = vpack.c.bf16 %v1222, %v1154
      %v2053 = vpack.c.bf16 %v1223, %v1155
      %v2054 = vpack.c.bf16 %v1224, %v1156
      %v2055 = vpack.c.bf16 %v1654, %v1638
      %v2056 = vpack.c.bf16 %v1655, %v1639
      %v2057 = vpack.c.bf16 %v1656, %v1640
      %v2058 = vpack.c.bf16 %v1657, %v1641
      %v2059 = vpack.c.bf16 %v1658, %v1642
      %v2060 = vpack.c.bf16 %v1659, %v1643
      %v2061 = vpack.c.bf16 %v1660, %v1644
      %v2062 = vpack.c.bf16 %v1661, %v1645
      %v2063 = vpack.c.bf16 %v1662, %v1646
      %v2064 = vpack.c.bf16 %v1663, %v1647
      %v2065 = vpack.c.bf16 %v1664, %v1648
      %v2066 = vpack.c.bf16 %v1665, %v1649
      %v2067 = vpack.c.bf16 %v1666, %v1650
      %v2068 = vpack.c.bf16 %v1667, %v1651
      %v2069 = vpack.c.bf16 %v1668, %v1652
      %v2070 = vpack.c.bf16 %v1669, %v1653
      %v2071 = vpack.c.bf16 %v1686, %v1670
      %v2072 = vpack.c.bf16 %v1687, %v1671
      %v2073 = vpack.c.bf16 %v1688, %v1672
      %v2074 = vpack.c.bf16 %v1689, %v1673
      %v2075 = vpack.c.bf16 %v1690, %v1674
      %v2076 = vpack.c.bf16 %v1691, %v1675
      %v2077 = vpack.c.bf16 %v1692, %v1676
      %v2078 = vpack.c.bf16 %v1693, %v1677
      %v2079 = vpack.c.bf16 %v1694, %v1678
      %v2080 = vpack.c.bf16 %v1695, %v1679
      %v2081 = vpack.c.bf16 %v1696, %v1680
      %v2082 = vpack.c.bf16 %v1697, %v1681
      %v2083 = vpack.c.bf16 %v1698, %v1682
      %v2084 = vpack.c.bf16 %v1699, %v1683
      %v2085 = vpack.c.bf16 %v1700, %v1684
      %v2086 = vpack.c.bf16 %v1701, %v1685
      %v2087 = vpack.c.bf16 %v1718, %v1702
      %v2088 = vpack.c.bf16 %v1719, %v1703
      %v2089 = vpack.c.bf16 %v1720, %v1704
      %v2090 = vpack.c.bf16 %v1721, %v1705
      %v2091 = vpack.c.bf16 %v1722, %v1706
      %v2092 = vpack.c.bf16 %v1723, %v1707
      %v2093 = vpack.c.bf16 %v1724, %v1708
      %v2094 = vpack.c.bf16 %v1725, %v1709
      %v2095 = vpack.c.bf16 %v1726, %v1710
      %v2096 = vpack.c.bf16 %v1727, %v1711
      %v2097 = vpack.c.bf16 %v1728, %v1712
      %v2098 = vpack.c.bf16 %v1729, %v1713
      %v2099 = vpack.c.bf16 %v1730, %v1714
      %v2100 = vpack.c.bf16 %v1731, %v1715
      %v2101 = vpack.c.bf16 %v1732, %v1716
      %v2102 = vpack.c.bf16 %v1733, %v1717
      %v2103 = vpack.c.bf16 %v1750, %v1734
      %v2104 = vpack.c.bf16 %v1751, %v1735
      %v2105 = vpack.c.bf16 %v1752, %v1736
      %v2106 = vpack.c.bf16 %v1753, %v1737
      %v2107 = vpack.c.bf16 %v1754, %v1738
      %v2108 = vpack.c.bf16 %v1755, %v1739
      %v2109 = vpack.c.bf16 %v1756, %v1740
      %v2110 = vpack.c.bf16 %v1757, %v1741
      %v2111 = vpack.c.bf16 %v1758, %v1742
      %v2112 = vpack.c.bf16 %v1759, %v1743
      %v2113 = vpack.c.bf16 %v1760, %v1744
      %v2114 = vpack.c.bf16 %v1761, %v1745
      %v2115 = vpack.c.bf16 %v1762, %v1746
      %v2116 = vpack.c.bf16 %v1763, %v1747
      %v2117 = vpack.c.bf16 %v1764, %v1748
      %v2118 = vpack.c.bf16 %v1765, %v1749
      %v2119 = vpack.c.bf16 %v1364, %v1766
      %v2120 = vpack.c.bf16 %v1364, %v1767
      %v2121 = vpack.c.bf16 %v1364, %v1768
      %v2122 = vpack.c.bf16 %v1364, %v1769
      %v2123 = vpack.c.bf16 %v1364, %v1770
      %v2124 = vpack.c.bf16 %v1364, %v1771
      %v2125 = vpack.c.bf16 %v1364, %v1772
      %v2126 = vpack.c.bf16 %v1364, %v1773
      %v2127 = vpack.c.bf16 %v1364, %v1774
      %v2128 = vpack.c.bf16 %v1364, %v1775
      %v2129 = vpack.c.bf16 %v1364, %v1776
      %v2130 = vpack.c.bf16 %v1364, %v1777
      %v2131 = vpack.c.bf16 %v1364, %v1778
      %v2132 = vpack.c.bf16 %v1364, %v1779
      %v2133 = vpack.c.bf16 %v1364, %v1780
      %v2134 = vpack.c.bf16 %v1364, %v1781
      %v2135 = vld [vmem:[%s1] sm:$0xff]
      %v2136 = vld [vmem:[%s1 + $0x8] sm:$0xff]
      %v2137 = vld [vmem:[%s2] sm:$0xff]
      %v2138 = vld [vmem:[%s2 + $0x8] sm:$0xff]
      %2140 = vset.pattern.permute.xlu0 0
      %2141 = vperm.xlu0 %2140, %v2137
      %v2142 = vpop.permute.xlu0 %2141
      %2145 = vset.pattern.permute.xlu0 0
      %2146 = vperm.xlu0 %2145, %v2138
      %v2147 = vpop.permute.xlu0 %2146
      %v2151 = vunpack.c.l.b16 %v2135
      %v2152 = vunpack.c.h.b16 %v2135
      %v2153 = vunpack.c.l.b16 %v2136
      %v2154 = vunpack.c.h.b16 %v2136
      %v2155 = vpack.c.b16 %v2153, %v2151
      %v2156 = vpack.c.b16 %v2154, %v2152
      %vm2158 = vcmask 654336
      %v2160 = vsel %vm2158, %v2156, 0
      %2162 = vmatprep.subr.bf16.mxu0 %v1928
      %2163 = vmatpush1.bf16.msra.mxu0 %v1927
      %2164 = vmatprep.subr.bf16.mxu0 %v1944
      %2165 = vmatpush1.bf16.msra.mxu0 %v1943
      %2166 = vmatprep.subr.bf16.mxu0 %v1960
      %2167 = vmatpush1.bf16.msra.mxu0 %v1959
      %2168 = vmatprep.subr.bf16.mxu0 %v1976
      %2169 = vmatpush1.bf16.msra.mxu0 %v1975
      %2170 = vmatprep.subr.bf16.mxu0 %v1992
      %2171 = vmatpush1.bf16.msra.mxu0 %v1991
      %2172 = vmatprep.subr.bf16.mxu0 %v2008
      %2173 = vmatpush1.bf16.msra.mxu0 %v2007
      %2174 = vmatprep.subr.bf16.mxu0 %v2024
      %2175 = vmatpush1.bf16.msra.mxu0 %v2023
      %2176 = vmatprep.subr.bf16.mxu0 %v2040
      %2177 = vmatpush1.bf16.msra.mxu0 %v2039
      %2178 = vmatprep.subr.bf16.mxu0 %v2056
      %2179 = vmatpush1.bf16.msra.mxu0 %v2055
      %2180 = vmatprep.subr.bf16.mxu0 %v2072
      %2181 = vmatpush1.bf16.msra.mxu0 %v2071
      %2182 = vmatprep.subr.bf16.mxu0 %v2088
      %2183 = vmatpush1.bf16.msra.mxu0 %v2087
      %2184 = vmatprep.subr.bf16.mxu0 %v2104
      %2185 = vmatpush1.bf16.msra.mxu0 %v2103
      %2186 = vmatprep.subr.bf16.mxu0 %v2120
      %2187 = vmatpush1.bf16.msra.mxu0 %v2119
      %2188 = vmatprep.subr.bf16.mxu0 0
      %2189 = vmatpush1.bf16.msra.mxu0 0
      %2190 = vmatprep.subr.bf16.mxu0 0
      %2191 = vmatpush1.bf16.msra.mxu0 0
      %2192 = vmatprep.subr.bf16.mxu0 0
      %2193 = vmatpush1.bf16.msra.mxu0 0
      %2194 = vmatprep.mubr.bf16.mxu0 %v2160
      %2195 = vmatmul.mubr.bf16.gmra.mrb[0].mxu0 %v2155
      %v2196 = vpop.f32.mrb[0].mxu0
      %v2197 = vadd.f32 %v2142, %v2196
      %v2198 = vpop.f32.mrb[0].mxu0
      %v2199 = vadd.f32 %v2142, %v2198
      %v2200 = vpop.f32.mrb[0].mxu0
      %v2201 = vadd.f32 %v2147, %v2200
      %v2202 = vpop.f32.mrb[0].mxu0
      %v2203 = vadd.f32 %v2147, %v2202
      %2204 = vdwg.mxu0
      %2205 = vmatprep.subr.bf16.mxu0 %v1930
      %2206 = vmatpush1.bf16.msra.mxu0 %v1929
      %2207 = vmatprep.subr.bf16.mxu0 %v1946
      %2208 = vmatpush1.bf16.msra.mxu0 %v1945
      %2209 = vmatprep.subr.bf16.mxu0 %v1962
      %2210 = vmatpush1.bf16.msra.mxu0 %v1961
      %2211 = vmatprep.subr.bf16.mxu0 %v1978
      %2212 = vmatpush1.bf16.msra.mxu0 %v1977
      %2213 = vmatprep.subr.bf16.mxu0 %v1994
      %2214 = vmatpush1.bf16.msra.mxu0 %v1993
      %2215 = vmatprep.subr.bf16.mxu0 %v2010
      %2216 = vmatpush1.bf16.msra.mxu0 %v2009
      %2217 = vmatprep.subr.bf16.mxu0 %v2026
      %2218 = vmatpush1.bf16.msra.mxu0 %v2025
      %2219 = vmatprep.subr.bf16.mxu0 %v2042
      %2220 = vmatpush1.bf16.msra.mxu0 %v2041
      %2221 = vmatprep.subr.bf16.mxu0 %v2058
      %2222 = vmatpush1.bf16.msra.mxu0 %v2057
      %2223 = vmatprep.subr.bf16.mxu0 %v2074
      %2224 = vmatpush1.bf16.msra.mxu0 %v2073
      %2225 = vmatprep.subr.bf16.mxu0 %v2090
      %2226 = vmatpush1.bf16.msra.mxu0 %v2089
      %2227 = vmatprep.subr.bf16.mxu0 %v2106
      %2228 = vmatpush1.bf16.msra.mxu0 %v2105
      %2229 = vmatprep.subr.bf16.mxu0 %v2122
      %2230 = vmatpush1.bf16.msra.mxu0 %v2121
      %2231 = vmatprep.subr.bf16.mxu0 0
      %2232 = vmatpush1.bf16.msra.mxu0 0
      %2233 = vmatprep.subr.bf16.mxu0 0
      %2234 = vmatpush1.bf16.msra.mxu0 0
      %2235 = vmatprep.subr.bf16.mxu0 0
      %2236 = vmatpush1.bf16.msra.mxu0 0
      %2237 = vmatprep.mubr.bf16.mxu0 %v2160
      %2238 = vmatmul.mubr.bf16.gmra.mrb[0].mxu0 %v2155
      %v2239 = vpop.f32.mrb[0].mxu0
      %v2240 = vadd.f32 %v2142, %v2239
      %v2241 = vpop.f32.mrb[0].mxu0
      %v2242 = vadd.f32 %v2142, %v2241
      %v2243 = vpop.f32.mrb[0].mxu0
      %v2244 = vadd.f32 %v2147, %v2243
      %v2245 = vpop.f32.mrb[0].mxu0
      %v2246 = vadd.f32 %v2147, %v2245
      %2247 = vdwg.mxu0
      %2248 = vmatprep.subr.bf16.mxu0 %v1932
      %2249 = vmatpush1.bf16.msra.mxu0 %v1931
      %2250 = vmatprep.subr.bf16.mxu0 %v1948
      %2251 = vmatpush1.bf16.msra.mxu0 %v1947
      %2252 = vmatprep.subr.bf16.mxu0 %v1964
      %2253 = vmatpush1.bf16.msra.mxu0 %v1963
      %2254 = vmatprep.subr.bf16.mxu0 %v1980
      %2255 = vmatpush1.bf16.msra.mxu0 %v1979
      %2256 = vmatprep.subr.bf16.mxu0 %v1996
      %2257 = vmatpush1.bf16.msra.mxu0 %v1995
      %2258 = vmatprep.subr.bf16.mxu0 %v2012
      %2259 = vmatpush1.bf16.msra.mxu0 %v2011
      %2260 = vmatprep.subr.bf16.mxu0 %v2028
      %2261 = vmatpush1.bf16.msra.mxu0 %v2027
      %2262 = vmatprep.subr.bf16.mxu0 %v2044
      %2263 = vmatpush1.bf16.msra.mxu0 %v2043
      %2264 = vmatprep.subr.bf16.mxu0 %v2060
      %2265 = vmatpush1.bf16.msra.mxu0 %v2059
      %2266 = vmatprep.subr.bf16.mxu0 %v2076
      %2267 = vmatpush1.bf16.msra.mxu0 %v2075
      %2268 = vmatprep.subr.bf16.mxu0 %v2092
      %2269 = vmatpush1.bf16.msra.mxu0 %v2091
      %2270 = vmatprep.subr.bf16.mxu0 %v2108
      %2271 = vmatpush1.bf16.msra.mxu0 %v2107
      %2272 = vmatprep.subr.bf16.mxu0 %v2124
      %2273 = vmatpush1.bf16.msra.mxu0 %v2123
      %2274 = vmatprep.subr.bf16.mxu0 0
      %2275 = vmatpush1.bf16.msra.mxu0 0
      %2276 = vmatprep.subr.bf16.mxu0 0
      %2277 = vmatpush1.bf16.msra.mxu0 0
      %2278 = vmatprep.subr.bf16.mxu0 0
      %2279 = vmatpush1.bf16.msra.mxu0 0
      %2280 = vmatprep.mubr.bf16.mxu0 %v2160
      %2281 = vmatmul.mubr.bf16.gmra.mrb[0].mxu0 %v2155
      %v2282 = vpop.f32.mrb[0].mxu0
      %v2283 = vadd.f32 %v2142, %v2282
      %v2284 = vpop.f32.mrb[0].mxu0
      %v2285 = vadd.f32 %v2142, %v2284
      %v2286 = vpop.f32.mrb[0].mxu0
      %v2287 = vadd.f32 %v2147, %v2286
      %v2288 = vpop.f32.mrb[0].mxu0
      %v2289 = vadd.f32 %v2147, %v2288
      %2290 = vdwg.mxu0
      %2291 = vmatprep.subr.bf16.mxu0 %v1934
      %2292 = vmatpush1.bf16.msra.mxu0 %v1933
      %2293 = vmatprep.subr.bf16.mxu0 %v1950
      %2294 = vmatpush1.bf16.msra.mxu0 %v1949
      %2295 = vmatprep.subr.bf16.mxu0 %v1966
      %2296 = vmatpush1.bf16.msra.mxu0 %v1965
      %2297 = vmatprep.subr.bf16.mxu0 %v1982
      %2298 = vmatpush1.bf16.msra.mxu0 %v1981
      %2299 = vmatprep.subr.bf16.mxu0 %v1998
      %2300 = vmatpush1.bf16.msra.mxu0 %v1997
      %2301 = vmatprep.subr.bf16.mxu0 %v2014
      %2302 = vmatpush1.bf16.msra.mxu0 %v2013
      %2303 = vmatprep.subr.bf16.mxu0 %v2030
      %2304 = vmatpush1.bf16.msra.mxu0 %v2029
      %2305 = vmatprep.subr.bf16.mxu0 %v2046
      %2306 = vmatpush1.bf16.msra.mxu0 %v2045
      %2307 = vmatprep.subr.bf16.mxu0 %v2062
      %2308 = vmatpush1.bf16.msra.mxu0 %v2061
      %2309 = vmatprep.subr.bf16.mxu0 %v2078
      %2310 = vmatpush1.bf16.msra.mxu0 %v2077
      %2311 = vmatprep.subr.bf16.mxu0 %v2094
      %2312 = vmatpush1.bf16.msra.mxu0 %v2093
      %2313 = vmatprep.subr.bf16.mxu0 %v2110
      %2314 = vmatpush1.bf16.msra.mxu0 %v2109
      %2315 = vmatprep.subr.bf16.mxu0 %v2126
      %2316 = vmatpush1.bf16.msra.mxu0 %v2125
      %2317 = vmatprep.subr.bf16.mxu0 0
      %2318 = vmatpush1.bf16.msra.mxu0 0
      %2319 = vmatprep.subr.bf16.mxu0 0
      %2320 = vmatpush1.bf16.msra.mxu0 0
      %2321 = vmatprep.subr.bf16.mxu0 0
      %2322 = vmatpush1.bf16.msra.mxu0 0
      %2323 = vmatprep.mubr.bf16.mxu0 %v2160
      %2324 = vmatmul.mubr.bf16.gmra.mrb[0].mxu0 %v2155
      %v2325 = vpop.f32.mrb[0].mxu0
      %v2326 = vadd.f32 %v2142, %v2325
      %v2327 = vpop.f32.mrb[0].mxu0
      %v2328 = vadd.f32 %v2142, %v2327
      %v2329 = vpop.f32.mrb[0].mxu0
      %v2330 = vadd.f32 %v2147, %v2329
      %v2331 = vpop.f32.mrb[0].mxu0
      %v2332 = vadd.f32 %v2147, %v2331
      %2333 = vdwg.mxu0
      %2334 = vmatprep.subr.bf16.mxu0 %v1936
      %2335 = vmatpush1.bf16.msra.mxu0 %v1935
      %2336 = vmatprep.subr.bf16.mxu0 %v1952
      %2337 = vmatpush1.bf16.msra.mxu0 %v1951
      %2338 = vmatprep.subr.bf16.mxu0 %v1968
      %2339 = vmatpush1.bf16.msra.mxu0 %v1967
      %2340 = vmatprep.subr.bf16.mxu0 %v1984
      %2341 = vmatpush1.bf16.msra.mxu0 %v1983
      %2342 = vmatprep.subr.bf16.mxu0 %v2000
      %2343 = vmatpush1.bf16.msra.mxu0 %v1999
      %2344 = vmatprep.subr.bf16.mxu0 %v2016
      %2345 = vmatpush1.bf16.msra.mxu0 %v2015
      %2346 = vmatprep.subr.bf16.mxu0 %v2032
      %2347 = vmatpush1.bf16.msra.mxu0 %v2031
      %2348 = vmatprep.subr.bf16.mxu0 %v2048
      %2349 = vmatpush1.bf16.msra.mxu0 %v2047
      %2350 = vmatprep.subr.bf16.mxu0 %v2064
      %2351 = vmatpush1.bf16.msra.mxu0 %v2063
      %2352 = vmatprep.subr.bf16.mxu0 %v2080
      %2353 = vmatpush1.bf16.msra.mxu0 %v2079
      %2354 = vmatprep.subr.bf16.mxu0 %v2096
      %2355 = vmatpush1.bf16.msra.mxu0 %v2095
      %2356 = vmatprep.subr.bf16.mxu0 %v2112
      %2357 = vmatpush1.bf16.msra.mxu0 %v2111
      %2358 = vmatprep.subr.bf16.mxu0 %v2128
      %2359 = vmatpush1.bf16.msra.mxu0 %v2127
      %2360 = vmatprep.subr.bf16.mxu0 0
      %2361 = vmatpush1.bf16.msra.mxu0 0
      %2362 = vmatprep.subr.bf16.mxu0 0
      %2363 = vmatpush1.bf16.msra.mxu0 0
      %2364 = vmatprep.subr.bf16.mxu0 0
      %2365 = vmatpush1.bf16.msra.mxu0 0
      %2366 = vmatprep.mubr.bf16.mxu0 %v2160
      %2367 = vmatmul.mubr.bf16.gmra.mrb[0].mxu0 %v2155
      %v2368 = vpop.f32.mrb[0].mxu0
      %v2369 = vadd.f32 %v2142, %v2368
      %v2370 = vpop.f32.mrb[0].mxu0
      %v2371 = vadd.f32 %v2142, %v2370
      %v2372 = vpop.f32.mrb[0].mxu0
      %v2373 = vadd.f32 %v2147, %v2372
      %v2374 = vpop.f32.mrb[0].mxu0
      %v2375 = vadd.f32 %v2147, %v2374
      %2376 = vdwg.mxu0
      %2377 = vmatprep.subr.bf16.mxu0 %v1938
      %2378 = vmatpush1.bf16.msra.mxu0 %v1937
      %2379 = vmatprep.subr.bf16.mxu0 %v1954
      %2380 = vmatpush1.bf16.msra.mxu0 %v1953
      %2381 = vmatprep.subr.bf16.mxu0 %v1970
      %2382 = vmatpush1.bf16.msra.mxu0 %v1969
      %2383 = vmatprep.subr.bf16.mxu0 %v1986
      %2384 = vmatpush1.bf16.msra.mxu0 %v1985
      %2385 = vmatprep.subr.bf16.mxu0 %v2002
      %2386 = vmatpush1.bf16.msra.mxu0 %v2001
      %2387 = vmatprep.subr.bf16.mxu0 %v2018
      %2388 = vmatpush1.bf16.msra.mxu0 %v2017
      %2389 = vmatprep.subr.bf16.mxu0 %v2034
      %2390 = vmatpush1.bf16.msra.mxu0 %v2033
      %2391 = vmatprep.subr.bf16.mxu0 %v2050
      %2392 = vmatpush1.bf16.msra.mxu0 %v2049
      %2393 = vmatprep.subr.bf16.mxu0 %v2066
      %2394 = vmatpush1.bf16.msra.mxu0 %v2065
      %2395 = vmatprep.subr.bf16.mxu0 %v2082
      %2396 = vmatpush1.bf16.msra.mxu0 %v2081
      %2397 = vmatprep.subr.bf16.mxu0 %v2098
      %2398 = vmatpush1.bf16.msra.mxu0 %v2097
      %2399 = vmatprep.subr.bf16.mxu0 %v2114
      %2400 = vmatpush1.bf16.msra.mxu0 %v2113
      %2401 = vmatprep.subr.bf16.mxu0 %v2130
      %2402 = vmatpush1.bf16.msra.mxu0 %v2129
      %2403 = vmatprep.subr.bf16.mxu0 0
      %2404 = vmatpush1.bf16.msra.mxu0 0
      %2405 = vmatprep.subr.bf16.mxu0 0
      %2406 = vmatpush1.bf16.msra.mxu0 0
      %2407 = vmatprep.subr.bf16.mxu0 0
      %2408 = vmatpush1.bf16.msra.mxu0 0
      %2409 = vmatprep.mubr.bf16.mxu0 %v2160
      %2410 = vmatmul.mubr.bf16.gmra.mrb[0].mxu0 %v2155
      %v2411 = vpop.f32.mrb[0].mxu0
      %v2412 = vadd.f32 %v2142, %v2411
      %v2413 = vpop.f32.mrb[0].mxu0
      %v2414 = vadd.f32 %v2142, %v2413
      %v2415 = vpop.f32.mrb[0].mxu0
      %v2416 = vadd.f32 %v2147, %v2415
      %v2417 = vpop.f32.mrb[0].mxu0
      %v2418 = vadd.f32 %v2147, %v2417
      %2419 = vdwg.mxu0
      %2420 = vmatprep.subr.bf16.mxu0 %v1940
      %2421 = vmatpush1.bf16.msra.mxu0 %v1939
      %2422 = vmatprep.subr.bf16.mxu0 %v1956
      %2423 = vmatpush1.bf16.msra.mxu0 %v1955
      %2424 = vmatprep.subr.bf16.mxu0 %v1972
      %2425 = vmatpush1.bf16.msra.mxu0 %v1971
      %2426 = vmatprep.subr.bf16.mxu0 %v1988
      %2427 = vmatpush1.bf16.msra.mxu0 %v1987
      %2428 = vmatprep.subr.bf16.mxu0 %v2004
      %2429 = vmatpush1.bf16.msra.mxu0 %v2003
      %2430 = vmatprep.subr.bf16.mxu0 %v2020
      %2431 = vmatpush1.bf16.msra.mxu0 %v2019
      %2432 = vmatprep.subr.bf16.mxu0 %v2036
      %2433 = vmatpush1.bf16.msra.mxu0 %v2035
      %2434 = vmatprep.subr.bf16.mxu0 %v2052
      %2435 = vmatpush1.bf16.msra.mxu0 %v2051
      %2436 = vmatprep.subr.bf16.mxu0 %v2068
      %2437 = vmatpush1.bf16.msra.mxu0 %v2067
      %2438 = vmatprep.subr.bf16.mxu0 %v2084
      %2439 = vmatpush1.bf16.msra.mxu0 %v2083
      %2440 = vmatprep.subr.bf16.mxu0 %v2100
      %2441 = vmatpush1.bf16.msra.mxu0 %v2099
      %2442 = vmatprep.subr.bf16.mxu0 %v2116
      %2443 = vmatpush1.bf16.msra.mxu0 %v2115
      %2444 = vmatprep.subr.bf16.mxu0 %v2132
      %2445 = vmatpush1.bf16.msra.mxu0 %v2131
      %2446 = vmatprep.subr.bf16.mxu0 0
      %2447 = vmatpush1.bf16.msra.mxu0 0
      %2448 = vmatprep.subr.bf16.mxu0 0
      %2449 = vmatpush1.bf16.msra.mxu0 0
      %2450 = vmatprep.subr.bf16.mxu0 0
      %2451 = vmatpush1.bf16.msra.mxu0 0
      %2452 = vmatprep.mubr.bf16.mxu0 %v2160
      %2453 = vmatmul.mubr.bf16.gmra.mrb[0].mxu0 %v2155
      %v2454 = vpop.f32.mrb[0].mxu0
      %v2455 = vadd.f32 %v2142, %v2454
      %v2456 = vpop.f32.mrb[0].mxu0
      %v2457 = vadd.f32 %v2142, %v2456
      %v2458 = vpop.f32.mrb[0].mxu0
      %v2459 = vadd.f32 %v2147, %v2458
      %v2460 = vpop.f32.mrb[0].mxu0
      %v2461 = vadd.f32 %v2147, %v2460
      %2462 = vdwg.mxu0
      %2463 = vmatprep.subr.bf16.mxu0 %v1942
      %2464 = vmatpush1.bf16.msra.mxu0 %v1941
      %2465 = vmatprep.subr.bf16.mxu0 %v1958
      %2466 = vmatpush1.bf16.msra.mxu0 %v1957
      %2467 = vmatprep.subr.bf16.mxu0 %v1974
      %2468 = vmatpush1.bf16.msra.mxu0 %v1973
      %2469 = vmatprep.subr.bf16.mxu0 %v1990
      %2470 = vmatpush1.bf16.msra.mxu0 %v1989
      %2471 = vmatprep.subr.bf16.mxu0 %v2006
      %2472 = vmatpush1.bf16.msra.mxu0 %v2005
      %2473 = vmatprep.subr.bf16.mxu0 %v2022
      %2474 = vmatpush1.bf16.msra.mxu0 %v2021
      %2475 = vmatprep.subr.bf16.mxu0 %v2038
      %2476 = vmatpush1.bf16.msra.mxu0 %v2037
      %2477 = vmatprep.subr.bf16.mxu0 %v2054
      %2478 = vmatpush1.bf16.msra.mxu0 %v2053
      %2479 = vmatprep.subr.bf16.mxu0 %v2070
      %2480 = vmatpush1.bf16.msra.mxu0 %v2069
      %2481 = vmatprep.subr.bf16.mxu0 %v2086
      %2482 = vmatpush1.bf16.msra.mxu0 %v2085
      %2483 = vmatprep.subr.bf16.mxu0 %v2102
      %2484 = vmatpush1.bf16.msra.mxu0 %v2101
      %2485 = vmatprep.subr.bf16.mxu0 %v2118
      %2486 = vmatpush1.bf16.msra.mxu0 %v2117
      %2487 = vmatprep.subr.bf16.mxu0 %v2134
      %2488 = vmatpush1.bf16.msra.mxu0 %v2133
      %2489 = vmatprep.subr.bf16.mxu0 0
      %2490 = vmatpush1.bf16.msra.mxu0 0
      %2491 = vmatprep.subr.bf16.mxu0 0
      %2492 = vmatpush1.bf16.msra.mxu0 0
      %2493 = vmatprep.subr.bf16.mxu0 0
      %2494 = vmatpush1.bf16.msra.mxu0 0
      %2495 = vmatprep.mubr.bf16.mxu0 %v2160
      %2496 = vmatmul.mubr.bf16.gmra.mrb[0].mxu0 %v2155
      %v2497 = vpop.f32.mrb[0].mxu0
      %v2498 = vadd.f32 %v2142, %v2497
      %v2499 = vpop.f32.mrb[0].mxu0
      %v2500 = vpop.f32.mrb[0].mxu0
      %v2501 = vadd.f32 %v2147, %v2500
      %v2502 = vpop.f32.mrb[0].mxu0
      %2503 = vdwg.mxu0
      %v2504 = vmax.f32 %v2197, 0.0
      %v2505 = vmax.f32 %v2199, 0.0
      %v2506 = vmax.f32 %v2240, 0.0
      %v2507 = vmax.f32 %v2242, 0.0
      %v2508 = vmax.f32 %v2283, 0.0
      %v2509 = vmax.f32 %v2285, 0.0
      %v2510 = vmax.f32 %v2326, 0.0
      %v2511 = vmax.f32 %v2328, 0.0
      %v2512 = vmax.f32 %v2369, 0.0
      %v2513 = vmax.f32 %v2371, 0.0
      %v2514 = vmax.f32 %v2412, 0.0
      %v2515 = vmax.f32 %v2414, 0.0
      %v2516 = vmax.f32 %v2455, 0.0
      %v2517 = vmax.f32 %v2457, 0.0
      %v2518 = vmax.f32 %v2498, 0.0
      %v2519 = vmax.f32 %v2201, 0.0
      %v2520 = vmax.f32 %v2203, 0.0
      %v2521 = vmax.f32 %v2244, 0.0
      %v2522 = vmax.f32 %v2246, 0.0
      %v2523 = vmax.f32 %v2287, 0.0
      %v2524 = vmax.f32 %v2289, 0.0
      %v2525 = vmax.f32 %v2330, 0.0
      %v2526 = vmax.f32 %v2332, 0.0
      %v2527 = vmax.f32 %v2373, 0.0
      %v2528 = vmax.f32 %v2375, 0.0
      %v2529 = vmax.f32 %v2416, 0.0
      %v2530 = vmax.f32 %v2418, 0.0
      %v2531 = vmax.f32 %v2459, 0.0
      %v2532 = vmax.f32 %v2461, 0.0
      %v2533 = vmax.f32 %v2501, 0.0
      %2564 = vrot.lane.b32.xlu0 %v2504, 126
      %v2565 = vpop.permute.xlu0 %2564
      %2566 = vrot.lane.b32.xlu0 %v2505, 126
      %v2567 = vpop.permute.xlu0 %2566
      %2568 = vrot.lane.b32.xlu0 %v2506, 126
      %v2569 = vpop.permute.xlu0 %2568
      %2570 = vrot.lane.b32.xlu0 %v2507, 126
      %v2571 = vpop.permute.xlu0 %2570
      %2572 = vrot.lane.b32.xlu0 %v2508, 126
      %v2573 = vpop.permute.xlu0 %2572
      %2574 = vrot.lane.b32.xlu0 %v2509, 126
      %v2575 = vpop.permute.xlu0 %2574
      %2576 = vrot.lane.b32.xlu0 %v2510, 126
      %v2577 = vpop.permute.xlu0 %2576
      %2578 = vrot.lane.b32.xlu0 %v2511, 126
      %v2579 = vpop.permute.xlu0 %2578
      %2580 = vrot.lane.b32.xlu0 %v2512, 126
      %v2581 = vpop.permute.xlu0 %2580
      %2582 = vrot.lane.b32.xlu0 %v2513, 126
      %v2583 = vpop.permute.xlu0 %2582
      %2584 = vrot.lane.b32.xlu0 %v2514, 126
      %v2585 = vpop.permute.xlu0 %2584
      %2586 = vrot.lane.b32.xlu0 %v2515, 126
      %v2587 = vpop.permute.xlu0 %2586
      %2588 = vrot.lane.b32.xlu0 %v2516, 126
      %v2589 = vpop.permute.xlu0 %2588
      %2590 = vrot.lane.b32.xlu0 %v2517, 126
      %v2591 = vpop.permute.xlu0 %2590
      %2592 = vrot.lane.b32.xlu0 %v2518, 126
      %v2593 = vpop.permute.xlu0 %2592
      %2594 = vrot.lane.b32.xlu0 %v2519, 126
      %v2595 = vpop.permute.xlu0 %2594
      %2596 = vrot.lane.b32.xlu0 %v2520, 126
      %v2597 = vpop.permute.xlu0 %2596
      %2598 = vrot.lane.b32.xlu0 %v2521, 126
      %v2599 = vpop.permute.xlu0 %2598
      %2600 = vrot.lane.b32.xlu0 %v2522, 126
      %v2601 = vpop.permute.xlu0 %2600
      %2602 = vrot.lane.b32.xlu0 %v2523, 126
      %v2603 = vpop.permute.xlu0 %2602
      %2604 = vrot.lane.b32.xlu0 %v2524, 126
      %v2605 = vpop.permute.xlu0 %2604
      %2606 = vrot.lane.b32.xlu0 %v2525, 126
      %v2607 = vpop.permute.xlu0 %2606
      %2608 = vrot.lane.b32.xlu0 %v2526, 126
      %v2609 = vpop.permute.xlu0 %2608
      %2610 = vrot.lane.b32.xlu0 %v2527, 126
      %v2611 = vpop.permute.xlu0 %2610
      %2612 = vrot.lane.b32.xlu0 %v2528, 126
      %v2613 = vpop.permute.xlu0 %2612
      %2614 = vrot.lane.b32.xlu0 %v2529, 126
      %v2615 = vpop.permute.xlu0 %2614
      %2616 = vrot.lane.b32.xlu0 %v2530, 126
      %v2617 = vpop.permute.xlu0 %2616
      %2618 = vrot.lane.b32.xlu0 %v2531, 126
      %v2619 = vpop.permute.xlu0 %2618
      %2620 = vrot.lane.b32.xlu0 %v2532, 126
      %v2621 = vpop.permute.xlu0 %2620
      %2622 = vrot.lane.b32.xlu0 %v2533, 126
      %v2623 = vpop.permute.xlu0 %2622
      %v2624 = vsel %vm268, %v2565, %v2567
      %v2625 = vsel %vm268, %v2567, %v2569
      %v2626 = vsel %vm268, %v2569, %v2571
      %v2627 = vsel %vm268, %v2571, %v2573
      %v2628 = vsel %vm268, %v2573, %v2575
      %v2629 = vsel %vm268, %v2575, %v2577
      %v2630 = vsel %vm268, %v2577, %v2579
      %v2631 = vsel %vm268, %v2579, %v2581
      %v2632 = vsel %vm268, %v2581, %v2583
      %v2633 = vsel %vm268, %v2583, %v2585
      %v2634 = vsel %vm268, %v2585, %v2587
      %v2635 = vsel %vm268, %v2587, %v2589
      %v2636 = vsel %vm268, %v2589, %v2591
      %v2637 = vsel %vm268, %v2591, %v2593
      %v2638 = vsel %vm268, %v2595, %v2597
      %v2639 = vsel %vm268, %v2597, %v2599
      %v2640 = vsel %vm268, %v2599, %v2601
      %v2641 = vsel %vm268, %v2601, %v2603
      %v2642 = vsel %vm268, %v2603, %v2605
      %v2643 = vsel %vm268, %v2605, %v2607
      %v2644 = vsel %vm268, %v2607, %v2609
      %v2645 = vsel %vm268, %v2609, %v2611
      %v2646 = vsel %vm268, %v2611, %v2613
      %v2647 = vsel %vm268, %v2613, %v2615
      %v2648 = vsel %vm268, %v2615, %v2617
      %v2649 = vsel %vm268, %v2617, %v2619
      %v2650 = vsel %vm268, %v2619, %v2621
      %v2651 = vsel %vm268, %v2621, %v2623
      %v2680 = vmax.f32 %v2504, %v2624
      %v2681 = vmax.f32 %v2505, %v2625
      %v2682 = vmax.f32 %v2506, %v2626
      %v2683 = vmax.f32 %v2507, %v2627
      %v2684 = vmax.f32 %v2508, %v2628
      %v2685 = vmax.f32 %v2509, %v2629
      %v2686 = vmax.f32 %v2510, %v2630
      %v2687 = vmax.f32 %v2511, %v2631
      %v2688 = vmax.f32 %v2512, %v2632
      %v2689 = vmax.f32 %v2513, %v2633
      %v2690 = vmax.f32 %v2514, %v2634
      %v2691 = vmax.f32 %v2515, %v2635
      %v2692 = vmax.f32 %v2516, %v2636
      %v2693 = vmax.f32 %v2517, %v2637
      %v2694 = vmax.f32 %v2519, %v2638
      %v2695 = vmax.f32 %v2520, %v2639
      %v2696 = vmax.f32 %v2521, %v2640
      %v2697 = vmax.f32 %v2522, %v2641
      %v2698 = vmax.f32 %v2523, %v2642
      %v2699 = vmax.f32 %v2524, %v2643
      %v2700 = vmax.f32 %v2525, %v2644
      %v2701 = vmax.f32 %v2526, %v2645
      %v2702 = vmax.f32 %v2527, %v2646
      %v2703 = vmax.f32 %v2528, %v2647
      %v2704 = vmax.f32 %v2529, %v2648
      %v2705 = vmax.f32 %v2530, %v2649
      %v2706 = vmax.f32 %v2531, %v2650
      %v2707 = vmax.f32 %v2532, %v2651
      %2736 = vrot.lane.b32.xlu0 %v2680, 32
      %v2737 = vpop.permute.xlu0 %2736
      %2738 = vrot.lane.b32.xlu0 %v2681, 32
      %v2739 = vpop.permute.xlu0 %2738
      %2740 = vrot.lane.b32.xlu0 %v2682, 32
      %v2741 = vpop.permute.xlu0 %2740
      %2742 = vrot.lane.b32.xlu0 %v2683, 32
      %v2743 = vpop.permute.xlu0 %2742
      %2744 = vrot.lane.b32.xlu0 %v2684, 32
      %v2745 = vpop.permute.xlu0 %2744
      %2746 = vrot.lane.b32.xlu0 %v2685, 32
      %v2747 = vpop.permute.xlu0 %2746
      %2748 = vrot.lane.b32.xlu0 %v2686, 32
      %v2749 = vpop.permute.xlu0 %2748
      %2750 = vrot.lane.b32.xlu0 %v2687, 32
      %v2751 = vpop.permute.xlu0 %2750
      %2752 = vrot.lane.b32.xlu0 %v2688, 32
      %v2753 = vpop.permute.xlu0 %2752
      %2754 = vrot.lane.b32.xlu0 %v2689, 32
      %v2755 = vpop.permute.xlu0 %2754
      %2756 = vrot.lane.b32.xlu0 %v2690, 32
      %v2757 = vpop.permute.xlu0 %2756
      %2758 = vrot.lane.b32.xlu0 %v2691, 32
      %v2759 = vpop.permute.xlu0 %2758
      %2760 = vrot.lane.b32.xlu0 %v2692, 32
      %v2761 = vpop.permute.xlu0 %2760
      %2762 = vrot.lane.b32.xlu0 %v2693, 32
      %v2763 = vpop.permute.xlu0 %2762
      %2764 = vrot.lane.b32.xlu0 %v2694, 32
      %v2765 = vpop.permute.xlu0 %2764
      %2766 = vrot.lane.b32.xlu0 %v2695, 32
      %v2767 = vpop.permute.xlu0 %2766
      %2768 = vrot.lane.b32.xlu0 %v2696, 32
      %v2769 = vpop.permute.xlu0 %2768
      %2770 = vrot.lane.b32.xlu0 %v2697, 32
      %v2771 = vpop.permute.xlu0 %2770
      %2772 = vrot.lane.b32.xlu0 %v2698, 32
      %v2773 = vpop.permute.xlu0 %2772
      %2774 = vrot.lane.b32.xlu0 %v2699, 32
      %v2775 = vpop.permute.xlu0 %2774
      %2776 = vrot.lane.b32.xlu0 %v2700, 32
      %v2777 = vpop.permute.xlu0 %2776
      %2778 = vrot.lane.b32.xlu0 %v2701, 32
      %v2779 = vpop.permute.xlu0 %2778
      %2780 = vrot.lane.b32.xlu0 %v2702, 32
      %v2781 = vpop.permute.xlu0 %2780
      %2782 = vrot.lane.b32.xlu0 %v2703, 32
      %v2783 = vpop.permute.xlu0 %2782
      %2784 = vrot.lane.b32.xlu0 %v2704, 32
      %v2785 = vpop.permute.xlu0 %2784
      %2786 = vrot.lane.b32.xlu0 %v2705, 32
      %v2787 = vpop.permute.xlu0 %2786
      %2788 = vrot.lane.b32.xlu0 %v2706, 32
      %v2789 = vpop.permute.xlu0 %2788
      %2790 = vrot.lane.b32.xlu0 %v2707, 32
      %v2791 = vpop.permute.xlu0 %2790
      %v2792 = vsel %vm536, %v2737, %v2739
      %v2793 = vsel %vm536, %v2739, %v2741
      %v2794 = vsel %vm536, %v2741, %v2743
      %v2795 = vsel %vm536, %v2743, %v2745
      %v2796 = vsel %vm536, %v2745, %v2747
      %v2797 = vsel %vm536, %v2747, %v2749
      %v2798 = vsel %vm536, %v2749, %v2751
      %v2799 = vsel %vm536, %v2751, %v2753
      %v2800 = vsel %vm536, %v2753, %v2755
      %v2801 = vsel %vm536, %v2755, %v2757
      %v2802 = vsel %vm536, %v2757, %v2759
      %v2803 = vsel %vm536, %v2759, %v2761
      %v2804 = vsel %vm536, %v2761, %v2763
      %v2805 = vsel %vm536, %v2765, %v2767
      %v2806 = vsel %vm536, %v2767, %v2769
      %v2807 = vsel %vm536, %v2769, %v2771
      %v2808 = vsel %vm536, %v2771, %v2773
      %v2809 = vsel %vm536, %v2773, %v2775
      %v2810 = vsel %vm536, %v2775, %v2777
      %v2811 = vsel %vm536, %v2777, %v2779
      %v2812 = vsel %vm536, %v2779, %v2781
      %v2813 = vsel %vm536, %v2781, %v2783
      %v2814 = vsel %vm536, %v2783, %v2785
      %v2815 = vsel %vm536, %v2785, %v2787
      %v2816 = vsel %vm536, %v2787, %v2789
      %v2817 = vsel %vm536, %v2789, %v2791
      %v2844 = vmax.f32 %v2680, %v2792
      %v2845 = vmax.f32 %v2681, %v2793
      %v2846 = vmax.f32 %v2682, %v2794
      %v2847 = vmax.f32 %v2683, %v2795
      %v2848 = vmax.f32 %v2684, %v2796
      %v2849 = vmax.f32 %v2685, %v2797
      %v2850 = vmax.f32 %v2686, %v2798
      %v2851 = vmax.f32 %v2687, %v2799
      %v2852 = vmax.f32 %v2688, %v2800
      %v2853 = vmax.f32 %v2689, %v2801
      %v2854 = vmax.f32 %v2690, %v2802
      %v2855 = vmax.f32 %v2691, %v2803
      %v2856 = vmax.f32 %v2692, %v2804
      %v2857 = vmax.f32 %v2694, %v2805
      %v2858 = vmax.f32 %v2695, %v2806
      %v2859 = vmax.f32 %v2696, %v2807
      %v2860 = vmax.f32 %v2697, %v2808
      %v2861 = vmax.f32 %v2698, %v2809
      %v2862 = vmax.f32 %v2699, %v2810
      %v2863 = vmax.f32 %v2700, %v2811
      %v2864 = vmax.f32 %v2701, %v2812
      %v2865 = vmax.f32 %v2702, %v2813
      %v2866 = vmax.f32 %v2703, %v2814
      %v2867 = vmax.f32 %v2704, %v2815
      %v2868 = vmax.f32 %v2705, %v2816
      %v2869 = vmax.f32 %v2706, %v2817
      %v2870 = vpack.c.bf16 %v2857, %v2844
      %v2871 = vpack.c.bf16 %v2858, %v2845
      %v2872 = vpack.c.bf16 %v2859, %v2846
      %v2873 = vpack.c.bf16 %v2860, %v2847
      %v2874 = vpack.c.bf16 %v2861, %v2848
      %v2875 = vpack.c.bf16 %v2862, %v2849
      %v2876 = vpack.c.bf16 %v2863, %v2850
      %v2877 = vpack.c.bf16 %v2864, %v2851
      %v2878 = vpack.c.bf16 %v2865, %v2852
      %v2879 = vpack.c.bf16 %v2866, %v2853
      %v2880 = vpack.c.bf16 %v2867, %v2854
      %v2881 = vpack.c.bf16 %v2868, %v2855
      %v2882 = vpack.c.bf16 %v2869, %v2856
      %v2883 = vld [vmem:[%s3] sm:$0xf]
      %v2884 = vld [vmem:[%s3 + $0x4] sm:$0xf]
      %v2885 = vld [vmem:[%s3 + $0x8] sm:$0xf]
      %v2886 = vld [vmem:[%s3 + $0xc] sm:$0xf]
      %v2887 = vld [vmem:[%s3 + $0x10] sm:$0xf]
      %v2888 = vld [vmem:[%s3 + $0x14] sm:$0xf]
      %v2889 = vld [vmem:[%s3 + $0x18] sm:$0xf]
      %v2890 = vld [vmem:[%s3 + $0x1c] sm:$0xf]
      %v2891 = vld [vmem:[%s3 + $0x20] sm:$0xf]
      %v2892 = vld [vmem:[%s3 + $0x24] sm:$0xf]
      %v2893 = vld [vmem:[%s3 + $0x28] sm:$0xf]
      %v2894 = vld [vmem:[%s3 + $0x2c] sm:$0xf]
      %v2895 = vld [vmem:[%s3 + $0x30] sm:$0xf]
      %v2896 = vld [vmem:[%s3 + $0x34] sm:$0xf]
      %v2897 = vld [vmem:[%s3 + $0x38] sm:$0xf]
      %v2898 = vld [vmem:[%s3 + $0x3c] sm:$0xf]
      %v2899 = vld [vmem:[%s3 + $0x40] sm:$0xf]
      %v2900 = vld [vmem:[%s3 + $0x44] sm:$0xf]
      %v2901 = vld [vmem:[%s3 + $0x48] sm:$0xf]
      %v2902 = vld [vmem:[%s3 + $0x4c] sm:$0xf]
      %v2903 = vld [vmem:[%s3 + $0x50] sm:$0xf]
      %v2904 = vld [vmem:[%s3 + $0x54] sm:$0xf]
      %v2905 = vld [vmem:[%s3 + $0x58] sm:$0xf]
      %v2906 = vld [vmem:[%s3 + $0x5c] sm:$0xf]
      %v2907 = vld [vmem:[%s3 + $0x60] sm:$0xf]
      %v2908 = vld [vmem:[%s3 + $0x64] sm:$0xf]
      %v2909 = vld [vmem:[%s3 + $0x68] sm:$0xf]
      %v2910 = vld [vmem:[%s3 + $0x6c] sm:$0xf]
      %v2911 = vld [vmem:[%s3 + $0x70] sm:$0xf]
      %v2912 = vld [vmem:[%s3 + $0x74] sm:$0xf]
      %v2913 = vld [vmem:[%s3 + $0x78] sm:$0xf]
      %v2914 = vld [vmem:[%s3 + $0x7c] sm:$0xf]
      %v2915 = vld [vmem:[%s3 + $0x80] sm:$0xf]
      %v2916 = vld [vmem:[%s3 + $0x84] sm:$0xf]
      %v2917 = vld [vmem:[%s3 + $0x88] sm:$0xf]
      %v2918 = vld [vmem:[%s3 + $0x8c] sm:$0xf]
      %v2919 = vld [vmem:[%s3 + $0x90] sm:$0xf]
      %v2920 = vld [vmem:[%s3 + $0x94] sm:$0xf]
      %v2921 = vld [vmem:[%s3 + $0x98] sm:$0xf]
      %v2922 = vld [vmem:[%s3 + $0x9c] sm:$0xf]
      %v2923 = vld [vmem:[%s3 + $0xa0] sm:$0xf]
      %v2924 = vld [vmem:[%s3 + $0xa4] sm:$0xf]
      %v2925 = vld [vmem:[%s3 + $0xa8] sm:$0xf]
      %v2926 = vld [vmem:[%s3 + $0xac] sm:$0xf]
      %v2927 = vld [vmem:[%s3 + $0xb0] sm:$0xf]
      %v2928 = vld [vmem:[%s3 + $0xb4] sm:$0xf]
      %v2929 = vld [vmem:[%s3 + $0xb8] sm:$0xf]
      %v2930 = vld [vmem:[%s3 + $0xbc] sm:$0xf]
      %v2931 = vld [vmem:[%s3 + $0xc0] sm:$0xf]
      %v2932 = vld [vmem:[%s3 + $0xc4] sm:$0xf]
      %v2933 = vld [vmem:[%s3 + $0xc8] sm:$0xf]
      %v2934 = vld [vmem:[%s3 + $0xcc] sm:$0xf]
      %v2935 = vld [vmem:[%s3 + $0xd0] sm:$0xf]
      %v2936 = vld [vmem:[%s3 + $0xd4] sm:$0xf]
      %v2937 = vld [vmem:[%s3 + $0xd8] sm:$0xf]
      %v2938 = vld [vmem:[%s3 + $0xdc] sm:$0xf]
      %v2939 = vld [vmem:[%s3 + $0xe0] sm:$0xf]
      %v2940 = vld [vmem:[%s3 + $0xe4] sm:$0xf]
      %v2941 = vld [vmem:[%s3 + $0xe8] sm:$0xf]
      %v2942 = vld [vmem:[%s3 + $0xec] sm:$0xf]
      %v2943 = vld [vmem:[%s3 + $0xf0] sm:$0xf]
      %v2944 = vld [vmem:[%s3 + $0xf4] sm:$0xf]
      %v2945 = vld [vmem:[%s3 + $0xf8] sm:$0xf]
      %v2946 = vld [vmem:[%s3 + $0xfc] sm:$0xf]
      %v2947 = vld [vmem:[%s3 + $0x100] sm:$0xf]
      %v2948 = vld [vmem:[%s3 + $0x104] sm:$0xf]
      %v2949 = vld [vmem:[%s3 + $0x108] sm:$0xf]
      %v2950 = vld [vmem:[%s3 + $0x10c] sm:$0xf]
      %v2951 = vld [vmem:[%s3 + $0x110] sm:$0xf]
      %v2952 = vld [vmem:[%s3 + $0x114] sm:$0xf]
      %v2953 = vld [vmem:[%s3 + $0x118] sm:$0xf]
      %v2954 = vld [vmem:[%s3 + $0x11c] sm:$0xf]
      %v2955 = vld [vmem:[%s3 + $0x120] sm:$0xf]
      %v2956 = vld [vmem:[%s3 + $0x124] sm:$0xf]
      %v2957 = vld [vmem:[%s3 + $0x128] sm:$0xf]
      %v2958 = vld [vmem:[%s3 + $0x12c] sm:$0xf]
      %v2959 = vld [vmem:[%s3 + $0x130] sm:$0xf]
      %v2960 = vld [vmem:[%s3 + $0x134] sm:$0xf]
      %v2961 = vld [vmem:[%s3 + $0x138] sm:$0xf]
      %v2962 = vld [vmem:[%s3 + $0x13c] sm:$0xf]
      %v2963 = vld [vmem:[%s3 + $0x140] sm:$0xf]
      %v2964 = vld [vmem:[%s3 + $0x144] sm:$0xf]
      %v2965 = vld [vmem:[%s3 + $0x148] sm:$0xf]
      %v2966 = vld [vmem:[%s3 + $0x14c] sm:$0xf]
      %v2967 = vld [vmem:[%s3 + $0x150] sm:$0xf]
      %v2968 = vld [vmem:[%s3 + $0x154] sm:$0xf]
      %v2969 = vld [vmem:[%s3 + $0x158] sm:$0xf]
      %v2970 = vld [vmem:[%s3 + $0x15c] sm:$0xf]
      %v2971 = vld [vmem:[%s3 + $0x160] sm:$0xf]
      %v2972 = vld [vmem:[%s3 + $0x164] sm:$0xf]
      %v2973 = vld [vmem:[%s3 + $0x168] sm:$0xf]
      %v2974 = vld [vmem:[%s3 + $0x16c] sm:$0xf]
      %v2975 = vld [vmem:[%s3 + $0x170] sm:$0xf]
      %v2976 = vld [vmem:[%s3 + $0x174] sm:$0xf]
      %v2977 = vld [vmem:[%s3 + $0x178] sm:$0xf]
      %v2978 = vld [vmem:[%s3 + $0x17c] sm:$0xf]
      %v2979 = vld [vmem:[%s3 + $0x180] sm:$0xf]
      %v2980 = vld [vmem:[%s3 + $0x184] sm:$0xf]
      %v2981 = vld [vmem:[%s3 + $0x188] sm:$0xf]
      %v2982 = vld [vmem:[%s3 + $0x18c] sm:$0xf]
      %v2983 = vld [vmem:[%s3 + $0x190] sm:$0xf]
      %v2984 = vld [vmem:[%s3 + $0x194] sm:$0xf]
      %v2985 = vld [vmem:[%s3 + $0x198] sm:$0xf]
      %v2986 = vld [vmem:[%s3 + $0x19c] sm:$0xf]
      %v2987 = vld [vmem:[%s3 + $0x1a0] sm:$0xf]
      %v2988 = vld [vmem:[%s3 + $0x1a4] sm:$0xf]
      %v2989 = vld [vmem:[%s3 + $0x1a8] sm:$0xf]
      %v2990 = vld [vmem:[%s3 + $0x1ac] sm:$0xf]
      %v2991 = vld [vmem:[%s3 + $0x1b0] sm:$0xf]
      %v2992 = vld [vmem:[%s3 + $0x1b4] sm:$0xf]
      %v2993 = vld [vmem:[%s3 + $0x1b8] sm:$0xf]
      %v2994 = vld [vmem:[%s3 + $0x1bc] sm:$0xf]
      %v2995 = vld [vmem:[%s3 + $0x1c0] sm:$0xf]
      %v2996 = vld [vmem:[%s3 + $0x1c4] sm:$0xf]
      %v2997 = vld [vmem:[%s3 + $0x1c8] sm:$0xf]
      %v2998 = vld [vmem:[%s3 + $0x1cc] sm:$0xf]
      %v2999 = vld [vmem:[%s3 + $0x1d0] sm:$0xf]
      %v3000 = vld [vmem:[%s3 + $0x1d4] sm:$0xf]
      %v3001 = vld [vmem:[%s3 + $0x1d8] sm:$0xf]
      %v3002 = vld [vmem:[%s3 + $0x1dc] sm:$0xf]
      %v3003 = vld [vmem:[%s3 + $0x1e0] sm:$0xf]
      %v3004 = vld [vmem:[%s3 + $0x1e4] sm:$0xf]
      %v3005 = vld [vmem:[%s3 + $0x1e8] sm:$0xf]
      %v3006 = vld [vmem:[%s3 + $0x1ec] sm:$0xf]
      %v3007 = vld [vmem:[%s3 + $0x1f0] sm:$0xf]
      %v3008 = vld [vmem:[%s3 + $0x1f4] sm:$0xf]
      %v3009 = vld [vmem:[%s3 + $0x1f8] sm:$0xf]
      %v3010 = vld [vmem:[%s3 + $0x1fc] sm:$0xf]
      %v3011 = vld [vmem:[%s3 + $0x200] sm:$0xf]
      %v3012 = vld [vmem:[%s3 + $0x204] sm:$0xf]
      %v3013 = vld [vmem:[%s3 + $0x208] sm:$0xf]
      %v3014 = vld [vmem:[%s3 + $0x20c] sm:$0xf]
      %v3015 = vld [vmem:[%s3 + $0x210] sm:$0xf]
      %v3016 = vld [vmem:[%s3 + $0x214] sm:$0xf]
      %v3017 = vld [vmem:[%s3 + $0x218] sm:$0xf]
      %v3018 = vld [vmem:[%s3 + $0x21c] sm:$0xf]
      %v3019 = vld [vmem:[%s3 + $0x220] sm:$0xf]
      %v3020 = vld [vmem:[%s3 + $0x224] sm:$0xf]
      %v3021 = vld [vmem:[%s3 + $0x228] sm:$0xf]
      %v3022 = vld [vmem:[%s3 + $0x22c] sm:$0xf]
      %v3023 = vld [vmem:[%s3 + $0x230] sm:$0xf]
      %v3024 = vld [vmem:[%s3 + $0x234] sm:$0xf]
      %v3025 = vld [vmem:[%s3 + $0x238] sm:$0xf]
      %v3026 = vld [vmem:[%s3 + $0x23c] sm:$0xf]
      %v3027 = vld [vmem:[%s3 + $0x240] sm:$0xf]
      %v3028 = vld [vmem:[%s3 + $0x244] sm:$0xf]
      %v3029 = vld [vmem:[%s3 + $0x248] sm:$0xf]
      %v3030 = vld [vmem:[%s3 + $0x24c] sm:$0xf]
      %v3031 = vld [vmem:[%s3 + $0x250] sm:$0xf]
      %v3032 = vld [vmem:[%s3 + $0x254] sm:$0xf]
      %v3033 = vld [vmem:[%s3 + $0x258] sm:$0xf]
      %v3034 = vld [vmem:[%s3 + $0x25c] sm:$0xf]
      %v3035 = vld [vmem:[%s3 + $0x260] sm:$0xf]
      %v3036 = vld [vmem:[%s3 + $0x264] sm:$0xf]
      %v3037 = vld [vmem:[%s3 + $0x268] sm:$0xf]
      %v3038 = vld [vmem:[%s3 + $0x26c] sm:$0xf]
      %v3039 = vld [vmem:[%s3 + $0x270] sm:$0xf]
      %v3040 = vld [vmem:[%s3 + $0x274] sm:$0xf]
      %v3041 = vld [vmem:[%s3 + $0x278] sm:$0xf]
      %v3042 = vld [vmem:[%s3 + $0x27c] sm:$0xf]
      %v3043 = vld [vmem:[%s3 + $0x280] sm:$0xf]
      %v3044 = vld [vmem:[%s3 + $0x284] sm:$0xf]
      %v3045 = vld [vmem:[%s3 + $0x288] sm:$0xf]
      %v3046 = vld [vmem:[%s3 + $0x28c] sm:$0xf]
      %v3047 = vld [vmem:[%s3 + $0x290] sm:$0xf]
      %v3048 = vld [vmem:[%s3 + $0x294] sm:$0xf]
      %v3049 = vld [vmem:[%s3 + $0x298] sm:$0xf]
      %v3050 = vld [vmem:[%s3 + $0x29c] sm:$0xf]
      %v3051 = vld [vmem:[%s3 + $0x2a0] sm:$0xf]
      %v3052 = vld [vmem:[%s3 + $0x2a4] sm:$0xf]
      %v3053 = vld [vmem:[%s3 + $0x2a8] sm:$0xf]
      %v3054 = vld [vmem:[%s3 + $0x2ac] sm:$0xf]
      %v3055 = vld [vmem:[%s3 + $0x2b0] sm:$0xf]
      %v3056 = vld [vmem:[%s3 + $0x2b4] sm:$0xf]
      %v3057 = vld [vmem:[%s3 + $0x2b8] sm:$0xf]
      %v3058 = vld [vmem:[%s3 + $0x2bc] sm:$0xf]
      %v3059 = vld [vmem:[%s3 + $0x2c0] sm:$0xf]
      %v3060 = vld [vmem:[%s3 + $0x2c4] sm:$0xf]
      %v3061 = vld [vmem:[%s3 + $0x2c8] sm:$0xf]
      %v3062 = vld [vmem:[%s3 + $0x2cc] sm:$0xf]
      %v3063 = vld [vmem:[%s3 + $0x2d0] sm:$0xf]
      %v3064 = vld [vmem:[%s3 + $0x2d4] sm:$0xf]
      %v3065 = vld [vmem:[%s3 + $0x2d8] sm:$0xf]
      %v3066 = vld [vmem:[%s3 + $0x2dc] sm:$0xf]
      %v3067 = vld [vmem:[%s3 + $0x2e0] sm:$0xf]
      %v3068 = vld [vmem:[%s3 + $0x2e4] sm:$0xf]
      %v3069 = vld [vmem:[%s3 + $0x2e8] sm:$0xf]
      %v3070 = vld [vmem:[%s3 + $0x2ec] sm:$0xf]
      %v3071 = vld [vmem:[%s3 + $0x2f0] sm:$0xf]
      %v3072 = vld [vmem:[%s3 + $0x2f4] sm:$0xf]
      %v3073 = vld [vmem:[%s3 + $0x2f8] sm:$0xf]
      %v3074 = vld [vmem:[%s3 + $0x2fc] sm:$0xf]
      %v3075 = vld [vmem:[%s3 + $0x300] sm:$0xf]
      %v3076 = vld [vmem:[%s3 + $0x304] sm:$0xf]
      %v3077 = vld [vmem:[%s3 + $0x308] sm:$0xf]
      %v3078 = vld [vmem:[%s3 + $0x30c] sm:$0xf]
      %v3079 = vld [vmem:[%s3 + $0x310] sm:$0xf]
      %v3080 = vld [vmem:[%s3 + $0x314] sm:$0xf]
      %v3081 = vld [vmem:[%s3 + $0x318] sm:$0xf]
      %v3082 = vld [vmem:[%s3 + $0x31c] sm:$0xf]
      %v3083 = vld [vmem:[%s3 + $0x320] sm:$0xf]
      %v3084 = vld [vmem:[%s3 + $0x324] sm:$0xf]
      %v3085 = vld [vmem:[%s3 + $0x328] sm:$0xf]
      %v3086 = vld [vmem:[%s3 + $0x32c] sm:$0xf]
      %v3087 = vld [vmem:[%s3 + $0x330] sm:$0xf]
      %v3088 = vld [vmem:[%s3 + $0x334] sm:$0xf]
      %v3089 = vld [vmem:[%s3 + $0x338] sm:$0xf]
      %v3090 = vld [vmem:[%s3 + $0x33c] sm:$0xf]
      %v3299 = vunpack.c.l.b16 %v2883
      %v3300 = vunpack.c.l.b16 %v2884
      %v3301 = vunpack.c.l.b16 %v2885
      %v3302 = vunpack.c.l.b16 %v2886
      %v3303 = vunpack.c.l.b16 %v2887
      %v3304 = vunpack.c.l.b16 %v2888
      %v3305 = vunpack.c.l.b16 %v2889
      %v3306 = vunpack.c.l.b16 %v2890
      %v3307 = vunpack.c.l.b16 %v2891
      %v3308 = vunpack.c.l.b16 %v2892
      %v3309 = vunpack.c.l.b16 %v2893
      %v3310 = vunpack.c.l.b16 %v2894
      %v3311 = vunpack.c.l.b16 %v2895
      %v3312 = vunpack.c.l.b16 %v2896
      %v3313 = vunpack.c.l.b16 %v2897
      %v3314 = vunpack.c.l.b16 %v2898
      %v3315 = vunpack.c.l.b16 %v2899
      %v3316 = vunpack.c.l.b16 %v2900
      %v3317 = vunpack.c.l.b16 %v2901
      %v3318 = vunpack.c.l.b16 %v2902
      %v3319 = vunpack.c.l.b16 %v2903
      %v3320 = vunpack.c.l.b16 %v2904
      %v3321 = vunpack.c.l.b16 %v2905
      %v3322 = vunpack.c.l.b16 %v2906
      %v3323 = vunpack.c.l.b16 %v2907
      %v3324 = vunpack.c.l.b16 %v2908
      %v3325 = vunpack.c.l.b16 %v2909
      %v3326 = vunpack.c.l.b16 %v2910
      %v3327 = vunpack.c.l.b16 %v2911
      %v3328 = vunpack.c.l.b16 %v2912
      %v3329 = vunpack.c.l.b16 %v2913
      %v3330 = vunpack.c.l.b16 %v2914
      %v3331 = vunpack.c.l.b16 %v2915
      %v3332 = vunpack.c.l.b16 %v2916
      %v3333 = vunpack.c.l.b16 %v2917
      %v3334 = vunpack.c.l.b16 %v2918
      %v3335 = vunpack.c.l.b16 %v2919
      %v3336 = vunpack.c.l.b16 %v2920
      %v3337 = vunpack.c.l.b16 %v2921
      %v3338 = vunpack.c.l.b16 %v2922
      %v3339 = vunpack.c.l.b16 %v2923
      %v3340 = vunpack.c.l.b16 %v2924
      %v3341 = vunpack.c.l.b16 %v2925
      %v3342 = vunpack.c.l.b16 %v2926
      %v3343 = vunpack.c.l.b16 %v2927
      %v3344 = vunpack.c.l.b16 %v2928
      %v3345 = vunpack.c.l.b16 %v2929
      %v3346 = vunpack.c.l.b16 %v2930
      %v3347 = vunpack.c.l.b16 %v2931
      %v3348 = vunpack.c.l.b16 %v2932
      %v3349 = vunpack.c.l.b16 %v2933
      %v3350 = vunpack.c.l.b16 %v2934
      %v3351 = vunpack.c.l.b16 %v2935
      %v3352 = vunpack.c.l.b16 %v2936
      %v3353 = vunpack.c.l.b16 %v2937
      %v3354 = vunpack.c.l.b16 %v2938
      %v3355 = vunpack.c.l.b16 %v2939
      %v3356 = vunpack.c.l.b16 %v2940
      %v3357 = vunpack.c.l.b16 %v2941
      %v3358 = vunpack.c.l.b16 %v2942
      %v3359 = vunpack.c.l.b16 %v2943
      %v3360 = vunpack.c.l.b16 %v2944
      %v3361 = vunpack.c.l.b16 %v2945
      %v3362 = vunpack.c.l.b16 %v2946
      %v3363 = vunpack.c.l.b16 %v2947
      %v3364 = vunpack.c.l.b16 %v2948
      %v3365 = vunpack.c.l.b16 %v2949
      %v3366 = vunpack.c.l.b16 %v2950
      %v3367 = vunpack.c.l.b16 %v2951
      %v3368 = vunpack.c.l.b16 %v2952
      %v3369 = vunpack.c.l.b16 %v2953
      %v3370 = vunpack.c.l.b16 %v2954
      %v3371 = vunpack.c.l.b16 %v2955
      %v3372 = vunpack.c.l.b16 %v2956
      %v3373 = vunpack.c.l.b16 %v2957
      %v3374 = vunpack.c.l.b16 %v2958
      %v3375 = vunpack.c.l.b16 %v2959
      %v3376 = vunpack.c.l.b16 %v2960
      %v3377 = vunpack.c.l.b16 %v2961
      %v3378 = vunpack.c.l.b16 %v2962
      %v3379 = vunpack.c.l.b16 %v2963
      %v3380 = vunpack.c.l.b16 %v2964
      %v3381 = vunpack.c.l.b16 %v2965
      %v3382 = vunpack.c.l.b16 %v2966
      %v3383 = vunpack.c.l.b16 %v2967
      %v3384 = vunpack.c.l.b16 %v2968
      %v3385 = vunpack.c.l.b16 %v2969
      %v3386 = vunpack.c.l.b16 %v2970
      %v3387 = vunpack.c.l.b16 %v2971
      %v3388 = vunpack.c.l.b16 %v2972
      %v3389 = vunpack.c.l.b16 %v2973
      %v3390 = vunpack.c.l.b16 %v2974
      %v3391 = vunpack.c.l.b16 %v2975
      %v3392 = vunpack.c.l.b16 %v2976
      %v3393 = vunpack.c.l.b16 %v2977
      %v3394 = vunpack.c.l.b16 %v2978
      %v3395 = vunpack.c.l.b16 %v2979
      %v3396 = vunpack.c.l.b16 %v2980
      %v3397 = vunpack.c.l.b16 %v2981
      %v3398 = vunpack.c.l.b16 %v2982
      %v3399 = vunpack.c.l.b16 %v2983
      %v3400 = vunpack.c.l.b16 %v2984
      %v3401 = vunpack.c.l.b16 %v2985
      %v3402 = vunpack.c.l.b16 %v2986
      %v3403 = vunpack.c.l.b16 %v2987
      %v3404 = vunpack.c.l.b16 %v2988
      %v3405 = vunpack.c.l.b16 %v2989
      %v3406 = vunpack.c.l.b16 %v2990
      %v3407 = vunpack.c.l.b16 %v2991
      %v3408 = vunpack.c.l.b16 %v2992
      %v3409 = vunpack.c.l.b16 %v2993
      %v3410 = vunpack.c.l.b16 %v2994
      %v3411 = vunpack.c.l.b16 %v2995
      %v3412 = vunpack.c.l.b16 %v2996
      %v3413 = vunpack.c.l.b16 %v2997
      %v3414 = vunpack.c.l.b16 %v2998
      %v3415 = vunpack.c.l.b16 %v2999
      %v3416 = vunpack.c.l.b16 %v3000
      %v3417 = vunpack.c.l.b16 %v3001
      %v3418 = vunpack.c.l.b16 %v3002
      %v3419 = vunpack.c.l.b16 %v3003
      %v3420 = vunpack.c.l.b16 %v3004
      %v3421 = vunpack.c.l.b16 %v3005
      %v3422 = vunpack.c.l.b16 %v3006
      %v3423 = vunpack.c.l.b16 %v3007
      %v3424 = vunpack.c.l.b16 %v3008
      %v3425 = vunpack.c.l.b16 %v3009
      %v3426 = vunpack.c.l.b16 %v3010
      %v3427 = vunpack.c.l.b16 %v3011
      %v3428 = vunpack.c.l.b16 %v3012
      %v3429 = vunpack.c.l.b16 %v3013
      %v3430 = vunpack.c.l.b16 %v3014
      %v3431 = vunpack.c.l.b16 %v3015
      %v3432 = vunpack.c.l.b16 %v3016
      %v3433 = vunpack.c.l.b16 %v3017
      %v3434 = vunpack.c.l.b16 %v3018
      %v3435 = vunpack.c.l.b16 %v3019
      %v3436 = vunpack.c.l.b16 %v3020
      %v3437 = vunpack.c.l.b16 %v3021
      %v3438 = vunpack.c.l.b16 %v3022
      %v3439 = vunpack.c.l.b16 %v3023
      %v3440 = vunpack.c.l.b16 %v3024
      %v3441 = vunpack.c.l.b16 %v3025
      %v3442 = vunpack.c.l.b16 %v3026
      %v3443 = vunpack.c.l.b16 %v3027
      %v3444 = vunpack.c.l.b16 %v3028
      %v3445 = vunpack.c.l.b16 %v3029
      %v3446 = vunpack.c.l.b16 %v3030
      %v3447 = vunpack.c.l.b16 %v3031
      %v3448 = vunpack.c.l.b16 %v3032
      %v3449 = vunpack.c.l.b16 %v3033
      %v3450 = vunpack.c.l.b16 %v3034
      %v3451 = vunpack.c.l.b16 %v3035
      %v3452 = vunpack.c.l.b16 %v3036
      %v3453 = vunpack.c.l.b16 %v3037
      %v3454 = vunpack.c.l.b16 %v3038
      %v3455 = vunpack.c.l.b16 %v3039
      %v3456 = vunpack.c.l.b16 %v3040
      %v3457 = vunpack.c.l.b16 %v3041
      %v3458 = vunpack.c.l.b16 %v3042
      %v3459 = vunpack.c.l.b16 %v3043
      %v3460 = vunpack.c.l.b16 %v3044
      %v3461 = vunpack.c.l.b16 %v3045
      %v3462 = vunpack.c.l.b16 %v3046
      %v3463 = vunpack.c.l.b16 %v3047
      %v3464 = vunpack.c.l.b16 %v3048
      %v3465 = vunpack.c.l.b16 %v3049
      %v3466 = vunpack.c.l.b16 %v3050
      %v3467 = vunpack.c.l.b16 %v3051
      %v3468 = vunpack.c.l.b16 %v3052
      %v3469 = vunpack.c.l.b16 %v3053
      %v3470 = vunpack.c.l.b16 %v3054
      %v3471 = vunpack.c.l.b16 %v3055
      %v3472 = vunpack.c.l.b16 %v3056
      %v3473 = vunpack.c.l.b16 %v3057
      %v3474 = vunpack.c.l.b16 %v3058
      %v3475 = vunpack.c.l.b16 %v3059
      %v3476 = vunpack.c.l.b16 %v3060
      %v3477 = vunpack.c.l.b16 %v3061
      %v3478 = vunpack.c.l.b16 %v3062
      %v3479 = vunpack.c.l.b16 %v3063
      %v3480 = vunpack.c.l.b16 %v3064
      %v3481 = vunpack.c.l.b16 %v3065
      %v3482 = vunpack.c.l.b16 %v3066
      %v3483 = vunpack.c.l.b16 %v3067
      %v3484 = vunpack.c.l.b16 %v3068
      %v3485 = vunpack.c.l.b16 %v3069
      %v3486 = vunpack.c.l.b16 %v3070
      %v3487 = vunpack.c.l.b16 %v3071
      %v3488 = vunpack.c.l.b16 %v3072
      %v3489 = vunpack.c.l.b16 %v3073
      %v3490 = vunpack.c.l.b16 %v3074
      %v3491 = vunpack.c.l.b16 %v3075
      %v3492 = vunpack.c.l.b16 %v3076
      %v3493 = vunpack.c.l.b16 %v3077
      %v3494 = vunpack.c.l.b16 %v3078
      %v3495 = vunpack.c.l.b16 %v3079
      %v3496 = vunpack.c.l.b16 %v3080
      %v3497 = vunpack.c.l.b16 %v3081
      %v3498 = vunpack.c.l.b16 %v3082
      %v3499 = vunpack.c.l.b16 %v3083
      %v3500 = vunpack.c.l.b16 %v3084
      %v3501 = vunpack.c.l.b16 %v3085
      %v3502 = vunpack.c.l.b16 %v3086
      %v3503 = vunpack.c.l.b16 %v3087
      %v3504 = vunpack.c.l.b16 %v3088
      %v3505 = vunpack.c.l.b16 %v3089
      %v3506 = vunpack.c.l.b16 %v3090
      %v3507 = vpack.c.b16 %v3300, %v3299
      %v3508 = vpack.c.b16 %v3302, %v3301
      %v3509 = vpack.c.b16 %v3304, %v3303
      %v3510 = vpack.c.b16 %v3306, %v3305
      %v3511 = vpack.c.b16 %v3308, %v3307
      %v3512 = vpack.c.b16 %v3310, %v3309
      %v3513 = vpack.c.b16 %v3312, %v3311
      %v3514 = vpack.c.b16 %v3314, %v3313
      %v3515 = vpack.c.b16 %v3316, %v3315
      %v3516 = vpack.c.b16 %v3318, %v3317
      %v3517 = vpack.c.b16 %v3320, %v3319
      %v3518 = vpack.c.b16 %v3322, %v3321
      %v3519 = vpack.c.b16 %v3324, %v3323
      %v3520 = vpack.c.b16 %v3326, %v3325
      %v3521 = vpack.c.b16 %v3328, %v3327
      %v3522 = vpack.c.b16 %v3330, %v3329
      %v3523 = vpack.c.b16 %v3332, %v3331
      %v3524 = vpack.c.b16 %v3334, %v3333
      %v3525 = vpack.c.b16 %v3336, %v3335
      %v3526 = vpack.c.b16 %v3338, %v3337
      %v3527 = vpack.c.b16 %v3340, %v3339
      %v3528 = vpack.c.b16 %v3342, %v3341
      %v3529 = vpack.c.b16 %v3344, %v3343
      %v3530 = vpack.c.b16 %v3346, %v3345
      %v3531 = vpack.c.b16 %v3348, %v3347
      %v3532 = vpack.c.b16 %v3350, %v3349
      %v3533 = vpack.c.b16 %v3352, %v3351
      %v3534 = vpack.c.b16 %v3354, %v3353
      %v3535 = vpack.c.b16 %v3356, %v3355
      %v3536 = vpack.c.b16 %v3358, %v3357
      %v3537 = vpack.c.b16 %v3360, %v3359
      %v3538 = vpack.c.b16 %v3362, %v3361
      %v3539 = vpack.c.b16 %v3364, %v3363
      %v3540 = vpack.c.b16 %v3366, %v3365
      %v3541 = vpack.c.b16 %v3368, %v3367
      %v3542 = vpack.c.b16 %v3370, %v3369
      %v3543 = vpack.c.b16 %v3372, %v3371
      %v3544 = vpack.c.b16 %v3374, %v3373
      %v3545 = vpack.c.b16 %v3376, %v3375
      %v3546 = vpack.c.b16 %v3378, %v3377
      %v3547 = vpack.c.b16 %v3380, %v3379
      %v3548 = vpack.c.b16 %v3382, %v3381
      %v3549 = vpack.c.b16 %v3384, %v3383
      %v3550 = vpack.c.b16 %v3386, %v3385
      %v3551 = vpack.c.b16 %v3388, %v3387
      %v3552 = vpack.c.b16 %v3390, %v3389
      %v3553 = vpack.c.b16 %v3392, %v3391
      %v3554 = vpack.c.b16 %v3394, %v3393
      %v3555 = vpack.c.b16 %v3396, %v3395
      %v3556 = vpack.c.b16 %v3398, %v3397
      %v3557 = vpack.c.b16 %v3400, %v3399
      %v3558 = vpack.c.b16 %v3402, %v3401
      %v3559 = vpack.c.b16 %v3404, %v3403
      %v3560 = vpack.c.b16 %v3406, %v3405
      %v3561 = vpack.c.b16 %v3408, %v3407
      %v3562 = vpack.c.b16 %v3410, %v3409
      %v3563 = vpack.c.b16 %v3412, %v3411
      %v3564 = vpack.c.b16 %v3414, %v3413
      %v3565 = vpack.c.b16 %v3416, %v3415
      %v3566 = vpack.c.b16 %v3418, %v3417
      %v3567 = vpack.c.b16 %v3420, %v3419
      %v3568 = vpack.c.b16 %v3422, %v3421
      %v3569 = vpack.c.b16 %v3424, %v3423
      %v3570 = vpack.c.b16 %v3426, %v3425
      %v3571 = vpack.c.b16 %v3428, %v3427
      %v3572 = vpack.c.b16 %v3430, %v3429
      %v3573 = vpack.c.b16 %v3432, %v3431
      %v3574 = vpack.c.b16 %v3434, %v3433
      %v3575 = vpack.c.b16 %v3436, %v3435
      %v3576 = vpack.c.b16 %v3438, %v3437
      %v3577 = vpack.c.b16 %v3440, %v3439
      %v3578 = vpack.c.b16 %v3442, %v3441
      %v3579 = vpack.c.b16 %v3444, %v3443
      %v3580 = vpack.c.b16 %v3446, %v3445
      %v3581 = vpack.c.b16 %v3448, %v3447
      %v3582 = vpack.c.b16 %v3450, %v3449
      %v3583 = vpack.c.b16 %v3452, %v3451
      %v3584 = vpack.c.b16 %v3454, %v3453
      %v3585 = vpack.c.b16 %v3456, %v3455
      %v3586 = vpack.c.b16 %v3458, %v3457
      %v3587 = vpack.c.b16 %v3460, %v3459
      %v3588 = vpack.c.b16 %v3462, %v3461
      %v3589 = vpack.c.b16 %v3464, %v3463
      %v3590 = vpack.c.b16 %v3466, %v3465
      %v3591 = vpack.c.b16 %v3468, %v3467
      %v3592 = vpack.c.b16 %v3470, %v3469
      %v3593 = vpack.c.b16 %v3472, %v3471
      %v3594 = vpack.c.b16 %v3474, %v3473
      %v3595 = vpack.c.b16 %v3476, %v3475
      %v3596 = vpack.c.b16 %v3478, %v3477
      %v3597 = vpack.c.b16 %v3480, %v3479
      %v3598 = vpack.c.b16 %v3482, %v3481
      %v3599 = vpack.c.b16 %v3484, %v3483
      %v3600 = vpack.c.b16 %v3486, %v3485
      %v3601 = vpack.c.b16 %v3488, %v3487
      %v3602 = vpack.c.b16 %v3490, %v3489
      %v3603 = vpack.c.b16 %v3492, %v3491
      %v3604 = vpack.c.b16 %v3494, %v3493
      %v3605 = vpack.c.b16 %v3496, %v3495
      %v3606 = vpack.c.b16 %v3498, %v3497
      %v3607 = vpack.c.b16 %v3500, %v3499
      %v3608 = vpack.c.b16 %v3502, %v3501
      %v3609 = vpack.c.b16 %v3504, %v3503
      %v3610 = vpack.c.b16 %v3506, %v3505
      %3715 = vmatprep.subr.bf16.mxu0 0
      %3716 = vmatpush1.bf16.msra.mxu0 %v3507
      %3717 = vmatprep.subr.bf16.mxu0 0
      %3718 = vmatpush1.bf16.msra.mxu0 %v3508
      %3719 = vmatprep.subr.bf16.mxu0 0
      %3720 = vmatpush1.bf16.msra.mxu0 %v3509
      %3721 = vmatprep.subr.bf16.mxu0 0
      %3722 = vmatpush1.bf16.msra.mxu0 %v3510
      %3723 = vmatprep.subr.bf16.mxu0 0
      %3724 = vmatpush1.bf16.msra.mxu0 %v3511
      %3725 = vmatprep.subr.bf16.mxu0 0
      %3726 = vmatpush1.bf16.msra.mxu0 %v3512
      %3727 = vmatprep.subr.bf16.mxu0 0
      %3728 = vmatpush1.bf16.msra.mxu0 %v3513
      %3729 = vmatprep.subr.bf16.mxu0 0
      %3730 = vmatpush1.bf16.msra.mxu0 %v3514
      %3731 = vmatprep.subr.bf16.mxu0 0
      %3732 = vmatpush1.bf16.msra.mxu0 %v3515
      %3733 = vmatprep.subr.bf16.mxu0 0
      %3734 = vmatpush1.bf16.msra.mxu0 %v3516
      %3735 = vmatprep.subr.bf16.mxu0 0
      %3736 = vmatpush1.bf16.msra.mxu0 %v3517
      %3737 = vmatprep.subr.bf16.mxu0 0
      %3738 = vmatpush1.bf16.msra.mxu0 %v3518
      %3739 = vmatprep.subr.bf16.mxu0 0
      %3740 = vmatpush1.bf16.msra.mxu0 %v3519
      %3741 = vmatprep.subr.bf16.mxu0 0
      %3742 = vmatpush1.bf16.msra.mxu0 %v3520
      %3743 = vmatprep.subr.bf16.mxu0 0
      %3744 = vmatpush1.bf16.msra.mxu0 %v3521
      %3745 = vmatprep.subr.bf16.mxu0 0
      %3746 = vmatpush1.bf16.msra.mxu0 %v3522
      %3747 = vmatprep.mubr.bf16.mxu0 %v2871
      %3748 = vmatmul.mubr.bf16.gmra.mrb[0].mxu0 %v2870
      %v3749 = vpop.f32.mrb[0].mxu0
      %v3750 = vadd.f32 0.0, %v3749
      %v3751 = vpop.f32.mrb[0].mxu0
      %v3752 = vpop.f32.mrb[0].mxu0
      %v3753 = vadd.f32 0.0, %v3752
      %v3754 = vpop.f32.mrb[0].mxu0
      %3755 = vdwg.mxu0
      %3756 = vmatprep.subr.bf16.mxu0 0
      %3757 = vmatpush1.bf16.msra.mxu0 %v3523
      %3758 = vmatprep.subr.bf16.mxu0 0
      %3759 = vmatpush1.bf16.msra.mxu0 %v3524
      %3760 = vmatprep.subr.bf16.mxu0 0
      %3761 = vmatpush1.bf16.msra.mxu0 %v3525
      %3762 = vmatprep.subr.bf16.mxu0 0
      %3763 = vmatpush1.bf16.msra.mxu0 %v3526
      %3764 = vmatprep.subr.bf16.mxu0 0
      %3765 = vmatpush1.bf16.msra.mxu0 %v3527
      %3766 = vmatprep.subr.bf16.mxu0 0
      %3767 = vmatpush1.bf16.msra.mxu0 %v3528
      %3768 = vmatprep.subr.bf16.mxu0 0
      %3769 = vmatpush1.bf16.msra.mxu0 %v3529
      %3770 = vmatprep.subr.bf16.mxu0 0
      %3771 = vmatpush1.bf16.msra.mxu0 %v3530
      %3772 = vmatprep.subr.bf16.mxu0 0
      %3773 = vmatpush1.bf16.msra.mxu0 %v3531
      %3774 = vmatprep.subr.bf16.mxu0 0
      %3775 = vmatpush1.bf16.msra.mxu0 %v3532
      %3776 = vmatprep.subr.bf16.mxu0 0
      %3777 = vmatpush1.bf16.msra.mxu0 %v3533
      %3778 = vmatprep.subr.bf16.mxu0 0
      %3779 = vmatpush1.bf16.msra.mxu0 %v3534
      %3780 = vmatprep.subr.bf16.mxu0 0
      %3781 = vmatpush1.bf16.msra.mxu0 %v3535
      %3782 = vmatprep.subr.bf16.mxu0 0
      %3783 = vmatpush1.bf16.msra.mxu0 %v3536
      %3784 = vmatprep.subr.bf16.mxu0 0
      %3785 = vmatpush1.bf16.msra.mxu0 %v3537
      %3786 = vmatprep.subr.bf16.mxu0 0
      %3787 = vmatpush1.bf16.msra.mxu0 %v3538
      %3788 = vmatprep.mubr.bf16.mxu0 %v2873
      %3789 = vmatmul.mubr.bf16.gmra.mrb[0].mxu0 %v2872
      %v3790 = vpop.f32.mrb[0].mxu0
      %v3791 = vadd.f32 %v3750, %v3790
      %v3792 = vpop.f32.mrb[0].mxu0
      %v3793 = vpop.f32.mrb[0].mxu0
      %v3794 = vadd.f32 %v3753, %v3793
      %v3795 = vpop.f32.mrb[0].mxu0
      %3796 = vdwg.mxu0
      %3797 = vmatprep.subr.bf16.mxu0 0
      %3798 = vmatpush1.bf16.msra.mxu0 %v3539
      %3799 = vmatprep.subr.bf16.mxu0 0
      %3800 = vmatpush1.bf16.msra.mxu0 %v3540
      %3801 = vmatprep.subr.bf16.mxu0 0
      %3802 = vmatpush1.bf16.msra.mxu0 %v3541
      %3803 = vmatprep.subr.bf16.mxu0 0
      %3804 = vmatpush1.bf16.msra.mxu0 %v3542
      %3805 = vmatprep.subr.bf16.mxu0 0
      %3806 = vmatpush1.bf16.msra.mxu0 %v3543
      %3807 = vmatprep.subr.bf16.mxu0 0
      %3808 = vmatpush1.bf16.msra.mxu0 %v3544
      %3809 = vmatprep.subr.bf16.mxu0 0
      %3810 = vmatpush1.bf16.msra.mxu0 %v3545
      %3811 = vmatprep.subr.bf16.mxu0 0
      %3812 = vmatpush1.bf16.msra.mxu0 %v3546
      %3813 = vmatprep.subr.bf16.mxu0 0
      %3814 = vmatpush1.bf16.msra.mxu0 %v3547
      %3815 = vmatprep.subr.bf16.mxu0 0
      %3816 = vmatpush1.bf16.msra.mxu0 %v3548
      %3817 = vmatprep.subr.bf16.mxu0 0
      %3818 = vmatpush1.bf16.msra.mxu0 %v3549
      %3819 = vmatprep.subr.bf16.mxu0 0
      %3820 = vmatpush1.bf16.msra.mxu0 %v3550
      %3821 = vmatprep.subr.bf16.mxu0 0
      %3822 = vmatpush1.bf16.msra.mxu0 %v3551
      %3823 = vmatprep.subr.bf16.mxu0 0
      %3824 = vmatpush1.bf16.msra.mxu0 %v3552
      %3825 = vmatprep.subr.bf16.mxu0 0
      %3826 = vmatpush1.bf16.msra.mxu0 %v3553
      %3827 = vmatprep.subr.bf16.mxu0 0
      %3828 = vmatpush1.bf16.msra.mxu0 %v3554
      %3829 = vmatprep.mubr.bf16.mxu0 %v2875
      %3830 = vmatmul.mubr.bf16.gmra.mrb[0].mxu0 %v2874
      %v3831 = vpop.f32.mrb[0].mxu0
      %v3832 = vadd.f32 %v3791, %v3831
      %v3833 = vpop.f32.mrb[0].mxu0
      %v3834 = vpop.f32.mrb[0].mxu0
      %v3835 = vadd.f32 %v3794, %v3834
      %v3836 = vpop.f32.mrb[0].mxu0
      %3837 = vdwg.mxu0
      %3838 = vmatprep.subr.bf16.mxu0 0
      %3839 = vmatpush1.bf16.msra.mxu0 %v3555
      %3840 = vmatprep.subr.bf16.mxu0 0
      %3841 = vmatpush1.bf16.msra.mxu0 %v3556
      %3842 = vmatprep.subr.bf16.mxu0 0
      %3843 = vmatpush1.bf16.msra.mxu0 %v3557
      %3844 = vmatprep.subr.bf16.mxu0 0
      %3845 = vmatpush1.bf16.msra.mxu0 %v3558
      %3846 = vmatprep.subr.bf16.mxu0 0
      %3847 = vmatpush1.bf16.msra.mxu0 %v3559
      %3848 = vmatprep.subr.bf16.mxu0 0
      %3849 = vmatpush1.bf16.msra.mxu0 %v3560
      %3850 = vmatprep.subr.bf16.mxu0 0
      %3851 = vmatpush1.bf16.msra.mxu0 %v3561
      %3852 = vmatprep.subr.bf16.mxu0 0
      %3853 = vmatpush1.bf16.msra.mxu0 %v3562
      %3854 = vmatprep.subr.bf16.mxu0 0
      %3855 = vmatpush1.bf16.msra.mxu0 %v3563
      %3856 = vmatprep.subr.bf16.mxu0 0
      %3857 = vmatpush1.bf16.msra.mxu0 %v3564
      %3858 = vmatprep.subr.bf16.mxu0 0
      %3859 = vmatpush1.bf16.msra.mxu0 %v3565
      %3860 = vmatprep.subr.bf16.mxu0 0
      %3861 = vmatpush1.bf16.msra.mxu0 %v3566
      %3862 = vmatprep.subr.bf16.mxu0 0
      %3863 = vmatpush1.bf16.msra.mxu0 %v3567
      %3864 = vmatprep.subr.bf16.mxu0 0
      %3865 = vmatpush1.bf16.msra.mxu0 %v3568
      %3866 = vmatprep.subr.bf16.mxu0 0
      %3867 = vmatpush1.bf16.msra.mxu0 %v3569
      %3868 = vmatprep.subr.bf16.mxu0 0
      %3869 = vmatpush1.bf16.msra.mxu0 %v3570
      %3870 = vmatprep.mubr.bf16.mxu0 %v2877
      %3871 = vmatmul.mubr.bf16.gmra.mrb[0].mxu0 %v2876
      %v3872 = vpop.f32.mrb[0].mxu0
      %v3873 = vadd.f32 %v3832, %v3872
      %v3874 = vpop.f32.mrb[0].mxu0
      %v3875 = vpop.f32.mrb[0].mxu0
      %v3876 = vadd.f32 %v3835, %v3875
      %v3877 = vpop.f32.mrb[0].mxu0
      %3878 = vdwg.mxu0
      %3879 = vmatprep.subr.bf16.mxu0 0
      %3880 = vmatpush1.bf16.msra.mxu0 %v3571
      %3881 = vmatprep.subr.bf16.mxu0 0
      %3882 = vmatpush1.bf16.msra.mxu0 %v3572
      %3883 = vmatprep.subr.bf16.mxu0 0
      %3884 = vmatpush1.bf16.msra.mxu0 %v3573
      %3885 = vmatprep.subr.bf16.mxu0 0
      %3886 = vmatpush1.bf16.msra.mxu0 %v3574
      %3887 = vmatprep.subr.bf16.mxu0 0
      %3888 = vmatpush1.bf16.msra.mxu0 %v3575
      %3889 = vmatprep.subr.bf16.mxu0 0
      %3890 = vmatpush1.bf16.msra.mxu0 %v3576
      %3891 = vmatprep.subr.bf16.mxu0 0
      %3892 = vmatpush1.bf16.msra.mxu0 %v3577
      %3893 = vmatprep.subr.bf16.mxu0 0
      %3894 = vmatpush1.bf16.msra.mxu0 %v3578
      %3895 = vmatprep.subr.bf16.mxu0 0
      %3896 = vmatpush1.bf16.msra.mxu0 %v3579
      %3897 = vmatprep.subr.bf16.mxu0 0
      %3898 = vmatpush1.bf16.msra.mxu0 %v3580
      %3899 = vmatprep.subr.bf16.mxu0 0
      %3900 = vmatpush1.bf16.msra.mxu0 %v3581
      %3901 = vmatprep.subr.bf16.mxu0 0
      %3902 = vmatpush1.bf16.msra.mxu0 %v3582
      %3903 = vmatprep.subr.bf16.mxu0 0
      %3904 = vmatpush1.bf16.msra.mxu0 %v3583
      %3905 = vmatprep.subr.bf16.mxu0 0
      %3906 = vmatpush1.bf16.msra.mxu0 %v3584
      %3907 = vmatprep.subr.bf16.mxu0 0
      %3908 = vmatpush1.bf16.msra.mxu0 %v3585
      %3909 = vmatprep.subr.bf16.mxu0 0
      %3910 = vmatpush1.bf16.msra.mxu0 %v3586
      %3911 = vmatprep.mubr.bf16.mxu0 %v2879
      %3912 = vmatmul.mubr.bf16.gmra.mrb[0].mxu0 %v2878
      %v3913 = vpop.f32.mrb[0].mxu0
      %v3914 = vadd.f32 %v3873, %v3913
      %v3915 = vpop.f32.mrb[0].mxu0
      %v3916 = vpop.f32.mrb[0].mxu0
      %v3917 = vadd.f32 %v3876, %v3916
      %v3918 = vpop.f32.mrb[0].mxu0
      %3919 = vdwg.mxu0
      %3920 = vmatprep.subr.bf16.mxu0 0
      %3921 = vmatpush1.bf16.msra.mxu0 %v3587
      %3922 = vmatprep.subr.bf16.mxu0 0
      %3923 = vmatpush1.bf16.msra.mxu0 %v3588
      %3924 = vmatprep.subr.bf16.mxu0 0
      %3925 = vmatpush1.bf16.msra.mxu0 %v3589
      %3926 = vmatprep.subr.bf16.mxu0 0
      %3927 = vmatpush1.bf16.msra.mxu0 %v3590
      %3928 = vmatprep.subr.bf16.mxu0 0
      %3929 = vmatpush1.bf16.msra.mxu0 %v3591
      %3930 = vmatprep.subr.bf16.mxu0 0
      %3931 = vmatpush1.bf16.msra.mxu0 %v3592
      %3932 = vmatprep.subr.bf16.mxu0 0
      %3933 = vmatpush1.bf16.msra.mxu0 %v3593
      %3934 = vmatprep.subr.bf16.mxu0 0
      %3935 = vmatpush1.bf16.msra.mxu0 %v3594
      %3936 = vmatprep.subr.bf16.mxu0 0
      %3937 = vmatpush1.bf16.msra.mxu0 %v3595
      %3938 = vmatprep.subr.bf16.mxu0 0
      %3939 = vmatpush1.bf16.msra.mxu0 %v3596
      %3940 = vmatprep.subr.bf16.mxu0 0
      %3941 = vmatpush1.bf16.msra.mxu0 %v3597
      %3942 = vmatprep.subr.bf16.mxu0 0
      %3943 = vmatpush1.bf16.msra.mxu0 %v3598
      %3944 = vmatprep.subr.bf16.mxu0 0
      %3945 = vmatpush1.bf16.msra.mxu0 %v3599
      %3946 = vmatprep.subr.bf16.mxu0 0
      %3947 = vmatpush1.bf16.msra.mxu0 %v3600
      %3948 = vmatprep.subr.bf16.mxu0 0
      %3949 = vmatpush1.bf16.msra.mxu0 %v3601
      %3950 = vmatprep.subr.bf16.mxu0 0
      %3951 = vmatpush1.bf16.msra.mxu0 %v3602
      %3952 = vmatprep.mubr.bf16.mxu0 %v2881
      %3953 = vmatmul.mubr.bf16.gmra.mrb[0].mxu0 %v2880
      %v3954 = vpop.f32.mrb[0].mxu0
      %v3955 = vadd.f32 %v3914, %v3954
      %v3956 = vpop.f32.mrb[0].mxu0
      %v3957 = vpop.f32.mrb[0].mxu0
      %v3958 = vadd.f32 %v3917, %v3957
      %v3959 = vpop.f32.mrb[0].mxu0
      %3960 = vdwg.mxu0
      %3961 = vmatprep.subr.bf16.mxu0 0
      %3962 = vmatpush1.bf16.msra.mxu0 %v3603
      %3963 = vmatprep.subr.bf16.mxu0 0
      %3964 = vmatpush1.bf16.msra.mxu0 %v3604
      %3965 = vmatprep.subr.bf16.mxu0 0
      %3966 = vmatpush1.bf16.msra.mxu0 %v3605
      %3967 = vmatprep.subr.bf16.mxu0 0
      %3968 = vmatpush1.bf16.msra.mxu0 %v3606
      %3969 = vmatprep.subr.bf16.mxu0 0
      %3970 = vmatpush1.bf16.msra.mxu0 %v3607
      %3971 = vmatprep.subr.bf16.mxu0 0
      %3972 = vmatpush1.bf16.msra.mxu0 %v3608
      %3973 = vmatprep.subr.bf16.mxu0 0
      %3974 = vmatpush1.bf16.msra.mxu0 %v3609
      %3975 = vmatprep.subr.bf16.mxu0 0
      %3976 = vmatpush1.bf16.msra.mxu0 %v3610
      %3977 = vmatprep.subr.bf16.mxu0 0
      %3978 = vmatpush1.bf16.msra.mxu0 0
      %3979 = vmatprep.subr.bf16.mxu0 0
      %3980 = vmatpush1.bf16.msra.mxu0 0
      %3981 = vmatprep.subr.bf16.mxu0 0
      %3982 = vmatpush1.bf16.msra.mxu0 0
      %3983 = vmatprep.subr.bf16.mxu0 0
      %3984 = vmatpush1.bf16.msra.mxu0 0
      %3985 = vmatprep.subr.bf16.mxu0 0
      %3986 = vmatpush1.bf16.msra.mxu0 0
      %3987 = vmatprep.subr.bf16.mxu0 0
      %3988 = vmatpush1.bf16.msra.mxu0 0
      %3989 = vmatprep.subr.bf16.mxu0 0
      %3990 = vmatpush1.bf16.msra.mxu0 0
      %3991 = vmatprep.subr.bf16.mxu0 0
      %3992 = vmatpush1.bf16.msra.mxu0 0
      %3993 = vmatprep.mubr.bf16.mxu0 0
      %3994 = vmatmul.mubr.bf16.gmra.mrb[0].mxu0 %v2882
      %v3995 = vpop.f32.mrb[0].mxu0
      %v3996 = vadd.f32 %v3955, %v3995
      %v3997 = vpop.f32.mrb[0].mxu0
      %v3998 = vpop.f32.mrb[0].mxu0
      %v3999 = vadd.f32 %v3958, %v3998
      %v4000 = vpop.f32.mrb[0].mxu0
      %4001 = vdwg.mxu0
      %v4002 = vpack.c.bf16 %v3999, %v3996
      %v4004 = vunpack.c.l.b16 %v4002
      %v4005 = vunpack.c.h.b16 %v4002
      %v4006 = vpack.c.b16 %v4004, %v4004
      %v4007 = vpack.c.b16 %v4005, %v4005
      %4010 = vst [vmem:[%s197] sm:$0xf] %v4006
      %4011 = vst [vmem:[%s197 + $0x4] sm:$0xf] %v4007
      %p4012 = scmp.lt.s32.totalorder %s15, 1
      %s4013 = scalar_select %p4012, %s15, 1
      %s4014 = smul.addr %s4013, 2
      %s4015 = smul.addr %s4014, 4
      %s4016 = scalar_lea.vmem %s4, %s4015
      // Predicated region
      $region37: #{simple_convnet_forward.4} parent=35 // pred_check
        %p4017 = pneg %p122
      $region38: #{simple_convnet_forward.4} parent=35 // pred_check_branch
        %4019 = sbr.rel (%p4017) target = $region40
      $region39: #{simple_convnet_forward.4} parent=35 // pred_region
        _
      $region40: #{simple_convnet_forward.4} parent=35 // pred_fallthru
        _
    $region36: #{simple_convnet_forward.4} parent=5 // pred_fallthru
      _
    %p4020 = scmp.le.s32.totalorder 2, %s10
    // Predicated region
    $region41: #{simple_convnet_forward.4} parent=5 // pred_check
      %p4021 = pneg %p4020
    $region42: #{simple_convnet_forward.4} parent=5 // pred_check_branch
      %4023 = sbr.rel (%p4021) target = $region44
    $region43: #{simple_convnet_forward.4} parent=5 // pred_region
      %s4024 = ssub.s32 %s10, 2
      // Predicated region
      $region45: #{simple_convnet_forward.4} parent=43 // pred_check
        %p4025 = pneg %p128
      $region46: #{simple_convnet_forward.4} parent=43 // pred_check_branch
        %4027 = sbr.rel (%p4025) target = $region48
      $region47: #{simple_convnet_forward.4} parent=43 // pred_region
        %p4028 = scmp.lt.s32.totalorder %s16, 1
        %s4029 = scalar_select %p4028, %s16, 1
        %s4030 = smul.addr %s4029, 2
        %s4031 = smul.addr %s4030, 4
        %s4032 = scalar_lea.vmem %s4, %s4031
      $region48: #{simple_convnet_forward.4} parent=43 // pred_fallthru
        _
    $region44: #{simple_convnet_forward.4} parent=5 // pred_fallthru
      _
  $region6: #{simple_convnet_forward.4} parent=0 // loop_footer
    %s14 = sadd.s32 1, %s10
  $region7: #{simple_convnet_forward.4} parent=0 // loop_footer_branch
    %9 = sbr.rel target = $region3
  $region8: #{simple_convnet_forward.4} parent=0 // loop_exit
    _

</llo_original>
